<compile_context>
chip_gen: v7x
topology: tpu7x:2x2x1
jax: 0.10.0
libtpu: 0.0.40
codegen_flags: <defaults>
</compile_context>

<pallas_src>
import jax
import jax.numpy as jnp
from jax.experimental import pallas as pl
from jax.experimental.pallas import tpu as pltpu


def _round_up(x, m):
    return ((x + m - 1) // m) * m


def _compiler_params():
    return pltpu.CompilerParams(
        dimension_semantics=("parallel",),
        vmem_limit_bytes=24 * 1024 * 1024,
    )


def _choose_tile(M, tm_max, align):
    """Row tile (multiple of `align`) that divides the padded M exactly.

    Prefers two grid steps (v7x megacore) when that adds no padding."""
    Mp = _round_up(M, align)
    if Mp <= tm_max:
        if Mp % (2 * align) == 0:
            return Mp // 2, Mp          # grid=(2,)
        return Mp, Mp                   # grid=(1,)
    steps = -(-Mp // tm_max)
    tm = _round_up(-(-Mp // steps), align)
    return tm, tm * steps


# ----------------------------------------------------------------------------
# Pallas kernel 1: fused conv (single tall quadrant matmul) + bias + ReLU
#                  + 2x2 average pool
# ----------------------------------------------------------------------------
def _conv_relu_pool_kernel(x_ref, w_ref, b_ref, o_ref):
    # x_ref: (4, tm, K) bf16 quadrant patches; w_ref: (K, Npad) bf16;
    # b_ref: (1, Npad) f32; o_ref: (tm, Npad) bf16.
    q, tm, k = x_ref.shape
    n = w_ref.shape[1]
    x = x_ref[...].reshape(q * tm, k)                       # major-dim merge, no-op layout
    acc = jnp.dot(x, w_ref[...], preferred_element_type=jnp.float32)
    acc = jnp.maximum(acc + b_ref[...], 0.0)                # bias + ReLU per conv output
    acc = acc.reshape(q, tm, n)
    pooled = (acc[0] + acc[1] + acc[2] + acc[3]) * 0.25     # 2x2 avg pool on the VPU
    o_ref[...] = pooled.astype(o_ref.dtype)


# ----------------------------------------------------------------------------
# Pallas kernel 2: fused fc -> ReLU -> fc1 -> ReLU -> fc2
# ----------------------------------------------------------------------------
def _fc_chain_kernel(x_ref, w1_ref, b1_ref, w2_ref, b2_ref, w3_ref, b3_ref, o_ref):
    a = x_ref[...].astype(jnp.bfloat16)
    a = jnp.dot(a, w1_ref[...], preferred_element_type=jnp.float32) + b1_ref[...]
    a = jnp.maximum(a, 0.0).astype(jnp.bfloat16)
    a = jnp.dot(a, w2_ref[...], preferred_element_type=jnp.float32) + b2_ref[...]
    a = jnp.maximum(a, 0.0).astype(jnp.bfloat16)
    a = jnp.dot(a, w3_ref[...], preferred_element_type=jnp.float32) + b3_ref[...]
    o_ref[...] = a.astype(o_ref.dtype)


# ----------------------------------------------------------------------------
# Wrapper glue: quadrant im2col (static shifted/strided slices, bf16, no K pad)
# ----------------------------------------------------------------------------
def _im2col_quadrants(x_nhwc, k):
    """Returns (4, B*Hp*Wp, k*k*C) quadrant patch matrices + (Hp, Wp)."""
    B, H, W, C = x_nhwc.shape
    Hp, Wp = (H - k + 1) // 2, (W - k + 1) // 2
    quads = []
    for di in range(2):
        for dj in range(2):
            cols = []
            for kh in range(k):
                for kw in range(k):
                    sl = x_nhwc[:, di + kh: di + kh + 2 * Hp: 2,
                                   dj + kw: dj + kw + 2 * Wp: 2, :]   # (B,Hp,Wp,C)
                    cols.append(sl)
            p = jnp.stack(cols, axis=3)                               # (B,Hp,Wp,k*k,C)
            quads.append(p.reshape(B * Hp * Wp, k * k * C))
    return jnp.stack(quads, axis=0), Hp, Wp                           # (4, M, K)


def conv_relu_pool(x_nhwc, w_mat, b_pad, k, cout, *, tm_max=512):
    """x_nhwc: (B,H,W,C); w_mat: (Kp,Npad) bf16; b_pad: (1,Npad) f32.
    Returns avg-pool(ReLU(conv(x))) in NHWC bf16: (B, Hp, Wp, cout)."""
    B = x_nhwc.shape[0]
    Kp, Npad = w_mat.shape
    quads, Hp, Wp = _im2col_quadrants(x_nhwc.astype(jnp.bfloat16), k)
    M, K = quads.shape[1], quads.shape[2]

    tm, Mp = _choose_tile(M, tm_max, 16)          # multiple of 16 (bf16 sublane pack)
    quads = jnp.pad(quads, ((0, 0), (0, Mp - M), (0, Kp - K)))

    out = pl.pallas_call(
        _conv_relu_pool_kernel,
        out_shape=jax.ShapeDtypeStruct((Mp, Npad), jnp.bfloat16),
        grid=(Mp // tm,),
        in_specs=[
            pl.BlockSpec((4, tm, Kp), lambda i: (0, i, 0)),
            pl.BlockSpec((Kp, Npad), lambda i: (0, 0)),
            pl.BlockSpec((1, Npad), lambda i: (0, 0)),
        ],
        out_specs=pl.BlockSpec((tm, Npad), lambda i: (i, 0)),
        compiler_params=_compiler_params(),
        cost_estimate=pl.CostEstimate(
            flops=2 * 4 * Mp * Kp * Npad,
            transcendentals=0,
            bytes_accessed=4 * Mp * Kp * 2 + Kp * Npad * 2 + Npad * 4 + Mp * Npad * 2),
    )(quads, w_mat, b_pad)

    return out[:M, :cout].reshape(B, Hp, Wp, cout)


def fc_chain(x, w1, b1, w2, b2, w3, b3, *, tm_max=512):
    """x: (M, K) bf16; wN: (K, N) bf16 pre-transposed/permuted/padded; bN: (1, N) f32."""
    M, K = x.shape
    N1, N2, N3 = w1.shape[1], w2.shape[1], w3.shape[1]
    tm, Mp = _choose_tile(M, tm_max, 8)
    if Mp != M:
        x = jnp.pad(x, ((0, Mp - M), (0, 0)))

    out = pl.pallas_call(
        _fc_chain_kernel,
        out_shape=jax.ShapeDtypeStruct((Mp, N3), jnp.float32),
        grid=(Mp // tm,),
        in_specs=[
            pl.BlockSpec((tm, K), lambda i: (i, 0)),
            pl.BlockSpec((K, N1), lambda i: (0, 0)),
            pl.BlockSpec((1, N1), lambda i: (0, 0)),
            pl.BlockSpec((N1, N2), lambda i: (0, 0)),
            pl.BlockSpec((1, N2), lambda i: (0, 0)),
            pl.BlockSpec((N2, N3), lambda i: (0, 0)),
            pl.BlockSpec((1, N3), lambda i: (0, 0)),
        ],
        out_specs=pl.BlockSpec((tm, N3), lambda i: (i, 0)),
        compiler_params=_compiler_params(),
        cost_estimate=pl.CostEstimate(
            flops=2 * Mp * (K * N1 + N1 * N2 + N2 * N3),
            transcendentals=0,
            bytes_accessed=Mp * K * 2
            + (K * N1 + N1 * N2 + N2 * N3) * 2
            + Mp * N3 * 4),
    )(x, w1, b1, w2, b2, w3, b3)
    return out


# ----------------------------------------------------------------------------
# Parameter init (PyTorch-default style) + one-time kernel-layout preparation
# ----------------------------------------------------------------------------
def init_params(key):
    ks = jax.random.split(key, 10)

    def uni(k, shape, fan_in):
        bound = 1.0 / float(fan_in) ** 0.5
        return jax.random.uniform(k, shape, jnp.float32, -bound, bound)

    return {
        "conv_w":  uni(ks[0], (32, 1, 5, 5), 1 * 5 * 5),
        "conv_b":  uni(ks[1], (32,),          1 * 5 * 5),
        "conv1_w": uni(ks[2], (64, 32, 5, 5), 32 * 5 * 5),
        "conv1_b": uni(ks[3], (64,),          32 * 5 * 5),
        "fc_w":    uni(ks[4], (1024, 1024),   1024),
        "fc_b":    uni(ks[5], (1024,),        1024),
        "fc1_w":   uni(ks[6], (256, 1024),    1024),
        "fc1_b":   uni(ks[7], (256,),         1024),
        "fc2_w":   uni(ks[8], (10, 256),      256),
        "fc2_b":   uni(ks[9], (10,),          256),
    }


def prepare_params(p, *, conv_out_hwc=(4, 4, 64)):
    """One-time layout prep: bf16 weights, (K,N) orientation, lane-dense N,
    fc_w input rows permuted to NHWC (H,W,C) flatten order."""

    def conv_mat(w, b, kp, npad):
        cout, cin, k, _ = w.shape
        # feature order (kh, kw, cin) to match the quadrant im2col flatten
        wm = jnp.transpose(w, (2, 3, 1, 0)).reshape(k * k * cin, cout)
        wm = jnp.pad(wm, ((0, kp - k * k * cin), (0, npad - cout)))
        bp = jnp.pad(b, (0, npad - cout)).reshape(1, npad).astype(jnp.float32)
        return wm.astype(jnp.bfloat16), bp

    def fc_mat_t(wt, b, npad=None):
        # wt: (n_in, n_out) already (K, N) oriented
        n_out = wt.shape[1]
        npad = n_out if npad is None else npad
        wm = jnp.pad(wt, ((0, 0), (0, npad - n_out)))
        bp = jnp.pad(b, (0, npad - n_out)).reshape(1, npad).astype(jnp.float32)
        return wm.astype(jnp.bfloat16), bp

    c1w, c1b = conv_mat(p["conv_w"], p["conv_b"], 32, 128)     # K 25 -> 32, N 32 -> 128
    c2w, c2b = conv_mat(p["conv1_w"], p["conv1_b"], 800, 128)  # K 800,       N 64 -> 128

    # torch flattens (C,H,W); our conv output is NHWC -> permute fc input rows once.
    H, W, C = conv_out_hwc
    f1wt = p["fc_w"].T.reshape(C, H, W, -1).transpose(1, 2, 0, 3).reshape(C * H * W, -1)
    f1w, f1b = fc_mat_t(f1wt, p["fc_b"])                       # (1024, 1024)
    f2w, f2b = fc_mat_t(p["fc1_w"].T, p["fc1_b"])               # (1024, 256)
    f3w, f3b = fc_mat_t(p["fc2_w"].T, p["fc2_b"], npad=128)     # (256, 10 -> 128)
    return dict(c1w=c1w, c1b=c1b, c2w=c2w, c2b=c2b,
                f1w=f1w, f1b=f1b, f2w=f2w, f2b=f2b, f3w=f3w, f3b=f3b)


# ----------------------------------------------------------------------------
# Forward pass (mirrors MyCNN.forward)
# ----------------------------------------------------------------------------
def forward(prepped, x):
    B = x.shape[0]
    x = jnp.transpose(x, (0, 2, 3, 1))                                   # NCHW -> NHWC (B,28,28,1)
    x = conv_relu_pool(x, prepped["c1w"], prepped["c1b"], k=5, cout=32)  # (B,12,12,32) bf16
    x = conv_relu_pool(x, prepped["c2w"], prepped["c2b"], k=5, cout=64)  # (B,4,4,64)   bf16
    x = x.reshape(B, -1)                                                 # (B,1024) in (H,W,C) order
    y = fc_chain(x, prepped["f1w"], prepped["f1b"],
                 prepped["f2w"], prepped["f2b"],
                 prepped["f3w"], prepped["f3b"])                         # (Mp, 128) f32
    return y[:B, :10]


if __name__ == "__main__":
    key = jax.random.PRNGKey(0)
    pkey, xkey = jax.random.split(key)
    params = init_params(pkey)
    prepped = prepare_params(params)
    x = jax.random.normal(xkey, (2, 1, 28, 28), dtype=jnp.float32)

    out = jax.jit(forward)(prepped, x)
    jax.block_until_ready(out)
    assert out.shape == (2, 10) and out.dtype == jnp.float32
    print("KERNEL_OK")
</pallas_src>

<mosaic_0001>
module attributes {stable_mosaic.version = 11 : i64} {
  func.func @_conv_relu_pool_kernel(%arg0: i32, %arg1: memref<4x144x32xbf16, #tpu.memory_space<vmem>>, %arg2: memref<32x128xbf16, #tpu.memory_space<vmem>>, %arg3: memref<1x128xf32, #tpu.memory_space<vmem>>, %arg4: memref<144x128xbf16, #tpu.memory_space<vmem>>) attributes {dimension_semantics = [#tpu.dimension_semantics<parallel>], iteration_bounds = array<i64: 2>, scalar_prefetch = 0 : i64, scratch_operands = 0 : i64, tpu.core_type = #tpu.core_type<tc>, window_params = [{transform_indices = @transform_0, window_bounds = array<i64: 4, 144, 32>}, {pipeline_mode = #tpu.pipeline_mode<synchronous>, transform_indices = @transform_1, window_bounds = array<i64: 32, 128>}, {pipeline_mode = #tpu.pipeline_mode<synchronous>, transform_indices = @transform_2, window_bounds = array<i64: 1, 128>}, {transform_indices = @transform_3, window_bounds = array<i64: 144, 128>}]} {
    %c0 = arith.constant 0 : index
    %c0_0 = arith.constant 0 : index
    %c0_1 = arith.constant 0 : index
    %0 = vector.load %arg1[%c0, %c0_0, %c0_1] : memref<4x144x32xbf16, #tpu.memory_space<vmem>>, vector<4x144x32xbf16>
    %1 = vector.shape_cast %0 : vector<4x144x32xbf16> to vector<576x32xbf16>
    %c0_2 = arith.constant 0 : index
    %c0_3 = arith.constant 0 : index
    %2 = vector.load %arg2[%c0_2, %c0_3] : memref<32x128xbf16, #tpu.memory_space<vmem>>, vector<32x128xbf16>
    %cst = arith.constant dense<0.000000e+00> : vector<576x128xf32>
    %3 = tpu.matmul %1, %2, %cst {dimension_numbers = #tpu.dot_dimension_numbers<[1], [0], [0], [1], [0, 0, 1, 1], [], []>} : vector<576x32xbf16>, vector<32x128xbf16>, vector<576x128xf32> -> vector<576x128xf32>
    %c0_4 = arith.constant 0 : index
    %c0_5 = arith.constant 0 : index
    %4 = vector.load %arg3[%c0_4, %c0_5] : memref<1x128xf32, #tpu.memory_space<vmem>>, vector<1x128xf32>
    %5 = vector.broadcast %4 : vector<1x128xf32> to vector<576x128xf32>
    %6 = arith.addf %3, %5 : vector<576x128xf32>
    %cst_6 = arith.constant 0.000000e+00 : f32
    %7 = vector.broadcast %cst_6 : f32 to vector<576x128xf32>
    %8 = arith.maximumf %6, %7 : vector<576x128xf32>
    %9 = vector.shape_cast %8 : vector<576x128xf32> to vector<4x144x128xf32>
    %10 = vector.extract_strided_slice %9 {offsets = [0, 0, 0], sizes = [1, 144, 128], strides = [1, 1, 1]} : vector<4x144x128xf32> to vector<1x144x128xf32>
    %11 = vector.shape_cast %10 : vector<1x144x128xf32> to vector<144x128xf32>
    %12 = vector.extract_strided_slice %9 {offsets = [1, 0, 0], sizes = [1, 144, 128], strides = [1, 1, 1]} : vector<4x144x128xf32> to vector<1x144x128xf32>
    %13 = vector.shape_cast %12 : vector<1x144x128xf32> to vector<144x128xf32>
    %14 = arith.addf %11, %13 : vector<144x128xf32>
    %15 = vector.extract_strided_slice %9 {offsets = [2, 0, 0], sizes = [1, 144, 128], strides = [1, 1, 1]} : vector<4x144x128xf32> to vector<1x144x128xf32>
    %16 = vector.shape_cast %15 : vector<1x144x128xf32> to vector<144x128xf32>
    %17 = arith.addf %14, %16 : vector<144x128xf32>
    %18 = vector.extract_strided_slice %9 {offsets = [3, 0, 0], sizes = [1, 144, 128], strides = [1, 1, 1]} : vector<4x144x128xf32> to vector<1x144x128xf32>
    %19 = vector.shape_cast %18 : vector<1x144x128xf32> to vector<144x128xf32>
    %20 = arith.addf %17, %19 : vector<144x128xf32>
    %cst_7 = arith.constant 2.500000e-01 : f32
    %21 = vector.broadcast %cst_7 : f32 to vector<144x128xf32>
    %22 = arith.mulf %20, %21 : vector<144x128xf32>
    %23 = arith.truncf %22 : vector<144x128xf32> to vector<144x128xbf16>
    %c0_8 = arith.constant 0 : index
    %c0_9 = arith.constant 0 : index
    %24 = vector.load %arg4[%c0_8, %c0_9] : memref<144x128xbf16, #tpu.memory_space<vmem>>, vector<144x128xbf16>
    tpu.vector_store %arg4[%c0_8, %c0_9], %23 {strides = array<i32>} : memref<144x128xbf16, #tpu.memory_space<vmem>>, vector<144x128xbf16>,
    return
  }
  func.func @transform_0(%arg0: i32) -> (i32, i32, i32) {
    %c0_i32 = arith.constant 0 : i32
    %c0_i32_0 = arith.constant 0 : i32
    %c0_i32_1 = arith.constant 0 : i32
    return %c0_i32, %arg0, %c0_i32_0 : i32, i32, i32
  }
  func.func @transform_1(%arg0: i32) -> (i32, i32) {
    %c0_i32 = arith.constant 0 : i32
    %c0_i32_0 = arith.constant 0 : i32
    %c0_i32_1 = arith.constant 0 : i32
    return %c0_i32, %c0_i32_0 : i32, i32
  }
  func.func @transform_2(%arg0: i32) -> (i32, i32) {
    %c0_i32 = arith.constant 0 : i32
    %c0_i32_0 = arith.constant 0 : i32
    %c0_i32_1 = arith.constant 0 : i32
    return %c0_i32, %c0_i32_0 : i32, i32
  }
  func.func @transform_3(%arg0: i32) -> (i32, i32) {
    %c0_i32 = arith.constant 0 : i32
    %c0_i32_0 = arith.constant 0 : i32
    return %arg0, %c0_i32 : i32, i32
  }
}

module attributes {stable_mosaic.version = 11 : i64} {
  func.func @_conv_relu_pool_kernel(%arg0: i32, %arg1: memref<4x16x800xbf16, #tpu.memory_space<vmem>>, %arg2: memref<800x128xbf16, #tpu.memory_space<vmem>>, %arg3: memref<1x128xf32, #tpu.memory_space<vmem>>, %arg4: memref<16x128xbf16, #tpu.memory_space<vmem>>) attributes {dimension_semantics = [#tpu.dimension_semantics<parallel>], iteration_bounds = array<i64: 2>, scalar_prefetch = 0 : i64, scratch_operands = 0 : i64, tpu.core_type = #tpu.core_type<tc>, window_params = [{transform_indices = @transform_0, window_bounds = array<i64: 4, 16, 800>}, {pipeline_mode = #tpu.pipeline_mode<synchronous>, transform_indices = @transform_1, window_bounds = array<i64: 800, 128>}, {pipeline_mode = #tpu.pipeline_mode<synchronous>, transform_indices = @transform_2, window_bounds = array<i64: 1, 128>}, {transform_indices = @transform_3, window_bounds = array<i64: 16, 128>}]} {
    %c0 = arith.constant 0 : index
    %c0_0 = arith.constant 0 : index
    %c0_1 = arith.constant 0 : index
    %0 = vector.load %arg1[%c0, %c0_0, %c0_1] : memref<4x16x800xbf16, #tpu.memory_space<vmem>>, vector<4x16x800xbf16>
    %1 = vector.shape_cast %0 : vector<4x16x800xbf16> to vector<64x800xbf16>
    %c0_2 = arith.constant 0 : index
    %c0_3 = arith.constant 0 : index
    %2 = vector.load %arg2[%c0_2, %c0_3] : memref<800x128xbf16, #tpu.memory_space<vmem>>, vector<800x128xbf16>
    %cst = arith.constant dense<0.000000e+00> : vector<64x128xf32>
    %3 = tpu.matmul %1, %2, %cst {dimension_numbers = #tpu.dot_dimension_numbers<[1], [0], [0], [1], [0, 0, 1, 1], [], []>} : vector<64x800xbf16>, vector<800x128xbf16>, vector<64x128xf32> -> vector<64x128xf32>
    %c0_4 = arith.constant 0 : index
    %c0_5 = arith.constant 0 : index
    %4 = vector.load %arg3[%c0_4, %c0_5] : memref<1x128xf32, #tpu.memory_space<vmem>>, vector<1x128xf32>
    %5 = vector.broadcast %4 : vector<1x128xf32> to vector<64x128xf32>
    %6 = arith.addf %3, %5 : vector<64x128xf32>
    %cst_6 = arith.constant 0.000000e+00 : f32
    %7 = vector.broadcast %cst_6 : f32 to vector<64x128xf32>
    %8 = arith.maximumf %6, %7 : vector<64x128xf32>
    %9 = vector.shape_cast %8 : vector<64x128xf32> to vector<4x16x128xf32>
    %10 = vector.extract_strided_slice %9 {offsets = [0, 0, 0], sizes = [1, 16, 128], strides = [1, 1, 1]} : vector<4x16x128xf32> to vector<1x16x128xf32>
    %11 = vector.shape_cast %10 : vector<1x16x128xf32> to vector<16x128xf32>
    %12 = vector.extract_strided_slice %9 {offsets = [1, 0, 0], sizes = [1, 16, 128], strides = [1, 1, 1]} : vector<4x16x128xf32> to vector<1x16x128xf32>
    %13 = vector.shape_cast %12 : vector<1x16x128xf32> to vector<16x128xf32>
    %14 = arith.addf %11, %13 : vector<16x128xf32>
    %15 = vector.extract_strided_slice %9 {offsets = [2, 0, 0], sizes = [1, 16, 128], strides = [1, 1, 1]} : vector<4x16x128xf32> to vector<1x16x128xf32>
    %16 = vector.shape_cast %15 : vector<1x16x128xf32> to vector<16x128xf32>
    %17 = arith.addf %14, %16 : vector<16x128xf32>
    %18 = vector.extract_strided_slice %9 {offsets = [3, 0, 0], sizes = [1, 16, 128], strides = [1, 1, 1]} : vector<4x16x128xf32> to vector<1x16x128xf32>
    %19 = vector.shape_cast %18 : vector<1x16x128xf32> to vector<16x128xf32>
    %20 = arith.addf %17, %19 : vector<16x128xf32>
    %cst_7 = arith.constant 2.500000e-01 : f32
    %21 = vector.broadcast %cst_7 : f32 to vector<16x128xf32>
    %22 = arith.mulf %20, %21 : vector<16x128xf32>
    %23 = arith.truncf %22 : vector<16x128xf32> to vector<16x128xbf16>
    %c0_8 = arith.constant 0 : index
    %c0_9 = arith.constant 0 : index
    %24 = vector.load %arg4[%c0_8, %c0_9] : memref<16x128xbf16, #tpu.memory_space<vmem>>, vector<16x128xbf16>
    tpu.vector_store %arg4[%c0_8, %c0_9], %23 {strides = array<i32>} : memref<16x128xbf16, #tpu.memory_space<vmem>>, vector<16x128xbf16>,
    return
  }
  func.func @transform_0(%arg0: i32) -> (i32, i32, i32) {
    %c0_i32 = arith.constant 0 : i32
    %c0_i32_0 = arith.constant 0 : i32
    %c0_i32_1 = arith.constant 0 : i32
    return %c0_i32, %arg0, %c0_i32_0 : i32, i32, i32
  }
  func.func @transform_1(%arg0: i32) -> (i32, i32) {
    %c0_i32 = arith.constant 0 : i32
    %c0_i32_0 = arith.constant 0 : i32
    %c0_i32_1 = arith.constant 0 : i32
    return %c0_i32, %c0_i32_0 : i32, i32
  }
  func.func @transform_2(%arg0: i32) -> (i32, i32) {
    %c0_i32 = arith.constant 0 : i32
    %c0_i32_0 = arith.constant 0 : i32
    %c0_i32_1 = arith.constant 0 : i32
    return %c0_i32, %c0_i32_0 : i32, i32
  }
  func.func @transform_3(%arg0: i32) -> (i32, i32) {
    %c0_i32 = arith.constant 0 : i32
    %c0_i32_0 = arith.constant 0 : i32
    return %arg0, %c0_i32 : i32, i32
  }
}

module attributes {stable_mosaic.version = 11 : i64} {
  func.func @_fc_chain_kernel(%arg0: i32, %arg1: memref<8x1024xbf16, #tpu.memory_space<vmem>>, %arg2: memref<1024x1024xbf16, #tpu.memory_space<vmem>>, %arg3: memref<1x1024xf32, #tpu.memory_space<vmem>>, %arg4: memref<1024x256xbf16, #tpu.memory_space<vmem>>, %arg5: memref<1x256xf32, #tpu.memory_space<vmem>>, %arg6: memref<256x128xbf16, #tpu.memory_space<vmem>>, %arg7: memref<1x128xf32, #tpu.memory_space<vmem>>, %arg8: memref<8x128xf32, #tpu.memory_space<vmem>>) attributes {dimension_semantics = [#tpu.dimension_semantics<parallel>], iteration_bounds = array<i64: 1>, scalar_prefetch = 0 : i64, scratch_operands = 0 : i64, tpu.core_type = #tpu.core_type<tc>, window_params = [{transform_indices = @transform_0, window_bounds = array<i64: 8, 1024>}, {pipeline_mode = #tpu.pipeline_mode<synchronous>, transform_indices = @transform_1, window_bounds = array<i64: 1024, 1024>}, {pipeline_mode = #tpu.pipeline_mode<synchronous>, transform_indices = @transform_2, window_bounds = array<i64: 1, 1024>}, {pipeline_mode = #tpu.pipeline_mode<synchronous>, transform_indices = @transform_3, window_bounds = array<i64: 1024, 256>}, {pipeline_mode = #tpu.pipeline_mode<synchronous>, transform_indices = @transform_4, window_bounds = array<i64: 1, 256>}, {pipeline_mode = #tpu.pipeline_mode<synchronous>, transform_indices = @transform_5, window_bounds = array<i64: 256, 128>}, {pipeline_mode = #tpu.pipeline_mode<synchronous>, transform_indices = @transform_6, window_bounds = array<i64: 1, 128>}, {transform_indices = @transform_7, window_bounds = array<i64: 8, 128>}]} {
    %c0 = arith.constant 0 : index
    %c0_0 = arith.constant 0 : index
    %0 = vector.load %arg1[%c0, %c0_0] : memref<8x1024xbf16, #tpu.memory_space<vmem>>, vector<8x1024xbf16>
    %c0_1 = arith.constant 0 : index
    %c0_2 = arith.constant 0 : index
    %1 = vector.load %arg2[%c0_1, %c0_2] : memref<1024x1024xbf16, #tpu.memory_space<vmem>>, vector<1024x1024xbf16>
    %cst = arith.constant dense<0.000000e+00> : vector<8x1024xf32>
    %2 = tpu.matmul %0, %1, %cst {dimension_numbers = #tpu.dot_dimension_numbers<[1], [0], [0], [1], [0, 0, 1, 1], [], []>} : vector<8x1024xbf16>, vector<1024x1024xbf16>, vector<8x1024xf32> -> vector<8x1024xf32>
    %c0_3 = arith.constant 0 : index
    %c0_4 = arith.constant 0 : index
    %3 = vector.load %arg3[%c0_3, %c0_4] : memref<1x1024xf32, #tpu.memory_space<vmem>>, vector<1x1024xf32>
    %4 = vector.broadcast %3 : vector<1x1024xf32> to vector<8x1024xf32>
    %5 = arith.addf %2, %4 : vector<8x1024xf32>
    %cst_5 = arith.constant 0.000000e+00 : f32
    %6 = vector.broadcast %cst_5 : f32 to vector<8x1024xf32>
    %7 = arith.maximumf %5, %6 : vector<8x1024xf32>
    %8 = arith.truncf %7 : vector<8x1024xf32> to vector<8x1024xbf16>
    %c0_6 = arith.constant 0 : index
    %c0_7 = arith.constant 0 : index
    %9 = vector.load %arg4[%c0_6, %c0_7] : memref<1024x256xbf16, #tpu.memory_space<vmem>>, vector<1024x256xbf16>
    %cst_8 = arith.constant dense<0.000000e+00> : vector<8x256xf32>
    %10 = tpu.matmul %8, %9, %cst_8 {dimension_numbers = #tpu.dot_dimension_numbers<[1], [0], [0], [1], [0, 0, 1, 1], [], []>} : vector<8x1024xbf16>, vector<1024x256xbf16>, vector<8x256xf32> -> vector<8x256xf32>
    %c0_9 = arith.constant 0 : index
    %c0_10 = arith.constant 0 : index
    %11 = vector.load %arg5[%c0_9, %c0_10] : memref<1x256xf32, #tpu.memory_space<vmem>>, vector<1x256xf32>
    %12 = vector.broadcast %11 : vector<1x256xf32> to vector<8x256xf32>
    %13 = arith.addf %10, %12 : vector<8x256xf32>
    %cst_11 = arith.constant 0.000000e+00 : f32
    %14 = vector.broadcast %cst_11 : f32 to vector<8x256xf32>
    %15 = arith.maximumf %13, %14 : vector<8x256xf32>
    %16 = arith.truncf %15 : vector<8x256xf32> to vector<8x256xbf16>
    %c0_12 = arith.constant 0 : index
    %c0_13 = arith.constant 0 : index
    %17 = vector.load %arg6[%c0_12, %c0_13] : memref<256x128xbf16, #tpu.memory_space<vmem>>, vector<256x128xbf16>
    %cst_14 = arith.constant dense<0.000000e+00> : vector<8x128xf32>
    %18 = tpu.matmul %16, %17, %cst_14 {dimension_numbers = #tpu.dot_dimension_numbers<[1], [0], [0], [1], [0, 0, 1, 1], [], []>} : vector<8x256xbf16>, vector<256x128xbf16>, vector<8x128xf32> -> vector<8x128xf32>
    %c0_15 = arith.constant 0 : index
    %c0_16 = arith.constant 0 : index
    %19 = vector.load %arg7[%c0_15, %c0_16] : memref<1x128xf32, #tpu.memory_space<vmem>>, vector<1x128xf32>
    %20 = vector.broadcast %19 : vector<1x128xf32> to vector<8x128xf32>
    %21 = arith.addf %18, %20 : vector<8x128xf32>
    %c0_17 = arith.constant 0 : index
    %c0_18 = arith.constant 0 : index
    %22 = vector.load %arg8[%c0_17, %c0_18] : memref<8x128xf32, #tpu.memory_space<vmem>>, vector<8x128xf32>
    tpu.vector_store %arg8[%c0_17, %c0_18], %21 {strides = array<i32>} : memref<8x128xf32, #tpu.memory_space<vmem>>, vector<8x128xf32>,
    return
  }
  func.func @transform_0(%arg0: i32) -> (i32, i32) {
    %c0_i32 = arith.constant 0 : i32
    %c0_i32_0 = arith.constant 0 : i32
    return %arg0, %c0_i32 : i32, i32
  }
  func.func @transform_1(%arg0: i32) -> (i32, i32) {
    %c0_i32 = arith.constant 0 : i32
    %c0_i32_0 = arith.constant 0 : i32
    %c0_i32_1 = arith.constant 0 : i32
    return %c0_i32, %c0_i32_0 : i32, i32
  }
  func.func @transform_2(%arg0: i32) -> (i32, i32) {
    %c0_i32 = arith.constant 0 : i32
    %c0_i32_0 = arith.constant 0 : i32
    %c0_i32_1 = arith.constant 0 : i32
    return %c0_i32, %c0_i32_0 : i32, i32
  }
  func.func @transform_3(%arg0: i32) -> (i32, i32) {
    %c0_i32 = arith.constant 0 : i32
    %c0_i32_0 = arith.constant 0 : i32
    %c0_i32_1 = arith.constant 0 : i32
    return %c0_i32, %c0_i32_0 : i32, i32
  }
  func.func @transform_4(%arg0: i32) -> (i32, i32) {
    %c0_i32 = arith.constant 0 : i32
    %c0_i32_0 = arith.constant 0 : i32
    %c0_i32_1 = arith.constant 0 : i32
    return %c0_i32, %c0_i32_0 : i32, i32
  }
  func.func @transform_5(%arg0: i32) -> (i32, i32) {
    %c0_i32 = arith.constant 0 : i32
    %c0_i32_0 = arith.constant 0 : i32
    %c0_i32_1 = arith.constant 0 : i32
    return %c0_i32, %c0_i32_0 : i32, i32
  }
  func.func @transform_6(%arg0: i32) -> (i32, i32) {
    %c0_i32 = arith.constant 0 : i32
    %c0_i32_0 = arith.constant 0 : i32
    %c0_i32_1 = arith.constant 0 : i32
    return %c0_i32, %c0_i32_0 : i32, i32
  }
  func.func @transform_7(%arg0: i32) -> (i32, i32) {
    %c0_i32 = arith.constant 0 : i32
    %c0_i32_0 = arith.constant 0 : i32
    return %arg0, %c0_i32 : i32, i32
  }
}

</mosaic_0001>

<llo_original>
// kernel: forward.3
$region0: #{forward.3}
  #allocation0 [shape = 'u32[]', space=smem, size = 0x4, offset = 0x4, fixed_abs, tag = 'smem constant byte address 0x4 - core index']
  #allocation1 [shape = 'u32[144,128]{1,0:T(1,128)}', space=vmem, size = 0x12000, scoped, tag = 'internal scratch']
  %s0 = inlined_call_operand.vmem [shape: bf16[4,288,32], index: 0, kind: input, shape index: {}]
  %s1 = inlined_call_operand.vmem [shape: bf16[32,128], index: 1, kind: input, shape index: {}]
  %s2 = inlined_call_operand.vmem [shape: f32[1,128], index: 2, kind: input, shape index: {}]
  %s3 = inlined_call_operand.vmem [shape: bf16[288,128], index: 3, kind: output, shape index: {}]
  %s4 = sld [smem:[#allocation0]]
  $region86: #{forward.3} parent=0
    _
  %s6 = ssub.s32 1, %s4
  %s7 = scalar_select 0, %s6, %s4
  $region1: #{forward.3} parent=0
    #allocation2 [shape = 'u8[294912]{0}', space=vmem, size = 0x48000, scoped, tag = 'input window, operand 0']
    loop: start=0, step=1, limit=4
    $region2: #{forward.3} parent=1 // loop_pre_header
      _
    $region3: #{forward.3} parent=1 // loop_header
      %s9 = sphi 0, %s13
      %p10 = scmp.ge.s32.totalorder %s9, 4
      %s19 = sphi 0, %s21
      %s22 = sphi 0, %s19
      %s23 = sphi 0, %s22
      %s39 = sphi 0, %s23
      %s43 = sphi 0, %s43
      %s45 = sphi 0, %s43
      %s46 = sphi 0, %s45
      %s60 = sphi 0, %s46
      %s64 = sphi 0, %s64
      %s66 = sphi 0, %s64
      %s67 = sphi 0, %s66
      %s81 = sphi 0, %s67
      %s87 = sphi 0, %s89
      %s90 = sphi 0, %s87
      %s91 = sphi 0, %s90
      %s107 = sphi 0, %s91
    $region4: #{forward.3} parent=1 // loop_header_branch
      %12 = sbr.rel (%p10) target = $region8
    $region5: #{forward.3} parent=1 // loop_body
      %s14 = ssub.s32 %s9, 1
      %s15 = ssub.s32 %s9, 2
      %s16 = sadd.s32 %s9, 1
      %s17 = ssub.s32 %s9, %s16
      %p18 = scmp.eq.s32.totalorder %s17, 0
      %s20 = sadd.s32 %s19, 1
      %s21 = scalar_select %p18, %s19, %s20
      %p24 = pneg %p18
      %p25 = scmp.eq.s32.totalorder %s9, 1
      %p26 = por %p24, %p25
      %p27 = scmp.ne.s32.totalorder %s19, %s22
      %p28 = scmp.eq.s32.totalorder %s9, 0
      %p29 = por %p27, %p28
      %p30 = scmp.ne.s32.totalorder %s19, %s22
      %p31 = scmp.eq.s32.totalorder %s14, 1
      %p32 = por %p30, %p31
      %p33 = scmp.ne.s32.totalorder %s22, %s23
      %p34 = scmp.eq.s32.totalorder %s14, 0
      %p35 = por %p33, %p34
      %p36 = scmp.ne.s32.totalorder %s22, %s23
      %p37 = scmp.eq.s32.totalorder %s15, 1
      %p38 = por %p36, %p37
      %p40 = scmp.ne.s32.totalorder %s23, %s39
      %p41 = scmp.eq.s32.totalorder %s15, 0
      %p42 = por %p40, %p41
      %s44 = sadd.s32 %s43, 1
      %p47 = scmp.eq.s32.totalorder %s9, 1
      %p48 = scmp.ne.s32.totalorder %s43, %s45
      %p49 = scmp.eq.s32.totalorder %s9, 0
      %p50 = por %p48, %p49
      %p51 = scmp.ne.s32.totalorder %s43, %s45
      %p52 = scmp.eq.s32.totalorder %s14, 1
      %p53 = por %p51, %p52
      %p54 = scmp.ne.s32.totalorder %s45, %s46
      %p55 = scmp.eq.s32.totalorder %s14, 0
      %p56 = por %p54, %p55
      %p57 = scmp.ne.s32.totalorder %s45, %s46
      %p58 = scmp.eq.s32.totalorder %s15, 1
      %p59 = por %p57, %p58
      %p61 = scmp.ne.s32.totalorder %s46, %s60
      %p62 = scmp.eq.s32.totalorder %s15, 0
      %p63 = por %p61, %p62
      %s65 = sadd.s32 %s64, 1
      %p68 = scmp.eq.s32.totalorder %s9, 1
      %p69 = scmp.ne.s32.totalorder %s64, %s66
      %p70 = scmp.eq.s32.totalorder %s9, 0
      %p71 = por %p69, %p70
      %p72 = scmp.ne.s32.totalorder %s64, %s66
      %p73 = scmp.eq.s32.totalorder %s14, 1
      %p74 = por %p72, %p73
      %p75 = scmp.ne.s32.totalorder %s66, %s67
      %p76 = scmp.eq.s32.totalorder %s14, 0
      %p77 = por %p75, %p76
      %p78 = scmp.ne.s32.totalorder %s66, %s67
      %p79 = scmp.eq.s32.totalorder %s15, 1
      %p80 = por %p78, %p79
      %p82 = scmp.ne.s32.totalorder %s67, %s81
      %p83 = scmp.eq.s32.totalorder %s15, 0
      %p84 = por %p82, %p83
      %s85 = ssub.s32 %s9, %s16
      %p86 = scmp.eq.s32.totalorder %s85, 0
      %s88 = sadd.s32 %s87, 1
      %s89 = scalar_select %p86, %s87, %s88
      %p92 = pneg %p86
      %p93 = scmp.eq.s32.totalorder %s9, 1
      %p94 = por %p92, %p93
      %p95 = scmp.ne.s32.totalorder %s87, %s90
      %p96 = scmp.eq.s32.totalorder %s9, 0
      %p97 = por %p95, %p96
      %p98 = scmp.ne.s32.totalorder %s87, %s90
      %p99 = scmp.eq.s32.totalorder %s14, 1
      %p100 = por %p98, %p99
      %p101 = scmp.ne.s32.totalorder %s90, %s91
      %p102 = scmp.eq.s32.totalorder %s14, 0
      %p103 = por %p101, %p102
      %p104 = scmp.ne.s32.totalorder %s90, %s91
      %p105 = scmp.eq.s32.totalorder %s15, 1
      %p106 = por %p104, %p105
      %p108 = scmp.ne.s32.totalorder %s91, %s107
      %p109 = scmp.eq.s32.totalorder %s15, 0
      %p110 = por %p108, %p109
      %p111 = scmp.le.s32.totalorder 1, %s9
      %p112 = scmp.lt.s32.totalorder %s9, 3
      %p113 = pnand %p111, %p112
      %p114 = pneg %p113
      // Predicated region
      $region9: #{forward.3} parent=5 // pred_check
        _
      $region10: #{forward.3} parent=5 // pred_check_branch
        %116 = sbr.rel (%p113) target = $region12
      $region11: #{forward.3} parent=5 // pred_region
        %s117 = ssub.s32 %s9, 1
        // Predicated region
        $region13: #{forward.3} parent=11 // pred_check
          %p118 = pneg %p56
        $region14: #{forward.3} parent=11 // pred_check_branch
          %120 = sbr.rel (%p118) target = $region16
        $region15: #{forward.3} parent=11 // pred_region
          _
        $region16: #{forward.3} parent=11 // pred_fallthru
          _
        // Predicated region
        $region17: #{forward.3} parent=11 // pred_check
          %p121 = pneg %p77
        $region18: #{forward.3} parent=11 // pred_check_branch
          %123 = sbr.rel (%p121) target = $region20
        $region19: #{forward.3} parent=11 // pred_region
          _
        $region20: #{forward.3} parent=11 // pred_fallthru
          _
      $region12: #{forward.3} parent=5 // pred_fallthru
        _
      %p124 = scmp.lt.s32.totalorder %s9, 2
      // Predicated region
      $region21: #{forward.3} parent=5 // pred_check
        %p125 = pneg %p124
      $region22: #{forward.3} parent=5 // pred_check_branch
        %127 = sbr.rel (%p125) target = $region24
      $region23: #{forward.3} parent=5 // pred_region
        // Predicated region
        $region25: #{forward.3} parent=23 // pred_check
          %p128 = pneg %p29
        $region26: #{forward.3} parent=23 // pred_check_branch
          %130 = sbr.rel (%p128) target = $region28
        $region27: #{forward.3} parent=23 // pred_region
          %s131 = sand.u32 %s19, 1
          %s132 = sand.u32 %s19, 1
          %s133 = smul.addr %s132, 288
          %s134 = scalar_lea.vmem [#allocation2], %s133
          %s135 = smul.u32 18, %s9
          %s136 = smul.addr %s135, 4
          %s137 = scalar_lea.vmem %s0, %s136
          // Predicated region
          $region29: #{forward.3} parent=27 // pred_check
            _
          $region30: #{forward.3} parent=27 // pred_check_branch
            %139 = sbr.rel (0) target = $region32
          $region31: #{forward.3} parent=27 // pred_region
            // Predicated region
            $region33: #{forward.3} parent=31 // pred_check
              _
            $region34: #{forward.3} parent=31 // pred_check_branch
              %141 = sbr.rel target = $region36
            $region35: #{forward.3} parent=31 // pred_region
              // Predicated region
              $region48: #{forward.3} parent=35 // pred_check
                _
              $region49: #{forward.3} parent=35 // pred_check_branch
                %298 = sbr.rel (0) target = $region51
              $region50: #{forward.3} parent=35 // pred_region
                loop: start=0, step=1, limit=1
                $region52: #{forward.3} parent=50 // loop_pre_header
                  _
                $region53: #{forward.3} parent=50 // loop_header
                  %s300 = sphi 0, %s304
                  %p301 = scmp.ge.s32.totalorder %s300, 1
                  %s305 = sphi %s137, %s137
                  %s306 = sphi %s134, %s134
                $region54: #{forward.3} parent=50 // loop_header_branch
                  %303 = sbr.rel (%p301) target = $region58
                $region55: #{forward.3} parent=50 // loop_body
                  _
                $region56: #{forward.3} parent=50 // loop_footer
                  %s304 = sadd.s32 1, %s300
                $region57: #{forward.3} parent=50 // loop_footer_branch
                  %299 = sbr.rel target = $region53
                $region58: #{forward.3} parent=50 // loop_exit
                  _
                loop: start=0, step=1, limit=1
                $region59: #{forward.3} parent=50 // loop_pre_header
                  _
                $region60: #{forward.3} parent=50 // loop_header
                  %s309 = sphi 0, %s313
                  %p310 = scmp.ge.s32.totalorder %s309, 1
                  %s314 = sphi %s137, %s137
                  %s315 = sphi %s134, %s134
                $region61: #{forward.3} parent=50 // loop_header_branch
                  %312 = sbr.rel (%p310) target = $region65
                $region62: #{forward.3} parent=50 // loop_body
                  %v316 = vld [vmem:[%s314] sm:$0xf]
                  %317 = vst [vmem:[%s315] sm:$0xf] %v316
                  %v318 = vld [vmem:[%s314 + $0x4] sm:$0xf]
                  %319 = vst [vmem:[%s315 + $0x4] sm:$0xf] %v318
                  %v320 = vld [vmem:[%s314 + $0x8] sm:$0xf]
                  %321 = vst [vmem:[%s315 + $0x8] sm:$0xf] %v320
                  %v322 = vld [vmem:[%s314 + $0xc] sm:$0xf]
                  %323 = vst [vmem:[%s315 + $0xc] sm:$0xf] %v322
                  %v324 = vld [vmem:[%s314 + $0x10] sm:$0xf]
                  %325 = vst [vmem:[%s315 + $0x10] sm:$0xf] %v324
                  %v326 = vld [vmem:[%s314 + $0x14] sm:$0xf]
                  %327 = vst [vmem:[%s315 + $0x14] sm:$0xf] %v326
                  %v328 = vld [vmem:[%s314 + $0x18] sm:$0xf]
                  %329 = vst [vmem:[%s315 + $0x18] sm:$0xf] %v328
                  %v330 = vld [vmem:[%s314 + $0x1c] sm:$0xf]
                  %331 = vst [vmem:[%s315 + $0x1c] sm:$0xf] %v330
                  %v332 = vld [vmem:[%s314 + $0x20] sm:$0xf]
                  %333 = vst [vmem:[%s315 + $0x20] sm:$0xf] %v332
                  %v334 = vld [vmem:[%s314 + $0x24] sm:$0xf]
                  %335 = vst [vmem:[%s315 + $0x24] sm:$0xf] %v334
                  %v336 = vld [vmem:[%s314 + $0x28] sm:$0xf]
                  %337 = vst [vmem:[%s315 + $0x28] sm:$0xf] %v336
                  %v338 = vld [vmem:[%s314 + $0x2c] sm:$0xf]
                  %339 = vst [vmem:[%s315 + $0x2c] sm:$0xf] %v338
                  %v340 = vld [vmem:[%s314 + $0x30] sm:$0xf]
                  %341 = vst [vmem:[%s315 + $0x30] sm:$0xf] %v340
                  %v342 = vld [vmem:[%s314 + $0x34] sm:$0xf]
                  %343 = vst [vmem:[%s315 + $0x34] sm:$0xf] %v342
                  %v344 = vld [vmem:[%s314 + $0x38] sm:$0xf]
                  %345 = vst [vmem:[%s315 + $0x38] sm:$0xf] %v344
                  %v346 = vld [vmem:[%s314 + $0x3c] sm:$0xf]
                  %347 = vst [vmem:[%s315 + $0x3c] sm:$0xf] %v346
                  %v348 = vld [vmem:[%s314 + $0x40] sm:$0xf]
                  %349 = vst [vmem:[%s315 + $0x40] sm:$0xf] %v348
                  %v350 = vld [vmem:[%s314 + $0x44] sm:$0xf]
                  %351 = vst [vmem:[%s315 + $0x44] sm:$0xf] %v350
                  %v352 = vld [vmem:[%s314 + $0x90] sm:$0xf]
                  %353 = vst [vmem:[%s315 + $0x48] sm:$0xf] %v352
                  %v354 = vld [vmem:[%s314 + $0x94] sm:$0xf]
                  %355 = vst [vmem:[%s315 + $0x4c] sm:$0xf] %v354
                  %v356 = vld [vmem:[%s314 + $0x98] sm:$0xf]
                  %357 = vst [vmem:[%s315 + $0x50] sm:$0xf] %v356
                  %v358 = vld [vmem:[%s314 + $0x9c] sm:$0xf]
                  %359 = vst [vmem:[%s315 + $0x54] sm:$0xf] %v358
                  %v360 = vld [vmem:[%s314 + $0xa0] sm:$0xf]
                  %361 = vst [vmem:[%s315 + $0x58] sm:$0xf] %v360
                  %v362 = vld [vmem:[%s314 + $0xa4] sm:$0xf]
                  %363 = vst [vmem:[%s315 + $0x5c] sm:$0xf] %v362
                  %v364 = vld [vmem:[%s314 + $0xa8] sm:$0xf]
                  %365 = vst [vmem:[%s315 + $0x60] sm:$0xf] %v364
                  %v366 = vld [vmem:[%s314 + $0xac] sm:$0xf]
                  %367 = vst [vmem:[%s315 + $0x64] sm:$0xf] %v366
                  %v368 = vld [vmem:[%s314 + $0xb0] sm:$0xf]
                  %369 = vst [vmem:[%s315 + $0x68] sm:$0xf] %v368
                  %v370 = vld [vmem:[%s314 + $0xb4] sm:$0xf]
                  %371 = vst [vmem:[%s315 + $0x6c] sm:$0xf] %v370
                  %v372 = vld [vmem:[%s314 + $0xb8] sm:$0xf]
                  %373 = vst [vmem:[%s315 + $0x70] sm:$0xf] %v372
                  %v374 = vld [vmem:[%s314 + $0xbc] sm:$0xf]
                  %375 = vst [vmem:[%s315 + $0x74] sm:$0xf] %v374
                  %v376 = vld [vmem:[%s314 + $0xc0] sm:$0xf]
                  %377 = vst [vmem:[%s315 + $0x78] sm:$0xf] %v376
                  %v378 = vld [vmem:[%s314 + $0xc4] sm:$0xf]
                  %379 = vst [vmem:[%s315 + $0x7c] sm:$0xf] %v378
                  %v380 = vld [vmem:[%s314 + $0xc8] sm:$0xf]
                  %381 = vst [vmem:[%s315 + $0x80] sm:$0xf] %v380
                  %v382 = vld [vmem:[%s314 + $0xcc] sm:$0xf]
                  %383 = vst [vmem:[%s315 + $0x84] sm:$0xf] %v382
                  %v384 = vld [vmem:[%s314 + $0xd0] sm:$0xf]
                  %385 = vst [vmem:[%s315 + $0x88] sm:$0xf] %v384
                  %v386 = vld [vmem:[%s314 + $0xd4] sm:$0xf]
                  %387 = vst [vmem:[%s315 + $0x8c] sm:$0xf] %v386
                  %v388 = vld [vmem:[%s314 + $0x120] sm:$0xf]
                  %389 = vst [vmem:[%s315 + $0x90] sm:$0xf] %v388
                  %v390 = vld [vmem:[%s314 + $0x124] sm:$0xf]
                  %391 = vst [vmem:[%s315 + $0x94] sm:$0xf] %v390
                  %v392 = vld [vmem:[%s314 + $0x128] sm:$0xf]
                  %393 = vst [vmem:[%s315 + $0x98] sm:$0xf] %v392
                  %v394 = vld [vmem:[%s314 + $0x12c] sm:$0xf]
                  %395 = vst [vmem:[%s315 + $0x9c] sm:$0xf] %v394
                  %v396 = vld [vmem:[%s314 + $0x130] sm:$0xf]
                  %397 = vst [vmem:[%s315 + $0xa0] sm:$0xf] %v396
                  %v398 = vld [vmem:[%s314 + $0x134] sm:$0xf]
                  %399 = vst [vmem:[%s315 + $0xa4] sm:$0xf] %v398
                  %v400 = vld [vmem:[%s314 + $0x138] sm:$0xf]
                  %401 = vst [vmem:[%s315 + $0xa8] sm:$0xf] %v400
                  %v402 = vld [vmem:[%s314 + $0x13c] sm:$0xf]
                  %403 = vst [vmem:[%s315 + $0xac] sm:$0xf] %v402
                  %v404 = vld [vmem:[%s314 + $0x140] sm:$0xf]
                  %405 = vst [vmem:[%s315 + $0xb0] sm:$0xf] %v404
                  %v406 = vld [vmem:[%s314 + $0x144] sm:$0xf]
                  %407 = vst [vmem:[%s315 + $0xb4] sm:$0xf] %v406
                  %v408 = vld [vmem:[%s314 + $0x148] sm:$0xf]
                  %409 = vst [vmem:[%s315 + $0xb8] sm:$0xf] %v408
                  %v410 = vld [vmem:[%s314 + $0x14c] sm:$0xf]
                  %411 = vst [vmem:[%s315 + $0xbc] sm:$0xf] %v410
                  %v412 = vld [vmem:[%s314 + $0x150] sm:$0xf]
                  %413 = vst [vmem:[%s315 + $0xc0] sm:$0xf] %v412
                  %v414 = vld [vmem:[%s314 + $0x154] sm:$0xf]
                  %415 = vst [vmem:[%s315 + $0xc4] sm:$0xf] %v414
                  %v416 = vld [vmem:[%s314 + $0x158] sm:$0xf]
                  %417 = vst [vmem:[%s315 + $0xc8] sm:$0xf] %v416
                  %v418 = vld [vmem:[%s314 + $0x15c] sm:$0xf]
                  %419 = vst [vmem:[%s315 + $0xcc] sm:$0xf] %v418
                  %v420 = vld [vmem:[%s314 + $0x160] sm:$0xf]
                  %421 = vst [vmem:[%s315 + $0xd0] sm:$0xf] %v420
                  %v422 = vld [vmem:[%s314 + $0x164] sm:$0xf]
                  %423 = vst [vmem:[%s315 + $0xd4] sm:$0xf] %v422
                  %v424 = vld [vmem:[%s314 + $0x1b0] sm:$0xf]
                  %425 = vst [vmem:[%s315 + $0xd8] sm:$0xf] %v424
                  %v426 = vld [vmem:[%s314 + $0x1b4] sm:$0xf]
                  %427 = vst [vmem:[%s315 + $0xdc] sm:$0xf] %v426
                  %v428 = vld [vmem:[%s314 + $0x1b8] sm:$0xf]
                  %429 = vst [vmem:[%s315 + $0xe0] sm:$0xf] %v428
                  %v430 = vld [vmem:[%s314 + $0x1bc] sm:$0xf]
                  %431 = vst [vmem:[%s315 + $0xe4] sm:$0xf] %v430
                  %v432 = vld [vmem:[%s314 + $0x1c0] sm:$0xf]
                  %433 = vst [vmem:[%s315 + $0xe8] sm:$0xf] %v432
                  %v434 = vld [vmem:[%s314 + $0x1c4] sm:$0xf]
                  %435 = vst [vmem:[%s315 + $0xec] sm:$0xf] %v434
                  %v436 = vld [vmem:[%s314 + $0x1c8] sm:$0xf]
                  %437 = vst [vmem:[%s315 + $0xf0] sm:$0xf] %v436
                  %v438 = vld [vmem:[%s314 + $0x1cc] sm:$0xf]
                  %439 = vst [vmem:[%s315 + $0xf4] sm:$0xf] %v438
                  %v440 = vld [vmem:[%s314 + $0x1d0] sm:$0xf]
                  %441 = vst [vmem:[%s315 + $0xf8] sm:$0xf] %v440
                  %v442 = vld [vmem:[%s314 + $0x1d4] sm:$0xf]
                  %443 = vst [vmem:[%s315 + $0xfc] sm:$0xf] %v442
                  %v444 = vld [vmem:[%s314 + $0x1d8] sm:$0xf]
                  %445 = vst [vmem:[%s315 + $0x100] sm:$0xf] %v444
                  %v446 = vld [vmem:[%s314 + $0x1dc] sm:$0xf]
                  %447 = vst [vmem:[%s315 + $0x104] sm:$0xf] %v446
                  %v448 = vld [vmem:[%s314 + $0x1e0] sm:$0xf]
                  %449 = vst [vmem:[%s315 + $0x108] sm:$0xf] %v448
                  %v450 = vld [vmem:[%s314 + $0x1e4] sm:$0xf]
                  %451 = vst [vmem:[%s315 + $0x10c] sm:$0xf] %v450
                  %v452 = vld [vmem:[%s314 + $0x1e8] sm:$0xf]
                  %453 = vst [vmem:[%s315 + $0x110] sm:$0xf] %v452
                  %v454 = vld [vmem:[%s314 + $0x1ec] sm:$0xf]
                  %455 = vst [vmem:[%s315 + $0x114] sm:$0xf] %v454
                  %v456 = vld [vmem:[%s314 + $0x1f0] sm:$0xf]
                  %457 = vst [vmem:[%s315 + $0x118] sm:$0xf] %v456
                  %v458 = vld [vmem:[%s314 + $0x1f4] sm:$0xf]
                  %459 = vst [vmem:[%s315 + $0x11c] sm:$0xf] %v458
                $region63: #{forward.3} parent=50 // loop_footer
                  %s313 = sadd.s32 1, %s309
                $region64: #{forward.3} parent=50 // loop_footer_branch
                  %308 = sbr.rel target = $region60
                $region65: #{forward.3} parent=50 // loop_exit
                  _
              $region51: #{forward.3} parent=35 // pred_fallthru
                _
            $region36: #{forward.3} parent=31 // pred_fallthru
              _
            // Predicated region
            $region37: #{forward.3} parent=31 // pred_check
              _
            $region38: #{forward.3} parent=31 // pred_check_branch
              %143 = sbr.rel (0) target = $region40
            $region39: #{forward.3} parent=31 // pred_region
              loop: start=0, step=1, limit=1
              $region41: #{forward.3} parent=39 // loop_pre_header
                _
              $region42: #{forward.3} parent=39 // loop_header
                %s146 = sphi 0, %s150
                %p147 = scmp.ge.s32.totalorder %s146, 1
                %s151 = sphi %s137, %s137
                %s152 = sphi %s134, %s134
              $region43: #{forward.3} parent=39 // loop_header_branch
                %149 = sbr.rel (%p147) target = $region47
              $region44: #{forward.3} parent=39 // loop_body
                %v153 = vld [vmem:[%s151] sm:$0xf]
                %154 = vst [vmem:[%s152] sm:$0xf] %v153
                %v155 = vld [vmem:[%s151 + $0x4] sm:$0xf]
                %156 = vst [vmem:[%s152 + $0x4] sm:$0xf] %v155
                %v157 = vld [vmem:[%s151 + $0x8] sm:$0xf]
                %158 = vst [vmem:[%s152 + $0x8] sm:$0xf] %v157
                %v159 = vld [vmem:[%s151 + $0xc] sm:$0xf]
                %160 = vst [vmem:[%s152 + $0xc] sm:$0xf] %v159
                %v161 = vld [vmem:[%s151 + $0x10] sm:$0xf]
                %162 = vst [vmem:[%s152 + $0x10] sm:$0xf] %v161
                %v163 = vld [vmem:[%s151 + $0x14] sm:$0xf]
                %164 = vst [vmem:[%s152 + $0x14] sm:$0xf] %v163
                %v165 = vld [vmem:[%s151 + $0x18] sm:$0xf]
                %166 = vst [vmem:[%s152 + $0x18] sm:$0xf] %v165
                %v167 = vld [vmem:[%s151 + $0x1c] sm:$0xf]
                %168 = vst [vmem:[%s152 + $0x1c] sm:$0xf] %v167
                %v169 = vld [vmem:[%s151 + $0x20] sm:$0xf]
                %170 = vst [vmem:[%s152 + $0x20] sm:$0xf] %v169
                %v171 = vld [vmem:[%s151 + $0x24] sm:$0xf]
                %172 = vst [vmem:[%s152 + $0x24] sm:$0xf] %v171
                %v173 = vld [vmem:[%s151 + $0x28] sm:$0xf]
                %174 = vst [vmem:[%s152 + $0x28] sm:$0xf] %v173
                %v175 = vld [vmem:[%s151 + $0x2c] sm:$0xf]
                %176 = vst [vmem:[%s152 + $0x2c] sm:$0xf] %v175
                %v177 = vld [vmem:[%s151 + $0x30] sm:$0xf]
                %178 = vst [vmem:[%s152 + $0x30] sm:$0xf] %v177
                %v179 = vld [vmem:[%s151 + $0x34] sm:$0xf]
                %180 = vst [vmem:[%s152 + $0x34] sm:$0xf] %v179
                %v181 = vld [vmem:[%s151 + $0x38] sm:$0xf]
                %182 = vst [vmem:[%s152 + $0x38] sm:$0xf] %v181
                %v183 = vld [vmem:[%s151 + $0x3c] sm:$0xf]
                %184 = vst [vmem:[%s152 + $0x3c] sm:$0xf] %v183
                %v185 = vld [vmem:[%s151 + $0x40] sm:$0xf]
                %186 = vst [vmem:[%s152 + $0x40] sm:$0xf] %v185
                %v187 = vld [vmem:[%s151 + $0x44] sm:$0xf]
                %188 = vst [vmem:[%s152 + $0x44] sm:$0xf] %v187
                %v189 = vld [vmem:[%s151 + $0x90] sm:$0xf]
                %190 = vst [vmem:[%s152 + $0x48] sm:$0xf] %v189
                %v191 = vld [vmem:[%s151 + $0x94] sm:$0xf]
                %192 = vst [vmem:[%s152 + $0x4c] sm:$0xf] %v191
                %v193 = vld [vmem:[%s151 + $0x98] sm:$0xf]
                %194 = vst [vmem:[%s152 + $0x50] sm:$0xf] %v193
                %v195 = vld [vmem:[%s151 + $0x9c] sm:$0xf]
                %196 = vst [vmem:[%s152 + $0x54] sm:$0xf] %v195
                %v197 = vld [vmem:[%s151 + $0xa0] sm:$0xf]
                %198 = vst [vmem:[%s152 + $0x58] sm:$0xf] %v197
                %v199 = vld [vmem:[%s151 + $0xa4] sm:$0xf]
                %200 = vst [vmem:[%s152 + $0x5c] sm:$0xf] %v199
                %v201 = vld [vmem:[%s151 + $0xa8] sm:$0xf]
                %202 = vst [vmem:[%s152 + $0x60] sm:$0xf] %v201
                %v203 = vld [vmem:[%s151 + $0xac] sm:$0xf]
                %204 = vst [vmem:[%s152 + $0x64] sm:$0xf] %v203
                %v205 = vld [vmem:[%s151 + $0xb0] sm:$0xf]
                %206 = vst [vmem:[%s152 + $0x68] sm:$0xf] %v205
                %v207 = vld [vmem:[%s151 + $0xb4] sm:$0xf]
                %208 = vst [vmem:[%s152 + $0x6c] sm:$0xf] %v207
                %v209 = vld [vmem:[%s151 + $0xb8] sm:$0xf]
                %210 = vst [vmem:[%s152 + $0x70] sm:$0xf] %v209
                %v211 = vld [vmem:[%s151 + $0xbc] sm:$0xf]
                %212 = vst [vmem:[%s152 + $0x74] sm:$0xf] %v211
                %v213 = vld [vmem:[%s151 + $0xc0] sm:$0xf]
                %214 = vst [vmem:[%s152 + $0x78] sm:$0xf] %v213
                %v215 = vld [vmem:[%s151 + $0xc4] sm:$0xf]
                %216 = vst [vmem:[%s152 + $0x7c] sm:$0xf] %v215
                %v217 = vld [vmem:[%s151 + $0xc8] sm:$0xf]
                %218 = vst [vmem:[%s152 + $0x80] sm:$0xf] %v217
                %v219 = vld [vmem:[%s151 + $0xcc] sm:$0xf]
                %220 = vst [vmem:[%s152 + $0x84] sm:$0xf] %v219
                %v221 = vld [vmem:[%s151 + $0xd0] sm:$0xf]
                %222 = vst [vmem:[%s152 + $0x88] sm:$0xf] %v221
                %v223 = vld [vmem:[%s151 + $0xd4] sm:$0xf]
                %224 = vst [vmem:[%s152 + $0x8c] sm:$0xf] %v223
                %v225 = vld [vmem:[%s151 + $0x120] sm:$0xf]
                %226 = vst [vmem:[%s152 + $0x90] sm:$0xf] %v225
                %v227 = vld [vmem:[%s151 + $0x124] sm:$0xf]
                %228 = vst [vmem:[%s152 + $0x94] sm:$0xf] %v227
                %v229 = vld [vmem:[%s151 + $0x128] sm:$0xf]
                %230 = vst [vmem:[%s152 + $0x98] sm:$0xf] %v229
                %v231 = vld [vmem:[%s151 + $0x12c] sm:$0xf]
                %232 = vst [vmem:[%s152 + $0x9c] sm:$0xf] %v231
                %v233 = vld [vmem:[%s151 + $0x130] sm:$0xf]
                %234 = vst [vmem:[%s152 + $0xa0] sm:$0xf] %v233
                %v235 = vld [vmem:[%s151 + $0x134] sm:$0xf]
                %236 = vst [vmem:[%s152 + $0xa4] sm:$0xf] %v235
                %v237 = vld [vmem:[%s151 + $0x138] sm:$0xf]
                %238 = vst [vmem:[%s152 + $0xa8] sm:$0xf] %v237
                %v239 = vld [vmem:[%s151 + $0x13c] sm:$0xf]
                %240 = vst [vmem:[%s152 + $0xac] sm:$0xf] %v239
                %v241 = vld [vmem:[%s151 + $0x140] sm:$0xf]
                %242 = vst [vmem:[%s152 + $0xb0] sm:$0xf] %v241
                %v243 = vld [vmem:[%s151 + $0x144] sm:$0xf]
                %244 = vst [vmem:[%s152 + $0xb4] sm:$0xf] %v243
                %v245 = vld [vmem:[%s151 + $0x148] sm:$0xf]
                %246 = vst [vmem:[%s152 + $0xb8] sm:$0xf] %v245
                %v247 = vld [vmem:[%s151 + $0x14c] sm:$0xf]
                %248 = vst [vmem:[%s152 + $0xbc] sm:$0xf] %v247
                %v249 = vld [vmem:[%s151 + $0x150] sm:$0xf]
                %250 = vst [vmem:[%s152 + $0xc0] sm:$0xf] %v249
                %v251 = vld [vmem:[%s151 + $0x154] sm:$0xf]
                %252 = vst [vmem:[%s152 + $0xc4] sm:$0xf] %v251
                %v253 = vld [vmem:[%s151 + $0x158] sm:$0xf]
                %254 = vst [vmem:[%s152 + $0xc8] sm:$0xf] %v253
                %v255 = vld [vmem:[%s151 + $0x15c] sm:$0xf]
                %256 = vst [vmem:[%s152 + $0xcc] sm:$0xf] %v255
                %v257 = vld [vmem:[%s151 + $0x160] sm:$0xf]
                %258 = vst [vmem:[%s152 + $0xd0] sm:$0xf] %v257
                %v259 = vld [vmem:[%s151 + $0x164] sm:$0xf]
                %260 = vst [vmem:[%s152 + $0xd4] sm:$0xf] %v259
                %v261 = vld [vmem:[%s151 + $0x1b0] sm:$0xf]
                %262 = vst [vmem:[%s152 + $0xd8] sm:$0xf] %v261
                %v263 = vld [vmem:[%s151 + $0x1b4] sm:$0xf]
                %264 = vst [vmem:[%s152 + $0xdc] sm:$0xf] %v263
                %v265 = vld [vmem:[%s151 + $0x1b8] sm:$0xf]
                %266 = vst [vmem:[%s152 + $0xe0] sm:$0xf] %v265
                %v267 = vld [vmem:[%s151 + $0x1bc] sm:$0xf]
                %268 = vst [vmem:[%s152 + $0xe4] sm:$0xf] %v267
                %v269 = vld [vmem:[%s151 + $0x1c0] sm:$0xf]
                %270 = vst [vmem:[%s152 + $0xe8] sm:$0xf] %v269
                %v271 = vld [vmem:[%s151 + $0x1c4] sm:$0xf]
                %272 = vst [vmem:[%s152 + $0xec] sm:$0xf] %v271
                %v273 = vld [vmem:[%s151 + $0x1c8] sm:$0xf]
                %274 = vst [vmem:[%s152 + $0xf0] sm:$0xf] %v273
                %v275 = vld [vmem:[%s151 + $0x1cc] sm:$0xf]
                %276 = vst [vmem:[%s152 + $0xf4] sm:$0xf] %v275
                %v277 = vld [vmem:[%s151 + $0x1d0] sm:$0xf]
                %278 = vst [vmem:[%s152 + $0xf8] sm:$0xf] %v277
                %v279 = vld [vmem:[%s151 + $0x1d4] sm:$0xf]
                %280 = vst [vmem:[%s152 + $0xfc] sm:$0xf] %v279
                %v281 = vld [vmem:[%s151 + $0x1d8] sm:$0xf]
                %282 = vst [vmem:[%s152 + $0x100] sm:$0xf] %v281
                %v283 = vld [vmem:[%s151 + $0x1dc] sm:$0xf]
                %284 = vst [vmem:[%s152 + $0x104] sm:$0xf] %v283
                %v285 = vld [vmem:[%s151 + $0x1e0] sm:$0xf]
                %286 = vst [vmem:[%s152 + $0x108] sm:$0xf] %v285
                %v287 = vld [vmem:[%s151 + $0x1e4] sm:$0xf]
                %288 = vst [vmem:[%s152 + $0x10c] sm:$0xf] %v287
                %v289 = vld [vmem:[%s151 + $0x1e8] sm:$0xf]
                %290 = vst [vmem:[%s152 + $0x110] sm:$0xf] %v289
                %v291 = vld [vmem:[%s151 + $0x1ec] sm:$0xf]
                %292 = vst [vmem:[%s152 + $0x114] sm:$0xf] %v291
                %v293 = vld [vmem:[%s151 + $0x1f0] sm:$0xf]
                %294 = vst [vmem:[%s152 + $0x118] sm:$0xf] %v293
                %v295 = vld [vmem:[%s151 + $0x1f4] sm:$0xf]
                %296 = vst [vmem:[%s152 + $0x11c] sm:$0xf] %v295
              $region45: #{forward.3} parent=39 // loop_footer
                %s150 = sadd.s32 1, %s146
              $region46: #{forward.3} parent=39 // loop_footer_branch
                %145 = sbr.rel target = $region42
              $region47: #{forward.3} parent=39 // loop_exit
                _
            $region40: #{forward.3} parent=31 // pred_fallthru
              _
          $region32: #{forward.3} parent=27 // pred_fallthru
            _
          %460 = vnop
        $region28: #{forward.3} parent=23 // pred_fallthru
          _
      $region24: #{forward.3} parent=5 // pred_fallthru
        _
      %p461 = scmp.le.s32.totalorder 1, %s9
      %p462 = scmp.lt.s32.totalorder %s9, 3
      %p463 = pnand %p461, %p462
      %p464 = pneg %p463
      // Predicated region
      $region66: #{forward.3} parent=5 // pred_check
        _
      $region67: #{forward.3} parent=5 // pred_check_branch
        %466 = sbr.rel (%p463) target = $region69
      $region68: #{forward.3} parent=5 // pred_region
        %s467 = ssub.s32 %s9, 1
        %s468 = sand.u32 %s22, 1
        %s469 = sand.u32 %s22, 1
        %s470 = smul.addr %s469, 288
        %s471 = scalar_lea.vmem [#allocation2], %s470
        // Predicated region
        $region70: #{forward.3} parent=68 // pred_check
          %p472 = pneg %p35
        $region71: #{forward.3} parent=68 // pred_check_branch
          %474 = sbr.rel (%p472) target = $region73
        $region72: #{forward.3} parent=68 // pred_region
          _
        $region73: #{forward.3} parent=68 // pred_fallthru
          _
        %s475 = sand.u32 %s22, 1
        %s476 = sand.u32 %s22, 1
        %s477 = smul.addr %s476, 288
        %s478 = scalar_lea.vmem [#allocation2], %s477
        %p479 = pneg %p35
        %p480 = pneg %p32
        %p481 = pneg %p56
        %p482 = pneg %p53
        %p483 = pneg %p77
        %p484 = pneg %p74
        %p485 = pneg %p103
        %p486 = pneg %p100
        %s487 = smul.u32 18, %s14
        %p488 = scmp.lt.s32.totalorder %s487, 35
        %s489 = scalar_select %p488, %s487, 35
        %s490 = smul.addr %s489, 4
        %s491 = scalar_lea.vmem %s3, %s490
        %s492 = smul.u32 18, %s14
        %s493 = smul.u32 18, %s14
        %p494 = scmp.lt.s32.totalorder %s493, 35
        %s495 = scalar_select %p494, %s493, 35
        %s496 = smul.addr %s495, 4
        %s497 = scalar_lea.vmem %s3, %s496
        %s498 = smul.u32 18, %s14
        %v500 = vld [vmem:[%s471] sm:$0xf]
        %v501 = vld [vmem:[%s471 + $0x4] sm:$0xf]
        %v502 = vld [vmem:[%s471 + $0x8] sm:$0xf]
        %v503 = vld [vmem:[%s471 + $0xc] sm:$0xf]
        %v504 = vld [vmem:[%s471 + $0x10] sm:$0xf]
        %v505 = vld [vmem:[%s471 + $0x14] sm:$0xf]
        %v506 = vld [vmem:[%s471 + $0x18] sm:$0xf]
        %v507 = vld [vmem:[%s471 + $0x1c] sm:$0xf]
        %v508 = vld [vmem:[%s471 + $0x20] sm:$0xf]
        %v509 = vld [vmem:[%s471 + $0x24] sm:$0xf]
        %v510 = vld [vmem:[%s471 + $0x28] sm:$0xf]
        %v511 = vld [vmem:[%s471 + $0x2c] sm:$0xf]
        %v512 = vld [vmem:[%s471 + $0x30] sm:$0xf]
        %v513 = vld [vmem:[%s471 + $0x34] sm:$0xf]
        %v514 = vld [vmem:[%s471 + $0x38] sm:$0xf]
        %v515 = vld [vmem:[%s471 + $0x3c] sm:$0xf]
        %v516 = vld [vmem:[%s471 + $0x40] sm:$0xf]
        %v517 = vld [vmem:[%s471 + $0x44] sm:$0xf]
        %v518 = vld [vmem:[%s471 + $0x48] sm:$0xf]
        %v519 = vld [vmem:[%s471 + $0x4c] sm:$0xf]
        %v520 = vld [vmem:[%s471 + $0x50] sm:$0xf]
        %v521 = vld [vmem:[%s471 + $0x54] sm:$0xf]
        %v522 = vld [vmem:[%s471 + $0x58] sm:$0xf]
        %v523 = vld [vmem:[%s471 + $0x5c] sm:$0xf]
        %v524 = vld [vmem:[%s471 + $0x60] sm:$0xf]
        %v525 = vld [vmem:[%s471 + $0x64] sm:$0xf]
        %v526 = vld [vmem:[%s471 + $0x68] sm:$0xf]
        %v527 = vld [vmem:[%s471 + $0x6c] sm:$0xf]
        %v528 = vld [vmem:[%s471 + $0x70] sm:$0xf]
        %v529 = vld [vmem:[%s471 + $0x74] sm:$0xf]
        %v530 = vld [vmem:[%s471 + $0x78] sm:$0xf]
        %v531 = vld [vmem:[%s471 + $0x7c] sm:$0xf]
        %v532 = vld [vmem:[%s471 + $0x80] sm:$0xf]
        %v533 = vld [vmem:[%s471 + $0x84] sm:$0xf]
        %v534 = vld [vmem:[%s471 + $0x88] sm:$0xf]
        %v535 = vld [vmem:[%s471 + $0x8c] sm:$0xf]
        %v536 = vld [vmem:[%s471 + $0x90] sm:$0xf]
        %v537 = vld [vmem:[%s471 + $0x94] sm:$0xf]
        %v538 = vld [vmem:[%s471 + $0x98] sm:$0xf]
        %v539 = vld [vmem:[%s471 + $0x9c] sm:$0xf]
        %v540 = vld [vmem:[%s471 + $0xa0] sm:$0xf]
        %v541 = vld [vmem:[%s471 + $0xa4] sm:$0xf]
        %v542 = vld [vmem:[%s471 + $0xa8] sm:$0xf]
        %v543 = vld [vmem:[%s471 + $0xac] sm:$0xf]
        %v544 = vld [vmem:[%s471 + $0xb0] sm:$0xf]
        %v545 = vld [vmem:[%s471 + $0xb4] sm:$0xf]
        %v546 = vld [vmem:[%s471 + $0xb8] sm:$0xf]
        %v547 = vld [vmem:[%s471 + $0xbc] sm:$0xf]
        %v548 = vld [vmem:[%s471 + $0xc0] sm:$0xf]
        %v549 = vld [vmem:[%s471 + $0xc4] sm:$0xf]
        %v550 = vld [vmem:[%s471 + $0xc8] sm:$0xf]
        %v551 = vld [vmem:[%s471 + $0xcc] sm:$0xf]
        %v552 = vld [vmem:[%s471 + $0xd0] sm:$0xf]
        %v553 = vld [vmem:[%s471 + $0xd4] sm:$0xf]
        %v554 = vld [vmem:[%s471 + $0xd8] sm:$0xf]
        %v555 = vld [vmem:[%s471 + $0xdc] sm:$0xf]
        %v556 = vld [vmem:[%s471 + $0xe0] sm:$0xf]
        %v557 = vld [vmem:[%s471 + $0xe4] sm:$0xf]
        %v558 = vld [vmem:[%s471 + $0xe8] sm:$0xf]
        %v559 = vld [vmem:[%s471 + $0xec] sm:$0xf]
        %v560 = vld [vmem:[%s471 + $0xf0] sm:$0xf]
        %v561 = vld [vmem:[%s471 + $0xf4] sm:$0xf]
        %v562 = vld [vmem:[%s471 + $0xf8] sm:$0xf]
        %v563 = vld [vmem:[%s471 + $0xfc] sm:$0xf]
        %v564 = vld [vmem:[%s471 + $0x100] sm:$0xf]
        %v565 = vld [vmem:[%s471 + $0x104] sm:$0xf]
        %v566 = vld [vmem:[%s471 + $0x108] sm:$0xf]
        %v567 = vld [vmem:[%s471 + $0x10c] sm:$0xf]
        %v568 = vld [vmem:[%s471 + $0x110] sm:$0xf]
        %v569 = vld [vmem:[%s471 + $0x114] sm:$0xf]
        %v570 = vld [vmem:[%s471 + $0x118] sm:$0xf]
        %v571 = vld [vmem:[%s471 + $0x11c] sm:$0xf]
        %v572 = vld [vmem:[%s1] sm:$0xf]
        %v573 = vld [vmem:[%s1 + $0x4] sm:$0xf]
        %v574 = vld [vmem:[%s1 + $0x8] sm:$0xf]
        %v575 = vld [vmem:[%s1 + $0xc] sm:$0xf]
        %v576 = vld [vmem:[%s2] sm:$0x1]
        %v578 = vlaneseq
        %v579 = vshrl.u32 %v578, 7
        %v580 = vsub.s32 0, %v579
        %v581 = vrot.slane %v576, %v580
        %v655 = vunpack.c.l.b16 %v500
        %v656 = vunpack.c.l.b16 %v501
        %v657 = vunpack.c.l.b16 %v502
        %v658 = vunpack.c.l.b16 %v503
        %v659 = vunpack.c.l.b16 %v504
        %v660 = vunpack.c.l.b16 %v505
        %v661 = vunpack.c.l.b16 %v506
        %v662 = vunpack.c.l.b16 %v507
        %v663 = vunpack.c.l.b16 %v508
        %v664 = vunpack.c.l.b16 %v509
        %v665 = vunpack.c.l.b16 %v510
        %v666 = vunpack.c.l.b16 %v511
        %v667 = vunpack.c.l.b16 %v512
        %v668 = vunpack.c.l.b16 %v513
        %v669 = vunpack.c.l.b16 %v514
        %v670 = vunpack.c.l.b16 %v515
        %v671 = vunpack.c.l.b16 %v516
        %v672 = vunpack.c.l.b16 %v517
        %v673 = vunpack.c.l.b16 %v518
        %v674 = vunpack.c.l.b16 %v519
        %v675 = vunpack.c.l.b16 %v520
        %v676 = vunpack.c.l.b16 %v521
        %v677 = vunpack.c.l.b16 %v522
        %v678 = vunpack.c.l.b16 %v523
        %v679 = vunpack.c.l.b16 %v524
        %v680 = vunpack.c.l.b16 %v525
        %v681 = vunpack.c.l.b16 %v526
        %v682 = vunpack.c.l.b16 %v527
        %v683 = vunpack.c.l.b16 %v528
        %v684 = vunpack.c.l.b16 %v529
        %v685 = vunpack.c.l.b16 %v530
        %v686 = vunpack.c.l.b16 %v531
        %v687 = vunpack.c.l.b16 %v532
        %v688 = vunpack.c.l.b16 %v533
        %v689 = vunpack.c.l.b16 %v534
        %v690 = vunpack.c.l.b16 %v535
        %v691 = vunpack.c.l.b16 %v536
        %v692 = vunpack.c.l.b16 %v537
        %v693 = vunpack.c.l.b16 %v538
        %v694 = vunpack.c.l.b16 %v539
        %v695 = vunpack.c.l.b16 %v540
        %v696 = vunpack.c.l.b16 %v541
        %v697 = vunpack.c.l.b16 %v542
        %v698 = vunpack.c.l.b16 %v543
        %v699 = vunpack.c.l.b16 %v544
        %v700 = vunpack.c.l.b16 %v545
        %v701 = vunpack.c.l.b16 %v546
        %v702 = vunpack.c.l.b16 %v547
        %v703 = vunpack.c.l.b16 %v548
        %v704 = vunpack.c.l.b16 %v549
        %v705 = vunpack.c.l.b16 %v550
        %v706 = vunpack.c.l.b16 %v551
        %v707 = vunpack.c.l.b16 %v552
        %v708 = vunpack.c.l.b16 %v553
        %v709 = vunpack.c.l.b16 %v554
        %v710 = vunpack.c.l.b16 %v555
        %v711 = vunpack.c.l.b16 %v556
        %v712 = vunpack.c.l.b16 %v557
        %v713 = vunpack.c.l.b16 %v558
        %v714 = vunpack.c.l.b16 %v559
        %v715 = vunpack.c.l.b16 %v560
        %v716 = vunpack.c.l.b16 %v561
        %v717 = vunpack.c.l.b16 %v562
        %v718 = vunpack.c.l.b16 %v563
        %v719 = vunpack.c.l.b16 %v564
        %v720 = vunpack.c.l.b16 %v565
        %v721 = vunpack.c.l.b16 %v566
        %v722 = vunpack.c.l.b16 %v567
        %v723 = vunpack.c.l.b16 %v568
        %v724 = vunpack.c.l.b16 %v569
        %v725 = vunpack.c.l.b16 %v570
        %v726 = vunpack.c.l.b16 %v571
        %v727 = vpack.c.b16 %v656, %v655
        %v728 = vpack.c.b16 %v658, %v657
        %v729 = vpack.c.b16 %v660, %v659
        %v730 = vpack.c.b16 %v662, %v661
        %v731 = vpack.c.b16 %v664, %v663
        %v732 = vpack.c.b16 %v666, %v665
        %v733 = vpack.c.b16 %v668, %v667
        %v734 = vpack.c.b16 %v670, %v669
        %v735 = vpack.c.b16 %v672, %v671
        %v736 = vpack.c.b16 %v674, %v673
        %v737 = vpack.c.b16 %v676, %v675
        %v738 = vpack.c.b16 %v678, %v677
        %v739 = vpack.c.b16 %v680, %v679
        %v740 = vpack.c.b16 %v682, %v681
        %v741 = vpack.c.b16 %v684, %v683
        %v742 = vpack.c.b16 %v686, %v685
        %v743 = vpack.c.b16 %v688, %v687
        %v744 = vpack.c.b16 %v690, %v689
        %v745 = vpack.c.b16 %v692, %v691
        %v746 = vpack.c.b16 %v694, %v693
        %v747 = vpack.c.b16 %v696, %v695
        %v748 = vpack.c.b16 %v698, %v697
        %v749 = vpack.c.b16 %v700, %v699
        %v750 = vpack.c.b16 %v702, %v701
        %v751 = vpack.c.b16 %v704, %v703
        %v752 = vpack.c.b16 %v706, %v705
        %v753 = vpack.c.b16 %v708, %v707
        %v754 = vpack.c.b16 %v710, %v709
        %v755 = vpack.c.b16 %v712, %v711
        %v756 = vpack.c.b16 %v714, %v713
        %v757 = vpack.c.b16 %v716, %v715
        %v758 = vpack.c.b16 %v718, %v717
        %v759 = vpack.c.b16 %v720, %v719
        %v760 = vpack.c.b16 %v722, %v721
        %v761 = vpack.c.b16 %v724, %v723
        %v762 = vpack.c.b16 %v726, %v725
        %v767 = vunpack.c.l.b16 %v572
        %v768 = vunpack.c.l.b16 %v573
        %v769 = vunpack.c.l.b16 %v574
        %v770 = vunpack.c.l.b16 %v575
        %v771 = vpack.c.b16 %v768, %v767
        %v772 = vpack.c.b16 %v770, %v769
        %vm775 = vcmask 261120
        %v777 = vsel %vm775, %v727, 0
        %v780 = vsel %vm775, %v728, 0
        %v783 = vsel %vm775, %v729, 0
        %v786 = vsel %vm775, %v730, 0
        %v789 = vsel %vm775, %v731, 0
        %v792 = vsel %vm775, %v732, 0
        %v795 = vsel %vm775, %v733, 0
        %v798 = vsel %vm775, %v734, 0
        %v801 = vsel %vm775, %v735, 0
        %v804 = vsel %vm775, %v736, 0
        %v807 = vsel %vm775, %v737, 0
        %v810 = vsel %vm775, %v738, 0
        %v813 = vsel %vm775, %v739, 0
        %v816 = vsel %vm775, %v740, 0
        %v819 = vsel %vm775, %v741, 0
        %v822 = vsel %vm775, %v742, 0
        %v825 = vsel %vm775, %v743, 0
        %v828 = vsel %vm775, %v744, 0
        %v831 = vsel %vm775, %v745, 0
        %v834 = vsel %vm775, %v746, 0
        %v837 = vsel %vm775, %v747, 0
        %v840 = vsel %vm775, %v748, 0
        %v843 = vsel %vm775, %v749, 0
        %v846 = vsel %vm775, %v750, 0
        %v849 = vsel %vm775, %v751, 0
        %v852 = vsel %vm775, %v752, 0
        %v855 = vsel %vm775, %v753, 0
        %v858 = vsel %vm775, %v754, 0
        %v861 = vsel %vm775, %v755, 0
        %v864 = vsel %vm775, %v756, 0
        %v867 = vsel %vm775, %v757, 0
        %v870 = vsel %vm775, %v758, 0
        %v873 = vsel %vm775, %v759, 0
        %v876 = vsel %vm775, %v760, 0
        %v879 = vsel %vm775, %v761, 0
        %v882 = vsel %vm775, %v762, 0
        %884 = vmatprep.subr.bf16.mxu0 0
        %885 = vmatpush1.bf16.msra.mxu0 %v771
        %886 = vmatprep.subr.bf16.mxu0 0
        %887 = vmatpush1.bf16.msra.mxu0 %v772
        %888 = vmatprep.subr.bf16.mxu0 0
        %889 = vmatpush1.bf16.msra.mxu0 0
        %890 = vmatprep.subr.bf16.mxu0 0
        %891 = vmatpush1.bf16.msra.mxu0 0
        %892 = vmatprep.subr.bf16.mxu0 0
        %893 = vmatpush1.bf16.msra.mxu0 0
        %894 = vmatprep.subr.bf16.mxu0 0
        %895 = vmatpush1.bf16.msra.mxu0 0
        %896 = vmatprep.subr.bf16.mxu0 0
        %897 = vmatpush1.bf16.msra.mxu0 0
        %898 = vmatprep.subr.bf16.mxu0 0
        %899 = vmatpush1.bf16.msra.mxu0 0
        %900 = vmatprep.subr.bf16.mxu0 0
        %901 = vmatpush1.bf16.msra.mxu0 0
        %902 = vmatprep.subr.bf16.mxu0 0
        %903 = vmatpush1.bf16.msra.mxu0 0
        %904 = vmatprep.subr.bf16.mxu0 0
        %905 = vmatpush1.bf16.msra.mxu0 0
        %906 = vmatprep.subr.bf16.mxu0 0
        %907 = vmatpush1.bf16.msra.mxu0 0
        %908 = vmatprep.subr.bf16.mxu0 0
        %909 = vmatpush1.bf16.msra.mxu0 0
        %910 = vmatprep.subr.bf16.mxu0 0
        %911 = vmatpush1.bf16.msra.mxu0 0
        %912 = vmatprep.subr.bf16.mxu0 0
        %913 = vmatpush1.bf16.msra.mxu0 0
        %914 = vmatprep.subr.bf16.mxu0 0
        %915 = vmatpush1.bf16.msra.mxu0 0
        %916 = vmatprep.mubr.bf16.mxu0 0
        %917 = vmatmul.mubr.bf16.gmra.mrb[0].mxu0 %v777
        %v918 = vpop.f32.mrb[0].mxu0
        %v919 = vadd.f32 %v581, %v918
        %v920 = vpop.f32.mrb[0].mxu0
        %v921 = vpop.f32.mrb[0].mxu0
        %v922 = vadd.f32 %v581, %v921
        %v923 = vpop.f32.mrb[0].mxu0
        %924 = vmatprep.mubr.bf16.mxu0 0
        %925 = vmatmul.mubr.bf16.gmra.mrb[0].mxu0 %v780
        %v926 = vpop.f32.mrb[0].mxu0
        %v927 = vadd.f32 %v581, %v926
        %v928 = vpop.f32.mrb[0].mxu0
        %v929 = vpop.f32.mrb[0].mxu0
        %v930 = vadd.f32 %v581, %v929
        %v931 = vpop.f32.mrb[0].mxu0
        %932 = vmatprep.mubr.bf16.mxu0 0
        %933 = vmatmul.mubr.bf16.gmra.mrb[0].mxu0 %v783
        %v934 = vpop.f32.mrb[0].mxu0
        %v935 = vadd.f32 %v581, %v934
        %v936 = vpop.f32.mrb[0].mxu0
        %v937 = vpop.f32.mrb[0].mxu0
        %v938 = vadd.f32 %v581, %v937
        %v939 = vpop.f32.mrb[0].mxu0
        %940 = vmatprep.mubr.bf16.mxu0 0
        %941 = vmatmul.mubr.bf16.gmra.mrb[0].mxu0 %v786
        %v942 = vpop.f32.mrb[0].mxu0
        %v943 = vadd.f32 %v581, %v942
        %v944 = vpop.f32.mrb[0].mxu0
        %v945 = vpop.f32.mrb[0].mxu0
        %v946 = vadd.f32 %v581, %v945
        %v947 = vpop.f32.mrb[0].mxu0
        %948 = vmatprep.mubr.bf16.mxu0 0
        %949 = vmatmul.mubr.bf16.gmra.mrb[0].mxu0 %v789
        %v950 = vpop.f32.mrb[0].mxu0
        %v951 = vadd.f32 %v581, %v950
        %v952 = vpop.f32.mrb[0].mxu0
        %v953 = vpop.f32.mrb[0].mxu0
        %v954 = vadd.f32 %v581, %v953
        %v955 = vpop.f32.mrb[0].mxu0
        %956 = vmatprep.mubr.bf16.mxu0 0
        %957 = vmatmul.mubr.bf16.gmra.mrb[0].mxu0 %v792
        %v958 = vpop.f32.mrb[0].mxu0
        %v959 = vadd.f32 %v581, %v958
        %v960 = vpop.f32.mrb[0].mxu0
        %v961 = vpop.f32.mrb[0].mxu0
        %v962 = vadd.f32 %v581, %v961
        %v963 = vpop.f32.mrb[0].mxu0
        %964 = vmatprep.mubr.bf16.mxu0 0
        %965 = vmatmul.mubr.bf16.gmra.mrb[0].mxu0 %v795
        %v966 = vpop.f32.mrb[0].mxu0
        %v967 = vadd.f32 %v581, %v966
        %v968 = vpop.f32.mrb[0].mxu0
        %v969 = vpop.f32.mrb[0].mxu0
        %v970 = vadd.f32 %v581, %v969
        %v971 = vpop.f32.mrb[0].mxu0
        %972 = vmatprep.mubr.bf16.mxu0 0
        %973 = vmatmul.mubr.bf16.gmra.mrb[0].mxu0 %v798
        %v974 = vpop.f32.mrb[0].mxu0
        %v975 = vadd.f32 %v581, %v974
        %v976 = vpop.f32.mrb[0].mxu0
        %v977 = vpop.f32.mrb[0].mxu0
        %v978 = vadd.f32 %v581, %v977
        %v979 = vpop.f32.mrb[0].mxu0
        %980 = vmatprep.mubr.bf16.mxu0 0
        %981 = vmatmul.mubr.bf16.gmra.mrb[0].mxu0 %v801
        %v982 = vpop.f32.mrb[0].mxu0
        %v983 = vadd.f32 %v581, %v982
        %v984 = vpop.f32.mrb[0].mxu0
        %v985 = vpop.f32.mrb[0].mxu0
        %v986 = vadd.f32 %v581, %v985
        %v987 = vpop.f32.mrb[0].mxu0
        %988 = vmatprep.mubr.bf16.mxu0 0
        %989 = vmatmul.mubr.bf16.gmra.mrb[0].mxu0 %v804
        %v990 = vpop.f32.mrb[0].mxu0
        %v991 = vadd.f32 %v581, %v990
        %v992 = vpop.f32.mrb[0].mxu0
        %v993 = vpop.f32.mrb[0].mxu0
        %v994 = vadd.f32 %v581, %v993
        %v995 = vpop.f32.mrb[0].mxu0
        %996 = vmatprep.mubr.bf16.mxu0 0
        %997 = vmatmul.mubr.bf16.gmra.mrb[0].mxu0 %v807
        %v998 = vpop.f32.mrb[0].mxu0
        %v999 = vadd.f32 %v581, %v998
        %v1000 = vpop.f32.mrb[0].mxu0
        %v1001 = vpop.f32.mrb[0].mxu0
        %v1002 = vadd.f32 %v581, %v1001
        %v1003 = vpop.f32.mrb[0].mxu0
        %1004 = vmatprep.mubr.bf16.mxu0 0
        %1005 = vmatmul.mubr.bf16.gmra.mrb[0].mxu0 %v810
        %v1006 = vpop.f32.mrb[0].mxu0
        %v1007 = vadd.f32 %v581, %v1006
        %v1008 = vpop.f32.mrb[0].mxu0
        %v1009 = vpop.f32.mrb[0].mxu0
        %v1010 = vadd.f32 %v581, %v1009
        %v1011 = vpop.f32.mrb[0].mxu0
        %1012 = vmatprep.mubr.bf16.mxu0 0
        %1013 = vmatmul.mubr.bf16.gmra.mrb[0].mxu0 %v813
        %v1014 = vpop.f32.mrb[0].mxu0
        %v1015 = vadd.f32 %v581, %v1014
        %v1016 = vpop.f32.mrb[0].mxu0
        %v1017 = vpop.f32.mrb[0].mxu0
        %v1018 = vadd.f32 %v581, %v1017
        %v1019 = vpop.f32.mrb[0].mxu0
        %1020 = vmatprep.mubr.bf16.mxu0 0
        %1021 = vmatmul.mubr.bf16.gmra.mrb[0].mxu0 %v816
        %v1022 = vpop.f32.mrb[0].mxu0
        %v1023 = vadd.f32 %v581, %v1022
        %v1024 = vpop.f32.mrb[0].mxu0
        %v1025 = vpop.f32.mrb[0].mxu0
        %v1026 = vadd.f32 %v581, %v1025
        %v1027 = vpop.f32.mrb[0].mxu0
        %1028 = vmatprep.mubr.bf16.mxu0 0
        %1029 = vmatmul.mubr.bf16.gmra.mrb[0].mxu0 %v819
        %v1030 = vpop.f32.mrb[0].mxu0
        %v1031 = vadd.f32 %v581, %v1030
        %v1032 = vpop.f32.mrb[0].mxu0
        %v1033 = vpop.f32.mrb[0].mxu0
        %v1034 = vadd.f32 %v581, %v1033
        %v1035 = vpop.f32.mrb[0].mxu0
        %1036 = vmatprep.mubr.bf16.mxu0 0
        %1037 = vmatmul.mubr.bf16.gmra.mrb[0].mxu0 %v822
        %v1038 = vpop.f32.mrb[0].mxu0
        %v1039 = vadd.f32 %v581, %v1038
        %v1040 = vpop.f32.mrb[0].mxu0
        %v1041 = vpop.f32.mrb[0].mxu0
        %v1042 = vadd.f32 %v581, %v1041
        %v1043 = vpop.f32.mrb[0].mxu0
        %1044 = vmatprep.mubr.bf16.mxu0 0
        %1045 = vmatmul.mubr.bf16.gmra.mrb[0].mxu0 %v825
        %v1046 = vpop.f32.mrb[0].mxu0
        %v1047 = vadd.f32 %v581, %v1046
        %v1048 = vpop.f32.mrb[0].mxu0
        %v1049 = vpop.f32.mrb[0].mxu0
        %v1050 = vadd.f32 %v581, %v1049
        %v1051 = vpop.f32.mrb[0].mxu0
        %1052 = vmatprep.mubr.bf16.mxu0 0
        %1053 = vmatmul.mubr.bf16.gmra.mrb[0].mxu0 %v828
        %v1054 = vpop.f32.mrb[0].mxu0
        %v1055 = vadd.f32 %v581, %v1054
        %v1056 = vpop.f32.mrb[0].mxu0
        %v1057 = vpop.f32.mrb[0].mxu0
        %v1058 = vadd.f32 %v581, %v1057
        %v1059 = vpop.f32.mrb[0].mxu0
        %1060 = vmatprep.mubr.bf16.mxu0 0
        %1061 = vmatmul.mubr.bf16.gmra.mrb[0].mxu0 %v831
        %v1062 = vpop.f32.mrb[0].mxu0
        %v1063 = vadd.f32 %v581, %v1062
        %v1064 = vpop.f32.mrb[0].mxu0
        %v1065 = vpop.f32.mrb[0].mxu0
        %v1066 = vadd.f32 %v581, %v1065
        %v1067 = vpop.f32.mrb[0].mxu0
        %1068 = vmatprep.mubr.bf16.mxu0 0
        %1069 = vmatmul.mubr.bf16.gmra.mrb[0].mxu0 %v834
        %v1070 = vpop.f32.mrb[0].mxu0
        %v1071 = vadd.f32 %v581, %v1070
        %v1072 = vpop.f32.mrb[0].mxu0
        %v1073 = vpop.f32.mrb[0].mxu0
        %v1074 = vadd.f32 %v581, %v1073
        %v1075 = vpop.f32.mrb[0].mxu0
        %1076 = vmatprep.mubr.bf16.mxu0 0
        %1077 = vmatmul.mubr.bf16.gmra.mrb[0].mxu0 %v837
        %v1078 = vpop.f32.mrb[0].mxu0
        %v1079 = vadd.f32 %v581, %v1078
        %v1080 = vpop.f32.mrb[0].mxu0
        %v1081 = vpop.f32.mrb[0].mxu0
        %v1082 = vadd.f32 %v581, %v1081
        %v1083 = vpop.f32.mrb[0].mxu0
        %1084 = vmatprep.mubr.bf16.mxu0 0
        %1085 = vmatmul.mubr.bf16.gmra.mrb[0].mxu0 %v840
        %v1086 = vpop.f32.mrb[0].mxu0
        %v1087 = vadd.f32 %v581, %v1086
        %v1088 = vpop.f32.mrb[0].mxu0
        %v1089 = vpop.f32.mrb[0].mxu0
        %v1090 = vadd.f32 %v581, %v1089
        %v1091 = vpop.f32.mrb[0].mxu0
        %1092 = vmatprep.mubr.bf16.mxu0 0
        %1093 = vmatmul.mubr.bf16.gmra.mrb[0].mxu0 %v843
        %v1094 = vpop.f32.mrb[0].mxu0
        %v1095 = vadd.f32 %v581, %v1094
        %v1096 = vpop.f32.mrb[0].mxu0
        %v1097 = vpop.f32.mrb[0].mxu0
        %v1098 = vadd.f32 %v581, %v1097
        %v1099 = vpop.f32.mrb[0].mxu0
        %1100 = vmatprep.mubr.bf16.mxu0 0
        %1101 = vmatmul.mubr.bf16.gmra.mrb[0].mxu0 %v846
        %v1102 = vpop.f32.mrb[0].mxu0
        %v1103 = vadd.f32 %v581, %v1102
        %v1104 = vpop.f32.mrb[0].mxu0
        %v1105 = vpop.f32.mrb[0].mxu0
        %v1106 = vadd.f32 %v581, %v1105
        %v1107 = vpop.f32.mrb[0].mxu0
        %1108 = vmatprep.mubr.bf16.mxu0 0
        %1109 = vmatmul.mubr.bf16.gmra.mrb[0].mxu0 %v849
        %v1110 = vpop.f32.mrb[0].mxu0
        %v1111 = vadd.f32 %v581, %v1110
        %v1112 = vpop.f32.mrb[0].mxu0
        %v1113 = vpop.f32.mrb[0].mxu0
        %v1114 = vadd.f32 %v581, %v1113
        %v1115 = vpop.f32.mrb[0].mxu0
        %1116 = vmatprep.mubr.bf16.mxu0 0
        %1117 = vmatmul.mubr.bf16.gmra.mrb[0].mxu0 %v852
        %v1118 = vpop.f32.mrb[0].mxu0
        %v1119 = vadd.f32 %v581, %v1118
        %v1120 = vpop.f32.mrb[0].mxu0
        %v1121 = vpop.f32.mrb[0].mxu0
        %v1122 = vadd.f32 %v581, %v1121
        %v1123 = vpop.f32.mrb[0].mxu0
        %1124 = vmatprep.mubr.bf16.mxu0 0
        %1125 = vmatmul.mubr.bf16.gmra.mrb[0].mxu0 %v855
        %v1126 = vpop.f32.mrb[0].mxu0
        %v1127 = vadd.f32 %v581, %v1126
        %v1128 = vpop.f32.mrb[0].mxu0
        %v1129 = vpop.f32.mrb[0].mxu0
        %v1130 = vadd.f32 %v581, %v1129
        %v1131 = vpop.f32.mrb[0].mxu0
        %1132 = vmatprep.mubr.bf16.mxu0 0
        %1133 = vmatmul.mubr.bf16.gmra.mrb[0].mxu0 %v858
        %v1134 = vpop.f32.mrb[0].mxu0
        %v1135 = vadd.f32 %v581, %v1134
        %v1136 = vpop.f32.mrb[0].mxu0
        %v1137 = vpop.f32.mrb[0].mxu0
        %v1138 = vadd.f32 %v581, %v1137
        %v1139 = vpop.f32.mrb[0].mxu0
        %1140 = vmatprep.mubr.bf16.mxu0 0
        %1141 = vmatmul.mubr.bf16.gmra.mrb[0].mxu0 %v861
        %v1142 = vpop.f32.mrb[0].mxu0
        %v1143 = vadd.f32 %v581, %v1142
        %v1144 = vpop.f32.mrb[0].mxu0
        %v1145 = vpop.f32.mrb[0].mxu0
        %v1146 = vadd.f32 %v581, %v1145
        %v1147 = vpop.f32.mrb[0].mxu0
        %1148 = vmatprep.mubr.bf16.mxu0 0
        %1149 = vmatmul.mubr.bf16.gmra.mrb[0].mxu0 %v864
        %v1150 = vpop.f32.mrb[0].mxu0
        %v1151 = vadd.f32 %v581, %v1150
        %v1152 = vpop.f32.mrb[0].mxu0
        %v1153 = vpop.f32.mrb[0].mxu0
        %v1154 = vadd.f32 %v581, %v1153
        %v1155 = vpop.f32.mrb[0].mxu0
        %1156 = vmatprep.mubr.bf16.mxu0 0
        %1157 = vmatmul.mubr.bf16.gmra.mrb[0].mxu0 %v867
        %v1158 = vpop.f32.mrb[0].mxu0
        %v1159 = vadd.f32 %v581, %v1158
        %v1160 = vpop.f32.mrb[0].mxu0
        %v1161 = vpop.f32.mrb[0].mxu0
        %v1162 = vadd.f32 %v581, %v1161
        %v1163 = vpop.f32.mrb[0].mxu0
        %1164 = vmatprep.mubr.bf16.mxu0 0
        %1165 = vmatmul.mubr.bf16.gmra.mrb[0].mxu0 %v870
        %v1166 = vpop.f32.mrb[0].mxu0
        %v1167 = vadd.f32 %v581, %v1166
        %v1168 = vpop.f32.mrb[0].mxu0
        %v1169 = vpop.f32.mrb[0].mxu0
        %v1170 = vadd.f32 %v581, %v1169
        %v1171 = vpop.f32.mrb[0].mxu0
        %1172 = vmatprep.mubr.bf16.mxu0 0
        %1173 = vmatmul.mubr.bf16.gmra.mrb[0].mxu0 %v873
        %v1174 = vpop.f32.mrb[0].mxu0
        %v1175 = vadd.f32 %v581, %v1174
        %v1176 = vpop.f32.mrb[0].mxu0
        %v1177 = vpop.f32.mrb[0].mxu0
        %v1178 = vadd.f32 %v581, %v1177
        %v1179 = vpop.f32.mrb[0].mxu0
        %1180 = vmatprep.mubr.bf16.mxu0 0
        %1181 = vmatmul.mubr.bf16.gmra.mrb[0].mxu0 %v876
        %v1182 = vpop.f32.mrb[0].mxu0
        %v1183 = vadd.f32 %v581, %v1182
        %v1184 = vpop.f32.mrb[0].mxu0
        %v1185 = vpop.f32.mrb[0].mxu0
        %v1186 = vadd.f32 %v581, %v1185
        %v1187 = vpop.f32.mrb[0].mxu0
        %1188 = vmatprep.mubr.bf16.mxu0 0
        %1189 = vmatmul.mubr.bf16.gmra.mrb[0].mxu0 %v879
        %v1190 = vpop.f32.mrb[0].mxu0
        %v1191 = vadd.f32 %v581, %v1190
        %v1192 = vpop.f32.mrb[0].mxu0
        %v1193 = vpop.f32.mrb[0].mxu0
        %v1194 = vadd.f32 %v581, %v1193
        %v1195 = vpop.f32.mrb[0].mxu0
        %1196 = vmatprep.mubr.bf16.mxu0 0
        %1197 = vmatmul.mubr.bf16.gmra.mrb[0].mxu0 %v882
        %v1198 = vpop.f32.mrb[0].mxu0
        %v1199 = vadd.f32 %v581, %v1198
        %v1200 = vpop.f32.mrb[0].mxu0
        %v1201 = vpop.f32.mrb[0].mxu0
        %v1202 = vadd.f32 %v581, %v1201
        %v1203 = vpop.f32.mrb[0].mxu0
        %1204 = vdwg.mxu0
        %v1205 = vmax.f32 %v919, 0.0
        %v1206 = vmax.f32 %v922, 0.0
        %v1207 = vmax.f32 %v927, 0.0
        %v1208 = vmax.f32 %v930, 0.0
        %v1209 = vmax.f32 %v935, 0.0
        %v1210 = vmax.f32 %v938, 0.0
        %v1211 = vmax.f32 %v943, 0.0
        %v1212 = vmax.f32 %v946, 0.0
        %v1213 = vmax.f32 %v951, 0.0
        %v1214 = vmax.f32 %v954, 0.0
        %v1215 = vmax.f32 %v959, 0.0
        %v1216 = vmax.f32 %v962, 0.0
        %v1217 = vmax.f32 %v967, 0.0
        %v1218 = vmax.f32 %v970, 0.0
        %v1219 = vmax.f32 %v975, 0.0
        %v1220 = vmax.f32 %v978, 0.0
        %v1221 = vmax.f32 %v983, 0.0
        %v1222 = vmax.f32 %v986, 0.0
        %v1223 = vmax.f32 %v991, 0.0
        %v1224 = vmax.f32 %v994, 0.0
        %v1225 = vmax.f32 %v999, 0.0
        %v1226 = vmax.f32 %v1002, 0.0
        %v1227 = vmax.f32 %v1007, 0.0
        %v1228 = vmax.f32 %v1010, 0.0
        %v1229 = vmax.f32 %v1015, 0.0
        %v1230 = vmax.f32 %v1018, 0.0
        %v1231 = vmax.f32 %v1023, 0.0
        %v1232 = vmax.f32 %v1026, 0.0
        %v1233 = vmax.f32 %v1031, 0.0
        %v1234 = vmax.f32 %v1034, 0.0
        %v1235 = vmax.f32 %v1039, 0.0
        %v1236 = vmax.f32 %v1042, 0.0
        %v1237 = vmax.f32 %v1047, 0.0
        %v1238 = vmax.f32 %v1050, 0.0
        %v1239 = vmax.f32 %v1055, 0.0
        %v1240 = vmax.f32 %v1058, 0.0
        %v1241 = vmax.f32 %v1063, 0.0
        %v1242 = vmax.f32 %v1066, 0.0
        %v1243 = vmax.f32 %v1071, 0.0
        %v1244 = vmax.f32 %v1074, 0.0
        %v1245 = vmax.f32 %v1079, 0.0
        %v1246 = vmax.f32 %v1082, 0.0
        %v1247 = vmax.f32 %v1087, 0.0
        %v1248 = vmax.f32 %v1090, 0.0
        %v1249 = vmax.f32 %v1095, 0.0
        %v1250 = vmax.f32 %v1098, 0.0
        %v1251 = vmax.f32 %v1103, 0.0
        %v1252 = vmax.f32 %v1106, 0.0
        %v1253 = vmax.f32 %v1111, 0.0
        %v1254 = vmax.f32 %v1114, 0.0
        %v1255 = vmax.f32 %v1119, 0.0
        %v1256 = vmax.f32 %v1122, 0.0
        %v1257 = vmax.f32 %v1127, 0.0
        %v1258 = vmax.f32 %v1130, 0.0
        %v1259 = vmax.f32 %v1135, 0.0
        %v1260 = vmax.f32 %v1138, 0.0
        %v1261 = vmax.f32 %v1143, 0.0
        %v1262 = vmax.f32 %v1146, 0.0
        %v1263 = vmax.f32 %v1151, 0.0
        %v1264 = vmax.f32 %v1154, 0.0
        %v1265 = vmax.f32 %v1159, 0.0
        %v1266 = vmax.f32 %v1162, 0.0
        %v1267 = vmax.f32 %v1167, 0.0
        %v1268 = vmax.f32 %v1170, 0.0
        %v1269 = vmax.f32 %v1175, 0.0
        %v1270 = vmax.f32 %v1178, 0.0
        %v1271 = vmax.f32 %v1183, 0.0
        %v1272 = vmax.f32 %v1186, 0.0
        %v1273 = vmax.f32 %v1191, 0.0
        %v1274 = vmax.f32 %v1194, 0.0
        %v1275 = vmax.f32 %v1199, 0.0
        %v1276 = vmax.f32 %v1202, 0.0
        %v1277 = vadd.f32 %v1205, %v1223
        %v1278 = vadd.f32 %v1206, %v1224
        %v1279 = vadd.f32 %v1207, %v1225
        %v1280 = vadd.f32 %v1208, %v1226
        %v1281 = vadd.f32 %v1209, %v1227
        %v1282 = vadd.f32 %v1210, %v1228
        %v1283 = vadd.f32 %v1211, %v1229
        %v1284 = vadd.f32 %v1212, %v1230
        %v1285 = vadd.f32 %v1213, %v1231
        %v1286 = vadd.f32 %v1214, %v1232
        %v1287 = vadd.f32 %v1215, %v1233
        %v1288 = vadd.f32 %v1216, %v1234
        %v1289 = vadd.f32 %v1217, %v1235
        %v1290 = vadd.f32 %v1218, %v1236
        %v1291 = vadd.f32 %v1219, %v1237
        %v1292 = vadd.f32 %v1220, %v1238
        %v1293 = vadd.f32 %v1221, %v1239
        %v1294 = vadd.f32 %v1222, %v1240
        %v1295 = vadd.f32 %v1277, %v1241
        %v1296 = vadd.f32 %v1278, %v1242
        %v1297 = vadd.f32 %v1279, %v1243
        %v1298 = vadd.f32 %v1280, %v1244
        %v1299 = vadd.f32 %v1281, %v1245
        %v1300 = vadd.f32 %v1282, %v1246
        %v1301 = vadd.f32 %v1283, %v1247
        %v1302 = vadd.f32 %v1284, %v1248
        %v1303 = vadd.f32 %v1285, %v1249
        %v1304 = vadd.f32 %v1286, %v1250
        %v1305 = vadd.f32 %v1287, %v1251
        %v1306 = vadd.f32 %v1288, %v1252
        %v1307 = vadd.f32 %v1289, %v1253
        %v1308 = vadd.f32 %v1290, %v1254
        %v1309 = vadd.f32 %v1291, %v1255
        %v1310 = vadd.f32 %v1292, %v1256
        %v1311 = vadd.f32 %v1293, %v1257
        %v1312 = vadd.f32 %v1294, %v1258
        %v1313 = vadd.f32 %v1295, %v1259
        %v1314 = vadd.f32 %v1296, %v1260
        %v1315 = vadd.f32 %v1297, %v1261
        %v1316 = vadd.f32 %v1298, %v1262
        %v1317 = vadd.f32 %v1299, %v1263
        %v1318 = vadd.f32 %v1300, %v1264
        %v1319 = vadd.f32 %v1301, %v1265
        %v1320 = vadd.f32 %v1302, %v1266
        %v1321 = vadd.f32 %v1303, %v1267
        %v1322 = vadd.f32 %v1304, %v1268
        %v1323 = vadd.f32 %v1305, %v1269
        %v1324 = vadd.f32 %v1306, %v1270
        %v1325 = vadd.f32 %v1307, %v1271
        %v1326 = vadd.f32 %v1308, %v1272
        %v1327 = vadd.f32 %v1309, %v1273
        %v1328 = vadd.f32 %v1310, %v1274
        %v1329 = vadd.f32 %v1311, %v1275
        %v1330 = vadd.f32 %v1312, %v1276
        %v1331 = vmul.f32 %v1313, 0.25
        %v1332 = vmul.f32 %v1314, 0.25
        %v1333 = vmul.f32 %v1315, 0.25
        %v1334 = vmul.f32 %v1316, 0.25
        %v1335 = vmul.f32 %v1317, 0.25
        %v1336 = vmul.f32 %v1318, 0.25
        %v1337 = vmul.f32 %v1319, 0.25
        %v1338 = vmul.f32 %v1320, 0.25
        %v1339 = vmul.f32 %v1321, 0.25
        %v1340 = vmul.f32 %v1322, 0.25
        %v1341 = vmul.f32 %v1323, 0.25
        %v1342 = vmul.f32 %v1324, 0.25
        %v1343 = vmul.f32 %v1325, 0.25
        %v1344 = vmul.f32 %v1326, 0.25
        %v1345 = vmul.f32 %v1327, 0.25
        %v1346 = vmul.f32 %v1328, 0.25
        %v1347 = vmul.f32 %v1329, 0.25
        %v1348 = vmul.f32 %v1330, 0.25
        %v1349 = vpack.c.bf16 %v1332, %v1331
        %v1350 = vpack.c.bf16 %v1334, %v1333
        %v1351 = vpack.c.bf16 %v1336, %v1335
        %v1352 = vpack.c.bf16 %v1338, %v1337
        %v1353 = vpack.c.bf16 %v1340, %v1339
        %v1354 = vpack.c.bf16 %v1342, %v1341
        %v1355 = vpack.c.bf16 %v1344, %v1343
        %v1356 = vpack.c.bf16 %v1346, %v1345
        %v1357 = vpack.c.bf16 %v1348, %v1347
        %v1367 = vunpack.c.l.b16 %v1349
        %v1368 = vunpack.c.h.b16 %v1349
        %v1369 = vunpack.c.l.b16 %v1350
        %v1370 = vunpack.c.h.b16 %v1350
        %v1371 = vunpack.c.l.b16 %v1351
        %v1372 = vunpack.c.h.b16 %v1351
        %v1373 = vunpack.c.l.b16 %v1352
        %v1374 = vunpack.c.h.b16 %v1352
        %v1375 = vunpack.c.l.b16 %v1353
        %v1376 = vunpack.c.h.b16 %v1353
        %v1377 = vunpack.c.l.b16 %v1354
        %v1378 = vunpack.c.h.b16 %v1354
        %v1379 = vunpack.c.l.b16 %v1355
        %v1380 = vunpack.c.h.b16 %v1355
        %v1381 = vunpack.c.l.b16 %v1356
        %v1382 = vunpack.c.h.b16 %v1356
        %v1383 = vunpack.c.l.b16 %v1357
        %v1384 = vunpack.c.h.b16 %v1357
        %v1385 = vpack.c.b16 %v1367, %v1367
        %v1386 = vpack.c.b16 %v1368, %v1368
        %v1387 = vpack.c.b16 %v1369, %v1369
        %v1388 = vpack.c.b16 %v1370, %v1370
        %v1389 = vpack.c.b16 %v1371, %v1371
        %v1390 = vpack.c.b16 %v1372, %v1372
        %v1391 = vpack.c.b16 %v1373, %v1373
        %v1392 = vpack.c.b16 %v1374, %v1374
        %v1393 = vpack.c.b16 %v1375, %v1375
        %v1394 = vpack.c.b16 %v1376, %v1376
        %v1395 = vpack.c.b16 %v1377, %v1377
        %v1396 = vpack.c.b16 %v1378, %v1378
        %v1397 = vpack.c.b16 %v1379, %v1379
        %v1398 = vpack.c.b16 %v1380, %v1380
        %v1399 = vpack.c.b16 %v1381, %v1381
        %v1400 = vpack.c.b16 %v1382, %v1382
        %v1401 = vpack.c.b16 %v1383, %v1383
        %v1402 = vpack.c.b16 %v1384, %v1384
        %1421 = vst [vmem:[%s497] sm:$0xf] %v1385
        %1422 = vst [vmem:[%s497 + $0x4] sm:$0xf] %v1386
        %1423 = vst [vmem:[%s497 + $0x8] sm:$0xf] %v1387
        %1424 = vst [vmem:[%s497 + $0xc] sm:$0xf] %v1388
        %1425 = vst [vmem:[%s497 + $0x10] sm:$0xf] %v1389
        %1426 = vst [vmem:[%s497 + $0x14] sm:$0xf] %v1390
        %1427 = vst [vmem:[%s497 + $0x18] sm:$0xf] %v1391
        %1428 = vst [vmem:[%s497 + $0x1c] sm:$0xf] %v1392
        %1429 = vst [vmem:[%s497 + $0x20] sm:$0xf] %v1393
        %1430 = vst [vmem:[%s497 + $0x24] sm:$0xf] %v1394
        %1431 = vst [vmem:[%s497 + $0x28] sm:$0xf] %v1395
        %1432 = vst [vmem:[%s497 + $0x2c] sm:$0xf] %v1396
        %1433 = vst [vmem:[%s497 + $0x30] sm:$0xf] %v1397
        %1434 = vst [vmem:[%s497 + $0x34] sm:$0xf] %v1398
        %1435 = vst [vmem:[%s497 + $0x38] sm:$0xf] %v1399
        %1436 = vst [vmem:[%s497 + $0x3c] sm:$0xf] %v1400
        %1437 = vst [vmem:[%s497 + $0x40] sm:$0xf] %v1401
        %1438 = vst [vmem:[%s497 + $0x44] sm:$0xf] %v1402
        %s1439 = smul.u32 18, %s14
        %p1440 = scmp.lt.s32.totalorder %s1439, 35
        %s1441 = scalar_select %p1440, %s1439, 35
        %s1442 = smul.addr %s1441, 4
        %s1443 = scalar_lea.vmem %s3, %s1442
        // Predicated region
        $region74: #{forward.3} parent=68 // pred_check
          %p1444 = pneg %p100
        $region75: #{forward.3} parent=68 // pred_check_branch
          %1446 = sbr.rel (%p1444) target = $region77
        $region76: #{forward.3} parent=68 // pred_region
          %s1447 = smul.u32 18, %s14
        $region77: #{forward.3} parent=68 // pred_fallthru
          _
      $region69: #{forward.3} parent=5 // pred_fallthru
        _
      %p1448 = scmp.le.s32.totalorder 2, %s9
      // Predicated region
      $region78: #{forward.3} parent=5 // pred_check
        %p1449 = pneg %p1448
      $region79: #{forward.3} parent=5 // pred_check_branch
        %1451 = sbr.rel (%p1449) target = $region81
      $region80: #{forward.3} parent=5 // pred_region
        %s1452 = ssub.s32 %s9, 2
        // Predicated region
        $region82: #{forward.3} parent=80 // pred_check
          %p1453 = pneg %p106
        $region83: #{forward.3} parent=80 // pred_check_branch
          %1455 = sbr.rel (%p1453) target = $region85
        $region84: #{forward.3} parent=80 // pred_region
          %s1456 = smul.u32 18, %s15
          %p1457 = scmp.lt.s32.totalorder %s1456, 35
          %s1458 = scalar_select %p1457, %s1456, 35
          %s1459 = smul.addr %s1458, 4
          %s1460 = scalar_lea.vmem %s3, %s1459
        $region85: #{forward.3} parent=80 // pred_fallthru
          _
      $region81: #{forward.3} parent=5 // pred_fallthru
        _
    $region6: #{forward.3} parent=1 // loop_footer
      %s13 = sadd.s32 1, %s9
    $region7: #{forward.3} parent=1 // loop_footer_branch
      %8 = sbr.rel target = $region3
    $region8: #{forward.3} parent=1 // loop_exit
      _

// kernel: forward.4
$region0: #{forward.4}
  #allocation0 [shape = 'u32[]', space=smem, size = 0x4, offset = 0x4, fixed_abs, tag = 'smem constant byte address 0x4 - core index']
  #allocation1 [shape = 'u32[144,128]{1,0:T(1,128)}', space=vmem, size = 0x12000, scoped, tag = 'internal scratch']
  %s0 = inlined_call_operand.vmem [shape: bf16[4,32,800], index: 0, kind: input, shape index: {}]
  %s1 = inlined_call_operand.vmem [shape: bf16[800,128], index: 1, kind: input, shape index: {}]
  %s2 = inlined_call_operand.vmem [shape: f32[1,128], index: 2, kind: input, shape index: {}]
  %s3 = inlined_call_operand.vmem [shape: bf16[32,128], index: 3, kind: output, shape index: {}]
  %s4 = sld [smem:[#allocation0]]
  $region71: #{forward.4} parent=0
    _
  %s6 = ssub.s32 1, %s4
  %s7 = scalar_select 0, %s6, %s4
  $region1: #{forward.4} parent=0
    #allocation2 [shape = 'u8[229376]{0}', space=vmem, size = 0x38000, scoped, tag = 'input window, operand 0']
    loop: start=0, step=1, limit=4
    $region2: #{forward.4} parent=1 // loop_pre_header
      _
    $region3: #{forward.4} parent=1 // loop_header
      %s9 = sphi 0, %s13
      %p10 = scmp.ge.s32.totalorder %s9, 4
      %s19 = sphi 0, %s21
      %s22 = sphi 0, %s19
      %s23 = sphi 0, %s22
      %s39 = sphi 0, %s23
      %s43 = sphi 0, %s43
      %s45 = sphi 0, %s43
      %s46 = sphi 0, %s45
      %s60 = sphi 0, %s46
      %s64 = sphi 0, %s64
      %s66 = sphi 0, %s64
      %s67 = sphi 0, %s66
      %s81 = sphi 0, %s67
      %s87 = sphi 0, %s89
      %s90 = sphi 0, %s87
      %s91 = sphi 0, %s90
      %s107 = sphi 0, %s91
    $region4: #{forward.4} parent=1 // loop_header_branch
      %12 = sbr.rel (%p10) target = $region8
    $region5: #{forward.4} parent=1 // loop_body
      %s14 = ssub.s32 %s9, 1
      %s15 = ssub.s32 %s9, 2
      %s16 = sadd.s32 %s9, 1
      %s17 = ssub.s32 %s9, %s16
      %p18 = scmp.eq.s32.totalorder %s17, 0
      %s20 = sadd.s32 %s19, 1
      %s21 = scalar_select %p18, %s19, %s20
      %p24 = pneg %p18
      %p25 = scmp.eq.s32.totalorder %s9, 1
      %p26 = por %p24, %p25
      %p27 = scmp.ne.s32.totalorder %s19, %s22
      %p28 = scmp.eq.s32.totalorder %s9, 0
      %p29 = por %p27, %p28
      %p30 = scmp.ne.s32.totalorder %s19, %s22
      %p31 = scmp.eq.s32.totalorder %s14, 1
      %p32 = por %p30, %p31
      %p33 = scmp.ne.s32.totalorder %s22, %s23
      %p34 = scmp.eq.s32.totalorder %s14, 0
      %p35 = por %p33, %p34
      %p36 = scmp.ne.s32.totalorder %s22, %s23
      %p37 = scmp.eq.s32.totalorder %s15, 1
      %p38 = por %p36, %p37
      %p40 = scmp.ne.s32.totalorder %s23, %s39
      %p41 = scmp.eq.s32.totalorder %s15, 0
      %p42 = por %p40, %p41
      %s44 = sadd.s32 %s43, 1
      %p47 = scmp.eq.s32.totalorder %s9, 1
      %p48 = scmp.ne.s32.totalorder %s43, %s45
      %p49 = scmp.eq.s32.totalorder %s9, 0
      %p50 = por %p48, %p49
      %p51 = scmp.ne.s32.totalorder %s43, %s45
      %p52 = scmp.eq.s32.totalorder %s14, 1
      %p53 = por %p51, %p52
      %p54 = scmp.ne.s32.totalorder %s45, %s46
      %p55 = scmp.eq.s32.totalorder %s14, 0
      %p56 = por %p54, %p55
      %p57 = scmp.ne.s32.totalorder %s45, %s46
      %p58 = scmp.eq.s32.totalorder %s15, 1
      %p59 = por %p57, %p58
      %p61 = scmp.ne.s32.totalorder %s46, %s60
      %p62 = scmp.eq.s32.totalorder %s15, 0
      %p63 = por %p61, %p62
      %s65 = sadd.s32 %s64, 1
      %p68 = scmp.eq.s32.totalorder %s9, 1
      %p69 = scmp.ne.s32.totalorder %s64, %s66
      %p70 = scmp.eq.s32.totalorder %s9, 0
      %p71 = por %p69, %p70
      %p72 = scmp.ne.s32.totalorder %s64, %s66
      %p73 = scmp.eq.s32.totalorder %s14, 1
      %p74 = por %p72, %p73
      %p75 = scmp.ne.s32.totalorder %s66, %s67
      %p76 = scmp.eq.s32.totalorder %s14, 0
      %p77 = por %p75, %p76
      %p78 = scmp.ne.s32.totalorder %s66, %s67
      %p79 = scmp.eq.s32.totalorder %s15, 1
      %p80 = por %p78, %p79
      %p82 = scmp.ne.s32.totalorder %s67, %s81
      %p83 = scmp.eq.s32.totalorder %s15, 0
      %p84 = por %p82, %p83
      %s85 = ssub.s32 %s9, %s16
      %p86 = scmp.eq.s32.totalorder %s85, 0
      %s88 = sadd.s32 %s87, 1
      %s89 = scalar_select %p86, %s87, %s88
      %p92 = pneg %p86
      %p93 = scmp.eq.s32.totalorder %s9, 1
      %p94 = por %p92, %p93
      %p95 = scmp.ne.s32.totalorder %s87, %s90
      %p96 = scmp.eq.s32.totalorder %s9, 0
      %p97 = por %p95, %p96
      %p98 = scmp.ne.s32.totalorder %s87, %s90
      %p99 = scmp.eq.s32.totalorder %s14, 1
      %p100 = por %p98, %p99
      %p101 = scmp.ne.s32.totalorder %s90, %s91
      %p102 = scmp.eq.s32.totalorder %s14, 0
      %p103 = por %p101, %p102
      %p104 = scmp.ne.s32.totalorder %s90, %s91
      %p105 = scmp.eq.s32.totalorder %s15, 1
      %p106 = por %p104, %p105
      %p108 = scmp.ne.s32.totalorder %s91, %s107
      %p109 = scmp.eq.s32.totalorder %s15, 0
      %p110 = por %p108, %p109
      %p111 = scmp.le.s32.totalorder 1, %s9
      %p112 = scmp.lt.s32.totalorder %s9, 3
      %p113 = pnand %p111, %p112
      %p114 = pneg %p113
      // Predicated region
      $region9: #{forward.4} parent=5 // pred_check
        _
      $region10: #{forward.4} parent=5 // pred_check_branch
        %116 = sbr.rel (%p113) target = $region12
      $region11: #{forward.4} parent=5 // pred_region
        %s117 = ssub.s32 %s9, 1
        // Predicated region
        $region13: #{forward.4} parent=11 // pred_check
          %p118 = pneg %p56
        $region14: #{forward.4} parent=11 // pred_check_branch
          %120 = sbr.rel (%p118) target = $region16
        $region15: #{forward.4} parent=11 // pred_region
          _
        $region16: #{forward.4} parent=11 // pred_fallthru
          _
        // Predicated region
        $region17: #{forward.4} parent=11 // pred_check
          %p121 = pneg %p77
        $region18: #{forward.4} parent=11 // pred_check_branch
          %123 = sbr.rel (%p121) target = $region20
        $region19: #{forward.4} parent=11 // pred_region
          _
        $region20: #{forward.4} parent=11 // pred_fallthru
          _
      $region12: #{forward.4} parent=5 // pred_fallthru
        _
      %p124 = scmp.lt.s32.totalorder %s9, 2
      // Predicated region
      $region21: #{forward.4} parent=5 // pred_check
        %p125 = pneg %p124
      $region22: #{forward.4} parent=5 // pred_check_branch
        %127 = sbr.rel (%p125) target = $region24
      $region23: #{forward.4} parent=5 // pred_region
        // Predicated region
        $region25: #{forward.4} parent=23 // pred_check
          %p128 = pneg %p29
        $region26: #{forward.4} parent=23 // pred_check_branch
          %130 = sbr.rel (%p128) target = $region28
        $region27: #{forward.4} parent=23 // pred_region
          %s131 = sand.u32 %s19, 1
          %s132 = sand.u32 %s19, 1
          %s133 = smul.addr %s132, 224
          %s134 = scalar_lea.vmem [#allocation2], %s133
          %s135 = smul.u32 2, %s9
          %s136 = smul.addr %s135, 7
          %s137 = smul.addr %s136, 4
          %s138 = scalar_lea.vmem %s0, %s137
          // Predicated region
          $region29: #{forward.4} parent=27 // pred_check
            _
          $region30: #{forward.4} parent=27 // pred_check_branch
            %140 = sbr.rel (0) target = $region32
          $region31: #{forward.4} parent=27 // pred_region
            // Predicated region
            $region33: #{forward.4} parent=31 // pred_check
              _
            $region34: #{forward.4} parent=31 // pred_check_branch
              %142 = sbr.rel (0) target = $region36
            $region35: #{forward.4} parent=31 // pred_region
              %s143 = scalar_lea.vmem %s138, 24
              %s144 = scalar_lea.vmem %s134, 24 [#allocation2]
              loop: start=0, step=1, limit=1
              $region37: #{forward.4} parent=35 // loop_pre_header
                _
              $region38: #{forward.4} parent=35 // loop_header
                %s146 = sphi 0, %s150
                %p147 = scmp.ge.s32.totalorder %s146, 1
                %s151 = sphi %s138, %s138
                %s152 = sphi %s134, %s134
              $region39: #{forward.4} parent=35 // loop_header_branch
                %149 = sbr.rel (%p147) target = $region43
              $region40: #{forward.4} parent=35 // loop_body
                %v153 = vld [vmem:[%s151] sm:$0xff]
                %154 = vst [vmem:[%s152] sm:$0xff] %v153
                %v155 = vld [vmem:[%s151 + $0x8] sm:$0xff]
                %156 = vst [vmem:[%s152 + $0x8] sm:$0xff] %v155
                %v157 = vld [vmem:[%s151 + $0x10] sm:$0xff]
                %158 = vst [vmem:[%s152 + $0x10] sm:$0xff] %v157
                %v159 = vld [vmem:[%s151 + $0x1c] sm:$0xff]
                %160 = vst [vmem:[%s152 + $0x1c] sm:$0xff] %v159
                %v161 = vld [vmem:[%s151 + $0x24] sm:$0xff]
                %162 = vst [vmem:[%s152 + $0x24] sm:$0xff] %v161
                %v163 = vld [vmem:[%s151 + $0x2c] sm:$0xff]
                %164 = vst [vmem:[%s152 + $0x2c] sm:$0xff] %v163
                %v165 = vld [vmem:[%s151 + $0x70] sm:$0xff]
                %166 = vst [vmem:[%s152 + $0x38] sm:$0xff] %v165
                %v167 = vld [vmem:[%s151 + $0x78] sm:$0xff]
                %168 = vst [vmem:[%s152 + $0x40] sm:$0xff] %v167
                %v169 = vld [vmem:[%s151 + $0x80] sm:$0xff]
                %170 = vst [vmem:[%s152 + $0x48] sm:$0xff] %v169
                %v171 = vld [vmem:[%s151 + $0x8c] sm:$0xff]
                %172 = vst [vmem:[%s152 + $0x54] sm:$0xff] %v171
                %v173 = vld [vmem:[%s151 + $0x94] sm:$0xff]
                %174 = vst [vmem:[%s152 + $0x5c] sm:$0xff] %v173
                %v175 = vld [vmem:[%s151 + $0x9c] sm:$0xff]
                %176 = vst [vmem:[%s152 + $0x64] sm:$0xff] %v175
                %v177 = vld [vmem:[%s151 + $0xe0] sm:$0xff]
                %178 = vst [vmem:[%s152 + $0x70] sm:$0xff] %v177
                %v179 = vld [vmem:[%s151 + $0xe8] sm:$0xff]
                %180 = vst [vmem:[%s152 + $0x78] sm:$0xff] %v179
                %v181 = vld [vmem:[%s151 + $0xf0] sm:$0xff]
                %182 = vst [vmem:[%s152 + $0x80] sm:$0xff] %v181
                %v183 = vld [vmem:[%s151 + $0xfc] sm:$0xff]
                %184 = vst [vmem:[%s152 + $0x8c] sm:$0xff] %v183
                %v185 = vld [vmem:[%s151 + $0x104] sm:$0xff]
                %186 = vst [vmem:[%s152 + $0x94] sm:$0xff] %v185
                %v187 = vld [vmem:[%s151 + $0x10c] sm:$0xff]
                %188 = vst [vmem:[%s152 + $0x9c] sm:$0xff] %v187
                %v189 = vld [vmem:[%s151 + $0x150] sm:$0xff]
                %190 = vst [vmem:[%s152 + $0xa8] sm:$0xff] %v189
                %v191 = vld [vmem:[%s151 + $0x158] sm:$0xff]
                %192 = vst [vmem:[%s152 + $0xb0] sm:$0xff] %v191
                %v193 = vld [vmem:[%s151 + $0x160] sm:$0xff]
                %194 = vst [vmem:[%s152 + $0xb8] sm:$0xff] %v193
                %v195 = vld [vmem:[%s151 + $0x16c] sm:$0xff]
                %196 = vst [vmem:[%s152 + $0xc4] sm:$0xff] %v195
                %v197 = vld [vmem:[%s151 + $0x174] sm:$0xff]
                %198 = vst [vmem:[%s152 + $0xcc] sm:$0xff] %v197
                %v199 = vld [vmem:[%s151 + $0x17c] sm:$0xff]
                %200 = vst [vmem:[%s152 + $0xd4] sm:$0xff] %v199
              $region41: #{forward.4} parent=35 // loop_footer
                %s150 = sadd.s32 1, %s146
              $region42: #{forward.4} parent=35 // loop_footer_branch
                %145 = sbr.rel target = $region38
              $region43: #{forward.4} parent=35 // loop_exit
                _
              loop: start=0, step=1, limit=1
              $region44: #{forward.4} parent=35 // loop_pre_header
                _
              $region45: #{forward.4} parent=35 // loop_header
                %s203 = sphi 0, %s207
                %p204 = scmp.ge.s32.totalorder %s203, 1
                %s208 = sphi %s143, %s143
                %s209 = sphi %s144, %s144
              $region46: #{forward.4} parent=35 // loop_header_branch
                %206 = sbr.rel (%p204) target = $region50
              $region47: #{forward.4} parent=35 // loop_body
                %v210 = vld [vmem:[%s208] sm:$0xf]
                %211 = vst [vmem:[%s209] sm:$0xf] %v210
                %v212 = vld [vmem:[%s208 + $0x1c] sm:$0xf]
                %213 = vst [vmem:[%s209 + $0x1c] sm:$0xf] %v212
                %v214 = vld [vmem:[%s208 + $0x70] sm:$0xf]
                %215 = vst [vmem:[%s209 + $0x38] sm:$0xf] %v214
                %v216 = vld [vmem:[%s208 + $0x8c] sm:$0xf]
                %217 = vst [vmem:[%s209 + $0x54] sm:$0xf] %v216
                %v218 = vld [vmem:[%s208 + $0xe0] sm:$0xf]
                %219 = vst [vmem:[%s209 + $0x70] sm:$0xf] %v218
                %v220 = vld [vmem:[%s208 + $0xfc] sm:$0xf]
                %221 = vst [vmem:[%s209 + $0x8c] sm:$0xf] %v220
                %v222 = vld [vmem:[%s208 + $0x150] sm:$0xf]
                %223 = vst [vmem:[%s209 + $0xa8] sm:$0xf] %v222
                %v224 = vld [vmem:[%s208 + $0x16c] sm:$0xf]
                %225 = vst [vmem:[%s209 + $0xc4] sm:$0xf] %v224
              $region48: #{forward.4} parent=35 // loop_footer
                %s207 = sadd.s32 1, %s203
              $region49: #{forward.4} parent=35 // loop_footer_branch
                %202 = sbr.rel target = $region45
              $region50: #{forward.4} parent=35 // loop_exit
                _
            $region36: #{forward.4} parent=31 // pred_fallthru
              _
          $region32: #{forward.4} parent=27 // pred_fallthru
            _
          %226 = vnop
        $region28: #{forward.4} parent=23 // pred_fallthru
          _
      $region24: #{forward.4} parent=5 // pred_fallthru
        _
      %p227 = scmp.le.s32.totalorder 1, %s9
      %p228 = scmp.lt.s32.totalorder %s9, 3
      %p229 = pnand %p227, %p228
      %p230 = pneg %p229
      // Predicated region
      $region51: #{forward.4} parent=5 // pred_check
        _
      $region52: #{forward.4} parent=5 // pred_check_branch
        %232 = sbr.rel (%p229) target = $region54
      $region53: #{forward.4} parent=5 // pred_region
        %s233 = ssub.s32 %s9, 1
        %s234 = sand.u32 %s22, 1
        %s235 = sand.u32 %s22, 1
        %s236 = smul.addr %s235, 224
        %s237 = scalar_lea.vmem [#allocation2], %s236
        // Predicated region
        $region55: #{forward.4} parent=53 // pred_check
          %p238 = pneg %p35
        $region56: #{forward.4} parent=53 // pred_check_branch
          %240 = sbr.rel (%p238) target = $region58
        $region57: #{forward.4} parent=53 // pred_region
          _
        $region58: #{forward.4} parent=53 // pred_fallthru
          _
        %s241 = sand.u32 %s22, 1
        %s242 = sand.u32 %s22, 1
        %s243 = smul.addr %s242, 224
        %s244 = scalar_lea.vmem [#allocation2], %s243
        %p245 = pneg %p35
        %p246 = pneg %p32
        %p247 = pneg %p56
        %p248 = pneg %p53
        %p249 = pneg %p77
        %p250 = pneg %p74
        %p251 = pneg %p103
        %p252 = pneg %p100
        %s253 = smul.u32 2, %s14
        %p254 = scmp.lt.s32.totalorder %s253, 3
        %s255 = scalar_select %p254, %s253, 3
        %s256 = smul.addr %s255, 4
        %s257 = scalar_lea.vmem %s3, %s256
        %s258 = smul.u32 2, %s14
        %s259 = smul.u32 2, %s14
        %p260 = scmp.lt.s32.totalorder %s259, 3
        %s261 = scalar_select %p260, %s259, 3
        %s262 = smul.addr %s261, 4
        %s263 = scalar_lea.vmem %s3, %s262
        %s264 = smul.u32 2, %s14
        %v266 = vld [vmem:[%s237] sm:$0xff]
        %v267 = vld [vmem:[%s237 + $0x8] sm:$0xff]
        %v268 = vld [vmem:[%s237 + $0x10] sm:$0xff]
        %v269 = vld [vmem:[%s237 + $0x18] sm:$0xf]
        %v270 = vld [vmem:[%s237 + $0x1c] sm:$0xff]
        %v271 = vld [vmem:[%s237 + $0x24] sm:$0xff]
        %v272 = vld [vmem:[%s237 + $0x2c] sm:$0xff]
        %v273 = vld [vmem:[%s237 + $0x34] sm:$0xf]
        %v274 = vld [vmem:[%s237 + $0x38] sm:$0xff]
        %v275 = vld [vmem:[%s237 + $0x40] sm:$0xff]
        %v276 = vld [vmem:[%s237 + $0x48] sm:$0xff]
        %v277 = vld [vmem:[%s237 + $0x50] sm:$0xf]
        %v278 = vld [vmem:[%s237 + $0x54] sm:$0xff]
        %v279 = vld [vmem:[%s237 + $0x5c] sm:$0xff]
        %v280 = vld [vmem:[%s237 + $0x64] sm:$0xff]
        %v281 = vld [vmem:[%s237 + $0x6c] sm:$0xf]
        %v282 = vld [vmem:[%s237 + $0x70] sm:$0xff]
        %v283 = vld [vmem:[%s237 + $0x78] sm:$0xff]
        %v284 = vld [vmem:[%s237 + $0x80] sm:$0xff]
        %v285 = vld [vmem:[%s237 + $0x88] sm:$0xf]
        %v286 = vld [vmem:[%s237 + $0x8c] sm:$0xff]
        %v287 = vld [vmem:[%s237 + $0x94] sm:$0xff]
        %v288 = vld [vmem:[%s237 + $0x9c] sm:$0xff]
        %v289 = vld [vmem:[%s237 + $0xa4] sm:$0xf]
        %v290 = vld [vmem:[%s237 + $0xa8] sm:$0xff]
        %v291 = vld [vmem:[%s237 + $0xb0] sm:$0xff]
        %v292 = vld [vmem:[%s237 + $0xb8] sm:$0xff]
        %v293 = vld [vmem:[%s237 + $0xc0] sm:$0xf]
        %v294 = vld [vmem:[%s237 + $0xc4] sm:$0xff]
        %v295 = vld [vmem:[%s237 + $0xcc] sm:$0xff]
        %v296 = vld [vmem:[%s237 + $0xd4] sm:$0xff]
        %v297 = vld [vmem:[%s237 + $0xdc] sm:$0xf]
        %v298 = vld [vmem:[%s1] sm:$0xf]
        %v299 = vld [vmem:[%s1 + $0x4] sm:$0xf]
        %v300 = vld [vmem:[%s1 + $0x8] sm:$0xf]
        %v301 = vld [vmem:[%s1 + $0xc] sm:$0xf]
        %v302 = vld [vmem:[%s1 + $0x10] sm:$0xf]
        %v303 = vld [vmem:[%s1 + $0x14] sm:$0xf]
        %v304 = vld [vmem:[%s1 + $0x18] sm:$0xf]
        %v305 = vld [vmem:[%s1 + $0x1c] sm:$0xf]
        %v306 = vld [vmem:[%s1 + $0x20] sm:$0xf]
        %v307 = vld [vmem:[%s1 + $0x24] sm:$0xf]
        %v308 = vld [vmem:[%s1 + $0x28] sm:$0xf]
        %v309 = vld [vmem:[%s1 + $0x2c] sm:$0xf]
        %v310 = vld [vmem:[%s1 + $0x30] sm:$0xf]
        %v311 = vld [vmem:[%s1 + $0x34] sm:$0xf]
        %v312 = vld [vmem:[%s1 + $0x38] sm:$0xf]
        %v313 = vld [vmem:[%s1 + $0x3c] sm:$0xf]
        %v314 = vld [vmem:[%s1 + $0x40] sm:$0xf]
        %v315 = vld [vmem:[%s1 + $0x44] sm:$0xf]
        %v316 = vld [vmem:[%s1 + $0x48] sm:$0xf]
        %v317 = vld [vmem:[%s1 + $0x4c] sm:$0xf]
        %v318 = vld [vmem:[%s1 + $0x50] sm:$0xf]
        %v319 = vld [vmem:[%s1 + $0x54] sm:$0xf]
        %v320 = vld [vmem:[%s1 + $0x58] sm:$0xf]
        %v321 = vld [vmem:[%s1 + $0x5c] sm:$0xf]
        %v322 = vld [vmem:[%s1 + $0x60] sm:$0xf]
        %v323 = vld [vmem:[%s1 + $0x64] sm:$0xf]
        %v324 = vld [vmem:[%s1 + $0x68] sm:$0xf]
        %v325 = vld [vmem:[%s1 + $0x6c] sm:$0xf]
        %v326 = vld [vmem:[%s1 + $0x70] sm:$0xf]
        %v327 = vld [vmem:[%s1 + $0x74] sm:$0xf]
        %v328 = vld [vmem:[%s1 + $0x78] sm:$0xf]
        %v329 = vld [vmem:[%s1 + $0x7c] sm:$0xf]
        %v330 = vld [vmem:[%s1 + $0x80] sm:$0xf]
        %v331 = vld [vmem:[%s1 + $0x84] sm:$0xf]
        %v332 = vld [vmem:[%s1 + $0x88] sm:$0xf]
        %v333 = vld [vmem:[%s1 + $0x8c] sm:$0xf]
        %v334 = vld [vmem:[%s1 + $0x90] sm:$0xf]
        %v335 = vld [vmem:[%s1 + $0x94] sm:$0xf]
        %v336 = vld [vmem:[%s1 + $0x98] sm:$0xf]
        %v337 = vld [vmem:[%s1 + $0x9c] sm:$0xf]
        %v338 = vld [vmem:[%s1 + $0xa0] sm:$0xf]
        %v339 = vld [vmem:[%s1 + $0xa4] sm:$0xf]
        %v340 = vld [vmem:[%s1 + $0xa8] sm:$0xf]
        %v341 = vld [vmem:[%s1 + $0xac] sm:$0xf]
        %v342 = vld [vmem:[%s1 + $0xb0] sm:$0xf]
        %v343 = vld [vmem:[%s1 + $0xb4] sm:$0xf]
        %v344 = vld [vmem:[%s1 + $0xb8] sm:$0xf]
        %v345 = vld [vmem:[%s1 + $0xbc] sm:$0xf]
        %v346 = vld [vmem:[%s1 + $0xc0] sm:$0xf]
        %v347 = vld [vmem:[%s1 + $0xc4] sm:$0xf]
        %v348 = vld [vmem:[%s1 + $0xc8] sm:$0xf]
        %v349 = vld [vmem:[%s1 + $0xcc] sm:$0xf]
        %v350 = vld [vmem:[%s1 + $0xd0] sm:$0xf]
        %v351 = vld [vmem:[%s1 + $0xd4] sm:$0xf]
        %v352 = vld [vmem:[%s1 + $0xd8] sm:$0xf]
        %v353 = vld [vmem:[%s1 + $0xdc] sm:$0xf]
        %v354 = vld [vmem:[%s1 + $0xe0] sm:$0xf]
        %v355 = vld [vmem:[%s1 + $0xe4] sm:$0xf]
        %v356 = vld [vmem:[%s1 + $0xe8] sm:$0xf]
        %v357 = vld [vmem:[%s1 + $0xec] sm:$0xf]
        %v358 = vld [vmem:[%s1 + $0xf0] sm:$0xf]
        %v359 = vld [vmem:[%s1 + $0xf4] sm:$0xf]
        %v360 = vld [vmem:[%s1 + $0xf8] sm:$0xf]
        %v361 = vld [vmem:[%s1 + $0xfc] sm:$0xf]
        %v362 = vld [vmem:[%s1 + $0x100] sm:$0xf]
        %v363 = vld [vmem:[%s1 + $0x104] sm:$0xf]
        %v364 = vld [vmem:[%s1 + $0x108] sm:$0xf]
        %v365 = vld [vmem:[%s1 + $0x10c] sm:$0xf]
        %v366 = vld [vmem:[%s1 + $0x110] sm:$0xf]
        %v367 = vld [vmem:[%s1 + $0x114] sm:$0xf]
        %v368 = vld [vmem:[%s1 + $0x118] sm:$0xf]
        %v369 = vld [vmem:[%s1 + $0x11c] sm:$0xf]
        %v370 = vld [vmem:[%s1 + $0x120] sm:$0xf]
        %v371 = vld [vmem:[%s1 + $0x124] sm:$0xf]
        %v372 = vld [vmem:[%s1 + $0x128] sm:$0xf]
        %v373 = vld [vmem:[%s1 + $0x12c] sm:$0xf]
        %v374 = vld [vmem:[%s1 + $0x130] sm:$0xf]
        %v375 = vld [vmem:[%s1 + $0x134] sm:$0xf]
        %v376 = vld [vmem:[%s1 + $0x138] sm:$0xf]
        %v377 = vld [vmem:[%s1 + $0x13c] sm:$0xf]
        %v378 = vld [vmem:[%s1 + $0x140] sm:$0xf]
        %v379 = vld [vmem:[%s1 + $0x144] sm:$0xf]
        %v380 = vld [vmem:[%s1 + $0x148] sm:$0xf]
        %v381 = vld [vmem:[%s1 + $0x14c] sm:$0xf]
        %v382 = vld [vmem:[%s1 + $0x150] sm:$0xf]
        %v383 = vld [vmem:[%s1 + $0x154] sm:$0xf]
        %v384 = vld [vmem:[%s1 + $0x158] sm:$0xf]
        %v385 = vld [vmem:[%s1 + $0x15c] sm:$0xf]
        %v386 = vld [vmem:[%s1 + $0x160] sm:$0xf]
        %v387 = vld [vmem:[%s1 + $0x164] sm:$0xf]
        %v388 = vld [vmem:[%s1 + $0x168] sm:$0xf]
        %v389 = vld [vmem:[%s1 + $0x16c] sm:$0xf]
        %v390 = vld [vmem:[%s1 + $0x170] sm:$0xf]
        %v391 = vld [vmem:[%s1 + $0x174] sm:$0xf]
        %v392 = vld [vmem:[%s1 + $0x178] sm:$0xf]
        %v393 = vld [vmem:[%s1 + $0x17c] sm:$0xf]
        %v394 = vld [vmem:[%s1 + $0x180] sm:$0xf]
        %v395 = vld [vmem:[%s1 + $0x184] sm:$0xf]
        %v396 = vld [vmem:[%s1 + $0x188] sm:$0xf]
        %v397 = vld [vmem:[%s1 + $0x18c] sm:$0xf]
        %v398 = vld [vmem:[%s2] sm:$0x1]
        %v400 = vlaneseq
        %v401 = vshrl.u32 %v400, 7
        %v402 = vsub.s32 0, %v401
        %v403 = vrot.slane %v398, %v402
        %v437 = vunpack.c.l.b16 %v266
        %v438 = vunpack.c.h.b16 %v266
        %v439 = vunpack.c.l.b16 %v267
        %v440 = vunpack.c.h.b16 %v267
        %v441 = vunpack.c.l.b16 %v268
        %v442 = vunpack.c.h.b16 %v268
        %v443 = vunpack.c.l.b16 %v269
        %v444 = vunpack.c.l.b16 %v270
        %v445 = vunpack.c.h.b16 %v270
        %v446 = vunpack.c.l.b16 %v271
        %v447 = vunpack.c.h.b16 %v271
        %v448 = vunpack.c.l.b16 %v272
        %v449 = vunpack.c.h.b16 %v272
        %v450 = vunpack.c.l.b16 %v273
        %v451 = vunpack.c.l.b16 %v274
        %v452 = vunpack.c.h.b16 %v274
        %v453 = vunpack.c.l.b16 %v275
        %v454 = vunpack.c.h.b16 %v275
        %v455 = vunpack.c.l.b16 %v276
        %v456 = vunpack.c.h.b16 %v276
        %v457 = vunpack.c.l.b16 %v277
        %v458 = vunpack.c.l.b16 %v278
        %v459 = vunpack.c.h.b16 %v278
        %v460 = vunpack.c.l.b16 %v279
        %v461 = vunpack.c.h.b16 %v279
        %v462 = vunpack.c.l.b16 %v280
        %v463 = vunpack.c.h.b16 %v280
        %v464 = vunpack.c.l.b16 %v281
        %v465 = vunpack.c.l.b16 %v282
        %v466 = vunpack.c.h.b16 %v282
        %v467 = vunpack.c.l.b16 %v283
        %v468 = vunpack.c.h.b16 %v283
        %v469 = vunpack.c.l.b16 %v284
        %v470 = vunpack.c.h.b16 %v284
        %v471 = vunpack.c.l.b16 %v285
        %v472 = vunpack.c.l.b16 %v286
        %v473 = vunpack.c.h.b16 %v286
        %v474 = vunpack.c.l.b16 %v287
        %v475 = vunpack.c.h.b16 %v287
        %v476 = vunpack.c.l.b16 %v288
        %v477 = vunpack.c.h.b16 %v288
        %v478 = vunpack.c.l.b16 %v289
        %v479 = vunpack.c.l.b16 %v290
        %v480 = vunpack.c.h.b16 %v290
        %v481 = vunpack.c.l.b16 %v291
        %v482 = vunpack.c.h.b16 %v291
        %v483 = vunpack.c.l.b16 %v292
        %v484 = vunpack.c.h.b16 %v292
        %v485 = vunpack.c.l.b16 %v293
        %v486 = vunpack.c.l.b16 %v294
        %v487 = vunpack.c.h.b16 %v294
        %v488 = vunpack.c.l.b16 %v295
        %v489 = vunpack.c.h.b16 %v295
        %v490 = vunpack.c.l.b16 %v296
        %v491 = vunpack.c.h.b16 %v296
        %v492 = vunpack.c.l.b16 %v297
        %v493 = vpack.c.b16 %v444, %v437
        %v494 = vpack.c.b16 %v445, %v438
        %v495 = vpack.c.b16 %v446, %v439
        %v496 = vpack.c.b16 %v447, %v440
        %v497 = vpack.c.b16 %v448, %v441
        %v498 = vpack.c.b16 %v449, %v442
        %v499 = vpack.c.b16 %v450, %v443
        %v500 = vpack.c.b16 %v458, %v451
        %v501 = vpack.c.b16 %v459, %v452
        %v502 = vpack.c.b16 %v460, %v453
        %v503 = vpack.c.b16 %v461, %v454
        %v504 = vpack.c.b16 %v462, %v455
        %v505 = vpack.c.b16 %v463, %v456
        %v506 = vpack.c.b16 %v464, %v457
        %v507 = vpack.c.b16 %v472, %v465
        %v508 = vpack.c.b16 %v473, %v466
        %v509 = vpack.c.b16 %v474, %v467
        %v510 = vpack.c.b16 %v475, %v468
        %v511 = vpack.c.b16 %v476, %v469
        %v512 = vpack.c.b16 %v477, %v470
        %v513 = vpack.c.b16 %v478, %v471
        %v514 = vpack.c.b16 %v486, %v479
        %v515 = vpack.c.b16 %v487, %v480
        %v516 = vpack.c.b16 %v488, %v481
        %v517 = vpack.c.b16 %v489, %v482
        %v518 = vpack.c.b16 %v490, %v483
        %v519 = vpack.c.b16 %v491, %v484
        %v520 = vpack.c.b16 %v492, %v485
        %v645 = vunpack.c.l.b16 %v298
        %v646 = vunpack.c.l.b16 %v299
        %v647 = vunpack.c.l.b16 %v300
        %v648 = vunpack.c.l.b16 %v301
        %v649 = vunpack.c.l.b16 %v302
        %v650 = vunpack.c.l.b16 %v303
        %v651 = vunpack.c.l.b16 %v304
        %v652 = vunpack.c.l.b16 %v305
        %v653 = vunpack.c.l.b16 %v306
        %v654 = vunpack.c.l.b16 %v307
        %v655 = vunpack.c.l.b16 %v308
        %v656 = vunpack.c.l.b16 %v309
        %v657 = vunpack.c.l.b16 %v310
        %v658 = vunpack.c.l.b16 %v311
        %v659 = vunpack.c.l.b16 %v312
        %v660 = vunpack.c.l.b16 %v313
        %v661 = vunpack.c.l.b16 %v314
        %v662 = vunpack.c.l.b16 %v315
        %v663 = vunpack.c.l.b16 %v316
        %v664 = vunpack.c.l.b16 %v317
        %v665 = vunpack.c.l.b16 %v318
        %v666 = vunpack.c.l.b16 %v319
        %v667 = vunpack.c.l.b16 %v320
        %v668 = vunpack.c.l.b16 %v321
        %v669 = vunpack.c.l.b16 %v322
        %v670 = vunpack.c.l.b16 %v323
        %v671 = vunpack.c.l.b16 %v324
        %v672 = vunpack.c.l.b16 %v325
        %v673 = vunpack.c.l.b16 %v326
        %v674 = vunpack.c.l.b16 %v327
        %v675 = vunpack.c.l.b16 %v328
        %v676 = vunpack.c.l.b16 %v329
        %v677 = vunpack.c.l.b16 %v330
        %v678 = vunpack.c.l.b16 %v331
        %v679 = vunpack.c.l.b16 %v332
        %v680 = vunpack.c.l.b16 %v333
        %v681 = vunpack.c.l.b16 %v334
        %v682 = vunpack.c.l.b16 %v335
        %v683 = vunpack.c.l.b16 %v336
        %v684 = vunpack.c.l.b16 %v337
        %v685 = vunpack.c.l.b16 %v338
        %v686 = vunpack.c.l.b16 %v339
        %v687 = vunpack.c.l.b16 %v340
        %v688 = vunpack.c.l.b16 %v341
        %v689 = vunpack.c.l.b16 %v342
        %v690 = vunpack.c.l.b16 %v343
        %v691 = vunpack.c.l.b16 %v344
        %v692 = vunpack.c.l.b16 %v345
        %v693 = vunpack.c.l.b16 %v346
        %v694 = vunpack.c.l.b16 %v347
        %v695 = vunpack.c.l.b16 %v348
        %v696 = vunpack.c.l.b16 %v349
        %v697 = vunpack.c.l.b16 %v350
        %v698 = vunpack.c.l.b16 %v351
        %v699 = vunpack.c.l.b16 %v352
        %v700 = vunpack.c.l.b16 %v353
        %v701 = vunpack.c.l.b16 %v354
        %v702 = vunpack.c.l.b16 %v355
        %v703 = vunpack.c.l.b16 %v356
        %v704 = vunpack.c.l.b16 %v357
        %v705 = vunpack.c.l.b16 %v358
        %v706 = vunpack.c.l.b16 %v359
        %v707 = vunpack.c.l.b16 %v360
        %v708 = vunpack.c.l.b16 %v361
        %v709 = vunpack.c.l.b16 %v362
        %v710 = vunpack.c.l.b16 %v363
        %v711 = vunpack.c.l.b16 %v364
        %v712 = vunpack.c.l.b16 %v365
        %v713 = vunpack.c.l.b16 %v366
        %v714 = vunpack.c.l.b16 %v367
        %v715 = vunpack.c.l.b16 %v368
        %v716 = vunpack.c.l.b16 %v369
        %v717 = vunpack.c.l.b16 %v370
        %v718 = vunpack.c.l.b16 %v371
        %v719 = vunpack.c.l.b16 %v372
        %v720 = vunpack.c.l.b16 %v373
        %v721 = vunpack.c.l.b16 %v374
        %v722 = vunpack.c.l.b16 %v375
        %v723 = vunpack.c.l.b16 %v376
        %v724 = vunpack.c.l.b16 %v377
        %v725 = vunpack.c.l.b16 %v378
        %v726 = vunpack.c.l.b16 %v379
        %v727 = vunpack.c.l.b16 %v380
        %v728 = vunpack.c.l.b16 %v381
        %v729 = vunpack.c.l.b16 %v382
        %v730 = vunpack.c.l.b16 %v383
        %v731 = vunpack.c.l.b16 %v384
        %v732 = vunpack.c.l.b16 %v385
        %v733 = vunpack.c.l.b16 %v386
        %v734 = vunpack.c.l.b16 %v387
        %v735 = vunpack.c.l.b16 %v388
        %v736 = vunpack.c.l.b16 %v389
        %v737 = vunpack.c.l.b16 %v390
        %v738 = vunpack.c.l.b16 %v391
        %v739 = vunpack.c.l.b16 %v392
        %v740 = vunpack.c.l.b16 %v393
        %v741 = vunpack.c.l.b16 %v394
        %v742 = vunpack.c.l.b16 %v395
        %v743 = vunpack.c.l.b16 %v396
        %v744 = vunpack.c.l.b16 %v397
        %v745 = vpack.c.b16 %v646, %v645
        %v746 = vpack.c.b16 %v648, %v647
        %v747 = vpack.c.b16 %v650, %v649
        %v748 = vpack.c.b16 %v652, %v651
        %v749 = vpack.c.b16 %v654, %v653
        %v750 = vpack.c.b16 %v656, %v655
        %v751 = vpack.c.b16 %v658, %v657
        %v752 = vpack.c.b16 %v660, %v659
        %v753 = vpack.c.b16 %v662, %v661
        %v754 = vpack.c.b16 %v664, %v663
        %v755 = vpack.c.b16 %v666, %v665
        %v756 = vpack.c.b16 %v668, %v667
        %v757 = vpack.c.b16 %v670, %v669
        %v758 = vpack.c.b16 %v672, %v671
        %v759 = vpack.c.b16 %v674, %v673
        %v760 = vpack.c.b16 %v676, %v675
        %v761 = vpack.c.b16 %v678, %v677
        %v762 = vpack.c.b16 %v680, %v679
        %v763 = vpack.c.b16 %v682, %v681
        %v764 = vpack.c.b16 %v684, %v683
        %v765 = vpack.c.b16 %v686, %v685
        %v766 = vpack.c.b16 %v688, %v687
        %v767 = vpack.c.b16 %v690, %v689
        %v768 = vpack.c.b16 %v692, %v691
        %v769 = vpack.c.b16 %v694, %v693
        %v770 = vpack.c.b16 %v696, %v695
        %v771 = vpack.c.b16 %v698, %v697
        %v772 = vpack.c.b16 %v700, %v699
        %v773 = vpack.c.b16 %v702, %v701
        %v774 = vpack.c.b16 %v704, %v703
        %v775 = vpack.c.b16 %v706, %v705
        %v776 = vpack.c.b16 %v708, %v707
        %v777 = vpack.c.b16 %v710, %v709
        %v778 = vpack.c.b16 %v712, %v711
        %v779 = vpack.c.b16 %v714, %v713
        %v780 = vpack.c.b16 %v716, %v715
        %v781 = vpack.c.b16 %v718, %v717
        %v782 = vpack.c.b16 %v720, %v719
        %v783 = vpack.c.b16 %v722, %v721
        %v784 = vpack.c.b16 %v724, %v723
        %v785 = vpack.c.b16 %v726, %v725
        %v786 = vpack.c.b16 %v728, %v727
        %v787 = vpack.c.b16 %v730, %v729
        %v788 = vpack.c.b16 %v732, %v731
        %v789 = vpack.c.b16 %v734, %v733
        %v790 = vpack.c.b16 %v736, %v735
        %v791 = vpack.c.b16 %v738, %v737
        %v792 = vpack.c.b16 %v740, %v739
        %v793 = vpack.c.b16 %v742, %v741
        %v794 = vpack.c.b16 %v744, %v743
        %vm845 = vcmask 261120
        %v847 = vsel %vm845, %v499, 0
        %v850 = vsel %vm845, %v506, 0
        %v853 = vsel %vm845, %v513, 0
        %v856 = vsel %vm845, %v520, 0
        %858 = vmatprep.subr.bf16.mxu0 0
        %859 = vmatpush1.bf16.msra.mxu0 %v745
        %860 = vmatprep.subr.bf16.mxu0 0
        %861 = vmatpush1.bf16.msra.mxu0 %v746
        %862 = vmatprep.subr.bf16.mxu0 0
        %863 = vmatpush1.bf16.msra.mxu0 %v747
        %864 = vmatprep.subr.bf16.mxu0 0
        %865 = vmatpush1.bf16.msra.mxu0 %v748
        %866 = vmatprep.subr.bf16.mxu0 0
        %867 = vmatpush1.bf16.msra.mxu0 %v749
        %868 = vmatprep.subr.bf16.mxu0 0
        %869 = vmatpush1.bf16.msra.mxu0 %v750
        %870 = vmatprep.subr.bf16.mxu0 0
        %871 = vmatpush1.bf16.msra.mxu0 %v751
        %872 = vmatprep.subr.bf16.mxu0 0
        %873 = vmatpush1.bf16.msra.mxu0 %v752
        %874 = vmatprep.subr.bf16.mxu0 0
        %875 = vmatpush1.bf16.msra.mxu0 %v753
        %876 = vmatprep.subr.bf16.mxu0 0
        %877 = vmatpush1.bf16.msra.mxu0 %v754
        %878 = vmatprep.subr.bf16.mxu0 0
        %879 = vmatpush1.bf16.msra.mxu0 %v755
        %880 = vmatprep.subr.bf16.mxu0 0
        %881 = vmatpush1.bf16.msra.mxu0 %v756
        %882 = vmatprep.subr.bf16.mxu0 0
        %883 = vmatpush1.bf16.msra.mxu0 %v757
        %884 = vmatprep.subr.bf16.mxu0 0
        %885 = vmatpush1.bf16.msra.mxu0 %v758
        %886 = vmatprep.subr.bf16.mxu0 0
        %887 = vmatpush1.bf16.msra.mxu0 %v759
        %888 = vmatprep.subr.bf16.mxu0 0
        %889 = vmatpush1.bf16.msra.mxu0 %v760
        %890 = vmatprep.mubr.bf16.mxu0 %v494
        %891 = vmatmul.mubr.bf16.gmra.mrb[0].mxu0 %v493
        %v892 = vpop.f32.mrb[0].mxu0
        %v893 = vadd.f32 %v403, %v892
        %v894 = vpop.f32.mrb[0].mxu0
        %v895 = vpop.f32.mrb[0].mxu0
        %v896 = vadd.f32 %v403, %v895
        %v897 = vpop.f32.mrb[0].mxu0
        %898 = vmatprep.mubr.bf16.mxu0 %v501
        %899 = vmatmul.mubr.bf16.gmra.mrb[0].mxu0 %v500
        %v900 = vpop.f32.mrb[0].mxu0
        %v901 = vadd.f32 %v403, %v900
        %v902 = vpop.f32.mrb[0].mxu0
        %v903 = vpop.f32.mrb[0].mxu0
        %v904 = vadd.f32 %v403, %v903
        %v905 = vpop.f32.mrb[0].mxu0
        %906 = vmatprep.mubr.bf16.mxu0 %v508
        %907 = vmatmul.mubr.bf16.gmra.mrb[0].mxu0 %v507
        %v908 = vpop.f32.mrb[0].mxu0
        %v909 = vadd.f32 %v403, %v908
        %v910 = vpop.f32.mrb[0].mxu0
        %v911 = vpop.f32.mrb[0].mxu0
        %v912 = vadd.f32 %v403, %v911
        %v913 = vpop.f32.mrb[0].mxu0
        %914 = vmatprep.mubr.bf16.mxu0 %v515
        %915 = vmatmul.mubr.bf16.gmra.mrb[0].mxu0 %v514
        %v916 = vpop.f32.mrb[0].mxu0
        %v917 = vadd.f32 %v403, %v916
        %v918 = vpop.f32.mrb[0].mxu0
        %v919 = vpop.f32.mrb[0].mxu0
        %v920 = vadd.f32 %v403, %v919
        %v921 = vpop.f32.mrb[0].mxu0
        %922 = vdwg.mxu0
        %923 = vmatprep.subr.bf16.mxu0 0
        %924 = vmatpush1.bf16.msra.mxu0 %v761
        %925 = vmatprep.subr.bf16.mxu0 0
        %926 = vmatpush1.bf16.msra.mxu0 %v762
        %927 = vmatprep.subr.bf16.mxu0 0
        %928 = vmatpush1.bf16.msra.mxu0 %v763
        %929 = vmatprep.subr.bf16.mxu0 0
        %930 = vmatpush1.bf16.msra.mxu0 %v764
        %931 = vmatprep.subr.bf16.mxu0 0
        %932 = vmatpush1.bf16.msra.mxu0 %v765
        %933 = vmatprep.subr.bf16.mxu0 0
        %934 = vmatpush1.bf16.msra.mxu0 %v766
        %935 = vmatprep.subr.bf16.mxu0 0
        %936 = vmatpush1.bf16.msra.mxu0 %v767
        %937 = vmatprep.subr.bf16.mxu0 0
        %938 = vmatpush1.bf16.msra.mxu0 %v768
        %939 = vmatprep.subr.bf16.mxu0 0
        %940 = vmatpush1.bf16.msra.mxu0 %v769
        %941 = vmatprep.subr.bf16.mxu0 0
        %942 = vmatpush1.bf16.msra.mxu0 %v770
        %943 = vmatprep.subr.bf16.mxu0 0
        %944 = vmatpush1.bf16.msra.mxu0 %v771
        %945 = vmatprep.subr.bf16.mxu0 0
        %946 = vmatpush1.bf16.msra.mxu0 %v772
        %947 = vmatprep.subr.bf16.mxu0 0
        %948 = vmatpush1.bf16.msra.mxu0 %v773
        %949 = vmatprep.subr.bf16.mxu0 0
        %950 = vmatpush1.bf16.msra.mxu0 %v774
        %951 = vmatprep.subr.bf16.mxu0 0
        %952 = vmatpush1.bf16.msra.mxu0 %v775
        %953 = vmatprep.subr.bf16.mxu0 0
        %954 = vmatpush1.bf16.msra.mxu0 %v776
        %955 = vmatprep.mubr.bf16.mxu0 %v496
        %956 = vmatmul.mubr.bf16.gmra.mrb[0].mxu0 %v495
        %v957 = vpop.f32.mrb[0].mxu0
        %v958 = vadd.f32 %v893, %v957
        %v959 = vpop.f32.mrb[0].mxu0
        %v960 = vpop.f32.mrb[0].mxu0
        %v961 = vadd.f32 %v896, %v960
        %v962 = vpop.f32.mrb[0].mxu0
        %963 = vmatprep.mubr.bf16.mxu0 %v503
        %964 = vmatmul.mubr.bf16.gmra.mrb[0].mxu0 %v502
        %v965 = vpop.f32.mrb[0].mxu0
        %v966 = vadd.f32 %v901, %v965
        %v967 = vpop.f32.mrb[0].mxu0
        %v968 = vpop.f32.mrb[0].mxu0
        %v969 = vadd.f32 %v904, %v968
        %v970 = vpop.f32.mrb[0].mxu0
        %971 = vmatprep.mubr.bf16.mxu0 %v510
        %972 = vmatmul.mubr.bf16.gmra.mrb[0].mxu0 %v509
        %v973 = vpop.f32.mrb[0].mxu0
        %v974 = vadd.f32 %v909, %v973
        %v975 = vpop.f32.mrb[0].mxu0
        %v976 = vpop.f32.mrb[0].mxu0
        %v977 = vadd.f32 %v912, %v976
        %v978 = vpop.f32.mrb[0].mxu0
        %979 = vmatprep.mubr.bf16.mxu0 %v517
        %980 = vmatmul.mubr.bf16.gmra.mrb[0].mxu0 %v516
        %v981 = vpop.f32.mrb[0].mxu0
        %v982 = vadd.f32 %v917, %v981
        %v983 = vpop.f32.mrb[0].mxu0
        %v984 = vpop.f32.mrb[0].mxu0
        %v985 = vadd.f32 %v920, %v984
        %v986 = vpop.f32.mrb[0].mxu0
        %987 = vdwg.mxu0
        %988 = vmatprep.subr.bf16.mxu0 0
        %989 = vmatpush1.bf16.msra.mxu0 %v777
        %990 = vmatprep.subr.bf16.mxu0 0
        %991 = vmatpush1.bf16.msra.mxu0 %v778
        %992 = vmatprep.subr.bf16.mxu0 0
        %993 = vmatpush1.bf16.msra.mxu0 %v779
        %994 = vmatprep.subr.bf16.mxu0 0
        %995 = vmatpush1.bf16.msra.mxu0 %v780
        %996 = vmatprep.subr.bf16.mxu0 0
        %997 = vmatpush1.bf16.msra.mxu0 %v781
        %998 = vmatprep.subr.bf16.mxu0 0
        %999 = vmatpush1.bf16.msra.mxu0 %v782
        %1000 = vmatprep.subr.bf16.mxu0 0
        %1001 = vmatpush1.bf16.msra.mxu0 %v783
        %1002 = vmatprep.subr.bf16.mxu0 0
        %1003 = vmatpush1.bf16.msra.mxu0 %v784
        %1004 = vmatprep.subr.bf16.mxu0 0
        %1005 = vmatpush1.bf16.msra.mxu0 %v785
        %1006 = vmatprep.subr.bf16.mxu0 0
        %1007 = vmatpush1.bf16.msra.mxu0 %v786
        %1008 = vmatprep.subr.bf16.mxu0 0
        %1009 = vmatpush1.bf16.msra.mxu0 %v787
        %1010 = vmatprep.subr.bf16.mxu0 0
        %1011 = vmatpush1.bf16.msra.mxu0 %v788
        %1012 = vmatprep.subr.bf16.mxu0 0
        %1013 = vmatpush1.bf16.msra.mxu0 %v789
        %1014 = vmatprep.subr.bf16.mxu0 0
        %1015 = vmatpush1.bf16.msra.mxu0 %v790
        %1016 = vmatprep.subr.bf16.mxu0 0
        %1017 = vmatpush1.bf16.msra.mxu0 %v791
        %1018 = vmatprep.subr.bf16.mxu0 0
        %1019 = vmatpush1.bf16.msra.mxu0 %v792
        %1020 = vmatprep.mubr.bf16.mxu0 %v498
        %1021 = vmatmul.mubr.bf16.gmra.mrb[0].mxu0 %v497
        %v1022 = vpop.f32.mrb[0].mxu0
        %v1023 = vadd.f32 %v958, %v1022
        %v1024 = vpop.f32.mrb[0].mxu0
        %v1025 = vpop.f32.mrb[0].mxu0
        %v1026 = vadd.f32 %v961, %v1025
        %v1027 = vpop.f32.mrb[0].mxu0
        %1028 = vmatprep.mubr.bf16.mxu0 %v505
        %1029 = vmatmul.mubr.bf16.gmra.mrb[0].mxu0 %v504
        %v1030 = vpop.f32.mrb[0].mxu0
        %v1031 = vadd.f32 %v966, %v1030
        %v1032 = vpop.f32.mrb[0].mxu0
        %v1033 = vpop.f32.mrb[0].mxu0
        %v1034 = vadd.f32 %v969, %v1033
        %v1035 = vpop.f32.mrb[0].mxu0
        %1036 = vmatprep.mubr.bf16.mxu0 %v512
        %1037 = vmatmul.mubr.bf16.gmra.mrb[0].mxu0 %v511
        %v1038 = vpop.f32.mrb[0].mxu0
        %v1039 = vadd.f32 %v974, %v1038
        %v1040 = vpop.f32.mrb[0].mxu0
        %v1041 = vpop.f32.mrb[0].mxu0
        %v1042 = vadd.f32 %v977, %v1041
        %v1043 = vpop.f32.mrb[0].mxu0
        %1044 = vmatprep.mubr.bf16.mxu0 %v519
        %1045 = vmatmul.mubr.bf16.gmra.mrb[0].mxu0 %v518
        %v1046 = vpop.f32.mrb[0].mxu0
        %v1047 = vadd.f32 %v982, %v1046
        %v1048 = vpop.f32.mrb[0].mxu0
        %v1049 = vpop.f32.mrb[0].mxu0
        %v1050 = vadd.f32 %v985, %v1049
        %v1051 = vpop.f32.mrb[0].mxu0
        %1052 = vdwg.mxu0
        %1053 = vmatprep.subr.bf16.mxu0 0
        %1054 = vmatpush1.bf16.msra.mxu0 %v793
        %1055 = vmatprep.subr.bf16.mxu0 0
        %1056 = vmatpush1.bf16.msra.mxu0 %v794
        %1057 = vmatprep.subr.bf16.mxu0 0
        %1058 = vmatpush1.bf16.msra.mxu0 0
        %1059 = vmatprep.subr.bf16.mxu0 0
        %1060 = vmatpush1.bf16.msra.mxu0 0
        %1061 = vmatprep.subr.bf16.mxu0 0
        %1062 = vmatpush1.bf16.msra.mxu0 0
        %1063 = vmatprep.subr.bf16.mxu0 0
        %1064 = vmatpush1.bf16.msra.mxu0 0
        %1065 = vmatprep.subr.bf16.mxu0 0
        %1066 = vmatpush1.bf16.msra.mxu0 0
        %1067 = vmatprep.subr.bf16.mxu0 0
        %1068 = vmatpush1.bf16.msra.mxu0 0
        %1069 = vmatprep.subr.bf16.mxu0 0
        %1070 = vmatpush1.bf16.msra.mxu0 0
        %1071 = vmatprep.subr.bf16.mxu0 0
        %1072 = vmatpush1.bf16.msra.mxu0 0
        %1073 = vmatprep.subr.bf16.mxu0 0
        %1074 = vmatpush1.bf16.msra.mxu0 0
        %1075 = vmatprep.subr.bf16.mxu0 0
        %1076 = vmatpush1.bf16.msra.mxu0 0
        %1077 = vmatprep.subr.bf16.mxu0 0
        %1078 = vmatpush1.bf16.msra.mxu0 0
        %1079 = vmatprep.subr.bf16.mxu0 0
        %1080 = vmatpush1.bf16.msra.mxu0 0
        %1081 = vmatprep.subr.bf16.mxu0 0
        %1082 = vmatpush1.bf16.msra.mxu0 0
        %1083 = vmatprep.subr.bf16.mxu0 0
        %1084 = vmatpush1.bf16.msra.mxu0 0
        %1085 = vmatprep.mubr.bf16.mxu0 0
        %1086 = vmatmul.mubr.bf16.gmra.mrb[0].mxu0 %v847
        %v1087 = vpop.f32.mrb[0].mxu0
        %v1088 = vadd.f32 %v1023, %v1087
        %v1089 = vpop.f32.mrb[0].mxu0
        %v1090 = vpop.f32.mrb[0].mxu0
        %v1091 = vadd.f32 %v1026, %v1090
        %v1092 = vpop.f32.mrb[0].mxu0
        %1093 = vmatprep.mubr.bf16.mxu0 0
        %1094 = vmatmul.mubr.bf16.gmra.mrb[0].mxu0 %v850
        %v1095 = vpop.f32.mrb[0].mxu0
        %v1096 = vadd.f32 %v1031, %v1095
        %v1097 = vpop.f32.mrb[0].mxu0
        %v1098 = vpop.f32.mrb[0].mxu0
        %v1099 = vadd.f32 %v1034, %v1098
        %v1100 = vpop.f32.mrb[0].mxu0
        %1101 = vmatprep.mubr.bf16.mxu0 0
        %1102 = vmatmul.mubr.bf16.gmra.mrb[0].mxu0 %v853
        %v1103 = vpop.f32.mrb[0].mxu0
        %v1104 = vadd.f32 %v1039, %v1103
        %v1105 = vpop.f32.mrb[0].mxu0
        %v1106 = vpop.f32.mrb[0].mxu0
        %v1107 = vadd.f32 %v1042, %v1106
        %v1108 = vpop.f32.mrb[0].mxu0
        %1109 = vmatprep.mubr.bf16.mxu0 0
        %1110 = vmatmul.mubr.bf16.gmra.mrb[0].mxu0 %v856
        %v1111 = vpop.f32.mrb[0].mxu0
        %v1112 = vadd.f32 %v1047, %v1111
        %v1113 = vpop.f32.mrb[0].mxu0
        %v1114 = vpop.f32.mrb[0].mxu0
        %v1115 = vadd.f32 %v1050, %v1114
        %v1116 = vpop.f32.mrb[0].mxu0
        %1117 = vdwg.mxu0
        %v1118 = vmax.f32 %v1088, 0.0
        %v1119 = vmax.f32 %v1091, 0.0
        %v1120 = vmax.f32 %v1096, 0.0
        %v1121 = vmax.f32 %v1099, 0.0
        %v1122 = vmax.f32 %v1104, 0.0
        %v1123 = vmax.f32 %v1107, 0.0
        %v1124 = vmax.f32 %v1112, 0.0
        %v1125 = vmax.f32 %v1115, 0.0
        %v1126 = vadd.f32 %v1118, %v1120
        %v1127 = vadd.f32 %v1119, %v1121
        %v1128 = vadd.f32 %v1126, %v1122
        %v1129 = vadd.f32 %v1127, %v1123
        %v1130 = vadd.f32 %v1128, %v1124
        %v1131 = vadd.f32 %v1129, %v1125
        %v1132 = vmul.f32 %v1130, 0.25
        %v1133 = vmul.f32 %v1131, 0.25
        %v1134 = vpack.c.bf16 %v1133, %v1132
        %v1136 = vunpack.c.l.b16 %v1134
        %v1137 = vunpack.c.h.b16 %v1134
        %v1138 = vpack.c.b16 %v1136, %v1136
        %v1139 = vpack.c.b16 %v1137, %v1137
        %1142 = vst [vmem:[%s263] sm:$0xf] %v1138
        %1143 = vst [vmem:[%s263 + $0x4] sm:$0xf] %v1139
        %s1144 = smul.u32 2, %s14
        %p1145 = scmp.lt.s32.totalorder %s1144, 3
        %s1146 = scalar_select %p1145, %s1144, 3
        %s1147 = smul.addr %s1146, 4
        %s1148 = scalar_lea.vmem %s3, %s1147
        // Predicated region
        $region59: #{forward.4} parent=53 // pred_check
          %p1149 = pneg %p100
        $region60: #{forward.4} parent=53 // pred_check_branch
          %1151 = sbr.rel (%p1149) target = $region62
        $region61: #{forward.4} parent=53 // pred_region
          %s1152 = smul.u32 2, %s14
        $region62: #{forward.4} parent=53 // pred_fallthru
          _
      $region54: #{forward.4} parent=5 // pred_fallthru
        _
      %p1153 = scmp.le.s32.totalorder 2, %s9
      // Predicated region
      $region63: #{forward.4} parent=5 // pred_check
        %p1154 = pneg %p1153
      $region64: #{forward.4} parent=5 // pred_check_branch
        %1156 = sbr.rel (%p1154) target = $region66
      $region65: #{forward.4} parent=5 // pred_region
        %s1157 = ssub.s32 %s9, 2
        // Predicated region
        $region67: #{forward.4} parent=65 // pred_check
          %p1158 = pneg %p106
        $region68: #{forward.4} parent=65 // pred_check_branch
          %1160 = sbr.rel (%p1158) target = $region70
        $region69: #{forward.4} parent=65 // pred_region
          %s1161 = smul.u32 2, %s15
          %p1162 = scmp.lt.s32.totalorder %s1161, 3
          %s1163 = scalar_select %p1162, %s1161, 3
          %s1164 = smul.addr %s1163, 4
          %s1165 = scalar_lea.vmem %s3, %s1164
        $region70: #{forward.4} parent=65 // pred_fallthru
          _
      $region66: #{forward.4} parent=5 // pred_fallthru
        _
    $region6: #{forward.4} parent=1 // loop_footer
      %s13 = sadd.s32 1, %s9
    $region7: #{forward.4} parent=1 // loop_footer_branch
      %8 = sbr.rel target = $region3
    $region8: #{forward.4} parent=1 // loop_exit
      _

// kernel: forward.5
$region0: #{forward.5}
  #allocation0 [shape = 'u32[]', space=smem, size = 0x4, offset = 0x4, fixed_abs, tag = 'smem constant byte address 0x4 - core index']
  #allocation1 [shape = 'u32[144,128]{1,0:T(1,128)}', space=vmem, size = 0x12000, scoped, tag = 'internal scratch']
  %s0 = inlined_call_operand.vmem [shape: bf16[8,1024], index: 0, kind: input, shape index: {}]
  %s1 = inlined_call_operand.vmem [shape: bf16[1024,1024], index: 1, kind: input, shape index: {}]
  %s2 = inlined_call_operand.vmem [shape: f32[1,1024], index: 2, kind: input, shape index: {}]
  %s3 = inlined_call_operand.vmem [shape: bf16[1024,256], index: 3, kind: input, shape index: {}]
  %s4 = inlined_call_operand.vmem [shape: f32[1,256], index: 4, kind: input, shape index: {}]
  %s5 = inlined_call_operand.vmem [shape: bf16[256,128], index: 5, kind: input, shape index: {}]
  %s6 = inlined_call_operand.vmem [shape: f32[1,128], index: 6, kind: input, shape index: {}]
  %s7 = inlined_call_operand.vmem [shape: f32[8,128], index: 7, kind: output, shape index: {}]
  %s8 = sld [smem:[#allocation0]]
  $region38: #{forward.5} parent=0
    _
  %s10 = ssub.s32 1, %s8
  %s11 = scalar_select 0, %s10, %s8
  // Predicated region
  $region2: #{forward.5} parent=0 // pred_check
    _
  $region3: #{forward.5} parent=0 // pred_check_branch
    %13 = sbr.rel (0) target = $region5
  $region4: #{forward.5} parent=0 // pred_region
    _
  $region5: #{forward.5} parent=0 // pred_fallthru
    _
  // Predicated region
  $region6: #{forward.5} parent=0 // pred_check
    _
  $region7: #{forward.5} parent=0 // pred_check_branch
    %15 = sbr.rel (0) target = $region9
  $region8: #{forward.5} parent=0 // pred_region
    _
  $region9: #{forward.5} parent=0 // pred_fallthru
    _
  // Predicated region
  $region10: #{forward.5} parent=0 // pred_check
    _
  $region11: #{forward.5} parent=0 // pred_check_branch
    %17 = sbr.rel (0) target = $region13
  $region12: #{forward.5} parent=0 // pred_region
    _
  $region13: #{forward.5} parent=0 // pred_fallthru
    _
  // Predicated region
  $region14: #{forward.5} parent=0 // pred_check
    _
  $region15: #{forward.5} parent=0 // pred_check_branch
    %19 = sbr.rel (0) target = $region17
  $region16: #{forward.5} parent=0 // pred_region
    _
  $region17: #{forward.5} parent=0 // pred_fallthru
    _
  // Predicated region
  $region18: #{forward.5} parent=0 // pred_check
    _
  $region19: #{forward.5} parent=0 // pred_check_branch
    %21 = sbr.rel (0) target = $region21
  $region20: #{forward.5} parent=0 // pred_region
    _
  $region21: #{forward.5} parent=0 // pred_fallthru
    _
  // Predicated region
  $region22: #{forward.5} parent=0 // pred_check
    _
  $region23: #{forward.5} parent=0 // pred_check_branch
    %23 = sbr.rel (0) target = $region25
  $region24: #{forward.5} parent=0 // pred_region
    _
  $region25: #{forward.5} parent=0 // pred_fallthru
    _
  // Predicated region
  $region26: #{forward.5} parent=0 // pred_check
    _
  $region27: #{forward.5} parent=0 // pred_check_branch
    %25 = sbr.rel (0) target = $region29
  $region28: #{forward.5} parent=0 // pred_region
    _
  $region29: #{forward.5} parent=0 // pred_fallthru
    _
  %v27 = vld [vmem:[%s0] sm:$0xff]
  %v28 = vld [vmem:[%s0 + $0x8] sm:$0xff]
  %v29 = vld [vmem:[%s0 + $0x10] sm:$0xff]
  %v30 = vld [vmem:[%s0 + $0x18] sm:$0xff]
  %v31 = vld [vmem:[%s1] sm:$0xff]
  %v32 = vld [vmem:[%s1 + $0x8] sm:$0xff]
  %v33 = vld [vmem:[%s1 + $0x10] sm:$0xff]
  %v34 = vld [vmem:[%s1 + $0x18] sm:$0xff]
  %v35 = vld [vmem:[%s1 + $0x20] sm:$0xff]
  %v36 = vld [vmem:[%s1 + $0x28] sm:$0xff]
  %v37 = vld [vmem:[%s1 + $0x30] sm:$0xff]
  %v38 = vld [vmem:[%s1 + $0x38] sm:$0xff]
  %v39 = vld [vmem:[%s1 + $0x40] sm:$0xff]
  %v40 = vld [vmem:[%s1 + $0x48] sm:$0xff]
  %v41 = vld [vmem:[%s1 + $0x50] sm:$0xff]
  %v42 = vld [vmem:[%s1 + $0x58] sm:$0xff]
  %v43 = vld [vmem:[%s1 + $0x60] sm:$0xff]
  %v44 = vld [vmem:[%s1 + $0x68] sm:$0xff]
  %v45 = vld [vmem:[%s1 + $0x70] sm:$0xff]
  %v46 = vld [vmem:[%s1 + $0x78] sm:$0xff]
  %v47 = vld [vmem:[%s1 + $0x80] sm:$0xff]
  %v48 = vld [vmem:[%s1 + $0x88] sm:$0xff]
  %v49 = vld [vmem:[%s1 + $0x90] sm:$0xff]
  %v50 = vld [vmem:[%s1 + $0x98] sm:$0xff]
  %v51 = vld [vmem:[%s1 + $0xa0] sm:$0xff]
  %v52 = vld [vmem:[%s1 + $0xa8] sm:$0xff]
  %v53 = vld [vmem:[%s1 + $0xb0] sm:$0xff]
  %v54 = vld [vmem:[%s1 + $0xb8] sm:$0xff]
  %v55 = vld [vmem:[%s1 + $0xc0] sm:$0xff]
  %v56 = vld [vmem:[%s1 + $0xc8] sm:$0xff]
  %v57 = vld [vmem:[%s1 + $0xd0] sm:$0xff]
  %v58 = vld [vmem:[%s1 + $0xd8] sm:$0xff]
  %v59 = vld [vmem:[%s1 + $0xe0] sm:$0xff]
  %v60 = vld [vmem:[%s1 + $0xe8] sm:$0xff]
  %v61 = vld [vmem:[%s1 + $0xf0] sm:$0xff]
  %v62 = vld [vmem:[%s1 + $0xf8] sm:$0xff]
  %v63 = vld [vmem:[%s1 + $0x100] sm:$0xff]
  %v64 = vld [vmem:[%s1 + $0x108] sm:$0xff]
  %v65 = vld [vmem:[%s1 + $0x110] sm:$0xff]
  %v66 = vld [vmem:[%s1 + $0x118] sm:$0xff]
  %v67 = vld [vmem:[%s1 + $0x120] sm:$0xff]
  %v68 = vld [vmem:[%s1 + $0x128] sm:$0xff]
  %v69 = vld [vmem:[%s1 + $0x130] sm:$0xff]
  %v70 = vld [vmem:[%s1 + $0x138] sm:$0xff]
  %v71 = vld [vmem:[%s1 + $0x140] sm:$0xff]
  %v72 = vld [vmem:[%s1 + $0x148] sm:$0xff]
  %v73 = vld [vmem:[%s1 + $0x150] sm:$0xff]
  %v74 = vld [vmem:[%s1 + $0x158] sm:$0xff]
  %v75 = vld [vmem:[%s1 + $0x160] sm:$0xff]
  %v76 = vld [vmem:[%s1 + $0x168] sm:$0xff]
  %v77 = vld [vmem:[%s1 + $0x170] sm:$0xff]
  %v78 = vld [vmem:[%s1 + $0x178] sm:$0xff]
  %v79 = vld [vmem:[%s1 + $0x180] sm:$0xff]
  %v80 = vld [vmem:[%s1 + $0x188] sm:$0xff]
  %v81 = vld [vmem:[%s1 + $0x190] sm:$0xff]
  %v82 = vld [vmem:[%s1 + $0x198] sm:$0xff]
  %v83 = vld [vmem:[%s1 + $0x1a0] sm:$0xff]
  %v84 = vld [vmem:[%s1 + $0x1a8] sm:$0xff]
  %v85 = vld [vmem:[%s1 + $0x1b0] sm:$0xff]
  %v86 = vld [vmem:[%s1 + $0x1b8] sm:$0xff]
  %v87 = vld [vmem:[%s1 + $0x1c0] sm:$0xff]
  %v88 = vld [vmem:[%s1 + $0x1c8] sm:$0xff]
  %v89 = vld [vmem:[%s1 + $0x1d0] sm:$0xff]
  %v90 = vld [vmem:[%s1 + $0x1d8] sm:$0xff]
  %v91 = vld [vmem:[%s1 + $0x1e0] sm:$0xff]
  %v92 = vld [vmem:[%s1 + $0x1e8] sm:$0xff]
  %v93 = vld [vmem:[%s1 + $0x1f0] sm:$0xff]
  %v94 = vld [vmem:[%s1 + $0x1f8] sm:$0xff]
  %v95 = vld [vmem:[%s1 + $0x200] sm:$0xff]
  %v96 = vld [vmem:[%s1 + $0x208] sm:$0xff]
  %v97 = vld [vmem:[%s1 + $0x210] sm:$0xff]
  %v98 = vld [vmem:[%s1 + $0x218] sm:$0xff]
  %v99 = vld [vmem:[%s1 + $0x220] sm:$0xff]
  %v100 = vld [vmem:[%s1 + $0x228] sm:$0xff]
  %v101 = vld [vmem:[%s1 + $0x230] sm:$0xff]
  %v102 = vld [vmem:[%s1 + $0x238] sm:$0xff]
  %v103 = vld [vmem:[%s1 + $0x240] sm:$0xff]
  %v104 = vld [vmem:[%s1 + $0x248] sm:$0xff]
  %v105 = vld [vmem:[%s1 + $0x250] sm:$0xff]
  %v106 = vld [vmem:[%s1 + $0x258] sm:$0xff]
  %v107 = vld [vmem:[%s1 + $0x260] sm:$0xff]
  %v108 = vld [vmem:[%s1 + $0x268] sm:$0xff]
  %v109 = vld [vmem:[%s1 + $0x270] sm:$0xff]
  %v110 = vld [vmem:[%s1 + $0x278] sm:$0xff]
  %v111 = vld [vmem:[%s1 + $0x280] sm:$0xff]
  %v112 = vld [vmem:[%s1 + $0x288] sm:$0xff]
  %v113 = vld [vmem:[%s1 + $0x290] sm:$0xff]
  %v114 = vld [vmem:[%s1 + $0x298] sm:$0xff]
  %v115 = vld [vmem:[%s1 + $0x2a0] sm:$0xff]
  %v116 = vld [vmem:[%s1 + $0x2a8] sm:$0xff]
  %v117 = vld [vmem:[%s1 + $0x2b0] sm:$0xff]
  %v118 = vld [vmem:[%s1 + $0x2b8] sm:$0xff]
  %v119 = vld [vmem:[%s1 + $0x2c0] sm:$0xff]
  %v120 = vld [vmem:[%s1 + $0x2c8] sm:$0xff]
  %v121 = vld [vmem:[%s1 + $0x2d0] sm:$0xff]
  %v122 = vld [vmem:[%s1 + $0x2d8] sm:$0xff]
  %v123 = vld [vmem:[%s1 + $0x2e0] sm:$0xff]
  %v124 = vld [vmem:[%s1 + $0x2e8] sm:$0xff]
  %v125 = vld [vmem:[%s1 + $0x2f0] sm:$0xff]
  %v126 = vld [vmem:[%s1 + $0x2f8] sm:$0xff]
  %v127 = vld [vmem:[%s1 + $0x300] sm:$0xff]
  %v128 = vld [vmem:[%s1 + $0x308] sm:$0xff]
  %v129 = vld [vmem:[%s1 + $0x310] sm:$0xff]
  %v130 = vld [vmem:[%s1 + $0x318] sm:$0xff]
  %v131 = vld [vmem:[%s1 + $0x320] sm:$0xff]
  %v132 = vld [vmem:[%s1 + $0x328] sm:$0xff]
  %v133 = vld [vmem:[%s1 + $0x330] sm:$0xff]
  %v134 = vld [vmem:[%s1 + $0x338] sm:$0xff]
  %v135 = vld [vmem:[%s1 + $0x340] sm:$0xff]
  %v136 = vld [vmem:[%s1 + $0x348] sm:$0xff]
  %v137 = vld [vmem:[%s1 + $0x350] sm:$0xff]
  %v138 = vld [vmem:[%s1 + $0x358] sm:$0xff]
  %v139 = vld [vmem:[%s1 + $0x360] sm:$0xff]
  %v140 = vld [vmem:[%s1 + $0x368] sm:$0xff]
  %v141 = vld [vmem:[%s1 + $0x370] sm:$0xff]
  %v142 = vld [vmem:[%s1 + $0x378] sm:$0xff]
  %v143 = vld [vmem:[%s1 + $0x380] sm:$0xff]
  %v144 = vld [vmem:[%s1 + $0x388] sm:$0xff]
  %v145 = vld [vmem:[%s1 + $0x390] sm:$0xff]
  %v146 = vld [vmem:[%s1 + $0x398] sm:$0xff]
  %v147 = vld [vmem:[%s1 + $0x3a0] sm:$0xff]
  %v148 = vld [vmem:[%s1 + $0x3a8] sm:$0xff]
  %v149 = vld [vmem:[%s1 + $0x3b0] sm:$0xff]
  %v150 = vld [vmem:[%s1 + $0x3b8] sm:$0xff]
  %v151 = vld [vmem:[%s1 + $0x3c0] sm:$0xff]
  %v152 = vld [vmem:[%s1 + $0x3c8] sm:$0xff]
  %v153 = vld [vmem:[%s1 + $0x3d0] sm:$0xff]
  %v154 = vld [vmem:[%s1 + $0x3d8] sm:$0xff]
  %v155 = vld [vmem:[%s1 + $0x3e0] sm:$0xff]
  %v156 = vld [vmem:[%s1 + $0x3e8] sm:$0xff]
  %v157 = vld [vmem:[%s1 + $0x3f0] sm:$0xff]
  %v158 = vld [vmem:[%s1 + $0x3f8] sm:$0xff]
  %v159 = vld [vmem:[%s1 + $0x400] sm:$0xff]
  %v160 = vld [vmem:[%s1 + $0x408] sm:$0xff]
  %v161 = vld [vmem:[%s1 + $0x410] sm:$0xff]
  %v162 = vld [vmem:[%s1 + $0x418] sm:$0xff]
  %v163 = vld [vmem:[%s1 + $0x420] sm:$0xff]
  %v164 = vld [vmem:[%s1 + $0x428] sm:$0xff]
  %v165 = vld [vmem:[%s1 + $0x430] sm:$0xff]
  %v166 = vld [vmem:[%s1 + $0x438] sm:$0xff]
  %v167 = vld [vmem:[%s1 + $0x440] sm:$0xff]
  %v168 = vld [vmem:[%s1 + $0x448] sm:$0xff]
  %v169 = vld [vmem:[%s1 + $0x450] sm:$0xff]
  %v170 = vld [vmem:[%s1 + $0x458] sm:$0xff]
  %v171 = vld [vmem:[%s1 + $0x460] sm:$0xff]
  %v172 = vld [vmem:[%s1 + $0x468] sm:$0xff]
  %v173 = vld [vmem:[%s1 + $0x470] sm:$0xff]
  %v174 = vld [vmem:[%s1 + $0x478] sm:$0xff]
  %v175 = vld [vmem:[%s1 + $0x480] sm:$0xff]
  %v176 = vld [vmem:[%s1 + $0x488] sm:$0xff]
  %v177 = vld [vmem:[%s1 + $0x490] sm:$0xff]
  %v178 = vld [vmem:[%s1 + $0x498] sm:$0xff]
  %v179 = vld [vmem:[%s1 + $0x4a0] sm:$0xff]
  %v180 = vld [vmem:[%s1 + $0x4a8] sm:$0xff]
  %v181 = vld [vmem:[%s1 + $0x4b0] sm:$0xff]
  %v182 = vld [vmem:[%s1 + $0x4b8] sm:$0xff]
  %v183 = vld [vmem:[%s1 + $0x4c0] sm:$0xff]
  %v184 = vld [vmem:[%s1 + $0x4c8] sm:$0xff]
  %v185 = vld [vmem:[%s1 + $0x4d0] sm:$0xff]
  %v186 = vld [vmem:[%s1 + $0x4d8] sm:$0xff]
  %v187 = vld [vmem:[%s1 + $0x4e0] sm:$0xff]
  %v188 = vld [vmem:[%s1 + $0x4e8] sm:$0xff]
  %v189 = vld [vmem:[%s1 + $0x4f0] sm:$0xff]
  %v190 = vld [vmem:[%s1 + $0x4f8] sm:$0xff]
  %v191 = vld [vmem:[%s1 + $0x500] sm:$0xff]
  %v192 = vld [vmem:[%s1 + $0x508] sm:$0xff]
  %v193 = vld [vmem:[%s1 + $0x510] sm:$0xff]
  %v194 = vld [vmem:[%s1 + $0x518] sm:$0xff]
  %v195 = vld [vmem:[%s1 + $0x520] sm:$0xff]
  %v196 = vld [vmem:[%s1 + $0x528] sm:$0xff]
  %v197 = vld [vmem:[%s1 + $0x530] sm:$0xff]
  %v198 = vld [vmem:[%s1 + $0x538] sm:$0xff]
  %v199 = vld [vmem:[%s1 + $0x540] sm:$0xff]
  %v200 = vld [vmem:[%s1 + $0x548] sm:$0xff]
  %v201 = vld [vmem:[%s1 + $0x550] sm:$0xff]
  %v202 = vld [vmem:[%s1 + $0x558] sm:$0xff]
  %v203 = vld [vmem:[%s1 + $0x560] sm:$0xff]
  %v204 = vld [vmem:[%s1 + $0x568] sm:$0xff]
  %v205 = vld [vmem:[%s1 + $0x570] sm:$0xff]
  %v206 = vld [vmem:[%s1 + $0x578] sm:$0xff]
  %v207 = vld [vmem:[%s1 + $0x580] sm:$0xff]
  %v208 = vld [vmem:[%s1 + $0x588] sm:$0xff]
  %v209 = vld [vmem:[%s1 + $0x590] sm:$0xff]
  %v210 = vld [vmem:[%s1 + $0x598] sm:$0xff]
  %v211 = vld [vmem:[%s1 + $0x5a0] sm:$0xff]
  %v212 = vld [vmem:[%s1 + $0x5a8] sm:$0xff]
  %v213 = vld [vmem:[%s1 + $0x5b0] sm:$0xff]
  %v214 = vld [vmem:[%s1 + $0x5b8] sm:$0xff]
  %v215 = vld [vmem:[%s1 + $0x5c0] sm:$0xff]
  %v216 = vld [vmem:[%s1 + $0x5c8] sm:$0xff]
  %v217 = vld [vmem:[%s1 + $0x5d0] sm:$0xff]
  %v218 = vld [vmem:[%s1 + $0x5d8] sm:$0xff]
  %v219 = vld [vmem:[%s1 + $0x5e0] sm:$0xff]
  %v220 = vld [vmem:[%s1 + $0x5e8] sm:$0xff]
  %v221 = vld [vmem:[%s1 + $0x5f0] sm:$0xff]
  %v222 = vld [vmem:[%s1 + $0x5f8] sm:$0xff]
  %v223 = vld [vmem:[%s1 + $0x600] sm:$0xff]
  %v224 = vld [vmem:[%s1 + $0x608] sm:$0xff]
  %v225 = vld [vmem:[%s1 + $0x610] sm:$0xff]
  %v226 = vld [vmem:[%s1 + $0x618] sm:$0xff]
  %v227 = vld [vmem:[%s1 + $0x620] sm:$0xff]
  %v228 = vld [vmem:[%s1 + $0x628] sm:$0xff]
  %v229 = vld [vmem:[%s1 + $0x630] sm:$0xff]
  %v230 = vld [vmem:[%s1 + $0x638] sm:$0xff]
  %v231 = vld [vmem:[%s1 + $0x640] sm:$0xff]
  %v232 = vld [vmem:[%s1 + $0x648] sm:$0xff]
  %v233 = vld [vmem:[%s1 + $0x650] sm:$0xff]
  %v234 = vld [vmem:[%s1 + $0x658] sm:$0xff]
  %v235 = vld [vmem:[%s1 + $0x660] sm:$0xff]
  %v236 = vld [vmem:[%s1 + $0x668] sm:$0xff]
  %v237 = vld [vmem:[%s1 + $0x670] sm:$0xff]
  %v238 = vld [vmem:[%s1 + $0x678] sm:$0xff]
  %v239 = vld [vmem:[%s1 + $0x680] sm:$0xff]
  %v240 = vld [vmem:[%s1 + $0x688] sm:$0xff]
  %v241 = vld [vmem:[%s1 + $0x690] sm:$0xff]
  %v242 = vld [vmem:[%s1 + $0x698] sm:$0xff]
  %v243 = vld [vmem:[%s1 + $0x6a0] sm:$0xff]
  %v244 = vld [vmem:[%s1 + $0x6a8] sm:$0xff]
  %v245 = vld [vmem:[%s1 + $0x6b0] sm:$0xff]
  %v246 = vld [vmem:[%s1 + $0x6b8] sm:$0xff]
  %v247 = vld [vmem:[%s1 + $0x6c0] sm:$0xff]
  %v248 = vld [vmem:[%s1 + $0x6c8] sm:$0xff]
  %v249 = vld [vmem:[%s1 + $0x6d0] sm:$0xff]
  %v250 = vld [vmem:[%s1 + $0x6d8] sm:$0xff]
  %v251 = vld [vmem:[%s1 + $0x6e0] sm:$0xff]
  %v252 = vld [vmem:[%s1 + $0x6e8] sm:$0xff]
  %v253 = vld [vmem:[%s1 + $0x6f0] sm:$0xff]
  %v254 = vld [vmem:[%s1 + $0x6f8] sm:$0xff]
  %v255 = vld [vmem:[%s1 + $0x700] sm:$0xff]
  %v256 = vld [vmem:[%s1 + $0x708] sm:$0xff]
  %v257 = vld [vmem:[%s1 + $0x710] sm:$0xff]
  %v258 = vld [vmem:[%s1 + $0x718] sm:$0xff]
  %v259 = vld [vmem:[%s1 + $0x720] sm:$0xff]
  %v260 = vld [vmem:[%s1 + $0x728] sm:$0xff]
  %v261 = vld [vmem:[%s1 + $0x730] sm:$0xff]
  %v262 = vld [vmem:[%s1 + $0x738] sm:$0xff]
  %v263 = vld [vmem:[%s1 + $0x740] sm:$0xff]
  %v264 = vld [vmem:[%s1 + $0x748] sm:$0xff]
  %v265 = vld [vmem:[%s1 + $0x750] sm:$0xff]
  %v266 = vld [vmem:[%s1 + $0x758] sm:$0xff]
  %v267 = vld [vmem:[%s1 + $0x760] sm:$0xff]
  %v268 = vld [vmem:[%s1 + $0x768] sm:$0xff]
  %v269 = vld [vmem:[%s1 + $0x770] sm:$0xff]
  %v270 = vld [vmem:[%s1 + $0x778] sm:$0xff]
  %v271 = vld [vmem:[%s1 + $0x780] sm:$0xff]
  %v272 = vld [vmem:[%s1 + $0x788] sm:$0xff]
  %v273 = vld [vmem:[%s1 + $0x790] sm:$0xff]
  %v274 = vld [vmem:[%s1 + $0x798] sm:$0xff]
  %v275 = vld [vmem:[%s1 + $0x7a0] sm:$0xff]
  %v276 = vld [vmem:[%s1 + $0x7a8] sm:$0xff]
  %v277 = vld [vmem:[%s1 + $0x7b0] sm:$0xff]
  %v278 = vld [vmem:[%s1 + $0x7b8] sm:$0xff]
  %v279 = vld [vmem:[%s1 + $0x7c0] sm:$0xff]
  %v280 = vld [vmem:[%s1 + $0x7c8] sm:$0xff]
  %v281 = vld [vmem:[%s1 + $0x7d0] sm:$0xff]
  %v282 = vld [vmem:[%s1 + $0x7d8] sm:$0xff]
  %v283 = vld [vmem:[%s1 + $0x7e0] sm:$0xff]
  %v284 = vld [vmem:[%s1 + $0x7e8] sm:$0xff]
  %v285 = vld [vmem:[%s1 + $0x7f0] sm:$0xff]
  %v286 = vld [vmem:[%s1 + $0x7f8] sm:$0xff]
  %v287 = vld [vmem:[%s1 + $0x800] sm:$0xff]
  %v288 = vld [vmem:[%s1 + $0x808] sm:$0xff]
  %v289 = vld [vmem:[%s1 + $0x810] sm:$0xff]
  %v290 = vld [vmem:[%s1 + $0x818] sm:$0xff]
  %v291 = vld [vmem:[%s1 + $0x820] sm:$0xff]
  %v292 = vld [vmem:[%s1 + $0x828] sm:$0xff]
  %v293 = vld [vmem:[%s1 + $0x830] sm:$0xff]
  %v294 = vld [vmem:[%s1 + $0x838] sm:$0xff]
  %v295 = vld [vmem:[%s1 + $0x840] sm:$0xff]
  %v296 = vld [vmem:[%s1 + $0x848] sm:$0xff]
  %v297 = vld [vmem:[%s1 + $0x850] sm:$0xff]
  %v298 = vld [vmem:[%s1 + $0x858] sm:$0xff]
  %v299 = vld [vmem:[%s1 + $0x860] sm:$0xff]
  %v300 = vld [vmem:[%s1 + $0x868] sm:$0xff]
  %v301 = vld [vmem:[%s1 + $0x870] sm:$0xff]
  %v302 = vld [vmem:[%s1 + $0x878] sm:$0xff]
  %v303 = vld [vmem:[%s1 + $0x880] sm:$0xff]
  %v304 = vld [vmem:[%s1 + $0x888] sm:$0xff]
  %v305 = vld [vmem:[%s1 + $0x890] sm:$0xff]
  %v306 = vld [vmem:[%s1 + $0x898] sm:$0xff]
  %v307 = vld [vmem:[%s1 + $0x8a0] sm:$0xff]
  %v308 = vld [vmem:[%s1 + $0x8a8] sm:$0xff]
  %v309 = vld [vmem:[%s1 + $0x8b0] sm:$0xff]
  %v310 = vld [vmem:[%s1 + $0x8b8] sm:$0xff]
  %v311 = vld [vmem:[%s1 + $0x8c0] sm:$0xff]
  %v312 = vld [vmem:[%s1 + $0x8c8] sm:$0xff]
  %v313 = vld [vmem:[%s1 + $0x8d0] sm:$0xff]
  %v314 = vld [vmem:[%s1 + $0x8d8] sm:$0xff]
  %v315 = vld [vmem:[%s1 + $0x8e0] sm:$0xff]
  %v316 = vld [vmem:[%s1 + $0x8e8] sm:$0xff]
  %v317 = vld [vmem:[%s1 + $0x8f0] sm:$0xff]
  %v318 = vld [vmem:[%s1 + $0x8f8] sm:$0xff]
  %v319 = vld [vmem:[%s1 + $0x900] sm:$0xff]
  %v320 = vld [vmem:[%s1 + $0x908] sm:$0xff]
  %v321 = vld [vmem:[%s1 + $0x910] sm:$0xff]
  %v322 = vld [vmem:[%s1 + $0x918] sm:$0xff]
  %v323 = vld [vmem:[%s1 + $0x920] sm:$0xff]
  %v324 = vld [vmem:[%s1 + $0x928] sm:$0xff]
  %v325 = vld [vmem:[%s1 + $0x930] sm:$0xff]
  %v326 = vld [vmem:[%s1 + $0x938] sm:$0xff]
  %v327 = vld [vmem:[%s1 + $0x940] sm:$0xff]
  %v328 = vld [vmem:[%s1 + $0x948] sm:$0xff]
  %v329 = vld [vmem:[%s1 + $0x950] sm:$0xff]
  %v330 = vld [vmem:[%s1 + $0x958] sm:$0xff]
  %v331 = vld [vmem:[%s1 + $0x960] sm:$0xff]
  %v332 = vld [vmem:[%s1 + $0x968] sm:$0xff]
  %v333 = vld [vmem:[%s1 + $0x970] sm:$0xff]
  %v334 = vld [vmem:[%s1 + $0x978] sm:$0xff]
  %v335 = vld [vmem:[%s1 + $0x980] sm:$0xff]
  %v336 = vld [vmem:[%s1 + $0x988] sm:$0xff]
  %v337 = vld [vmem:[%s1 + $0x990] sm:$0xff]
  %v338 = vld [vmem:[%s1 + $0x998] sm:$0xff]
  %v339 = vld [vmem:[%s1 + $0x9a0] sm:$0xff]
  %v340 = vld [vmem:[%s1 + $0x9a8] sm:$0xff]
  %v341 = vld [vmem:[%s1 + $0x9b0] sm:$0xff]
  %v342 = vld [vmem:[%s1 + $0x9b8] sm:$0xff]
  %v343 = vld [vmem:[%s1 + $0x9c0] sm:$0xff]
  %v344 = vld [vmem:[%s1 + $0x9c8] sm:$0xff]
  %v345 = vld [vmem:[%s1 + $0x9d0] sm:$0xff]
  %v346 = vld [vmem:[%s1 + $0x9d8] sm:$0xff]
  %v347 = vld [vmem:[%s1 + $0x9e0] sm:$0xff]
  %v348 = vld [vmem:[%s1 + $0x9e8] sm:$0xff]
  %v349 = vld [vmem:[%s1 + $0x9f0] sm:$0xff]
  %v350 = vld [vmem:[%s1 + $0x9f8] sm:$0xff]
  %v351 = vld [vmem:[%s1 + $0xa00] sm:$0xff]
  %v352 = vld [vmem:[%s1 + $0xa08] sm:$0xff]
  %v353 = vld [vmem:[%s1 + $0xa10] sm:$0xff]
  %v354 = vld [vmem:[%s1 + $0xa18] sm:$0xff]
  %v355 = vld [vmem:[%s1 + $0xa20] sm:$0xff]
  %v356 = vld [vmem:[%s1 + $0xa28] sm:$0xff]
  %v357 = vld [vmem:[%s1 + $0xa30] sm:$0xff]
  %v358 = vld [vmem:[%s1 + $0xa38] sm:$0xff]
  %v359 = vld [vmem:[%s1 + $0xa40] sm:$0xff]
  %v360 = vld [vmem:[%s1 + $0xa48] sm:$0xff]
  %v361 = vld [vmem:[%s1 + $0xa50] sm:$0xff]
  %v362 = vld [vmem:[%s1 + $0xa58] sm:$0xff]
  %v363 = vld [vmem:[%s1 + $0xa60] sm:$0xff]
  %v364 = vld [vmem:[%s1 + $0xa68] sm:$0xff]
  %v365 = vld [vmem:[%s1 + $0xa70] sm:$0xff]
  %v366 = vld [vmem:[%s1 + $0xa78] sm:$0xff]
  %v367 = vld [vmem:[%s1 + $0xa80] sm:$0xff]
  %v368 = vld [vmem:[%s1 + $0xa88] sm:$0xff]
  %v369 = vld [vmem:[%s1 + $0xa90] sm:$0xff]
  %v370 = vld [vmem:[%s1 + $0xa98] sm:$0xff]
  %v371 = vld [vmem:[%s1 + $0xaa0] sm:$0xff]
  %v372 = vld [vmem:[%s1 + $0xaa8] sm:$0xff]
  %v373 = vld [vmem:[%s1 + $0xab0] sm:$0xff]
  %v374 = vld [vmem:[%s1 + $0xab8] sm:$0xff]
  %v375 = vld [vmem:[%s1 + $0xac0] sm:$0xff]
  %v376 = vld [vmem:[%s1 + $0xac8] sm:$0xff]
  %v377 = vld [vmem:[%s1 + $0xad0] sm:$0xff]
  %v378 = vld [vmem:[%s1 + $0xad8] sm:$0xff]
  %v379 = vld [vmem:[%s1 + $0xae0] sm:$0xff]
  %v380 = vld [vmem:[%s1 + $0xae8] sm:$0xff]
  %v381 = vld [vmem:[%s1 + $0xaf0] sm:$0xff]
  %v382 = vld [vmem:[%s1 + $0xaf8] sm:$0xff]
  %v383 = vld [vmem:[%s1 + $0xb00] sm:$0xff]
  %v384 = vld [vmem:[%s1 + $0xb08] sm:$0xff]
  %v385 = vld [vmem:[%s1 + $0xb10] sm:$0xff]
  %v386 = vld [vmem:[%s1 + $0xb18] sm:$0xff]
  %v387 = vld [vmem:[%s1 + $0xb20] sm:$0xff]
  %v388 = vld [vmem:[%s1 + $0xb28] sm:$0xff]
  %v389 = vld [vmem:[%s1 + $0xb30] sm:$0xff]
  %v390 = vld [vmem:[%s1 + $0xb38] sm:$0xff]
  %v391 = vld [vmem:[%s1 + $0xb40] sm:$0xff]
  %v392 = vld [vmem:[%s1 + $0xb48] sm:$0xff]
  %v393 = vld [vmem:[%s1 + $0xb50] sm:$0xff]
  %v394 = vld [vmem:[%s1 + $0xb58] sm:$0xff]
  %v395 = vld [vmem:[%s1 + $0xb60] sm:$0xff]
  %v396 = vld [vmem:[%s1 + $0xb68] sm:$0xff]
  %v397 = vld [vmem:[%s1 + $0xb70] sm:$0xff]
  %v398 = vld [vmem:[%s1 + $0xb78] sm:$0xff]
  %v399 = vld [vmem:[%s1 + $0xb80] sm:$0xff]
  %v400 = vld [vmem:[%s1 + $0xb88] sm:$0xff]
  %v401 = vld [vmem:[%s1 + $0xb90] sm:$0xff]
  %v402 = vld [vmem:[%s1 + $0xb98] sm:$0xff]
  %v403 = vld [vmem:[%s1 + $0xba0] sm:$0xff]
  %v404 = vld [vmem:[%s1 + $0xba8] sm:$0xff]
  %v405 = vld [vmem:[%s1 + $0xbb0] sm:$0xff]
  %v406 = vld [vmem:[%s1 + $0xbb8] sm:$0xff]
  %v407 = vld [vmem:[%s1 + $0xbc0] sm:$0xff]
  %v408 = vld [vmem:[%s1 + $0xbc8] sm:$0xff]
  %v409 = vld [vmem:[%s1 + $0xbd0] sm:$0xff]
  %v410 = vld [vmem:[%s1 + $0xbd8] sm:$0xff]
  %v411 = vld [vmem:[%s1 + $0xbe0] sm:$0xff]
  %v412 = vld [vmem:[%s1 + $0xbe8] sm:$0xff]
  %v413 = vld [vmem:[%s1 + $0xbf0] sm:$0xff]
  %v414 = vld [vmem:[%s1 + $0xbf8] sm:$0xff]
  %v415 = vld [vmem:[%s1 + $0xc00] sm:$0xff]
  %v416 = vld [vmem:[%s1 + $0xc08] sm:$0xff]
  %v417 = vld [vmem:[%s1 + $0xc10] sm:$0xff]
  %v418 = vld [vmem:[%s1 + $0xc18] sm:$0xff]
  %v419 = vld [vmem:[%s1 + $0xc20] sm:$0xff]
  %v420 = vld [vmem:[%s1 + $0xc28] sm:$0xff]
  %v421 = vld [vmem:[%s1 + $0xc30] sm:$0xff]
  %v422 = vld [vmem:[%s1 + $0xc38] sm:$0xff]
  %v423 = vld [vmem:[%s1 + $0xc40] sm:$0xff]
  %v424 = vld [vmem:[%s1 + $0xc48] sm:$0xff]
  %v425 = vld [vmem:[%s1 + $0xc50] sm:$0xff]
  %v426 = vld [vmem:[%s1 + $0xc58] sm:$0xff]
  %v427 = vld [vmem:[%s1 + $0xc60] sm:$0xff]
  %v428 = vld [vmem:[%s1 + $0xc68] sm:$0xff]
  %v429 = vld [vmem:[%s1 + $0xc70] sm:$0xff]
  %v430 = vld [vmem:[%s1 + $0xc78] sm:$0xff]
  %v431 = vld [vmem:[%s1 + $0xc80] sm:$0xff]
  %v432 = vld [vmem:[%s1 + $0xc88] sm:$0xff]
  %v433 = vld [vmem:[%s1 + $0xc90] sm:$0xff]
  %v434 = vld [vmem:[%s1 + $0xc98] sm:$0xff]
  %v435 = vld [vmem:[%s1 + $0xca0] sm:$0xff]
  %v436 = vld [vmem:[%s1 + $0xca8] sm:$0xff]
  %v437 = vld [vmem:[%s1 + $0xcb0] sm:$0xff]
  %v438 = vld [vmem:[%s1 + $0xcb8] sm:$0xff]
  %v439 = vld [vmem:[%s1 + $0xcc0] sm:$0xff]
  %v440 = vld [vmem:[%s1 + $0xcc8] sm:$0xff]
  %v441 = vld [vmem:[%s1 + $0xcd0] sm:$0xff]
  %v442 = vld [vmem:[%s1 + $0xcd8] sm:$0xff]
  %v443 = vld [vmem:[%s1 + $0xce0] sm:$0xff]
  %v444 = vld [vmem:[%s1 + $0xce8] sm:$0xff]
  %v445 = vld [vmem:[%s1 + $0xcf0] sm:$0xff]
  %v446 = vld [vmem:[%s1 + $0xcf8] sm:$0xff]
  %v447 = vld [vmem:[%s1 + $0xd00] sm:$0xff]
  %v448 = vld [vmem:[%s1 + $0xd08] sm:$0xff]
  %v449 = vld [vmem:[%s1 + $0xd10] sm:$0xff]
  %v450 = vld [vmem:[%s1 + $0xd18] sm:$0xff]
  %v451 = vld [vmem:[%s1 + $0xd20] sm:$0xff]
  %v452 = vld [vmem:[%s1 + $0xd28] sm:$0xff]
  %v453 = vld [vmem:[%s1 + $0xd30] sm:$0xff]
  %v454 = vld [vmem:[%s1 + $0xd38] sm:$0xff]
  %v455 = vld [vmem:[%s1 + $0xd40] sm:$0xff]
  %v456 = vld [vmem:[%s1 + $0xd48] sm:$0xff]
  %v457 = vld [vmem:[%s1 + $0xd50] sm:$0xff]
  %v458 = vld [vmem:[%s1 + $0xd58] sm:$0xff]
  %v459 = vld [vmem:[%s1 + $0xd60] sm:$0xff]
  %v460 = vld [vmem:[%s1 + $0xd68] sm:$0xff]
  %v461 = vld [vmem:[%s1 + $0xd70] sm:$0xff]
  %v462 = vld [vmem:[%s1 + $0xd78] sm:$0xff]
  %v463 = vld [vmem:[%s1 + $0xd80] sm:$0xff]
  %v464 = vld [vmem:[%s1 + $0xd88] sm:$0xff]
  %v465 = vld [vmem:[%s1 + $0xd90] sm:$0xff]
  %v466 = vld [vmem:[%s1 + $0xd98] sm:$0xff]
  %v467 = vld [vmem:[%s1 + $0xda0] sm:$0xff]
  %v468 = vld [vmem:[%s1 + $0xda8] sm:$0xff]
  %v469 = vld [vmem:[%s1 + $0xdb0] sm:$0xff]
  %v470 = vld [vmem:[%s1 + $0xdb8] sm:$0xff]
  %v471 = vld [vmem:[%s1 + $0xdc0] sm:$0xff]
  %v472 = vld [vmem:[%s1 + $0xdc8] sm:$0xff]
  %v473 = vld [vmem:[%s1 + $0xdd0] sm:$0xff]
  %v474 = vld [vmem:[%s1 + $0xdd8] sm:$0xff]
  %v475 = vld [vmem:[%s1 + $0xde0] sm:$0xff]
  %v476 = vld [vmem:[%s1 + $0xde8] sm:$0xff]
  %v477 = vld [vmem:[%s1 + $0xdf0] sm:$0xff]
  %v478 = vld [vmem:[%s1 + $0xdf8] sm:$0xff]
  %v479 = vld [vmem:[%s1 + $0xe00] sm:$0xff]
  %v480 = vld [vmem:[%s1 + $0xe08] sm:$0xff]
  %v481 = vld [vmem:[%s1 + $0xe10] sm:$0xff]
  %v482 = vld [vmem:[%s1 + $0xe18] sm:$0xff]
  %v483 = vld [vmem:[%s1 + $0xe20] sm:$0xff]
  %v484 = vld [vmem:[%s1 + $0xe28] sm:$0xff]
  %v485 = vld [vmem:[%s1 + $0xe30] sm:$0xff]
  %v486 = vld [vmem:[%s1 + $0xe38] sm:$0xff]
  %v487 = vld [vmem:[%s1 + $0xe40] sm:$0xff]
  %v488 = vld [vmem:[%s1 + $0xe48] sm:$0xff]
  %v489 = vld [vmem:[%s1 + $0xe50] sm:$0xff]
  %v490 = vld [vmem:[%s1 + $0xe58] sm:$0xff]
  %v491 = vld [vmem:[%s1 + $0xe60] sm:$0xff]
  %v492 = vld [vmem:[%s1 + $0xe68] sm:$0xff]
  %v493 = vld [vmem:[%s1 + $0xe70] sm:$0xff]
  %v494 = vld [vmem:[%s1 + $0xe78] sm:$0xff]
  %v495 = vld [vmem:[%s1 + $0xe80] sm:$0xff]
  %v496 = vld [vmem:[%s1 + $0xe88] sm:$0xff]
  %v497 = vld [vmem:[%s1 + $0xe90] sm:$0xff]
  %v498 = vld [vmem:[%s1 + $0xe98] sm:$0xff]
  %v499 = vld [vmem:[%s1 + $0xea0] sm:$0xff]
  %v500 = vld [vmem:[%s1 + $0xea8] sm:$0xff]
  %v501 = vld [vmem:[%s1 + $0xeb0] sm:$0xff]
  %v502 = vld [vmem:[%s1 + $0xeb8] sm:$0xff]
  %v503 = vld [vmem:[%s1 + $0xec0] sm:$0xff]
  %v504 = vld [vmem:[%s1 + $0xec8] sm:$0xff]
  %v505 = vld [vmem:[%s1 + $0xed0] sm:$0xff]
  %v506 = vld [vmem:[%s1 + $0xed8] sm:$0xff]
  %v507 = vld [vmem:[%s1 + $0xee0] sm:$0xff]
  %v508 = vld [vmem:[%s1 + $0xee8] sm:$0xff]
  %v509 = vld [vmem:[%s1 + $0xef0] sm:$0xff]
  %v510 = vld [vmem:[%s1 + $0xef8] sm:$0xff]
  %v511 = vld [vmem:[%s1 + $0xf00] sm:$0xff]
  %v512 = vld [vmem:[%s1 + $0xf08] sm:$0xff]
  %v513 = vld [vmem:[%s1 + $0xf10] sm:$0xff]
  %v514 = vld [vmem:[%s1 + $0xf18] sm:$0xff]
  %v515 = vld [vmem:[%s1 + $0xf20] sm:$0xff]
  %v516 = vld [vmem:[%s1 + $0xf28] sm:$0xff]
  %v517 = vld [vmem:[%s1 + $0xf30] sm:$0xff]
  %v518 = vld [vmem:[%s1 + $0xf38] sm:$0xff]
  %v519 = vld [vmem:[%s1 + $0xf40] sm:$0xff]
  %v520 = vld [vmem:[%s1 + $0xf48] sm:$0xff]
  %v521 = vld [vmem:[%s1 + $0xf50] sm:$0xff]
  %v522 = vld [vmem:[%s1 + $0xf58] sm:$0xff]
  %v523 = vld [vmem:[%s1 + $0xf60] sm:$0xff]
  %v524 = vld [vmem:[%s1 + $0xf68] sm:$0xff]
  %v525 = vld [vmem:[%s1 + $0xf70] sm:$0xff]
  %v526 = vld [vmem:[%s1 + $0xf78] sm:$0xff]
  %v527 = vld [vmem:[%s1 + $0xf80] sm:$0xff]
  %v528 = vld [vmem:[%s1 + $0xf88] sm:$0xff]
  %v529 = vld [vmem:[%s1 + $0xf90] sm:$0xff]
  %v530 = vld [vmem:[%s1 + $0xf98] sm:$0xff]
  %v531 = vld [vmem:[%s1 + $0xfa0] sm:$0xff]
  %v532 = vld [vmem:[%s1 + $0xfa8] sm:$0xff]
  %v533 = vld [vmem:[%s1 + $0xfb0] sm:$0xff]
  %v534 = vld [vmem:[%s1 + $0xfb8] sm:$0xff]
  %v535 = vld [vmem:[%s1 + $0xfc0] sm:$0xff]
  %v536 = vld [vmem:[%s1 + $0xfc8] sm:$0xff]
  %v537 = vld [vmem:[%s1 + $0xfd0] sm:$0xff]
  %v538 = vld [vmem:[%s1 + $0xfd8] sm:$0xff]
  %v539 = vld [vmem:[%s1 + $0xfe0] sm:$0xff]
  %v540 = vld [vmem:[%s1 + $0xfe8] sm:$0xff]
  %v541 = vld [vmem:[%s1 + $0xff0] sm:$0xff]
  %v542 = vld [vmem:[%s1 + $0xff8] sm:$0xff]
  %v543 = vld [vmem:[%s2] sm:$0xff]
  %v545 = vlaneseq
  %v546 = vshrl.u32 %v545, 7
  %v547 = vsub.s32 0, %v546
  %v548 = vrot.slane %v543, %v547
  %v549 = vlaneseq
  %v550 = vshrl.u32 %v549, 7
  %v551 = vsub.s32 1, %v550
  %v552 = vrot.slane %v543, %v551
  %v553 = vlaneseq
  %v554 = vshrl.u32 %v553, 7
  %v555 = vsub.s32 2, %v554
  %v556 = vrot.slane %v543, %v555
  %v557 = vlaneseq
  %v558 = vshrl.u32 %v557, 7
  %v559 = vsub.s32 3, %v558
  %v560 = vrot.slane %v543, %v559
  %v561 = vlaneseq
  %v562 = vshrl.u32 %v561, 7
  %v563 = vsub.s32 4, %v562
  %v564 = vrot.slane %v543, %v563
  %v565 = vlaneseq
  %v566 = vshrl.u32 %v565, 7
  %v567 = vsub.s32 5, %v566
  %v568 = vrot.slane %v543, %v567
  %v569 = vlaneseq
  %v570 = vshrl.u32 %v569, 7
  %v571 = vsub.s32 6, %v570
  %v572 = vrot.slane %v543, %v571
  %v573 = vlaneseq
  %v574 = vshrl.u32 %v573, 7
  %v575 = vsub.s32 7, %v574
  %v576 = vrot.slane %v543, %v575
  %v589 = vunpack.c.l.b16 %v27
  %v590 = vunpack.c.h.b16 %v27
  %v591 = vunpack.c.l.b16 %v28
  %v592 = vunpack.c.h.b16 %v28
  %v593 = vunpack.c.l.b16 %v29
  %v594 = vunpack.c.h.b16 %v29
  %v595 = vunpack.c.l.b16 %v30
  %v596 = vunpack.c.h.b16 %v30
  %v597 = vpack.c.b16 %v589, %v589
  %v598 = vpack.c.b16 %v590, %v590
  %v599 = vpack.c.b16 %v591, %v591
  %v600 = vpack.c.b16 %v592, %v592
  %v601 = vpack.c.b16 %v593, %v593
  %v602 = vpack.c.b16 %v594, %v594
  %v603 = vpack.c.b16 %v595, %v595
  %v604 = vpack.c.b16 %v596, %v596
  %v1125 = vunpack.c.l.b16 %v31
  %v1126 = vunpack.c.h.b16 %v31
  %v1127 = vunpack.c.l.b16 %v32
  %v1128 = vunpack.c.h.b16 %v32
  %v1129 = vunpack.c.l.b16 %v33
  %v1130 = vunpack.c.h.b16 %v33
  %v1131 = vunpack.c.l.b16 %v34
  %v1132 = vunpack.c.h.b16 %v34
  %v1133 = vunpack.c.l.b16 %v35
  %v1134 = vunpack.c.h.b16 %v35
  %v1135 = vunpack.c.l.b16 %v36
  %v1136 = vunpack.c.h.b16 %v36
  %v1137 = vunpack.c.l.b16 %v37
  %v1138 = vunpack.c.h.b16 %v37
  %v1139 = vunpack.c.l.b16 %v38
  %v1140 = vunpack.c.h.b16 %v38
  %v1141 = vunpack.c.l.b16 %v39
  %v1142 = vunpack.c.h.b16 %v39
  %v1143 = vunpack.c.l.b16 %v40
  %v1144 = vunpack.c.h.b16 %v40
  %v1145 = vunpack.c.l.b16 %v41
  %v1146 = vunpack.c.h.b16 %v41
  %v1147 = vunpack.c.l.b16 %v42
  %v1148 = vunpack.c.h.b16 %v42
  %v1149 = vunpack.c.l.b16 %v43
  %v1150 = vunpack.c.h.b16 %v43
  %v1151 = vunpack.c.l.b16 %v44
  %v1152 = vunpack.c.h.b16 %v44
  %v1153 = vunpack.c.l.b16 %v45
  %v1154 = vunpack.c.h.b16 %v45
  %v1155 = vunpack.c.l.b16 %v46
  %v1156 = vunpack.c.h.b16 %v46
  %v1157 = vunpack.c.l.b16 %v47
  %v1158 = vunpack.c.h.b16 %v47
  %v1159 = vunpack.c.l.b16 %v48
  %v1160 = vunpack.c.h.b16 %v48
  %v1161 = vunpack.c.l.b16 %v49
  %v1162 = vunpack.c.h.b16 %v49
  %v1163 = vunpack.c.l.b16 %v50
  %v1164 = vunpack.c.h.b16 %v50
  %v1165 = vunpack.c.l.b16 %v51
  %v1166 = vunpack.c.h.b16 %v51
  %v1167 = vunpack.c.l.b16 %v52
  %v1168 = vunpack.c.h.b16 %v52
  %v1169 = vunpack.c.l.b16 %v53
  %v1170 = vunpack.c.h.b16 %v53
  %v1171 = vunpack.c.l.b16 %v54
  %v1172 = vunpack.c.h.b16 %v54
  %v1173 = vunpack.c.l.b16 %v55
  %v1174 = vunpack.c.h.b16 %v55
  %v1175 = vunpack.c.l.b16 %v56
  %v1176 = vunpack.c.h.b16 %v56
  %v1177 = vunpack.c.l.b16 %v57
  %v1178 = vunpack.c.h.b16 %v57
  %v1179 = vunpack.c.l.b16 %v58
  %v1180 = vunpack.c.h.b16 %v58
  %v1181 = vunpack.c.l.b16 %v59
  %v1182 = vunpack.c.h.b16 %v59
  %v1183 = vunpack.c.l.b16 %v60
  %v1184 = vunpack.c.h.b16 %v60
  %v1185 = vunpack.c.l.b16 %v61
  %v1186 = vunpack.c.h.b16 %v61
  %v1187 = vunpack.c.l.b16 %v62
  %v1188 = vunpack.c.h.b16 %v62
  %v1189 = vunpack.c.l.b16 %v63
  %v1190 = vunpack.c.h.b16 %v63
  %v1191 = vunpack.c.l.b16 %v64
  %v1192 = vunpack.c.h.b16 %v64
  %v1193 = vunpack.c.l.b16 %v65
  %v1194 = vunpack.c.h.b16 %v65
  %v1195 = vunpack.c.l.b16 %v66
  %v1196 = vunpack.c.h.b16 %v66
  %v1197 = vunpack.c.l.b16 %v67
  %v1198 = vunpack.c.h.b16 %v67
  %v1199 = vunpack.c.l.b16 %v68
  %v1200 = vunpack.c.h.b16 %v68
  %v1201 = vunpack.c.l.b16 %v69
  %v1202 = vunpack.c.h.b16 %v69
  %v1203 = vunpack.c.l.b16 %v70
  %v1204 = vunpack.c.h.b16 %v70
  %v1205 = vunpack.c.l.b16 %v71
  %v1206 = vunpack.c.h.b16 %v71
  %v1207 = vunpack.c.l.b16 %v72
  %v1208 = vunpack.c.h.b16 %v72
  %v1209 = vunpack.c.l.b16 %v73
  %v1210 = vunpack.c.h.b16 %v73
  %v1211 = vunpack.c.l.b16 %v74
  %v1212 = vunpack.c.h.b16 %v74
  %v1213 = vunpack.c.l.b16 %v75
  %v1214 = vunpack.c.h.b16 %v75
  %v1215 = vunpack.c.l.b16 %v76
  %v1216 = vunpack.c.h.b16 %v76
  %v1217 = vunpack.c.l.b16 %v77
  %v1218 = vunpack.c.h.b16 %v77
  %v1219 = vunpack.c.l.b16 %v78
  %v1220 = vunpack.c.h.b16 %v78
  %v1221 = vunpack.c.l.b16 %v79
  %v1222 = vunpack.c.h.b16 %v79
  %v1223 = vunpack.c.l.b16 %v80
  %v1224 = vunpack.c.h.b16 %v80
  %v1225 = vunpack.c.l.b16 %v81
  %v1226 = vunpack.c.h.b16 %v81
  %v1227 = vunpack.c.l.b16 %v82
  %v1228 = vunpack.c.h.b16 %v82
  %v1229 = vunpack.c.l.b16 %v83
  %v1230 = vunpack.c.h.b16 %v83
  %v1231 = vunpack.c.l.b16 %v84
  %v1232 = vunpack.c.h.b16 %v84
  %v1233 = vunpack.c.l.b16 %v85
  %v1234 = vunpack.c.h.b16 %v85
  %v1235 = vunpack.c.l.b16 %v86
  %v1236 = vunpack.c.h.b16 %v86
  %v1237 = vunpack.c.l.b16 %v87
  %v1238 = vunpack.c.h.b16 %v87
  %v1239 = vunpack.c.l.b16 %v88
  %v1240 = vunpack.c.h.b16 %v88
  %v1241 = vunpack.c.l.b16 %v89
  %v1242 = vunpack.c.h.b16 %v89
  %v1243 = vunpack.c.l.b16 %v90
  %v1244 = vunpack.c.h.b16 %v90
  %v1245 = vunpack.c.l.b16 %v91
  %v1246 = vunpack.c.h.b16 %v91
  %v1247 = vunpack.c.l.b16 %v92
  %v1248 = vunpack.c.h.b16 %v92
  %v1249 = vunpack.c.l.b16 %v93
  %v1250 = vunpack.c.h.b16 %v93
  %v1251 = vunpack.c.l.b16 %v94
  %v1252 = vunpack.c.h.b16 %v94
  %v1253 = vunpack.c.l.b16 %v95
  %v1254 = vunpack.c.h.b16 %v95
  %v1255 = vunpack.c.l.b16 %v96
  %v1256 = vunpack.c.h.b16 %v96
  %v1257 = vunpack.c.l.b16 %v97
  %v1258 = vunpack.c.h.b16 %v97
  %v1259 = vunpack.c.l.b16 %v98
  %v1260 = vunpack.c.h.b16 %v98
  %v1261 = vunpack.c.l.b16 %v99
  %v1262 = vunpack.c.h.b16 %v99
  %v1263 = vunpack.c.l.b16 %v100
  %v1264 = vunpack.c.h.b16 %v100
  %v1265 = vunpack.c.l.b16 %v101
  %v1266 = vunpack.c.h.b16 %v101
  %v1267 = vunpack.c.l.b16 %v102
  %v1268 = vunpack.c.h.b16 %v102
  %v1269 = vunpack.c.l.b16 %v103
  %v1270 = vunpack.c.h.b16 %v103
  %v1271 = vunpack.c.l.b16 %v104
  %v1272 = vunpack.c.h.b16 %v104
  %v1273 = vunpack.c.l.b16 %v105
  %v1274 = vunpack.c.h.b16 %v105
  %v1275 = vunpack.c.l.b16 %v106
  %v1276 = vunpack.c.h.b16 %v106
  %v1277 = vunpack.c.l.b16 %v107
  %v1278 = vunpack.c.h.b16 %v107
  %v1279 = vunpack.c.l.b16 %v108
  %v1280 = vunpack.c.h.b16 %v108
  %v1281 = vunpack.c.l.b16 %v109
  %v1282 = vunpack.c.h.b16 %v109
  %v1283 = vunpack.c.l.b16 %v110
  %v1284 = vunpack.c.h.b16 %v110
  %v1285 = vunpack.c.l.b16 %v111
  %v1286 = vunpack.c.h.b16 %v111
  %v1287 = vunpack.c.l.b16 %v112
  %v1288 = vunpack.c.h.b16 %v112
  %v1289 = vunpack.c.l.b16 %v113
  %v1290 = vunpack.c.h.b16 %v113
  %v1291 = vunpack.c.l.b16 %v114
  %v1292 = vunpack.c.h.b16 %v114
  %v1293 = vunpack.c.l.b16 %v115
  %v1294 = vunpack.c.h.b16 %v115
  %v1295 = vunpack.c.l.b16 %v116
  %v1296 = vunpack.c.h.b16 %v116
  %v1297 = vunpack.c.l.b16 %v117
  %v1298 = vunpack.c.h.b16 %v117
  %v1299 = vunpack.c.l.b16 %v118
  %v1300 = vunpack.c.h.b16 %v118
  %v1301 = vunpack.c.l.b16 %v119
  %v1302 = vunpack.c.h.b16 %v119
  %v1303 = vunpack.c.l.b16 %v120
  %v1304 = vunpack.c.h.b16 %v120
  %v1305 = vunpack.c.l.b16 %v121
  %v1306 = vunpack.c.h.b16 %v121
  %v1307 = vunpack.c.l.b16 %v122
  %v1308 = vunpack.c.h.b16 %v122
  %v1309 = vunpack.c.l.b16 %v123
  %v1310 = vunpack.c.h.b16 %v123
  %v1311 = vunpack.c.l.b16 %v124
  %v1312 = vunpack.c.h.b16 %v124
  %v1313 = vunpack.c.l.b16 %v125
  %v1314 = vunpack.c.h.b16 %v125
  %v1315 = vunpack.c.l.b16 %v126
  %v1316 = vunpack.c.h.b16 %v126
  %v1317 = vunpack.c.l.b16 %v127
  %v1318 = vunpack.c.h.b16 %v127
  %v1319 = vunpack.c.l.b16 %v128
  %v1320 = vunpack.c.h.b16 %v128
  %v1321 = vunpack.c.l.b16 %v129
  %v1322 = vunpack.c.h.b16 %v129
  %v1323 = vunpack.c.l.b16 %v130
  %v1324 = vunpack.c.h.b16 %v130
  %v1325 = vunpack.c.l.b16 %v131
  %v1326 = vunpack.c.h.b16 %v131
  %v1327 = vunpack.c.l.b16 %v132
  %v1328 = vunpack.c.h.b16 %v132
  %v1329 = vunpack.c.l.b16 %v133
  %v1330 = vunpack.c.h.b16 %v133
  %v1331 = vunpack.c.l.b16 %v134
  %v1332 = vunpack.c.h.b16 %v134
  %v1333 = vunpack.c.l.b16 %v135
  %v1334 = vunpack.c.h.b16 %v135
  %v1335 = vunpack.c.l.b16 %v136
  %v1336 = vunpack.c.h.b16 %v136
  %v1337 = vunpack.c.l.b16 %v137
  %v1338 = vunpack.c.h.b16 %v137
  %v1339 = vunpack.c.l.b16 %v138
  %v1340 = vunpack.c.h.b16 %v138
  %v1341 = vunpack.c.l.b16 %v139
  %v1342 = vunpack.c.h.b16 %v139
  %v1343 = vunpack.c.l.b16 %v140
  %v1344 = vunpack.c.h.b16 %v140
  %v1345 = vunpack.c.l.b16 %v141
  %v1346 = vunpack.c.h.b16 %v141
  %v1347 = vunpack.c.l.b16 %v142
  %v1348 = vunpack.c.h.b16 %v142
  %v1349 = vunpack.c.l.b16 %v143
  %v1350 = vunpack.c.h.b16 %v143
  %v1351 = vunpack.c.l.b16 %v144
  %v1352 = vunpack.c.h.b16 %v144
  %v1353 = vunpack.c.l.b16 %v145
  %v1354 = vunpack.c.h.b16 %v145
  %v1355 = vunpack.c.l.b16 %v146
  %v1356 = vunpack.c.h.b16 %v146
  %v1357 = vunpack.c.l.b16 %v147
  %v1358 = vunpack.c.h.b16 %v147
  %v1359 = vunpack.c.l.b16 %v148
  %v1360 = vunpack.c.h.b16 %v148
  %v1361 = vunpack.c.l.b16 %v149
  %v1362 = vunpack.c.h.b16 %v149
  %v1363 = vunpack.c.l.b16 %v150
  %v1364 = vunpack.c.h.b16 %v150
  %v1365 = vunpack.c.l.b16 %v151
  %v1366 = vunpack.c.h.b16 %v151
  %v1367 = vunpack.c.l.b16 %v152
  %v1368 = vunpack.c.h.b16 %v152
  %v1369 = vunpack.c.l.b16 %v153
  %v1370 = vunpack.c.h.b16 %v153
  %v1371 = vunpack.c.l.b16 %v154
  %v1372 = vunpack.c.h.b16 %v154
  %v1373 = vunpack.c.l.b16 %v155
  %v1374 = vunpack.c.h.b16 %v155
  %v1375 = vunpack.c.l.b16 %v156
  %v1376 = vunpack.c.h.b16 %v156
  %v1377 = vunpack.c.l.b16 %v157
  %v1378 = vunpack.c.h.b16 %v157
  %v1379 = vunpack.c.l.b16 %v158
  %v1380 = vunpack.c.h.b16 %v158
  %v1381 = vunpack.c.l.b16 %v159
  %v1382 = vunpack.c.h.b16 %v159
  %v1383 = vunpack.c.l.b16 %v160
  %v1384 = vunpack.c.h.b16 %v160
  %v1385 = vunpack.c.l.b16 %v161
  %v1386 = vunpack.c.h.b16 %v161
  %v1387 = vunpack.c.l.b16 %v162
  %v1388 = vunpack.c.h.b16 %v162
  %v1389 = vunpack.c.l.b16 %v163
  %v1390 = vunpack.c.h.b16 %v163
  %v1391 = vunpack.c.l.b16 %v164
  %v1392 = vunpack.c.h.b16 %v164
  %v1393 = vunpack.c.l.b16 %v165
  %v1394 = vunpack.c.h.b16 %v165
  %v1395 = vunpack.c.l.b16 %v166
  %v1396 = vunpack.c.h.b16 %v166
  %v1397 = vunpack.c.l.b16 %v167
  %v1398 = vunpack.c.h.b16 %v167
  %v1399 = vunpack.c.l.b16 %v168
  %v1400 = vunpack.c.h.b16 %v168
  %v1401 = vunpack.c.l.b16 %v169
  %v1402 = vunpack.c.h.b16 %v169
  %v1403 = vunpack.c.l.b16 %v170
  %v1404 = vunpack.c.h.b16 %v170
  %v1405 = vunpack.c.l.b16 %v171
  %v1406 = vunpack.c.h.b16 %v171
  %v1407 = vunpack.c.l.b16 %v172
  %v1408 = vunpack.c.h.b16 %v172
  %v1409 = vunpack.c.l.b16 %v173
  %v1410 = vunpack.c.h.b16 %v173
  %v1411 = vunpack.c.l.b16 %v174
  %v1412 = vunpack.c.h.b16 %v174
  %v1413 = vunpack.c.l.b16 %v175
  %v1414 = vunpack.c.h.b16 %v175
  %v1415 = vunpack.c.l.b16 %v176
  %v1416 = vunpack.c.h.b16 %v176
  %v1417 = vunpack.c.l.b16 %v177
  %v1418 = vunpack.c.h.b16 %v177
  %v1419 = vunpack.c.l.b16 %v178
  %v1420 = vunpack.c.h.b16 %v178
  %v1421 = vunpack.c.l.b16 %v179
  %v1422 = vunpack.c.h.b16 %v179
  %v1423 = vunpack.c.l.b16 %v180
  %v1424 = vunpack.c.h.b16 %v180
  %v1425 = vunpack.c.l.b16 %v181
  %v1426 = vunpack.c.h.b16 %v181
  %v1427 = vunpack.c.l.b16 %v182
  %v1428 = vunpack.c.h.b16 %v182
  %v1429 = vunpack.c.l.b16 %v183
  %v1430 = vunpack.c.h.b16 %v183
  %v1431 = vunpack.c.l.b16 %v184
  %v1432 = vunpack.c.h.b16 %v184
  %v1433 = vunpack.c.l.b16 %v185
  %v1434 = vunpack.c.h.b16 %v185
  %v1435 = vunpack.c.l.b16 %v186
  %v1436 = vunpack.c.h.b16 %v186
  %v1437 = vunpack.c.l.b16 %v187
  %v1438 = vunpack.c.h.b16 %v187
  %v1439 = vunpack.c.l.b16 %v188
  %v1440 = vunpack.c.h.b16 %v188
  %v1441 = vunpack.c.l.b16 %v189
  %v1442 = vunpack.c.h.b16 %v189
  %v1443 = vunpack.c.l.b16 %v190
  %v1444 = vunpack.c.h.b16 %v190
  %v1445 = vunpack.c.l.b16 %v191
  %v1446 = vunpack.c.h.b16 %v191
  %v1447 = vunpack.c.l.b16 %v192
  %v1448 = vunpack.c.h.b16 %v192
  %v1449 = vunpack.c.l.b16 %v193
  %v1450 = vunpack.c.h.b16 %v193
  %v1451 = vunpack.c.l.b16 %v194
  %v1452 = vunpack.c.h.b16 %v194
  %v1453 = vunpack.c.l.b16 %v195
  %v1454 = vunpack.c.h.b16 %v195
  %v1455 = vunpack.c.l.b16 %v196
  %v1456 = vunpack.c.h.b16 %v196
  %v1457 = vunpack.c.l.b16 %v197
  %v1458 = vunpack.c.h.b16 %v197
  %v1459 = vunpack.c.l.b16 %v198
  %v1460 = vunpack.c.h.b16 %v198
  %v1461 = vunpack.c.l.b16 %v199
  %v1462 = vunpack.c.h.b16 %v199
  %v1463 = vunpack.c.l.b16 %v200
  %v1464 = vunpack.c.h.b16 %v200
  %v1465 = vunpack.c.l.b16 %v201
  %v1466 = vunpack.c.h.b16 %v201
  %v1467 = vunpack.c.l.b16 %v202
  %v1468 = vunpack.c.h.b16 %v202
  %v1469 = vunpack.c.l.b16 %v203
  %v1470 = vunpack.c.h.b16 %v203
  %v1471 = vunpack.c.l.b16 %v204
  %v1472 = vunpack.c.h.b16 %v204
  %v1473 = vunpack.c.l.b16 %v205
  %v1474 = vunpack.c.h.b16 %v205
  %v1475 = vunpack.c.l.b16 %v206
  %v1476 = vunpack.c.h.b16 %v206
  %v1477 = vunpack.c.l.b16 %v207
  %v1478 = vunpack.c.h.b16 %v207
  %v1479 = vunpack.c.l.b16 %v208
  %v1480 = vunpack.c.h.b16 %v208
  %v1481 = vunpack.c.l.b16 %v209
  %v1482 = vunpack.c.h.b16 %v209
  %v1483 = vunpack.c.l.b16 %v210
  %v1484 = vunpack.c.h.b16 %v210
  %v1485 = vunpack.c.l.b16 %v211
  %v1486 = vunpack.c.h.b16 %v211
  %v1487 = vunpack.c.l.b16 %v212
  %v1488 = vunpack.c.h.b16 %v212
  %v1489 = vunpack.c.l.b16 %v213
  %v1490 = vunpack.c.h.b16 %v213
  %v1491 = vunpack.c.l.b16 %v214
  %v1492 = vunpack.c.h.b16 %v214
  %v1493 = vunpack.c.l.b16 %v215
  %v1494 = vunpack.c.h.b16 %v215
  %v1495 = vunpack.c.l.b16 %v216
  %v1496 = vunpack.c.h.b16 %v216
  %v1497 = vunpack.c.l.b16 %v217
  %v1498 = vunpack.c.h.b16 %v217
  %v1499 = vunpack.c.l.b16 %v218
  %v1500 = vunpack.c.h.b16 %v218
  %v1501 = vunpack.c.l.b16 %v219
  %v1502 = vunpack.c.h.b16 %v219
  %v1503 = vunpack.c.l.b16 %v220
  %v1504 = vunpack.c.h.b16 %v220
  %v1505 = vunpack.c.l.b16 %v221
  %v1506 = vunpack.c.h.b16 %v221
  %v1507 = vunpack.c.l.b16 %v222
  %v1508 = vunpack.c.h.b16 %v222
  %v1509 = vunpack.c.l.b16 %v223
  %v1510 = vunpack.c.h.b16 %v223
  %v1511 = vunpack.c.l.b16 %v224
  %v1512 = vunpack.c.h.b16 %v224
  %v1513 = vunpack.c.l.b16 %v225
  %v1514 = vunpack.c.h.b16 %v225
  %v1515 = vunpack.c.l.b16 %v226
  %v1516 = vunpack.c.h.b16 %v226
  %v1517 = vunpack.c.l.b16 %v227
  %v1518 = vunpack.c.h.b16 %v227
  %v1519 = vunpack.c.l.b16 %v228
  %v1520 = vunpack.c.h.b16 %v228
  %v1521 = vunpack.c.l.b16 %v229
  %v1522 = vunpack.c.h.b16 %v229
  %v1523 = vunpack.c.l.b16 %v230
  %v1524 = vunpack.c.h.b16 %v230
  %v1525 = vunpack.c.l.b16 %v231
  %v1526 = vunpack.c.h.b16 %v231
  %v1527 = vunpack.c.l.b16 %v232
  %v1528 = vunpack.c.h.b16 %v232
  %v1529 = vunpack.c.l.b16 %v233
  %v1530 = vunpack.c.h.b16 %v233
  %v1531 = vunpack.c.l.b16 %v234
  %v1532 = vunpack.c.h.b16 %v234
  %v1533 = vunpack.c.l.b16 %v235
  %v1534 = vunpack.c.h.b16 %v235
  %v1535 = vunpack.c.l.b16 %v236
  %v1536 = vunpack.c.h.b16 %v236
  %v1537 = vunpack.c.l.b16 %v237
  %v1538 = vunpack.c.h.b16 %v237
  %v1539 = vunpack.c.l.b16 %v238
  %v1540 = vunpack.c.h.b16 %v238
  %v1541 = vunpack.c.l.b16 %v239
  %v1542 = vunpack.c.h.b16 %v239
  %v1543 = vunpack.c.l.b16 %v240
  %v1544 = vunpack.c.h.b16 %v240
  %v1545 = vunpack.c.l.b16 %v241
  %v1546 = vunpack.c.h.b16 %v241
  %v1547 = vunpack.c.l.b16 %v242
  %v1548 = vunpack.c.h.b16 %v242
  %v1549 = vunpack.c.l.b16 %v243
  %v1550 = vunpack.c.h.b16 %v243
  %v1551 = vunpack.c.l.b16 %v244
  %v1552 = vunpack.c.h.b16 %v244
  %v1553 = vunpack.c.l.b16 %v245
  %v1554 = vunpack.c.h.b16 %v245
  %v1555 = vunpack.c.l.b16 %v246
  %v1556 = vunpack.c.h.b16 %v246
  %v1557 = vunpack.c.l.b16 %v247
  %v1558 = vunpack.c.h.b16 %v247
  %v1559 = vunpack.c.l.b16 %v248
  %v1560 = vunpack.c.h.b16 %v248
  %v1561 = vunpack.c.l.b16 %v249
  %v1562 = vunpack.c.h.b16 %v249
  %v1563 = vunpack.c.l.b16 %v250
  %v1564 = vunpack.c.h.b16 %v250
  %v1565 = vunpack.c.l.b16 %v251
  %v1566 = vunpack.c.h.b16 %v251
  %v1567 = vunpack.c.l.b16 %v252
  %v1568 = vunpack.c.h.b16 %v252
  %v1569 = vunpack.c.l.b16 %v253
  %v1570 = vunpack.c.h.b16 %v253
  %v1571 = vunpack.c.l.b16 %v254
  %v1572 = vunpack.c.h.b16 %v254
  %v1573 = vunpack.c.l.b16 %v255
  %v1574 = vunpack.c.h.b16 %v255
  %v1575 = vunpack.c.l.b16 %v256
  %v1576 = vunpack.c.h.b16 %v256
  %v1577 = vunpack.c.l.b16 %v257
  %v1578 = vunpack.c.h.b16 %v257
  %v1579 = vunpack.c.l.b16 %v258
  %v1580 = vunpack.c.h.b16 %v258
  %v1581 = vunpack.c.l.b16 %v259
  %v1582 = vunpack.c.h.b16 %v259
  %v1583 = vunpack.c.l.b16 %v260
  %v1584 = vunpack.c.h.b16 %v260
  %v1585 = vunpack.c.l.b16 %v261
  %v1586 = vunpack.c.h.b16 %v261
  %v1587 = vunpack.c.l.b16 %v262
  %v1588 = vunpack.c.h.b16 %v262
  %v1589 = vunpack.c.l.b16 %v263
  %v1590 = vunpack.c.h.b16 %v263
  %v1591 = vunpack.c.l.b16 %v264
  %v1592 = vunpack.c.h.b16 %v264
  %v1593 = vunpack.c.l.b16 %v265
  %v1594 = vunpack.c.h.b16 %v265
  %v1595 = vunpack.c.l.b16 %v266
  %v1596 = vunpack.c.h.b16 %v266
  %v1597 = vunpack.c.l.b16 %v267
  %v1598 = vunpack.c.h.b16 %v267
  %v1599 = vunpack.c.l.b16 %v268
  %v1600 = vunpack.c.h.b16 %v268
  %v1601 = vunpack.c.l.b16 %v269
  %v1602 = vunpack.c.h.b16 %v269
  %v1603 = vunpack.c.l.b16 %v270
  %v1604 = vunpack.c.h.b16 %v270
  %v1605 = vunpack.c.l.b16 %v271
  %v1606 = vunpack.c.h.b16 %v271
  %v1607 = vunpack.c.l.b16 %v272
  %v1608 = vunpack.c.h.b16 %v272
  %v1609 = vunpack.c.l.b16 %v273
  %v1610 = vunpack.c.h.b16 %v273
  %v1611 = vunpack.c.l.b16 %v274
  %v1612 = vunpack.c.h.b16 %v274
  %v1613 = vunpack.c.l.b16 %v275
  %v1614 = vunpack.c.h.b16 %v275
  %v1615 = vunpack.c.l.b16 %v276
  %v1616 = vunpack.c.h.b16 %v276
  %v1617 = vunpack.c.l.b16 %v277
  %v1618 = vunpack.c.h.b16 %v277
  %v1619 = vunpack.c.l.b16 %v278
  %v1620 = vunpack.c.h.b16 %v278
  %v1621 = vunpack.c.l.b16 %v279
  %v1622 = vunpack.c.h.b16 %v279
  %v1623 = vunpack.c.l.b16 %v280
  %v1624 = vunpack.c.h.b16 %v280
  %v1625 = vunpack.c.l.b16 %v281
  %v1626 = vunpack.c.h.b16 %v281
  %v1627 = vunpack.c.l.b16 %v282
  %v1628 = vunpack.c.h.b16 %v282
  %v1629 = vunpack.c.l.b16 %v283
  %v1630 = vunpack.c.h.b16 %v283
  %v1631 = vunpack.c.l.b16 %v284
  %v1632 = vunpack.c.h.b16 %v284
  %v1633 = vunpack.c.l.b16 %v285
  %v1634 = vunpack.c.h.b16 %v285
  %v1635 = vunpack.c.l.b16 %v286
  %v1636 = vunpack.c.h.b16 %v286
  %v1637 = vunpack.c.l.b16 %v287
  %v1638 = vunpack.c.h.b16 %v287
  %v1639 = vunpack.c.l.b16 %v288
  %v1640 = vunpack.c.h.b16 %v288
  %v1641 = vunpack.c.l.b16 %v289
  %v1642 = vunpack.c.h.b16 %v289
  %v1643 = vunpack.c.l.b16 %v290
  %v1644 = vunpack.c.h.b16 %v290
  %v1645 = vunpack.c.l.b16 %v291
  %v1646 = vunpack.c.h.b16 %v291
  %v1647 = vunpack.c.l.b16 %v292
  %v1648 = vunpack.c.h.b16 %v292
  %v1649 = vunpack.c.l.b16 %v293
  %v1650 = vunpack.c.h.b16 %v293
  %v1651 = vunpack.c.l.b16 %v294
  %v1652 = vunpack.c.h.b16 %v294
  %v1653 = vunpack.c.l.b16 %v295
  %v1654 = vunpack.c.h.b16 %v295
  %v1655 = vunpack.c.l.b16 %v296
  %v1656 = vunpack.c.h.b16 %v296
  %v1657 = vunpack.c.l.b16 %v297
  %v1658 = vunpack.c.h.b16 %v297
  %v1659 = vunpack.c.l.b16 %v298
  %v1660 = vunpack.c.h.b16 %v298
  %v1661 = vunpack.c.l.b16 %v299
  %v1662 = vunpack.c.h.b16 %v299
  %v1663 = vunpack.c.l.b16 %v300
  %v1664 = vunpack.c.h.b16 %v300
  %v1665 = vunpack.c.l.b16 %v301
  %v1666 = vunpack.c.h.b16 %v301
  %v1667 = vunpack.c.l.b16 %v302
  %v1668 = vunpack.c.h.b16 %v302
  %v1669 = vunpack.c.l.b16 %v303
  %v1670 = vunpack.c.h.b16 %v303
  %v1671 = vunpack.c.l.b16 %v304
  %v1672 = vunpack.c.h.b16 %v304
  %v1673 = vunpack.c.l.b16 %v305
  %v1674 = vunpack.c.h.b16 %v305
  %v1675 = vunpack.c.l.b16 %v306
  %v1676 = vunpack.c.h.b16 %v306
  %v1677 = vunpack.c.l.b16 %v307
  %v1678 = vunpack.c.h.b16 %v307
  %v1679 = vunpack.c.l.b16 %v308
  %v1680 = vunpack.c.h.b16 %v308
  %v1681 = vunpack.c.l.b16 %v309
  %v1682 = vunpack.c.h.b16 %v309
  %v1683 = vunpack.c.l.b16 %v310
  %v1684 = vunpack.c.h.b16 %v310
  %v1685 = vunpack.c.l.b16 %v311
  %v1686 = vunpack.c.h.b16 %v311
  %v1687 = vunpack.c.l.b16 %v312
  %v1688 = vunpack.c.h.b16 %v312
  %v1689 = vunpack.c.l.b16 %v313
  %v1690 = vunpack.c.h.b16 %v313
  %v1691 = vunpack.c.l.b16 %v314
  %v1692 = vunpack.c.h.b16 %v314
  %v1693 = vunpack.c.l.b16 %v315
  %v1694 = vunpack.c.h.b16 %v315
  %v1695 = vunpack.c.l.b16 %v316
  %v1696 = vunpack.c.h.b16 %v316
  %v1697 = vunpack.c.l.b16 %v317
  %v1698 = vunpack.c.h.b16 %v317
  %v1699 = vunpack.c.l.b16 %v318
  %v1700 = vunpack.c.h.b16 %v318
  %v1701 = vunpack.c.l.b16 %v319
  %v1702 = vunpack.c.h.b16 %v319
  %v1703 = vunpack.c.l.b16 %v320
  %v1704 = vunpack.c.h.b16 %v320
  %v1705 = vunpack.c.l.b16 %v321
  %v1706 = vunpack.c.h.b16 %v321
  %v1707 = vunpack.c.l.b16 %v322
  %v1708 = vunpack.c.h.b16 %v322
  %v1709 = vunpack.c.l.b16 %v323
  %v1710 = vunpack.c.h.b16 %v323
  %v1711 = vunpack.c.l.b16 %v324
  %v1712 = vunpack.c.h.b16 %v324
  %v1713 = vunpack.c.l.b16 %v325
  %v1714 = vunpack.c.h.b16 %v325
  %v1715 = vunpack.c.l.b16 %v326
  %v1716 = vunpack.c.h.b16 %v326
  %v1717 = vunpack.c.l.b16 %v327
  %v1718 = vunpack.c.h.b16 %v327
  %v1719 = vunpack.c.l.b16 %v328
  %v1720 = vunpack.c.h.b16 %v328
  %v1721 = vunpack.c.l.b16 %v329
  %v1722 = vunpack.c.h.b16 %v329
  %v1723 = vunpack.c.l.b16 %v330
  %v1724 = vunpack.c.h.b16 %v330
  %v1725 = vunpack.c.l.b16 %v331
  %v1726 = vunpack.c.h.b16 %v331
  %v1727 = vunpack.c.l.b16 %v332
  %v1728 = vunpack.c.h.b16 %v332
  %v1729 = vunpack.c.l.b16 %v333
  %v1730 = vunpack.c.h.b16 %v333
  %v1731 = vunpack.c.l.b16 %v334
  %v1732 = vunpack.c.h.b16 %v334
  %v1733 = vunpack.c.l.b16 %v335
  %v1734 = vunpack.c.h.b16 %v335
  %v1735 = vunpack.c.l.b16 %v336
  %v1736 = vunpack.c.h.b16 %v336
  %v1737 = vunpack.c.l.b16 %v337
  %v1738 = vunpack.c.h.b16 %v337
  %v1739 = vunpack.c.l.b16 %v338
  %v1740 = vunpack.c.h.b16 %v338
  %v1741 = vunpack.c.l.b16 %v339
  %v1742 = vunpack.c.h.b16 %v339
  %v1743 = vunpack.c.l.b16 %v340
  %v1744 = vunpack.c.h.b16 %v340
  %v1745 = vunpack.c.l.b16 %v341
  %v1746 = vunpack.c.h.b16 %v341
  %v1747 = vunpack.c.l.b16 %v342
  %v1748 = vunpack.c.h.b16 %v342
  %v1749 = vunpack.c.l.b16 %v343
  %v1750 = vunpack.c.h.b16 %v343
  %v1751 = vunpack.c.l.b16 %v344
  %v1752 = vunpack.c.h.b16 %v344
  %v1753 = vunpack.c.l.b16 %v345
  %v1754 = vunpack.c.h.b16 %v345
  %v1755 = vunpack.c.l.b16 %v346
  %v1756 = vunpack.c.h.b16 %v346
  %v1757 = vunpack.c.l.b16 %v347
  %v1758 = vunpack.c.h.b16 %v347
  %v1759 = vunpack.c.l.b16 %v348
  %v1760 = vunpack.c.h.b16 %v348
  %v1761 = vunpack.c.l.b16 %v349
  %v1762 = vunpack.c.h.b16 %v349
  %v1763 = vunpack.c.l.b16 %v350
  %v1764 = vunpack.c.h.b16 %v350
  %v1765 = vunpack.c.l.b16 %v351
  %v1766 = vunpack.c.h.b16 %v351
  %v1767 = vunpack.c.l.b16 %v352
  %v1768 = vunpack.c.h.b16 %v352
  %v1769 = vunpack.c.l.b16 %v353
  %v1770 = vunpack.c.h.b16 %v353
  %v1771 = vunpack.c.l.b16 %v354
  %v1772 = vunpack.c.h.b16 %v354
  %v1773 = vunpack.c.l.b16 %v355
  %v1774 = vunpack.c.h.b16 %v355
  %v1775 = vunpack.c.l.b16 %v356
  %v1776 = vunpack.c.h.b16 %v356
  %v1777 = vunpack.c.l.b16 %v357
  %v1778 = vunpack.c.h.b16 %v357
  %v1779 = vunpack.c.l.b16 %v358
  %v1780 = vunpack.c.h.b16 %v358
  %v1781 = vunpack.c.l.b16 %v359
  %v1782 = vunpack.c.h.b16 %v359
  %v1783 = vunpack.c.l.b16 %v360
  %v1784 = vunpack.c.h.b16 %v360
  %v1785 = vunpack.c.l.b16 %v361
  %v1786 = vunpack.c.h.b16 %v361
  %v1787 = vunpack.c.l.b16 %v362
  %v1788 = vunpack.c.h.b16 %v362
  %v1789 = vunpack.c.l.b16 %v363
  %v1790 = vunpack.c.h.b16 %v363
  %v1791 = vunpack.c.l.b16 %v364
  %v1792 = vunpack.c.h.b16 %v364
  %v1793 = vunpack.c.l.b16 %v365
  %v1794 = vunpack.c.h.b16 %v365
  %v1795 = vunpack.c.l.b16 %v366
  %v1796 = vunpack.c.h.b16 %v366
  %v1797 = vunpack.c.l.b16 %v367
  %v1798 = vunpack.c.h.b16 %v367
  %v1799 = vunpack.c.l.b16 %v368
  %v1800 = vunpack.c.h.b16 %v368
  %v1801 = vunpack.c.l.b16 %v369
  %v1802 = vunpack.c.h.b16 %v369
  %v1803 = vunpack.c.l.b16 %v370
  %v1804 = vunpack.c.h.b16 %v370
  %v1805 = vunpack.c.l.b16 %v371
  %v1806 = vunpack.c.h.b16 %v371
  %v1807 = vunpack.c.l.b16 %v372
  %v1808 = vunpack.c.h.b16 %v372
  %v1809 = vunpack.c.l.b16 %v373
  %v1810 = vunpack.c.h.b16 %v373
  %v1811 = vunpack.c.l.b16 %v374
  %v1812 = vunpack.c.h.b16 %v374
  %v1813 = vunpack.c.l.b16 %v375
  %v1814 = vunpack.c.h.b16 %v375
  %v1815 = vunpack.c.l.b16 %v376
  %v1816 = vunpack.c.h.b16 %v376
  %v1817 = vunpack.c.l.b16 %v377
  %v1818 = vunpack.c.h.b16 %v377
  %v1819 = vunpack.c.l.b16 %v378
  %v1820 = vunpack.c.h.b16 %v378
  %v1821 = vunpack.c.l.b16 %v379
  %v1822 = vunpack.c.h.b16 %v379
  %v1823 = vunpack.c.l.b16 %v380
  %v1824 = vunpack.c.h.b16 %v380
  %v1825 = vunpack.c.l.b16 %v381
  %v1826 = vunpack.c.h.b16 %v381
  %v1827 = vunpack.c.l.b16 %v382
  %v1828 = vunpack.c.h.b16 %v382
  %v1829 = vunpack.c.l.b16 %v383
  %v1830 = vunpack.c.h.b16 %v383
  %v1831 = vunpack.c.l.b16 %v384
  %v1832 = vunpack.c.h.b16 %v384
  %v1833 = vunpack.c.l.b16 %v385
  %v1834 = vunpack.c.h.b16 %v385
  %v1835 = vunpack.c.l.b16 %v386
  %v1836 = vunpack.c.h.b16 %v386
  %v1837 = vunpack.c.l.b16 %v387
  %v1838 = vunpack.c.h.b16 %v387
  %v1839 = vunpack.c.l.b16 %v388
  %v1840 = vunpack.c.h.b16 %v388
  %v1841 = vunpack.c.l.b16 %v389
  %v1842 = vunpack.c.h.b16 %v389
  %v1843 = vunpack.c.l.b16 %v390
  %v1844 = vunpack.c.h.b16 %v390
  %v1845 = vunpack.c.l.b16 %v391
  %v1846 = vunpack.c.h.b16 %v391
  %v1847 = vunpack.c.l.b16 %v392
  %v1848 = vunpack.c.h.b16 %v392
  %v1849 = vunpack.c.l.b16 %v393
  %v1850 = vunpack.c.h.b16 %v393
  %v1851 = vunpack.c.l.b16 %v394
  %v1852 = vunpack.c.h.b16 %v394
  %v1853 = vunpack.c.l.b16 %v395
  %v1854 = vunpack.c.h.b16 %v395
  %v1855 = vunpack.c.l.b16 %v396
  %v1856 = vunpack.c.h.b16 %v396
  %v1857 = vunpack.c.l.b16 %v397
  %v1858 = vunpack.c.h.b16 %v397
  %v1859 = vunpack.c.l.b16 %v398
  %v1860 = vunpack.c.h.b16 %v398
  %v1861 = vunpack.c.l.b16 %v399
  %v1862 = vunpack.c.h.b16 %v399
  %v1863 = vunpack.c.l.b16 %v400
  %v1864 = vunpack.c.h.b16 %v400
  %v1865 = vunpack.c.l.b16 %v401
  %v1866 = vunpack.c.h.b16 %v401
  %v1867 = vunpack.c.l.b16 %v402
  %v1868 = vunpack.c.h.b16 %v402
  %v1869 = vunpack.c.l.b16 %v403
  %v1870 = vunpack.c.h.b16 %v403
  %v1871 = vunpack.c.l.b16 %v404
  %v1872 = vunpack.c.h.b16 %v404
  %v1873 = vunpack.c.l.b16 %v405
  %v1874 = vunpack.c.h.b16 %v405
  %v1875 = vunpack.c.l.b16 %v406
  %v1876 = vunpack.c.h.b16 %v406
  %v1877 = vunpack.c.l.b16 %v407
  %v1878 = vunpack.c.h.b16 %v407
  %v1879 = vunpack.c.l.b16 %v408
  %v1880 = vunpack.c.h.b16 %v408
  %v1881 = vunpack.c.l.b16 %v409
  %v1882 = vunpack.c.h.b16 %v409
  %v1883 = vunpack.c.l.b16 %v410
  %v1884 = vunpack.c.h.b16 %v410
  %v1885 = vunpack.c.l.b16 %v411
  %v1886 = vunpack.c.h.b16 %v411
  %v1887 = vunpack.c.l.b16 %v412
  %v1888 = vunpack.c.h.b16 %v412
  %v1889 = vunpack.c.l.b16 %v413
  %v1890 = vunpack.c.h.b16 %v413
  %v1891 = vunpack.c.l.b16 %v414
  %v1892 = vunpack.c.h.b16 %v414
  %v1893 = vunpack.c.l.b16 %v415
  %v1894 = vunpack.c.h.b16 %v415
  %v1895 = vunpack.c.l.b16 %v416
  %v1896 = vunpack.c.h.b16 %v416
  %v1897 = vunpack.c.l.b16 %v417
  %v1898 = vunpack.c.h.b16 %v417
  %v1899 = vunpack.c.l.b16 %v418
  %v1900 = vunpack.c.h.b16 %v418
  %v1901 = vunpack.c.l.b16 %v419
  %v1902 = vunpack.c.h.b16 %v419
  %v1903 = vunpack.c.l.b16 %v420
  %v1904 = vunpack.c.h.b16 %v420
  %v1905 = vunpack.c.l.b16 %v421
  %v1906 = vunpack.c.h.b16 %v421
  %v1907 = vunpack.c.l.b16 %v422
  %v1908 = vunpack.c.h.b16 %v422
  %v1909 = vunpack.c.l.b16 %v423
  %v1910 = vunpack.c.h.b16 %v423
  %v1911 = vunpack.c.l.b16 %v424
  %v1912 = vunpack.c.h.b16 %v424
  %v1913 = vunpack.c.l.b16 %v425
  %v1914 = vunpack.c.h.b16 %v425
  %v1915 = vunpack.c.l.b16 %v426
  %v1916 = vunpack.c.h.b16 %v426
  %v1917 = vunpack.c.l.b16 %v427
  %v1918 = vunpack.c.h.b16 %v427
  %v1919 = vunpack.c.l.b16 %v428
  %v1920 = vunpack.c.h.b16 %v428
  %v1921 = vunpack.c.l.b16 %v429
  %v1922 = vunpack.c.h.b16 %v429
  %v1923 = vunpack.c.l.b16 %v430
  %v1924 = vunpack.c.h.b16 %v430
  %v1925 = vunpack.c.l.b16 %v431
  %v1926 = vunpack.c.h.b16 %v431
  %v1927 = vunpack.c.l.b16 %v432
  %v1928 = vunpack.c.h.b16 %v432
  %v1929 = vunpack.c.l.b16 %v433
  %v1930 = vunpack.c.h.b16 %v433
  %v1931 = vunpack.c.l.b16 %v434
  %v1932 = vunpack.c.h.b16 %v434
  %v1933 = vunpack.c.l.b16 %v435
  %v1934 = vunpack.c.h.b16 %v435
  %v1935 = vunpack.c.l.b16 %v436
  %v1936 = vunpack.c.h.b16 %v436
  %v1937 = vunpack.c.l.b16 %v437
  %v1938 = vunpack.c.h.b16 %v437
  %v1939 = vunpack.c.l.b16 %v438
  %v1940 = vunpack.c.h.b16 %v438
  %v1941 = vunpack.c.l.b16 %v439
  %v1942 = vunpack.c.h.b16 %v439
  %v1943 = vunpack.c.l.b16 %v440
  %v1944 = vunpack.c.h.b16 %v440
  %v1945 = vunpack.c.l.b16 %v441
  %v1946 = vunpack.c.h.b16 %v441
  %v1947 = vunpack.c.l.b16 %v442
  %v1948 = vunpack.c.h.b16 %v442
  %v1949 = vunpack.c.l.b16 %v443
  %v1950 = vunpack.c.h.b16 %v443
  %v1951 = vunpack.c.l.b16 %v444
  %v1952 = vunpack.c.h.b16 %v444
  %v1953 = vunpack.c.l.b16 %v445
  %v1954 = vunpack.c.h.b16 %v445
  %v1955 = vunpack.c.l.b16 %v446
  %v1956 = vunpack.c.h.b16 %v446
  %v1957 = vunpack.c.l.b16 %v447
  %v1958 = vunpack.c.h.b16 %v447
  %v1959 = vunpack.c.l.b16 %v448
  %v1960 = vunpack.c.h.b16 %v448
  %v1961 = vunpack.c.l.b16 %v449
  %v1962 = vunpack.c.h.b16 %v449
  %v1963 = vunpack.c.l.b16 %v450
  %v1964 = vunpack.c.h.b16 %v450
  %v1965 = vunpack.c.l.b16 %v451
  %v1966 = vunpack.c.h.b16 %v451
  %v1967 = vunpack.c.l.b16 %v452
  %v1968 = vunpack.c.h.b16 %v452
  %v1969 = vunpack.c.l.b16 %v453
  %v1970 = vunpack.c.h.b16 %v453
  %v1971 = vunpack.c.l.b16 %v454
  %v1972 = vunpack.c.h.b16 %v454
  %v1973 = vunpack.c.l.b16 %v455
  %v1974 = vunpack.c.h.b16 %v455
  %v1975 = vunpack.c.l.b16 %v456
  %v1976 = vunpack.c.h.b16 %v456
  %v1977 = vunpack.c.l.b16 %v457
  %v1978 = vunpack.c.h.b16 %v457
  %v1979 = vunpack.c.l.b16 %v458
  %v1980 = vunpack.c.h.b16 %v458
  %v1981 = vunpack.c.l.b16 %v459
  %v1982 = vunpack.c.h.b16 %v459
  %v1983 = vunpack.c.l.b16 %v460
  %v1984 = vunpack.c.h.b16 %v460
  %v1985 = vunpack.c.l.b16 %v461
  %v1986 = vunpack.c.h.b16 %v461
  %v1987 = vunpack.c.l.b16 %v462
  %v1988 = vunpack.c.h.b16 %v462
  %v1989 = vunpack.c.l.b16 %v463
  %v1990 = vunpack.c.h.b16 %v463
  %v1991 = vunpack.c.l.b16 %v464
  %v1992 = vunpack.c.h.b16 %v464
  %v1993 = vunpack.c.l.b16 %v465
  %v1994 = vunpack.c.h.b16 %v465
  %v1995 = vunpack.c.l.b16 %v466
  %v1996 = vunpack.c.h.b16 %v466
  %v1997 = vunpack.c.l.b16 %v467
  %v1998 = vunpack.c.h.b16 %v467
  %v1999 = vunpack.c.l.b16 %v468
  %v2000 = vunpack.c.h.b16 %v468
  %v2001 = vunpack.c.l.b16 %v469
  %v2002 = vunpack.c.h.b16 %v469
  %v2003 = vunpack.c.l.b16 %v470
  %v2004 = vunpack.c.h.b16 %v470
  %v2005 = vunpack.c.l.b16 %v471
  %v2006 = vunpack.c.h.b16 %v471
  %v2007 = vunpack.c.l.b16 %v472
  %v2008 = vunpack.c.h.b16 %v472
  %v2009 = vunpack.c.l.b16 %v473
  %v2010 = vunpack.c.h.b16 %v473
  %v2011 = vunpack.c.l.b16 %v474
  %v2012 = vunpack.c.h.b16 %v474
  %v2013 = vunpack.c.l.b16 %v475
  %v2014 = vunpack.c.h.b16 %v475
  %v2015 = vunpack.c.l.b16 %v476
  %v2016 = vunpack.c.h.b16 %v476
  %v2017 = vunpack.c.l.b16 %v477
  %v2018 = vunpack.c.h.b16 %v477
  %v2019 = vunpack.c.l.b16 %v478
  %v2020 = vunpack.c.h.b16 %v478
  %v2021 = vunpack.c.l.b16 %v479
  %v2022 = vunpack.c.h.b16 %v479
  %v2023 = vunpack.c.l.b16 %v480
  %v2024 = vunpack.c.h.b16 %v480
  %v2025 = vunpack.c.l.b16 %v481
  %v2026 = vunpack.c.h.b16 %v481
  %v2027 = vunpack.c.l.b16 %v482
  %v2028 = vunpack.c.h.b16 %v482
  %v2029 = vunpack.c.l.b16 %v483
  %v2030 = vunpack.c.h.b16 %v483
  %v2031 = vunpack.c.l.b16 %v484
  %v2032 = vunpack.c.h.b16 %v484
  %v2033 = vunpack.c.l.b16 %v485
  %v2034 = vunpack.c.h.b16 %v485
  %v2035 = vunpack.c.l.b16 %v486
  %v2036 = vunpack.c.h.b16 %v486
  %v2037 = vunpack.c.l.b16 %v487
  %v2038 = vunpack.c.h.b16 %v487
  %v2039 = vunpack.c.l.b16 %v488
  %v2040 = vunpack.c.h.b16 %v488
  %v2041 = vunpack.c.l.b16 %v489
  %v2042 = vunpack.c.h.b16 %v489
  %v2043 = vunpack.c.l.b16 %v490
  %v2044 = vunpack.c.h.b16 %v490
  %v2045 = vunpack.c.l.b16 %v491
  %v2046 = vunpack.c.h.b16 %v491
  %v2047 = vunpack.c.l.b16 %v492
  %v2048 = vunpack.c.h.b16 %v492
  %v2049 = vunpack.c.l.b16 %v493
  %v2050 = vunpack.c.h.b16 %v493
  %v2051 = vunpack.c.l.b16 %v494
  %v2052 = vunpack.c.h.b16 %v494
  %v2053 = vunpack.c.l.b16 %v495
  %v2054 = vunpack.c.h.b16 %v495
  %v2055 = vunpack.c.l.b16 %v496
  %v2056 = vunpack.c.h.b16 %v496
  %v2057 = vunpack.c.l.b16 %v497
  %v2058 = vunpack.c.h.b16 %v497
  %v2059 = vunpack.c.l.b16 %v498
  %v2060 = vunpack.c.h.b16 %v498
  %v2061 = vunpack.c.l.b16 %v499
  %v2062 = vunpack.c.h.b16 %v499
  %v2063 = vunpack.c.l.b16 %v500
  %v2064 = vunpack.c.h.b16 %v500
  %v2065 = vunpack.c.l.b16 %v501
  %v2066 = vunpack.c.h.b16 %v501
  %v2067 = vunpack.c.l.b16 %v502
  %v2068 = vunpack.c.h.b16 %v502
  %v2069 = vunpack.c.l.b16 %v503
  %v2070 = vunpack.c.h.b16 %v503
  %v2071 = vunpack.c.l.b16 %v504
  %v2072 = vunpack.c.h.b16 %v504
  %v2073 = vunpack.c.l.b16 %v505
  %v2074 = vunpack.c.h.b16 %v505
  %v2075 = vunpack.c.l.b16 %v506
  %v2076 = vunpack.c.h.b16 %v506
  %v2077 = vunpack.c.l.b16 %v507
  %v2078 = vunpack.c.h.b16 %v507
  %v2079 = vunpack.c.l.b16 %v508
  %v2080 = vunpack.c.h.b16 %v508
  %v2081 = vunpack.c.l.b16 %v509
  %v2082 = vunpack.c.h.b16 %v509
  %v2083 = vunpack.c.l.b16 %v510
  %v2084 = vunpack.c.h.b16 %v510
  %v2085 = vunpack.c.l.b16 %v511
  %v2086 = vunpack.c.h.b16 %v511
  %v2087 = vunpack.c.l.b16 %v512
  %v2088 = vunpack.c.h.b16 %v512
  %v2089 = vunpack.c.l.b16 %v513
  %v2090 = vunpack.c.h.b16 %v513
  %v2091 = vunpack.c.l.b16 %v514
  %v2092 = vunpack.c.h.b16 %v514
  %v2093 = vunpack.c.l.b16 %v515
  %v2094 = vunpack.c.h.b16 %v515
  %v2095 = vunpack.c.l.b16 %v516
  %v2096 = vunpack.c.h.b16 %v516
  %v2097 = vunpack.c.l.b16 %v517
  %v2098 = vunpack.c.h.b16 %v517
  %v2099 = vunpack.c.l.b16 %v518
  %v2100 = vunpack.c.h.b16 %v518
  %v2101 = vunpack.c.l.b16 %v519
  %v2102 = vunpack.c.h.b16 %v519
  %v2103 = vunpack.c.l.b16 %v520
  %v2104 = vunpack.c.h.b16 %v520
  %v2105 = vunpack.c.l.b16 %v521
  %v2106 = vunpack.c.h.b16 %v521
  %v2107 = vunpack.c.l.b16 %v522
  %v2108 = vunpack.c.h.b16 %v522
  %v2109 = vunpack.c.l.b16 %v523
  %v2110 = vunpack.c.h.b16 %v523
  %v2111 = vunpack.c.l.b16 %v524
  %v2112 = vunpack.c.h.b16 %v524
  %v2113 = vunpack.c.l.b16 %v525
  %v2114 = vunpack.c.h.b16 %v525
  %v2115 = vunpack.c.l.b16 %v526
  %v2116 = vunpack.c.h.b16 %v526
  %v2117 = vunpack.c.l.b16 %v527
  %v2118 = vunpack.c.h.b16 %v527
  %v2119 = vunpack.c.l.b16 %v528
  %v2120 = vunpack.c.h.b16 %v528
  %v2121 = vunpack.c.l.b16 %v529
  %v2122 = vunpack.c.h.b16 %v529
  %v2123 = vunpack.c.l.b16 %v530
  %v2124 = vunpack.c.h.b16 %v530
  %v2125 = vunpack.c.l.b16 %v531
  %v2126 = vunpack.c.h.b16 %v531
  %v2127 = vunpack.c.l.b16 %v532
  %v2128 = vunpack.c.h.b16 %v532
  %v2129 = vunpack.c.l.b16 %v533
  %v2130 = vunpack.c.h.b16 %v533
  %v2131 = vunpack.c.l.b16 %v534
  %v2132 = vunpack.c.h.b16 %v534
  %v2133 = vunpack.c.l.b16 %v535
  %v2134 = vunpack.c.h.b16 %v535
  %v2135 = vunpack.c.l.b16 %v536
  %v2136 = vunpack.c.h.b16 %v536
  %v2137 = vunpack.c.l.b16 %v537
  %v2138 = vunpack.c.h.b16 %v537
  %v2139 = vunpack.c.l.b16 %v538
  %v2140 = vunpack.c.h.b16 %v538
  %v2141 = vunpack.c.l.b16 %v539
  %v2142 = vunpack.c.h.b16 %v539
  %v2143 = vunpack.c.l.b16 %v540
  %v2144 = vunpack.c.h.b16 %v540
  %v2145 = vunpack.c.l.b16 %v541
  %v2146 = vunpack.c.h.b16 %v541
  %v2147 = vunpack.c.l.b16 %v542
  %v2148 = vunpack.c.h.b16 %v542
  %v2149 = vpack.c.b16 %v1133, %v1125
  %v2150 = vpack.c.b16 %v1134, %v1126
  %v2151 = vpack.c.b16 %v1135, %v1127
  %v2152 = vpack.c.b16 %v1136, %v1128
  %v2153 = vpack.c.b16 %v1137, %v1129
  %v2154 = vpack.c.b16 %v1138, %v1130
  %v2155 = vpack.c.b16 %v1139, %v1131
  %v2156 = vpack.c.b16 %v1140, %v1132
  %v2157 = vpack.c.b16 %v1149, %v1141
  %v2158 = vpack.c.b16 %v1150, %v1142
  %v2159 = vpack.c.b16 %v1151, %v1143
  %v2160 = vpack.c.b16 %v1152, %v1144
  %v2161 = vpack.c.b16 %v1153, %v1145
  %v2162 = vpack.c.b16 %v1154, %v1146
  %v2163 = vpack.c.b16 %v1155, %v1147
  %v2164 = vpack.c.b16 %v1156, %v1148
  %v2165 = vpack.c.b16 %v1165, %v1157
  %v2166 = vpack.c.b16 %v1166, %v1158
  %v2167 = vpack.c.b16 %v1167, %v1159
  %v2168 = vpack.c.b16 %v1168, %v1160
  %v2169 = vpack.c.b16 %v1169, %v1161
  %v2170 = vpack.c.b16 %v1170, %v1162
  %v2171 = vpack.c.b16 %v1171, %v1163
  %v2172 = vpack.c.b16 %v1172, %v1164
  %v2173 = vpack.c.b16 %v1181, %v1173
  %v2174 = vpack.c.b16 %v1182, %v1174
  %v2175 = vpack.c.b16 %v1183, %v1175
  %v2176 = vpack.c.b16 %v1184, %v1176
  %v2177 = vpack.c.b16 %v1185, %v1177
  %v2178 = vpack.c.b16 %v1186, %v1178
  %v2179 = vpack.c.b16 %v1187, %v1179
  %v2180 = vpack.c.b16 %v1188, %v1180
  %v2181 = vpack.c.b16 %v1197, %v1189
  %v2182 = vpack.c.b16 %v1198, %v1190
  %v2183 = vpack.c.b16 %v1199, %v1191
  %v2184 = vpack.c.b16 %v1200, %v1192
  %v2185 = vpack.c.b16 %v1201, %v1193
  %v2186 = vpack.c.b16 %v1202, %v1194
  %v2187 = vpack.c.b16 %v1203, %v1195
  %v2188 = vpack.c.b16 %v1204, %v1196
  %v2189 = vpack.c.b16 %v1213, %v1205
  %v2190 = vpack.c.b16 %v1214, %v1206
  %v2191 = vpack.c.b16 %v1215, %v1207
  %v2192 = vpack.c.b16 %v1216, %v1208
  %v2193 = vpack.c.b16 %v1217, %v1209
  %v2194 = vpack.c.b16 %v1218, %v1210
  %v2195 = vpack.c.b16 %v1219, %v1211
  %v2196 = vpack.c.b16 %v1220, %v1212
  %v2197 = vpack.c.b16 %v1229, %v1221
  %v2198 = vpack.c.b16 %v1230, %v1222
  %v2199 = vpack.c.b16 %v1231, %v1223
  %v2200 = vpack.c.b16 %v1232, %v1224
  %v2201 = vpack.c.b16 %v1233, %v1225
  %v2202 = vpack.c.b16 %v1234, %v1226
  %v2203 = vpack.c.b16 %v1235, %v1227
  %v2204 = vpack.c.b16 %v1236, %v1228
  %v2205 = vpack.c.b16 %v1245, %v1237
  %v2206 = vpack.c.b16 %v1246, %v1238
  %v2207 = vpack.c.b16 %v1247, %v1239
  %v2208 = vpack.c.b16 %v1248, %v1240
  %v2209 = vpack.c.b16 %v1249, %v1241
  %v2210 = vpack.c.b16 %v1250, %v1242
  %v2211 = vpack.c.b16 %v1251, %v1243
  %v2212 = vpack.c.b16 %v1252, %v1244
  %v2213 = vpack.c.b16 %v1261, %v1253
  %v2214 = vpack.c.b16 %v1262, %v1254
  %v2215 = vpack.c.b16 %v1263, %v1255
  %v2216 = vpack.c.b16 %v1264, %v1256
  %v2217 = vpack.c.b16 %v1265, %v1257
  %v2218 = vpack.c.b16 %v1266, %v1258
  %v2219 = vpack.c.b16 %v1267, %v1259
  %v2220 = vpack.c.b16 %v1268, %v1260
  %v2221 = vpack.c.b16 %v1277, %v1269
  %v2222 = vpack.c.b16 %v1278, %v1270
  %v2223 = vpack.c.b16 %v1279, %v1271
  %v2224 = vpack.c.b16 %v1280, %v1272
  %v2225 = vpack.c.b16 %v1281, %v1273
  %v2226 = vpack.c.b16 %v1282, %v1274
  %v2227 = vpack.c.b16 %v1283, %v1275
  %v2228 = vpack.c.b16 %v1284, %v1276
  %v2229 = vpack.c.b16 %v1293, %v1285
  %v2230 = vpack.c.b16 %v1294, %v1286
  %v2231 = vpack.c.b16 %v1295, %v1287
  %v2232 = vpack.c.b16 %v1296, %v1288
  %v2233 = vpack.c.b16 %v1297, %v1289
  %v2234 = vpack.c.b16 %v1298, %v1290
  %v2235 = vpack.c.b16 %v1299, %v1291
  %v2236 = vpack.c.b16 %v1300, %v1292
  %v2237 = vpack.c.b16 %v1309, %v1301
  %v2238 = vpack.c.b16 %v1310, %v1302
  %v2239 = vpack.c.b16 %v1311, %v1303
  %v2240 = vpack.c.b16 %v1312, %v1304
  %v2241 = vpack.c.b16 %v1313, %v1305
  %v2242 = vpack.c.b16 %v1314, %v1306
  %v2243 = vpack.c.b16 %v1315, %v1307
  %v2244 = vpack.c.b16 %v1316, %v1308
  %v2245 = vpack.c.b16 %v1325, %v1317
  %v2246 = vpack.c.b16 %v1326, %v1318
  %v2247 = vpack.c.b16 %v1327, %v1319
  %v2248 = vpack.c.b16 %v1328, %v1320
  %v2249 = vpack.c.b16 %v1329, %v1321
  %v2250 = vpack.c.b16 %v1330, %v1322
  %v2251 = vpack.c.b16 %v1331, %v1323
  %v2252 = vpack.c.b16 %v1332, %v1324
  %v2253 = vpack.c.b16 %v1341, %v1333
  %v2254 = vpack.c.b16 %v1342, %v1334
  %v2255 = vpack.c.b16 %v1343, %v1335
  %v2256 = vpack.c.b16 %v1344, %v1336
  %v2257 = vpack.c.b16 %v1345, %v1337
  %v2258 = vpack.c.b16 %v1346, %v1338
  %v2259 = vpack.c.b16 %v1347, %v1339
  %v2260 = vpack.c.b16 %v1348, %v1340
  %v2261 = vpack.c.b16 %v1357, %v1349
  %v2262 = vpack.c.b16 %v1358, %v1350
  %v2263 = vpack.c.b16 %v1359, %v1351
  %v2264 = vpack.c.b16 %v1360, %v1352
  %v2265 = vpack.c.b16 %v1361, %v1353
  %v2266 = vpack.c.b16 %v1362, %v1354
  %v2267 = vpack.c.b16 %v1363, %v1355
  %v2268 = vpack.c.b16 %v1364, %v1356
  %v2269 = vpack.c.b16 %v1373, %v1365
  %v2270 = vpack.c.b16 %v1374, %v1366
  %v2271 = vpack.c.b16 %v1375, %v1367
  %v2272 = vpack.c.b16 %v1376, %v1368
  %v2273 = vpack.c.b16 %v1377, %v1369
  %v2274 = vpack.c.b16 %v1378, %v1370
  %v2275 = vpack.c.b16 %v1379, %v1371
  %v2276 = vpack.c.b16 %v1380, %v1372
  %v2277 = vpack.c.b16 %v1389, %v1381
  %v2278 = vpack.c.b16 %v1390, %v1382
  %v2279 = vpack.c.b16 %v1391, %v1383
  %v2280 = vpack.c.b16 %v1392, %v1384
  %v2281 = vpack.c.b16 %v1393, %v1385
  %v2282 = vpack.c.b16 %v1394, %v1386
  %v2283 = vpack.c.b16 %v1395, %v1387
  %v2284 = vpack.c.b16 %v1396, %v1388
  %v2285 = vpack.c.b16 %v1405, %v1397
  %v2286 = vpack.c.b16 %v1406, %v1398
  %v2287 = vpack.c.b16 %v1407, %v1399
  %v2288 = vpack.c.b16 %v1408, %v1400
  %v2289 = vpack.c.b16 %v1409, %v1401
  %v2290 = vpack.c.b16 %v1410, %v1402
  %v2291 = vpack.c.b16 %v1411, %v1403
  %v2292 = vpack.c.b16 %v1412, %v1404
  %v2293 = vpack.c.b16 %v1421, %v1413
  %v2294 = vpack.c.b16 %v1422, %v1414
  %v2295 = vpack.c.b16 %v1423, %v1415
  %v2296 = vpack.c.b16 %v1424, %v1416
  %v2297 = vpack.c.b16 %v1425, %v1417
  %v2298 = vpack.c.b16 %v1426, %v1418
  %v2299 = vpack.c.b16 %v1427, %v1419
  %v2300 = vpack.c.b16 %v1428, %v1420
  %v2301 = vpack.c.b16 %v1437, %v1429
  %v2302 = vpack.c.b16 %v1438, %v1430
  %v2303 = vpack.c.b16 %v1439, %v1431
  %v2304 = vpack.c.b16 %v1440, %v1432
  %v2305 = vpack.c.b16 %v1441, %v1433
  %v2306 = vpack.c.b16 %v1442, %v1434
  %v2307 = vpack.c.b16 %v1443, %v1435
  %v2308 = vpack.c.b16 %v1444, %v1436
  %v2309 = vpack.c.b16 %v1453, %v1445
  %v2310 = vpack.c.b16 %v1454, %v1446
  %v2311 = vpack.c.b16 %v1455, %v1447
  %v2312 = vpack.c.b16 %v1456, %v1448
  %v2313 = vpack.c.b16 %v1457, %v1449
  %v2314 = vpack.c.b16 %v1458, %v1450
  %v2315 = vpack.c.b16 %v1459, %v1451
  %v2316 = vpack.c.b16 %v1460, %v1452
  %v2317 = vpack.c.b16 %v1469, %v1461
  %v2318 = vpack.c.b16 %v1470, %v1462
  %v2319 = vpack.c.b16 %v1471, %v1463
  %v2320 = vpack.c.b16 %v1472, %v1464
  %v2321 = vpack.c.b16 %v1473, %v1465
  %v2322 = vpack.c.b16 %v1474, %v1466
  %v2323 = vpack.c.b16 %v1475, %v1467
  %v2324 = vpack.c.b16 %v1476, %v1468
  %v2325 = vpack.c.b16 %v1485, %v1477
  %v2326 = vpack.c.b16 %v1486, %v1478
  %v2327 = vpack.c.b16 %v1487, %v1479
  %v2328 = vpack.c.b16 %v1488, %v1480
  %v2329 = vpack.c.b16 %v1489, %v1481
  %v2330 = vpack.c.b16 %v1490, %v1482
  %v2331 = vpack.c.b16 %v1491, %v1483
  %v2332 = vpack.c.b16 %v1492, %v1484
  %v2333 = vpack.c.b16 %v1501, %v1493
  %v2334 = vpack.c.b16 %v1502, %v1494
  %v2335 = vpack.c.b16 %v1503, %v1495
  %v2336 = vpack.c.b16 %v1504, %v1496
  %v2337 = vpack.c.b16 %v1505, %v1497
  %v2338 = vpack.c.b16 %v1506, %v1498
  %v2339 = vpack.c.b16 %v1507, %v1499
  %v2340 = vpack.c.b16 %v1508, %v1500
  %v2341 = vpack.c.b16 %v1517, %v1509
  %v2342 = vpack.c.b16 %v1518, %v1510
  %v2343 = vpack.c.b16 %v1519, %v1511
  %v2344 = vpack.c.b16 %v1520, %v1512
  %v2345 = vpack.c.b16 %v1521, %v1513
  %v2346 = vpack.c.b16 %v1522, %v1514
  %v2347 = vpack.c.b16 %v1523, %v1515
  %v2348 = vpack.c.b16 %v1524, %v1516
  %v2349 = vpack.c.b16 %v1533, %v1525
  %v2350 = vpack.c.b16 %v1534, %v1526
  %v2351 = vpack.c.b16 %v1535, %v1527
  %v2352 = vpack.c.b16 %v1536, %v1528
  %v2353 = vpack.c.b16 %v1537, %v1529
  %v2354 = vpack.c.b16 %v1538, %v1530
  %v2355 = vpack.c.b16 %v1539, %v1531
  %v2356 = vpack.c.b16 %v1540, %v1532
  %v2357 = vpack.c.b16 %v1549, %v1541
  %v2358 = vpack.c.b16 %v1550, %v1542
  %v2359 = vpack.c.b16 %v1551, %v1543
  %v2360 = vpack.c.b16 %v1552, %v1544
  %v2361 = vpack.c.b16 %v1553, %v1545
  %v2362 = vpack.c.b16 %v1554, %v1546
  %v2363 = vpack.c.b16 %v1555, %v1547
  %v2364 = vpack.c.b16 %v1556, %v1548
  %v2365 = vpack.c.b16 %v1565, %v1557
  %v2366 = vpack.c.b16 %v1566, %v1558
  %v2367 = vpack.c.b16 %v1567, %v1559
  %v2368 = vpack.c.b16 %v1568, %v1560
  %v2369 = vpack.c.b16 %v1569, %v1561
  %v2370 = vpack.c.b16 %v1570, %v1562
  %v2371 = vpack.c.b16 %v1571, %v1563
  %v2372 = vpack.c.b16 %v1572, %v1564
  %v2373 = vpack.c.b16 %v1581, %v1573
  %v2374 = vpack.c.b16 %v1582, %v1574
  %v2375 = vpack.c.b16 %v1583, %v1575
  %v2376 = vpack.c.b16 %v1584, %v1576
  %v2377 = vpack.c.b16 %v1585, %v1577
  %v2378 = vpack.c.b16 %v1586, %v1578
  %v2379 = vpack.c.b16 %v1587, %v1579
  %v2380 = vpack.c.b16 %v1588, %v1580
  %v2381 = vpack.c.b16 %v1597, %v1589
  %v2382 = vpack.c.b16 %v1598, %v1590
  %v2383 = vpack.c.b16 %v1599, %v1591
  %v2384 = vpack.c.b16 %v1600, %v1592
  %v2385 = vpack.c.b16 %v1601, %v1593
  %v2386 = vpack.c.b16 %v1602, %v1594
  %v2387 = vpack.c.b16 %v1603, %v1595
  %v2388 = vpack.c.b16 %v1604, %v1596
  %v2389 = vpack.c.b16 %v1613, %v1605
  %v2390 = vpack.c.b16 %v1614, %v1606
  %v2391 = vpack.c.b16 %v1615, %v1607
  %v2392 = vpack.c.b16 %v1616, %v1608
  %v2393 = vpack.c.b16 %v1617, %v1609
  %v2394 = vpack.c.b16 %v1618, %v1610
  %v2395 = vpack.c.b16 %v1619, %v1611
  %v2396 = vpack.c.b16 %v1620, %v1612
  %v2397 = vpack.c.b16 %v1629, %v1621
  %v2398 = vpack.c.b16 %v1630, %v1622
  %v2399 = vpack.c.b16 %v1631, %v1623
  %v2400 = vpack.c.b16 %v1632, %v1624
  %v2401 = vpack.c.b16 %v1633, %v1625
  %v2402 = vpack.c.b16 %v1634, %v1626
  %v2403 = vpack.c.b16 %v1635, %v1627
  %v2404 = vpack.c.b16 %v1636, %v1628
  %v2405 = vpack.c.b16 %v1645, %v1637
  %v2406 = vpack.c.b16 %v1646, %v1638
  %v2407 = vpack.c.b16 %v1647, %v1639
  %v2408 = vpack.c.b16 %v1648, %v1640
  %v2409 = vpack.c.b16 %v1649, %v1641
  %v2410 = vpack.c.b16 %v1650, %v1642
  %v2411 = vpack.c.b16 %v1651, %v1643
  %v2412 = vpack.c.b16 %v1652, %v1644
  %v2413 = vpack.c.b16 %v1661, %v1653
  %v2414 = vpack.c.b16 %v1662, %v1654
  %v2415 = vpack.c.b16 %v1663, %v1655
  %v2416 = vpack.c.b16 %v1664, %v1656
  %v2417 = vpack.c.b16 %v1665, %v1657
  %v2418 = vpack.c.b16 %v1666, %v1658
  %v2419 = vpack.c.b16 %v1667, %v1659
  %v2420 = vpack.c.b16 %v1668, %v1660
  %v2421 = vpack.c.b16 %v1677, %v1669
  %v2422 = vpack.c.b16 %v1678, %v1670
  %v2423 = vpack.c.b16 %v1679, %v1671
  %v2424 = vpack.c.b16 %v1680, %v1672
  %v2425 = vpack.c.b16 %v1681, %v1673
  %v2426 = vpack.c.b16 %v1682, %v1674
  %v2427 = vpack.c.b16 %v1683, %v1675
  %v2428 = vpack.c.b16 %v1684, %v1676
  %v2429 = vpack.c.b16 %v1693, %v1685
  %v2430 = vpack.c.b16 %v1694, %v1686
  %v2431 = vpack.c.b16 %v1695, %v1687
  %v2432 = vpack.c.b16 %v1696, %v1688
  %v2433 = vpack.c.b16 %v1697, %v1689
  %v2434 = vpack.c.b16 %v1698, %v1690
  %v2435 = vpack.c.b16 %v1699, %v1691
  %v2436 = vpack.c.b16 %v1700, %v1692
  %v2437 = vpack.c.b16 %v1709, %v1701
  %v2438 = vpack.c.b16 %v1710, %v1702
  %v2439 = vpack.c.b16 %v1711, %v1703
  %v2440 = vpack.c.b16 %v1712, %v1704
  %v2441 = vpack.c.b16 %v1713, %v1705
  %v2442 = vpack.c.b16 %v1714, %v1706
  %v2443 = vpack.c.b16 %v1715, %v1707
  %v2444 = vpack.c.b16 %v1716, %v1708
  %v2445 = vpack.c.b16 %v1725, %v1717
  %v2446 = vpack.c.b16 %v1726, %v1718
  %v2447 = vpack.c.b16 %v1727, %v1719
  %v2448 = vpack.c.b16 %v1728, %v1720
  %v2449 = vpack.c.b16 %v1729, %v1721
  %v2450 = vpack.c.b16 %v1730, %v1722
  %v2451 = vpack.c.b16 %v1731, %v1723
  %v2452 = vpack.c.b16 %v1732, %v1724
  %v2453 = vpack.c.b16 %v1741, %v1733
  %v2454 = vpack.c.b16 %v1742, %v1734
  %v2455 = vpack.c.b16 %v1743, %v1735
  %v2456 = vpack.c.b16 %v1744, %v1736
  %v2457 = vpack.c.b16 %v1745, %v1737
  %v2458 = vpack.c.b16 %v1746, %v1738
  %v2459 = vpack.c.b16 %v1747, %v1739
  %v2460 = vpack.c.b16 %v1748, %v1740
  %v2461 = vpack.c.b16 %v1757, %v1749
  %v2462 = vpack.c.b16 %v1758, %v1750
  %v2463 = vpack.c.b16 %v1759, %v1751
  %v2464 = vpack.c.b16 %v1760, %v1752
  %v2465 = vpack.c.b16 %v1761, %v1753
  %v2466 = vpack.c.b16 %v1762, %v1754
  %v2467 = vpack.c.b16 %v1763, %v1755
  %v2468 = vpack.c.b16 %v1764, %v1756
  %v2469 = vpack.c.b16 %v1773, %v1765
  %v2470 = vpack.c.b16 %v1774, %v1766
  %v2471 = vpack.c.b16 %v1775, %v1767
  %v2472 = vpack.c.b16 %v1776, %v1768
  %v2473 = vpack.c.b16 %v1777, %v1769
  %v2474 = vpack.c.b16 %v1778, %v1770
  %v2475 = vpack.c.b16 %v1779, %v1771
  %v2476 = vpack.c.b16 %v1780, %v1772
  %v2477 = vpack.c.b16 %v1789, %v1781
  %v2478 = vpack.c.b16 %v1790, %v1782
  %v2479 = vpack.c.b16 %v1791, %v1783
  %v2480 = vpack.c.b16 %v1792, %v1784
  %v2481 = vpack.c.b16 %v1793, %v1785
  %v2482 = vpack.c.b16 %v1794, %v1786
  %v2483 = vpack.c.b16 %v1795, %v1787
  %v2484 = vpack.c.b16 %v1796, %v1788
  %v2485 = vpack.c.b16 %v1805, %v1797
  %v2486 = vpack.c.b16 %v1806, %v1798
  %v2487 = vpack.c.b16 %v1807, %v1799
  %v2488 = vpack.c.b16 %v1808, %v1800
  %v2489 = vpack.c.b16 %v1809, %v1801
  %v2490 = vpack.c.b16 %v1810, %v1802
  %v2491 = vpack.c.b16 %v1811, %v1803
  %v2492 = vpack.c.b16 %v1812, %v1804
  %v2493 = vpack.c.b16 %v1821, %v1813
  %v2494 = vpack.c.b16 %v1822, %v1814
  %v2495 = vpack.c.b16 %v1823, %v1815
  %v2496 = vpack.c.b16 %v1824, %v1816
  %v2497 = vpack.c.b16 %v1825, %v1817
  %v2498 = vpack.c.b16 %v1826, %v1818
  %v2499 = vpack.c.b16 %v1827, %v1819
  %v2500 = vpack.c.b16 %v1828, %v1820
  %v2501 = vpack.c.b16 %v1837, %v1829
  %v2502 = vpack.c.b16 %v1838, %v1830
  %v2503 = vpack.c.b16 %v1839, %v1831
  %v2504 = vpack.c.b16 %v1840, %v1832
  %v2505 = vpack.c.b16 %v1841, %v1833
  %v2506 = vpack.c.b16 %v1842, %v1834
  %v2507 = vpack.c.b16 %v1843, %v1835
  %v2508 = vpack.c.b16 %v1844, %v1836
  %v2509 = vpack.c.b16 %v1853, %v1845
  %v2510 = vpack.c.b16 %v1854, %v1846
  %v2511 = vpack.c.b16 %v1855, %v1847
  %v2512 = vpack.c.b16 %v1856, %v1848
  %v2513 = vpack.c.b16 %v1857, %v1849
  %v2514 = vpack.c.b16 %v1858, %v1850
  %v2515 = vpack.c.b16 %v1859, %v1851
  %v2516 = vpack.c.b16 %v1860, %v1852
  %v2517 = vpack.c.b16 %v1869, %v1861
  %v2518 = vpack.c.b16 %v1870, %v1862
  %v2519 = vpack.c.b16 %v1871, %v1863
  %v2520 = vpack.c.b16 %v1872, %v1864
  %v2521 = vpack.c.b16 %v1873, %v1865
  %v2522 = vpack.c.b16 %v1874, %v1866
  %v2523 = vpack.c.b16 %v1875, %v1867
  %v2524 = vpack.c.b16 %v1876, %v1868
  %v2525 = vpack.c.b16 %v1885, %v1877
  %v2526 = vpack.c.b16 %v1886, %v1878
  %v2527 = vpack.c.b16 %v1887, %v1879
  %v2528 = vpack.c.b16 %v1888, %v1880
  %v2529 = vpack.c.b16 %v1889, %v1881
  %v2530 = vpack.c.b16 %v1890, %v1882
  %v2531 = vpack.c.b16 %v1891, %v1883
  %v2532 = vpack.c.b16 %v1892, %v1884
  %v2533 = vpack.c.b16 %v1901, %v1893
  %v2534 = vpack.c.b16 %v1902, %v1894
  %v2535 = vpack.c.b16 %v1903, %v1895
  %v2536 = vpack.c.b16 %v1904, %v1896
  %v2537 = vpack.c.b16 %v1905, %v1897
  %v2538 = vpack.c.b16 %v1906, %v1898
  %v2539 = vpack.c.b16 %v1907, %v1899
  %v2540 = vpack.c.b16 %v1908, %v1900
  %v2541 = vpack.c.b16 %v1917, %v1909
  %v2542 = vpack.c.b16 %v1918, %v1910
  %v2543 = vpack.c.b16 %v1919, %v1911
  %v2544 = vpack.c.b16 %v1920, %v1912
  %v2545 = vpack.c.b16 %v1921, %v1913
  %v2546 = vpack.c.b16 %v1922, %v1914
  %v2547 = vpack.c.b16 %v1923, %v1915
  %v2548 = vpack.c.b16 %v1924, %v1916
  %v2549 = vpack.c.b16 %v1933, %v1925
  %v2550 = vpack.c.b16 %v1934, %v1926
  %v2551 = vpack.c.b16 %v1935, %v1927
  %v2552 = vpack.c.b16 %v1936, %v1928
  %v2553 = vpack.c.b16 %v1937, %v1929
  %v2554 = vpack.c.b16 %v1938, %v1930
  %v2555 = vpack.c.b16 %v1939, %v1931
  %v2556 = vpack.c.b16 %v1940, %v1932
  %v2557 = vpack.c.b16 %v1949, %v1941
  %v2558 = vpack.c.b16 %v1950, %v1942
  %v2559 = vpack.c.b16 %v1951, %v1943
  %v2560 = vpack.c.b16 %v1952, %v1944
  %v2561 = vpack.c.b16 %v1953, %v1945
  %v2562 = vpack.c.b16 %v1954, %v1946
  %v2563 = vpack.c.b16 %v1955, %v1947
  %v2564 = vpack.c.b16 %v1956, %v1948
  %v2565 = vpack.c.b16 %v1965, %v1957
  %v2566 = vpack.c.b16 %v1966, %v1958
  %v2567 = vpack.c.b16 %v1967, %v1959
  %v2568 = vpack.c.b16 %v1968, %v1960
  %v2569 = vpack.c.b16 %v1969, %v1961
  %v2570 = vpack.c.b16 %v1970, %v1962
  %v2571 = vpack.c.b16 %v1971, %v1963
  %v2572 = vpack.c.b16 %v1972, %v1964
  %v2573 = vpack.c.b16 %v1981, %v1973
  %v2574 = vpack.c.b16 %v1982, %v1974
  %v2575 = vpack.c.b16 %v1983, %v1975
  %v2576 = vpack.c.b16 %v1984, %v1976
  %v2577 = vpack.c.b16 %v1985, %v1977
  %v2578 = vpack.c.b16 %v1986, %v1978
  %v2579 = vpack.c.b16 %v1987, %v1979
  %v2580 = vpack.c.b16 %v1988, %v1980
  %v2581 = vpack.c.b16 %v1997, %v1989
  %v2582 = vpack.c.b16 %v1998, %v1990
  %v2583 = vpack.c.b16 %v1999, %v1991
  %v2584 = vpack.c.b16 %v2000, %v1992
  %v2585 = vpack.c.b16 %v2001, %v1993
  %v2586 = vpack.c.b16 %v2002, %v1994
  %v2587 = vpack.c.b16 %v2003, %v1995
  %v2588 = vpack.c.b16 %v2004, %v1996
  %v2589 = vpack.c.b16 %v2013, %v2005
  %v2590 = vpack.c.b16 %v2014, %v2006
  %v2591 = vpack.c.b16 %v2015, %v2007
  %v2592 = vpack.c.b16 %v2016, %v2008
  %v2593 = vpack.c.b16 %v2017, %v2009
  %v2594 = vpack.c.b16 %v2018, %v2010
  %v2595 = vpack.c.b16 %v2019, %v2011
  %v2596 = vpack.c.b16 %v2020, %v2012
  %v2597 = vpack.c.b16 %v2029, %v2021
  %v2598 = vpack.c.b16 %v2030, %v2022
  %v2599 = vpack.c.b16 %v2031, %v2023
  %v2600 = vpack.c.b16 %v2032, %v2024
  %v2601 = vpack.c.b16 %v2033, %v2025
  %v2602 = vpack.c.b16 %v2034, %v2026
  %v2603 = vpack.c.b16 %v2035, %v2027
  %v2604 = vpack.c.b16 %v2036, %v2028
  %v2605 = vpack.c.b16 %v2045, %v2037
  %v2606 = vpack.c.b16 %v2046, %v2038
  %v2607 = vpack.c.b16 %v2047, %v2039
  %v2608 = vpack.c.b16 %v2048, %v2040
  %v2609 = vpack.c.b16 %v2049, %v2041
  %v2610 = vpack.c.b16 %v2050, %v2042
  %v2611 = vpack.c.b16 %v2051, %v2043
  %v2612 = vpack.c.b16 %v2052, %v2044
  %v2613 = vpack.c.b16 %v2061, %v2053
  %v2614 = vpack.c.b16 %v2062, %v2054
  %v2615 = vpack.c.b16 %v2063, %v2055
  %v2616 = vpack.c.b16 %v2064, %v2056
  %v2617 = vpack.c.b16 %v2065, %v2057
  %v2618 = vpack.c.b16 %v2066, %v2058
  %v2619 = vpack.c.b16 %v2067, %v2059
  %v2620 = vpack.c.b16 %v2068, %v2060
  %v2621 = vpack.c.b16 %v2077, %v2069
  %v2622 = vpack.c.b16 %v2078, %v2070
  %v2623 = vpack.c.b16 %v2079, %v2071
  %v2624 = vpack.c.b16 %v2080, %v2072
  %v2625 = vpack.c.b16 %v2081, %v2073
  %v2626 = vpack.c.b16 %v2082, %v2074
  %v2627 = vpack.c.b16 %v2083, %v2075
  %v2628 = vpack.c.b16 %v2084, %v2076
  %v2629 = vpack.c.b16 %v2093, %v2085
  %v2630 = vpack.c.b16 %v2094, %v2086
  %v2631 = vpack.c.b16 %v2095, %v2087
  %v2632 = vpack.c.b16 %v2096, %v2088
  %v2633 = vpack.c.b16 %v2097, %v2089
  %v2634 = vpack.c.b16 %v2098, %v2090
  %v2635 = vpack.c.b16 %v2099, %v2091
  %v2636 = vpack.c.b16 %v2100, %v2092
  %v2637 = vpack.c.b16 %v2109, %v2101
  %v2638 = vpack.c.b16 %v2110, %v2102
  %v2639 = vpack.c.b16 %v2111, %v2103
  %v2640 = vpack.c.b16 %v2112, %v2104
  %v2641 = vpack.c.b16 %v2113, %v2105
  %v2642 = vpack.c.b16 %v2114, %v2106
  %v2643 = vpack.c.b16 %v2115, %v2107
  %v2644 = vpack.c.b16 %v2116, %v2108
  %v2645 = vpack.c.b16 %v2125, %v2117
  %v2646 = vpack.c.b16 %v2126, %v2118
  %v2647 = vpack.c.b16 %v2127, %v2119
  %v2648 = vpack.c.b16 %v2128, %v2120
  %v2649 = vpack.c.b16 %v2129, %v2121
  %v2650 = vpack.c.b16 %v2130, %v2122
  %v2651 = vpack.c.b16 %v2131, %v2123
  %v2652 = vpack.c.b16 %v2132, %v2124
  %v2653 = vpack.c.b16 %v2141, %v2133
  %v2654 = vpack.c.b16 %v2142, %v2134
  %v2655 = vpack.c.b16 %v2143, %v2135
  %v2656 = vpack.c.b16 %v2144, %v2136
  %v2657 = vpack.c.b16 %v2145, %v2137
  %v2658 = vpack.c.b16 %v2146, %v2138
  %v2659 = vpack.c.b16 %v2147, %v2139
  %v2660 = vpack.c.b16 %v2148, %v2140
  %3173 = vmatprep.subr.bf16.mxu0 %v2150
  %3174 = vmatpush1.bf16.msra.mxu0 %v2149
  %3175 = vmatprep.subr.bf16.mxu0 %v2158
  %3176 = vmatpush1.bf16.msra.mxu0 %v2157
  %3177 = vmatprep.subr.bf16.mxu0 %v2166
  %3178 = vmatpush1.bf16.msra.mxu0 %v2165
  %3179 = vmatprep.subr.bf16.mxu0 %v2174
  %3180 = vmatpush1.bf16.msra.mxu0 %v2173
  %3181 = vmatprep.subr.bf16.mxu0 %v2182
  %3182 = vmatpush1.bf16.msra.mxu0 %v2181
  %3183 = vmatprep.subr.bf16.mxu0 %v2190
  %3184 = vmatpush1.bf16.msra.mxu0 %v2189
  %3185 = vmatprep.subr.bf16.mxu0 %v2198
  %3186 = vmatpush1.bf16.msra.mxu0 %v2197
  %3187 = vmatprep.subr.bf16.mxu0 %v2206
  %3188 = vmatpush1.bf16.msra.mxu0 %v2205
  %3189 = vmatprep.subr.bf16.mxu0 %v2214
  %3190 = vmatpush1.bf16.msra.mxu0 %v2213
  %3191 = vmatprep.subr.bf16.mxu0 %v2222
  %3192 = vmatpush1.bf16.msra.mxu0 %v2221
  %3193 = vmatprep.subr.bf16.mxu0 %v2230
  %3194 = vmatpush1.bf16.msra.mxu0 %v2229
  %3195 = vmatprep.subr.bf16.mxu0 %v2238
  %3196 = vmatpush1.bf16.msra.mxu0 %v2237
  %3197 = vmatprep.subr.bf16.mxu0 %v2246
  %3198 = vmatpush1.bf16.msra.mxu0 %v2245
  %3199 = vmatprep.subr.bf16.mxu0 %v2254
  %3200 = vmatpush1.bf16.msra.mxu0 %v2253
  %3201 = vmatprep.subr.bf16.mxu0 %v2262
  %3202 = vmatpush1.bf16.msra.mxu0 %v2261
  %3203 = vmatprep.subr.bf16.mxu0 %v2270
  %3204 = vmatpush1.bf16.msra.mxu0 %v2269
  %3205 = vmatprep.mubr.bf16.mxu0 %v598
  %3206 = vmatmul.mubr.bf16.gmra.mrb[0].mxu0 %v597
  %v3207 = vpop.f32.mrb[0].mxu0
  %v3208 = vadd.f32 %v548, %v3207
  %v3209 = vpop.f32.mrb[0].mxu0
  %v3210 = vadd.f32 %v552, %v3209
  %v3211 = vpop.f32.mrb[0].mxu0
  %v3212 = vpop.f32.mrb[0].mxu0
  %3213 = vdwg.mxu0
  %3214 = vmatprep.subr.bf16.mxu0 %v2278
  %3215 = vmatpush1.bf16.msra.mxu0 %v2277
  %3216 = vmatprep.subr.bf16.mxu0 %v2286
  %3217 = vmatpush1.bf16.msra.mxu0 %v2285
  %3218 = vmatprep.subr.bf16.mxu0 %v2294
  %3219 = vmatpush1.bf16.msra.mxu0 %v2293
  %3220 = vmatprep.subr.bf16.mxu0 %v2302
  %3221 = vmatpush1.bf16.msra.mxu0 %v2301
  %3222 = vmatprep.subr.bf16.mxu0 %v2310
  %3223 = vmatpush1.bf16.msra.mxu0 %v2309
  %3224 = vmatprep.subr.bf16.mxu0 %v2318
  %3225 = vmatpush1.bf16.msra.mxu0 %v2317
  %3226 = vmatprep.subr.bf16.mxu0 %v2326
  %3227 = vmatpush1.bf16.msra.mxu0 %v2325
  %3228 = vmatprep.subr.bf16.mxu0 %v2334
  %3229 = vmatpush1.bf16.msra.mxu0 %v2333
  %3230 = vmatprep.subr.bf16.mxu0 %v2342
  %3231 = vmatpush1.bf16.msra.mxu0 %v2341
  %3232 = vmatprep.subr.bf16.mxu0 %v2350
  %3233 = vmatpush1.bf16.msra.mxu0 %v2349
  %3234 = vmatprep.subr.bf16.mxu0 %v2358
  %3235 = vmatpush1.bf16.msra.mxu0 %v2357
  %3236 = vmatprep.subr.bf16.mxu0 %v2366
  %3237 = vmatpush1.bf16.msra.mxu0 %v2365
  %3238 = vmatprep.subr.bf16.mxu0 %v2374
  %3239 = vmatpush1.bf16.msra.mxu0 %v2373
  %3240 = vmatprep.subr.bf16.mxu0 %v2382
  %3241 = vmatpush1.bf16.msra.mxu0 %v2381
  %3242 = vmatprep.subr.bf16.mxu0 %v2390
  %3243 = vmatpush1.bf16.msra.mxu0 %v2389
  %3244 = vmatprep.subr.bf16.mxu0 %v2398
  %3245 = vmatpush1.bf16.msra.mxu0 %v2397
  %3246 = vmatprep.mubr.bf16.mxu0 %v600
  %3247 = vmatmul.mubr.bf16.gmra.mrb[0].mxu0 %v599
  %v3248 = vpop.f32.mrb[0].mxu0
  %v3249 = vadd.f32 %v3208, %v3248
  %v3250 = vpop.f32.mrb[0].mxu0
  %v3251 = vadd.f32 %v3210, %v3250
  %v3252 = vpop.f32.mrb[0].mxu0
  %v3253 = vpop.f32.mrb[0].mxu0
  %3254 = vdwg.mxu0
  %3255 = vmatprep.subr.bf16.mxu0 %v2406
  %3256 = vmatpush1.bf16.msra.mxu0 %v2405
  %3257 = vmatprep.subr.bf16.mxu0 %v2414
  %3258 = vmatpush1.bf16.msra.mxu0 %v2413
  %3259 = vmatprep.subr.bf16.mxu0 %v2422
  %3260 = vmatpush1.bf16.msra.mxu0 %v2421
  %3261 = vmatprep.subr.bf16.mxu0 %v2430
  %3262 = vmatpush1.bf16.msra.mxu0 %v2429
  %3263 = vmatprep.subr.bf16.mxu0 %v2438
  %3264 = vmatpush1.bf16.msra.mxu0 %v2437
  %3265 = vmatprep.subr.bf16.mxu0 %v2446
  %3266 = vmatpush1.bf16.msra.mxu0 %v2445
  %3267 = vmatprep.subr.bf16.mxu0 %v2454
  %3268 = vmatpush1.bf16.msra.mxu0 %v2453
  %3269 = vmatprep.subr.bf16.mxu0 %v2462
  %3270 = vmatpush1.bf16.msra.mxu0 %v2461
  %3271 = vmatprep.subr.bf16.mxu0 %v2470
  %3272 = vmatpush1.bf16.msra.mxu0 %v2469
  %3273 = vmatprep.subr.bf16.mxu0 %v2478
  %3274 = vmatpush1.bf16.msra.mxu0 %v2477
  %3275 = vmatprep.subr.bf16.mxu0 %v2486
  %3276 = vmatpush1.bf16.msra.mxu0 %v2485
  %3277 = vmatprep.subr.bf16.mxu0 %v2494
  %3278 = vmatpush1.bf16.msra.mxu0 %v2493
  %3279 = vmatprep.subr.bf16.mxu0 %v2502
  %3280 = vmatpush1.bf16.msra.mxu0 %v2501
  %3281 = vmatprep.subr.bf16.mxu0 %v2510
  %3282 = vmatpush1.bf16.msra.mxu0 %v2509
  %3283 = vmatprep.subr.bf16.mxu0 %v2518
  %3284 = vmatpush1.bf16.msra.mxu0 %v2517
  %3285 = vmatprep.subr.bf16.mxu0 %v2526
  %3286 = vmatpush1.bf16.msra.mxu0 %v2525
  %3287 = vmatprep.mubr.bf16.mxu0 %v602
  %3288 = vmatmul.mubr.bf16.gmra.mrb[0].mxu0 %v601
  %v3289 = vpop.f32.mrb[0].mxu0
  %v3290 = vadd.f32 %v3249, %v3289
  %v3291 = vpop.f32.mrb[0].mxu0
  %v3292 = vadd.f32 %v3251, %v3291
  %v3293 = vpop.f32.mrb[0].mxu0
  %v3294 = vpop.f32.mrb[0].mxu0
  %3295 = vdwg.mxu0
  %3296 = vmatprep.subr.bf16.mxu0 %v2534
  %3297 = vmatpush1.bf16.msra.mxu0 %v2533
  %3298 = vmatprep.subr.bf16.mxu0 %v2542
  %3299 = vmatpush1.bf16.msra.mxu0 %v2541
  %3300 = vmatprep.subr.bf16.mxu0 %v2550
  %3301 = vmatpush1.bf16.msra.mxu0 %v2549
  %3302 = vmatprep.subr.bf16.mxu0 %v2558
  %3303 = vmatpush1.bf16.msra.mxu0 %v2557
  %3304 = vmatprep.subr.bf16.mxu0 %v2566
  %3305 = vmatpush1.bf16.msra.mxu0 %v2565
  %3306 = vmatprep.subr.bf16.mxu0 %v2574
  %3307 = vmatpush1.bf16.msra.mxu0 %v2573
  %3308 = vmatprep.subr.bf16.mxu0 %v2582
  %3309 = vmatpush1.bf16.msra.mxu0 %v2581
  %3310 = vmatprep.subr.bf16.mxu0 %v2590
  %3311 = vmatpush1.bf16.msra.mxu0 %v2589
  %3312 = vmatprep.subr.bf16.mxu0 %v2598
  %3313 = vmatpush1.bf16.msra.mxu0 %v2597
  %3314 = vmatprep.subr.bf16.mxu0 %v2606
  %3315 = vmatpush1.bf16.msra.mxu0 %v2605
  %3316 = vmatprep.subr.bf16.mxu0 %v2614
  %3317 = vmatpush1.bf16.msra.mxu0 %v2613
  %3318 = vmatprep.subr.bf16.mxu0 %v2622
  %3319 = vmatpush1.bf16.msra.mxu0 %v2621
  %3320 = vmatprep.subr.bf16.mxu0 %v2630
  %3321 = vmatpush1.bf16.msra.mxu0 %v2629
  %3322 = vmatprep.subr.bf16.mxu0 %v2638
  %3323 = vmatpush1.bf16.msra.mxu0 %v2637
  %3324 = vmatprep.subr.bf16.mxu0 %v2646
  %3325 = vmatpush1.bf16.msra.mxu0 %v2645
  %3326 = vmatprep.subr.bf16.mxu0 %v2654
  %3327 = vmatpush1.bf16.msra.mxu0 %v2653
  %3328 = vmatprep.mubr.bf16.mxu0 %v604
  %3329 = vmatmul.mubr.bf16.gmra.mrb[0].mxu0 %v603
  %v3330 = vpop.f32.mrb[0].mxu0
  %v3331 = vadd.f32 %v3290, %v3330
  %v3332 = vpop.f32.mrb[0].mxu0
  %v3333 = vadd.f32 %v3292, %v3332
  %v3334 = vpop.f32.mrb[0].mxu0
  %v3335 = vpop.f32.mrb[0].mxu0
  %3336 = vdwg.mxu0
  %3337 = vmatprep.subr.bf16.mxu0 %v2152
  %3338 = vmatpush1.bf16.msra.mxu0 %v2151
  %3339 = vmatprep.subr.bf16.mxu0 %v2160
  %3340 = vmatpush1.bf16.msra.mxu0 %v2159
  %3341 = vmatprep.subr.bf16.mxu0 %v2168
  %3342 = vmatpush1.bf16.msra.mxu0 %v2167
  %3343 = vmatprep.subr.bf16.mxu0 %v2176
  %3344 = vmatpush1.bf16.msra.mxu0 %v2175
  %3345 = vmatprep.subr.bf16.mxu0 %v2184
  %3346 = vmatpush1.bf16.msra.mxu0 %v2183
  %3347 = vmatprep.subr.bf16.mxu0 %v2192
  %3348 = vmatpush1.bf16.msra.mxu0 %v2191
  %3349 = vmatprep.subr.bf16.mxu0 %v2200
  %3350 = vmatpush1.bf16.msra.mxu0 %v2199
  %3351 = vmatprep.subr.bf16.mxu0 %v2208
  %3352 = vmatpush1.bf16.msra.mxu0 %v2207
  %3353 = vmatprep.subr.bf16.mxu0 %v2216
  %3354 = vmatpush1.bf16.msra.mxu0 %v2215
  %3355 = vmatprep.subr.bf16.mxu0 %v2224
  %3356 = vmatpush1.bf16.msra.mxu0 %v2223
  %3357 = vmatprep.subr.bf16.mxu0 %v2232
  %3358 = vmatpush1.bf16.msra.mxu0 %v2231
  %3359 = vmatprep.subr.bf16.mxu0 %v2240
  %3360 = vmatpush1.bf16.msra.mxu0 %v2239
  %3361 = vmatprep.subr.bf16.mxu0 %v2248
  %3362 = vmatpush1.bf16.msra.mxu0 %v2247
  %3363 = vmatprep.subr.bf16.mxu0 %v2256
  %3364 = vmatpush1.bf16.msra.mxu0 %v2255
  %3365 = vmatprep.subr.bf16.mxu0 %v2264
  %3366 = vmatpush1.bf16.msra.mxu0 %v2263
  %3367 = vmatprep.subr.bf16.mxu0 %v2272
  %3368 = vmatpush1.bf16.msra.mxu0 %v2271
  %3369 = vmatprep.mubr.bf16.mxu0 %v598
  %3370 = vmatmul.mubr.bf16.gmra.mrb[0].mxu0 %v597
  %v3371 = vpop.f32.mrb[0].mxu0
  %v3372 = vadd.f32 %v556, %v3371
  %v3373 = vpop.f32.mrb[0].mxu0
  %v3374 = vadd.f32 %v560, %v3373
  %v3375 = vpop.f32.mrb[0].mxu0
  %v3376 = vpop.f32.mrb[0].mxu0
  %3377 = vdwg.mxu0
  %3378 = vmatprep.subr.bf16.mxu0 %v2280
  %3379 = vmatpush1.bf16.msra.mxu0 %v2279
  %3380 = vmatprep.subr.bf16.mxu0 %v2288
  %3381 = vmatpush1.bf16.msra.mxu0 %v2287
  %3382 = vmatprep.subr.bf16.mxu0 %v2296
  %3383 = vmatpush1.bf16.msra.mxu0 %v2295
  %3384 = vmatprep.subr.bf16.mxu0 %v2304
  %3385 = vmatpush1.bf16.msra.mxu0 %v2303
  %3386 = vmatprep.subr.bf16.mxu0 %v2312
  %3387 = vmatpush1.bf16.msra.mxu0 %v2311
  %3388 = vmatprep.subr.bf16.mxu0 %v2320
  %3389 = vmatpush1.bf16.msra.mxu0 %v2319
  %3390 = vmatprep.subr.bf16.mxu0 %v2328
  %3391 = vmatpush1.bf16.msra.mxu0 %v2327
  %3392 = vmatprep.subr.bf16.mxu0 %v2336
  %3393 = vmatpush1.bf16.msra.mxu0 %v2335
  %3394 = vmatprep.subr.bf16.mxu0 %v2344
  %3395 = vmatpush1.bf16.msra.mxu0 %v2343
  %3396 = vmatprep.subr.bf16.mxu0 %v2352
  %3397 = vmatpush1.bf16.msra.mxu0 %v2351
  %3398 = vmatprep.subr.bf16.mxu0 %v2360
  %3399 = vmatpush1.bf16.msra.mxu0 %v2359
  %3400 = vmatprep.subr.bf16.mxu0 %v2368
  %3401 = vmatpush1.bf16.msra.mxu0 %v2367
  %3402 = vmatprep.subr.bf16.mxu0 %v2376
  %3403 = vmatpush1.bf16.msra.mxu0 %v2375
  %3404 = vmatprep.subr.bf16.mxu0 %v2384
  %3405 = vmatpush1.bf16.msra.mxu0 %v2383
  %3406 = vmatprep.subr.bf16.mxu0 %v2392
  %3407 = vmatpush1.bf16.msra.mxu0 %v2391
  %3408 = vmatprep.subr.bf16.mxu0 %v2400
  %3409 = vmatpush1.bf16.msra.mxu0 %v2399
  %3410 = vmatprep.mubr.bf16.mxu0 %v600
  %3411 = vmatmul.mubr.bf16.gmra.mrb[0].mxu0 %v599
  %v3412 = vpop.f32.mrb[0].mxu0
  %v3413 = vadd.f32 %v3372, %v3412
  %v3414 = vpop.f32.mrb[0].mxu0
  %v3415 = vadd.f32 %v3374, %v3414
  %v3416 = vpop.f32.mrb[0].mxu0
  %v3417 = vpop.f32.mrb[0].mxu0
  %3418 = vdwg.mxu0
  %3419 = vmatprep.subr.bf16.mxu0 %v2408
  %3420 = vmatpush1.bf16.msra.mxu0 %v2407
  %3421 = vmatprep.subr.bf16.mxu0 %v2416
  %3422 = vmatpush1.bf16.msra.mxu0 %v2415
  %3423 = vmatprep.subr.bf16.mxu0 %v2424
  %3424 = vmatpush1.bf16.msra.mxu0 %v2423
  %3425 = vmatprep.subr.bf16.mxu0 %v2432
  %3426 = vmatpush1.bf16.msra.mxu0 %v2431
  %3427 = vmatprep.subr.bf16.mxu0 %v2440
  %3428 = vmatpush1.bf16.msra.mxu0 %v2439
  %3429 = vmatprep.subr.bf16.mxu0 %v2448
  %3430 = vmatpush1.bf16.msra.mxu0 %v2447
  %3431 = vmatprep.subr.bf16.mxu0 %v2456
  %3432 = vmatpush1.bf16.msra.mxu0 %v2455
  %3433 = vmatprep.subr.bf16.mxu0 %v2464
  %3434 = vmatpush1.bf16.msra.mxu0 %v2463
  %3435 = vmatprep.subr.bf16.mxu0 %v2472
  %3436 = vmatpush1.bf16.msra.mxu0 %v2471
  %3437 = vmatprep.subr.bf16.mxu0 %v2480
  %3438 = vmatpush1.bf16.msra.mxu0 %v2479
  %3439 = vmatprep.subr.bf16.mxu0 %v2488
  %3440 = vmatpush1.bf16.msra.mxu0 %v2487
  %3441 = vmatprep.subr.bf16.mxu0 %v2496
  %3442 = vmatpush1.bf16.msra.mxu0 %v2495
  %3443 = vmatprep.subr.bf16.mxu0 %v2504
  %3444 = vmatpush1.bf16.msra.mxu0 %v2503
  %3445 = vmatprep.subr.bf16.mxu0 %v2512
  %3446 = vmatpush1.bf16.msra.mxu0 %v2511
  %3447 = vmatprep.subr.bf16.mxu0 %v2520
  %3448 = vmatpush1.bf16.msra.mxu0 %v2519
  %3449 = vmatprep.subr.bf16.mxu0 %v2528
  %3450 = vmatpush1.bf16.msra.mxu0 %v2527
  %3451 = vmatprep.mubr.bf16.mxu0 %v602
  %3452 = vmatmul.mubr.bf16.gmra.mrb[0].mxu0 %v601
  %v3453 = vpop.f32.mrb[0].mxu0
  %v3454 = vadd.f32 %v3413, %v3453
  %v3455 = vpop.f32.mrb[0].mxu0
  %v3456 = vadd.f32 %v3415, %v3455
  %v3457 = vpop.f32.mrb[0].mxu0
  %v3458 = vpop.f32.mrb[0].mxu0
  %3459 = vdwg.mxu0
  %3460 = vmatprep.subr.bf16.mxu0 %v2536
  %3461 = vmatpush1.bf16.msra.mxu0 %v2535
  %3462 = vmatprep.subr.bf16.mxu0 %v2544
  %3463 = vmatpush1.bf16.msra.mxu0 %v2543
  %3464 = vmatprep.subr.bf16.mxu0 %v2552
  %3465 = vmatpush1.bf16.msra.mxu0 %v2551
  %3466 = vmatprep.subr.bf16.mxu0 %v2560
  %3467 = vmatpush1.bf16.msra.mxu0 %v2559
  %3468 = vmatprep.subr.bf16.mxu0 %v2568
  %3469 = vmatpush1.bf16.msra.mxu0 %v2567
  %3470 = vmatprep.subr.bf16.mxu0 %v2576
  %3471 = vmatpush1.bf16.msra.mxu0 %v2575
  %3472 = vmatprep.subr.bf16.mxu0 %v2584
  %3473 = vmatpush1.bf16.msra.mxu0 %v2583
  %3474 = vmatprep.subr.bf16.mxu0 %v2592
  %3475 = vmatpush1.bf16.msra.mxu0 %v2591
  %3476 = vmatprep.subr.bf16.mxu0 %v2600
  %3477 = vmatpush1.bf16.msra.mxu0 %v2599
  %3478 = vmatprep.subr.bf16.mxu0 %v2608
  %3479 = vmatpush1.bf16.msra.mxu0 %v2607
  %3480 = vmatprep.subr.bf16.mxu0 %v2616
  %3481 = vmatpush1.bf16.msra.mxu0 %v2615
  %3482 = vmatprep.subr.bf16.mxu0 %v2624
  %3483 = vmatpush1.bf16.msra.mxu0 %v2623
  %3484 = vmatprep.subr.bf16.mxu0 %v2632
  %3485 = vmatpush1.bf16.msra.mxu0 %v2631
  %3486 = vmatprep.subr.bf16.mxu0 %v2640
  %3487 = vmatpush1.bf16.msra.mxu0 %v2639
  %3488 = vmatprep.subr.bf16.mxu0 %v2648
  %3489 = vmatpush1.bf16.msra.mxu0 %v2647
  %3490 = vmatprep.subr.bf16.mxu0 %v2656
  %3491 = vmatpush1.bf16.msra.mxu0 %v2655
  %3492 = vmatprep.mubr.bf16.mxu0 %v604
  %3493 = vmatmul.mubr.bf16.gmra.mrb[0].mxu0 %v603
  %v3494 = vpop.f32.mrb[0].mxu0
  %v3495 = vadd.f32 %v3454, %v3494
  %v3496 = vpop.f32.mrb[0].mxu0
  %v3497 = vadd.f32 %v3456, %v3496
  %v3498 = vpop.f32.mrb[0].mxu0
  %v3499 = vpop.f32.mrb[0].mxu0
  %3500 = vdwg.mxu0
  %3501 = vmatprep.subr.bf16.mxu0 %v2154
  %3502 = vmatpush1.bf16.msra.mxu0 %v2153
  %3503 = vmatprep.subr.bf16.mxu0 %v2162
  %3504 = vmatpush1.bf16.msra.mxu0 %v2161
  %3505 = vmatprep.subr.bf16.mxu0 %v2170
  %3506 = vmatpush1.bf16.msra.mxu0 %v2169
  %3507 = vmatprep.subr.bf16.mxu0 %v2178
  %3508 = vmatpush1.bf16.msra.mxu0 %v2177
  %3509 = vmatprep.subr.bf16.mxu0 %v2186
  %3510 = vmatpush1.bf16.msra.mxu0 %v2185
  %3511 = vmatprep.subr.bf16.mxu0 %v2194
  %3512 = vmatpush1.bf16.msra.mxu0 %v2193
  %3513 = vmatprep.subr.bf16.mxu0 %v2202
  %3514 = vmatpush1.bf16.msra.mxu0 %v2201
  %3515 = vmatprep.subr.bf16.mxu0 %v2210
  %3516 = vmatpush1.bf16.msra.mxu0 %v2209
  %3517 = vmatprep.subr.bf16.mxu0 %v2218
  %3518 = vmatpush1.bf16.msra.mxu0 %v2217
  %3519 = vmatprep.subr.bf16.mxu0 %v2226
  %3520 = vmatpush1.bf16.msra.mxu0 %v2225
  %3521 = vmatprep.subr.bf16.mxu0 %v2234
  %3522 = vmatpush1.bf16.msra.mxu0 %v2233
  %3523 = vmatprep.subr.bf16.mxu0 %v2242
  %3524 = vmatpush1.bf16.msra.mxu0 %v2241
  %3525 = vmatprep.subr.bf16.mxu0 %v2250
  %3526 = vmatpush1.bf16.msra.mxu0 %v2249
  %3527 = vmatprep.subr.bf16.mxu0 %v2258
  %3528 = vmatpush1.bf16.msra.mxu0 %v2257
  %3529 = vmatprep.subr.bf16.mxu0 %v2266
  %3530 = vmatpush1.bf16.msra.mxu0 %v2265
  %3531 = vmatprep.subr.bf16.mxu0 %v2274
  %3532 = vmatpush1.bf16.msra.mxu0 %v2273
  %3533 = vmatprep.mubr.bf16.mxu0 %v598
  %3534 = vmatmul.mubr.bf16.gmra.mrb[0].mxu0 %v597
  %v3535 = vpop.f32.mrb[0].mxu0
  %v3536 = vadd.f32 %v564, %v3535
  %v3537 = vpop.f32.mrb[0].mxu0
  %v3538 = vadd.f32 %v568, %v3537
  %v3539 = vpop.f32.mrb[0].mxu0
  %v3540 = vpop.f32.mrb[0].mxu0
  %3541 = vdwg.mxu0
  %3542 = vmatprep.subr.bf16.mxu0 %v2282
  %3543 = vmatpush1.bf16.msra.mxu0 %v2281
  %3544 = vmatprep.subr.bf16.mxu0 %v2290
  %3545 = vmatpush1.bf16.msra.mxu0 %v2289
  %3546 = vmatprep.subr.bf16.mxu0 %v2298
  %3547 = vmatpush1.bf16.msra.mxu0 %v2297
  %3548 = vmatprep.subr.bf16.mxu0 %v2306
  %3549 = vmatpush1.bf16.msra.mxu0 %v2305
  %3550 = vmatprep.subr.bf16.mxu0 %v2314
  %3551 = vmatpush1.bf16.msra.mxu0 %v2313
  %3552 = vmatprep.subr.bf16.mxu0 %v2322
  %3553 = vmatpush1.bf16.msra.mxu0 %v2321
  %3554 = vmatprep.subr.bf16.mxu0 %v2330
  %3555 = vmatpush1.bf16.msra.mxu0 %v2329
  %3556 = vmatprep.subr.bf16.mxu0 %v2338
  %3557 = vmatpush1.bf16.msra.mxu0 %v2337
  %3558 = vmatprep.subr.bf16.mxu0 %v2346
  %3559 = vmatpush1.bf16.msra.mxu0 %v2345
  %3560 = vmatprep.subr.bf16.mxu0 %v2354
  %3561 = vmatpush1.bf16.msra.mxu0 %v2353
  %3562 = vmatprep.subr.bf16.mxu0 %v2362
  %3563 = vmatpush1.bf16.msra.mxu0 %v2361
  %3564 = vmatprep.subr.bf16.mxu0 %v2370
  %3565 = vmatpush1.bf16.msra.mxu0 %v2369
  %3566 = vmatprep.subr.bf16.mxu0 %v2378
  %3567 = vmatpush1.bf16.msra.mxu0 %v2377
  %3568 = vmatprep.subr.bf16.mxu0 %v2386
  %3569 = vmatpush1.bf16.msra.mxu0 %v2385
  %3570 = vmatprep.subr.bf16.mxu0 %v2394
  %3571 = vmatpush1.bf16.msra.mxu0 %v2393
  %3572 = vmatprep.subr.bf16.mxu0 %v2402
  %3573 = vmatpush1.bf16.msra.mxu0 %v2401
  %3574 = vmatprep.mubr.bf16.mxu0 %v600
  %3575 = vmatmul.mubr.bf16.gmra.mrb[0].mxu0 %v599
  %v3576 = vpop.f32.mrb[0].mxu0
  %v3577 = vadd.f32 %v3536, %v3576
  %v3578 = vpop.f32.mrb[0].mxu0
  %v3579 = vadd.f32 %v3538, %v3578
  %v3580 = vpop.f32.mrb[0].mxu0
  %v3581 = vpop.f32.mrb[0].mxu0
  %3582 = vdwg.mxu0
  %3583 = vmatprep.subr.bf16.mxu0 %v2410
  %3584 = vmatpush1.bf16.msra.mxu0 %v2409
  %3585 = vmatprep.subr.bf16.mxu0 %v2418
  %3586 = vmatpush1.bf16.msra.mxu0 %v2417
  %3587 = vmatprep.subr.bf16.mxu0 %v2426
  %3588 = vmatpush1.bf16.msra.mxu0 %v2425
  %3589 = vmatprep.subr.bf16.mxu0 %v2434
  %3590 = vmatpush1.bf16.msra.mxu0 %v2433
  %3591 = vmatprep.subr.bf16.mxu0 %v2442
  %3592 = vmatpush1.bf16.msra.mxu0 %v2441
  %3593 = vmatprep.subr.bf16.mxu0 %v2450
  %3594 = vmatpush1.bf16.msra.mxu0 %v2449
  %3595 = vmatprep.subr.bf16.mxu0 %v2458
  %3596 = vmatpush1.bf16.msra.mxu0 %v2457
  %3597 = vmatprep.subr.bf16.mxu0 %v2466
  %3598 = vmatpush1.bf16.msra.mxu0 %v2465
  %3599 = vmatprep.subr.bf16.mxu0 %v2474
  %3600 = vmatpush1.bf16.msra.mxu0 %v2473
  %3601 = vmatprep.subr.bf16.mxu0 %v2482
  %3602 = vmatpush1.bf16.msra.mxu0 %v2481
  %3603 = vmatprep.subr.bf16.mxu0 %v2490
  %3604 = vmatpush1.bf16.msra.mxu0 %v2489
  %3605 = vmatprep.subr.bf16.mxu0 %v2498
  %3606 = vmatpush1.bf16.msra.mxu0 %v2497
  %3607 = vmatprep.subr.bf16.mxu0 %v2506
  %3608 = vmatpush1.bf16.msra.mxu0 %v2505
  %3609 = vmatprep.subr.bf16.mxu0 %v2514
  %3610 = vmatpush1.bf16.msra.mxu0 %v2513
  %3611 = vmatprep.subr.bf16.mxu0 %v2522
  %3612 = vmatpush1.bf16.msra.mxu0 %v2521
  %3613 = vmatprep.subr.bf16.mxu0 %v2530
  %3614 = vmatpush1.bf16.msra.mxu0 %v2529
  %3615 = vmatprep.mubr.bf16.mxu0 %v602
  %3616 = vmatmul.mubr.bf16.gmra.mrb[0].mxu0 %v601
  %v3617 = vpop.f32.mrb[0].mxu0
  %v3618 = vadd.f32 %v3577, %v3617
  %v3619 = vpop.f32.mrb[0].mxu0
  %v3620 = vadd.f32 %v3579, %v3619
  %v3621 = vpop.f32.mrb[0].mxu0
  %v3622 = vpop.f32.mrb[0].mxu0
  %3623 = vdwg.mxu0
  %3624 = vmatprep.subr.bf16.mxu0 %v2538
  %3625 = vmatpush1.bf16.msra.mxu0 %v2537
  %3626 = vmatprep.subr.bf16.mxu0 %v2546
  %3627 = vmatpush1.bf16.msra.mxu0 %v2545
  %3628 = vmatprep.subr.bf16.mxu0 %v2554
  %3629 = vmatpush1.bf16.msra.mxu0 %v2553
  %3630 = vmatprep.subr.bf16.mxu0 %v2562
  %3631 = vmatpush1.bf16.msra.mxu0 %v2561
  %3632 = vmatprep.subr.bf16.mxu0 %v2570
  %3633 = vmatpush1.bf16.msra.mxu0 %v2569
  %3634 = vmatprep.subr.bf16.mxu0 %v2578
  %3635 = vmatpush1.bf16.msra.mxu0 %v2577
  %3636 = vmatprep.subr.bf16.mxu0 %v2586
  %3637 = vmatpush1.bf16.msra.mxu0 %v2585
  %3638 = vmatprep.subr.bf16.mxu0 %v2594
  %3639 = vmatpush1.bf16.msra.mxu0 %v2593
  %3640 = vmatprep.subr.bf16.mxu0 %v2602
  %3641 = vmatpush1.bf16.msra.mxu0 %v2601
  %3642 = vmatprep.subr.bf16.mxu0 %v2610
  %3643 = vmatpush1.bf16.msra.mxu0 %v2609
  %3644 = vmatprep.subr.bf16.mxu0 %v2618
  %3645 = vmatpush1.bf16.msra.mxu0 %v2617
  %3646 = vmatprep.subr.bf16.mxu0 %v2626
  %3647 = vmatpush1.bf16.msra.mxu0 %v2625
  %3648 = vmatprep.subr.bf16.mxu0 %v2634
  %3649 = vmatpush1.bf16.msra.mxu0 %v2633
  %3650 = vmatprep.subr.bf16.mxu0 %v2642
  %3651 = vmatpush1.bf16.msra.mxu0 %v2641
  %3652 = vmatprep.subr.bf16.mxu0 %v2650
  %3653 = vmatpush1.bf16.msra.mxu0 %v2649
  %3654 = vmatprep.subr.bf16.mxu0 %v2658
  %3655 = vmatpush1.bf16.msra.mxu0 %v2657
  %3656 = vmatprep.mubr.bf16.mxu0 %v604
  %3657 = vmatmul.mubr.bf16.gmra.mrb[0].mxu0 %v603
  %v3658 = vpop.f32.mrb[0].mxu0
  %v3659 = vadd.f32 %v3618, %v3658
  %v3660 = vpop.f32.mrb[0].mxu0
  %v3661 = vadd.f32 %v3620, %v3660
  %v3662 = vpop.f32.mrb[0].mxu0
  %v3663 = vpop.f32.mrb[0].mxu0
  %3664 = vdwg.mxu0
  %3665 = vmatprep.subr.bf16.mxu0 %v2156
  %3666 = vmatpush1.bf16.msra.mxu0 %v2155
  %3667 = vmatprep.subr.bf16.mxu0 %v2164
  %3668 = vmatpush1.bf16.msra.mxu0 %v2163
  %3669 = vmatprep.subr.bf16.mxu0 %v2172
  %3670 = vmatpush1.bf16.msra.mxu0 %v2171
  %3671 = vmatprep.subr.bf16.mxu0 %v2180
  %3672 = vmatpush1.bf16.msra.mxu0 %v2179
  %3673 = vmatprep.subr.bf16.mxu0 %v2188
  %3674 = vmatpush1.bf16.msra.mxu0 %v2187
  %3675 = vmatprep.subr.bf16.mxu0 %v2196
  %3676 = vmatpush1.bf16.msra.mxu0 %v2195
  %3677 = vmatprep.subr.bf16.mxu0 %v2204
  %3678 = vmatpush1.bf16.msra.mxu0 %v2203
  %3679 = vmatprep.subr.bf16.mxu0 %v2212
  %3680 = vmatpush1.bf16.msra.mxu0 %v2211
  %3681 = vmatprep.subr.bf16.mxu0 %v2220
  %3682 = vmatpush1.bf16.msra.mxu0 %v2219
  %3683 = vmatprep.subr.bf16.mxu0 %v2228
  %3684 = vmatpush1.bf16.msra.mxu0 %v2227
  %3685 = vmatprep.subr.bf16.mxu0 %v2236
  %3686 = vmatpush1.bf16.msra.mxu0 %v2235
  %3687 = vmatprep.subr.bf16.mxu0 %v2244
  %3688 = vmatpush1.bf16.msra.mxu0 %v2243
  %3689 = vmatprep.subr.bf16.mxu0 %v2252
  %3690 = vmatpush1.bf16.msra.mxu0 %v2251
  %3691 = vmatprep.subr.bf16.mxu0 %v2260
  %3692 = vmatpush1.bf16.msra.mxu0 %v2259
  %3693 = vmatprep.subr.bf16.mxu0 %v2268
  %3694 = vmatpush1.bf16.msra.mxu0 %v2267
  %3695 = vmatprep.subr.bf16.mxu0 %v2276
  %3696 = vmatpush1.bf16.msra.mxu0 %v2275
  %3697 = vmatprep.mubr.bf16.mxu0 %v598
  %3698 = vmatmul.mubr.bf16.gmra.mrb[0].mxu0 %v597
  %v3699 = vpop.f32.mrb[0].mxu0
  %v3700 = vadd.f32 %v572, %v3699
  %v3701 = vpop.f32.mrb[0].mxu0
  %v3702 = vadd.f32 %v576, %v3701
  %v3703 = vpop.f32.mrb[0].mxu0
  %v3704 = vpop.f32.mrb[0].mxu0
  %3705 = vdwg.mxu0
  %3706 = vmatprep.subr.bf16.mxu0 %v2284
  %3707 = vmatpush1.bf16.msra.mxu0 %v2283
  %3708 = vmatprep.subr.bf16.mxu0 %v2292
  %3709 = vmatpush1.bf16.msra.mxu0 %v2291
  %3710 = vmatprep.subr.bf16.mxu0 %v2300
  %3711 = vmatpush1.bf16.msra.mxu0 %v2299
  %3712 = vmatprep.subr.bf16.mxu0 %v2308
  %3713 = vmatpush1.bf16.msra.mxu0 %v2307
  %3714 = vmatprep.subr.bf16.mxu0 %v2316
  %3715 = vmatpush1.bf16.msra.mxu0 %v2315
  %3716 = vmatprep.subr.bf16.mxu0 %v2324
  %3717 = vmatpush1.bf16.msra.mxu0 %v2323
  %3718 = vmatprep.subr.bf16.mxu0 %v2332
  %3719 = vmatpush1.bf16.msra.mxu0 %v2331
  %3720 = vmatprep.subr.bf16.mxu0 %v2340
  %3721 = vmatpush1.bf16.msra.mxu0 %v2339
  %3722 = vmatprep.subr.bf16.mxu0 %v2348
  %3723 = vmatpush1.bf16.msra.mxu0 %v2347
  %3724 = vmatprep.subr.bf16.mxu0 %v2356
  %3725 = vmatpush1.bf16.msra.mxu0 %v2355
  %3726 = vmatprep.subr.bf16.mxu0 %v2364
  %3727 = vmatpush1.bf16.msra.mxu0 %v2363
  %3728 = vmatprep.subr.bf16.mxu0 %v2372
  %3729 = vmatpush1.bf16.msra.mxu0 %v2371
  %3730 = vmatprep.subr.bf16.mxu0 %v2380
  %3731 = vmatpush1.bf16.msra.mxu0 %v2379
  %3732 = vmatprep.subr.bf16.mxu0 %v2388
  %3733 = vmatpush1.bf16.msra.mxu0 %v2387
  %3734 = vmatprep.subr.bf16.mxu0 %v2396
  %3735 = vmatpush1.bf16.msra.mxu0 %v2395
  %3736 = vmatprep.subr.bf16.mxu0 %v2404
  %3737 = vmatpush1.bf16.msra.mxu0 %v2403
  %3738 = vmatprep.mubr.bf16.mxu0 %v600
  %3739 = vmatmul.mubr.bf16.gmra.mrb[0].mxu0 %v599
  %v3740 = vpop.f32.mrb[0].mxu0
  %v3741 = vadd.f32 %v3700, %v3740
  %v3742 = vpop.f32.mrb[0].mxu0
  %v3743 = vadd.f32 %v3702, %v3742
  %v3744 = vpop.f32.mrb[0].mxu0
  %v3745 = vpop.f32.mrb[0].mxu0
  %3746 = vdwg.mxu0
  %3747 = vmatprep.subr.bf16.mxu0 %v2412
  %3748 = vmatpush1.bf16.msra.mxu0 %v2411
  %3749 = vmatprep.subr.bf16.mxu0 %v2420
  %3750 = vmatpush1.bf16.msra.mxu0 %v2419
  %3751 = vmatprep.subr.bf16.mxu0 %v2428
  %3752 = vmatpush1.bf16.msra.mxu0 %v2427
  %3753 = vmatprep.subr.bf16.mxu0 %v2436
  %3754 = vmatpush1.bf16.msra.mxu0 %v2435
  %3755 = vmatprep.subr.bf16.mxu0 %v2444
  %3756 = vmatpush1.bf16.msra.mxu0 %v2443
  %3757 = vmatprep.subr.bf16.mxu0 %v2452
  %3758 = vmatpush1.bf16.msra.mxu0 %v2451
  %3759 = vmatprep.subr.bf16.mxu0 %v2460
  %3760 = vmatpush1.bf16.msra.mxu0 %v2459
  %3761 = vmatprep.subr.bf16.mxu0 %v2468
  %3762 = vmatpush1.bf16.msra.mxu0 %v2467
  %3763 = vmatprep.subr.bf16.mxu0 %v2476
  %3764 = vmatpush1.bf16.msra.mxu0 %v2475
  %3765 = vmatprep.subr.bf16.mxu0 %v2484
  %3766 = vmatpush1.bf16.msra.mxu0 %v2483
  %3767 = vmatprep.subr.bf16.mxu0 %v2492
  %3768 = vmatpush1.bf16.msra.mxu0 %v2491
  %3769 = vmatprep.subr.bf16.mxu0 %v2500
  %3770 = vmatpush1.bf16.msra.mxu0 %v2499
  %3771 = vmatprep.subr.bf16.mxu0 %v2508
  %3772 = vmatpush1.bf16.msra.mxu0 %v2507
  %3773 = vmatprep.subr.bf16.mxu0 %v2516
  %3774 = vmatpush1.bf16.msra.mxu0 %v2515
  %3775 = vmatprep.subr.bf16.mxu0 %v2524
  %3776 = vmatpush1.bf16.msra.mxu0 %v2523
  %3777 = vmatprep.subr.bf16.mxu0 %v2532
  %3778 = vmatpush1.bf16.msra.mxu0 %v2531
  %3779 = vmatprep.mubr.bf16.mxu0 %v602
  %3780 = vmatmul.mubr.bf16.gmra.mrb[0].mxu0 %v601
  %v3781 = vpop.f32.mrb[0].mxu0
  %v3782 = vadd.f32 %v3741, %v3781
  %v3783 = vpop.f32.mrb[0].mxu0
  %v3784 = vadd.f32 %v3743, %v3783
  %v3785 = vpop.f32.mrb[0].mxu0
  %v3786 = vpop.f32.mrb[0].mxu0
  %3787 = vdwg.mxu0
  %3788 = vmatprep.subr.bf16.mxu0 %v2540
  %3789 = vmatpush1.bf16.msra.mxu0 %v2539
  %3790 = vmatprep.subr.bf16.mxu0 %v2548
  %3791 = vmatpush1.bf16.msra.mxu0 %v2547
  %3792 = vmatprep.subr.bf16.mxu0 %v2556
  %3793 = vmatpush1.bf16.msra.mxu0 %v2555
  %3794 = vmatprep.subr.bf16.mxu0 %v2564
  %3795 = vmatpush1.bf16.msra.mxu0 %v2563
  %3796 = vmatprep.subr.bf16.mxu0 %v2572
  %3797 = vmatpush1.bf16.msra.mxu0 %v2571
  %3798 = vmatprep.subr.bf16.mxu0 %v2580
  %3799 = vmatpush1.bf16.msra.mxu0 %v2579
  %3800 = vmatprep.subr.bf16.mxu0 %v2588
  %3801 = vmatpush1.bf16.msra.mxu0 %v2587
  %3802 = vmatprep.subr.bf16.mxu0 %v2596
  %3803 = vmatpush1.bf16.msra.mxu0 %v2595
  %3804 = vmatprep.subr.bf16.mxu0 %v2604
  %3805 = vmatpush1.bf16.msra.mxu0 %v2603
  %3806 = vmatprep.subr.bf16.mxu0 %v2612
  %3807 = vmatpush1.bf16.msra.mxu0 %v2611
  %3808 = vmatprep.subr.bf16.mxu0 %v2620
  %3809 = vmatpush1.bf16.msra.mxu0 %v2619
  %3810 = vmatprep.subr.bf16.mxu0 %v2628
  %3811 = vmatpush1.bf16.msra.mxu0 %v2627
  %3812 = vmatprep.subr.bf16.mxu0 %v2636
  %3813 = vmatpush1.bf16.msra.mxu0 %v2635
  %3814 = vmatprep.subr.bf16.mxu0 %v2644
  %3815 = vmatpush1.bf16.msra.mxu0 %v2643
  %3816 = vmatprep.subr.bf16.mxu0 %v2652
  %3817 = vmatpush1.bf16.msra.mxu0 %v2651
  %3818 = vmatprep.subr.bf16.mxu0 %v2660
  %3819 = vmatpush1.bf16.msra.mxu0 %v2659
  %3820 = vmatprep.mubr.bf16.mxu0 %v604
  %3821 = vmatmul.mubr.bf16.gmra.mrb[0].mxu0 %v603
  %v3822 = vpop.f32.mrb[0].mxu0
  %v3823 = vadd.f32 %v3782, %v3822
  %v3824 = vpop.f32.mrb[0].mxu0
  %v3825 = vadd.f32 %v3784, %v3824
  %v3826 = vpop.f32.mrb[0].mxu0
  %v3827 = vpop.f32.mrb[0].mxu0
  %3828 = vdwg.mxu0
  %v3829 = vmax.f32 %v3331, 0.0
  %v3830 = vmax.f32 %v3333, 0.0
  %v3831 = vmax.f32 %v3495, 0.0
  %v3832 = vmax.f32 %v3497, 0.0
  %v3833 = vmax.f32 %v3659, 0.0
  %v3834 = vmax.f32 %v3661, 0.0
  %v3835 = vmax.f32 %v3823, 0.0
  %v3836 = vmax.f32 %v3825, 0.0
  %v3837 = vpack.c.bf16 %v3829, %v3829
  %v3838 = vpack.c.bf16 %v3830, %v3830
  %v3839 = vpack.c.bf16 %v3831, %v3831
  %v3840 = vpack.c.bf16 %v3832, %v3832
  %v3841 = vpack.c.bf16 %v3833, %v3833
  %v3842 = vpack.c.bf16 %v3834, %v3834
  %v3843 = vpack.c.bf16 %v3835, %v3835
  %v3844 = vpack.c.bf16 %v3836, %v3836
  %v3845 = vld [vmem:[%s3] sm:$0xff]
  %v3846 = vld [vmem:[%s3 + $0x8] sm:$0xff]
  %v3847 = vld [vmem:[%s3 + $0x10] sm:$0xff]
  %v3848 = vld [vmem:[%s3 + $0x18] sm:$0xff]
  %v3849 = vld [vmem:[%s3 + $0x20] sm:$0xff]
  %v3850 = vld [vmem:[%s3 + $0x28] sm:$0xff]
  %v3851 = vld [vmem:[%s3 + $0x30] sm:$0xff]
  %v3852 = vld [vmem:[%s3 + $0x38] sm:$0xff]
  %v3853 = vld [vmem:[%s3 + $0x40] sm:$0xff]
  %v3854 = vld [vmem:[%s3 + $0x48] sm:$0xff]
  %v3855 = vld [vmem:[%s3 + $0x50] sm:$0xff]
  %v3856 = vld [vmem:[%s3 + $0x58] sm:$0xff]
  %v3857 = vld [vmem:[%s3 + $0x60] sm:$0xff]
  %v3858 = vld [vmem:[%s3 + $0x68] sm:$0xff]
  %v3859 = vld [vmem:[%s3 + $0x70] sm:$0xff]
  %v3860 = vld [vmem:[%s3 + $0x78] sm:$0xff]
  %v3861 = vld [vmem:[%s3 + $0x80] sm:$0xff]
  %v3862 = vld [vmem:[%s3 + $0x88] sm:$0xff]
  %v3863 = vld [vmem:[%s3 + $0x90] sm:$0xff]
  %v3864 = vld [vmem:[%s3 + $0x98] sm:$0xff]
  %v3865 = vld [vmem:[%s3 + $0xa0] sm:$0xff]
  %v3866 = vld [vmem:[%s3 + $0xa8] sm:$0xff]
  %v3867 = vld [vmem:[%s3 + $0xb0] sm:$0xff]
  %v3868 = vld [vmem:[%s3 + $0xb8] sm:$0xff]
  %v3869 = vld [vmem:[%s3 + $0xc0] sm:$0xff]
  %v3870 = vld [vmem:[%s3 + $0xc8] sm:$0xff]
  %v3871 = vld [vmem:[%s3 + $0xd0] sm:$0xff]
  %v3872 = vld [vmem:[%s3 + $0xd8] sm:$0xff]
  %v3873 = vld [vmem:[%s3 + $0xe0] sm:$0xff]
  %v3874 = vld [vmem:[%s3 + $0xe8] sm:$0xff]
  %v3875 = vld [vmem:[%s3 + $0xf0] sm:$0xff]
  %v3876 = vld [vmem:[%s3 + $0xf8] sm:$0xff]
  %v3877 = vld [vmem:[%s3 + $0x100] sm:$0xff]
  %v3878 = vld [vmem:[%s3 + $0x108] sm:$0xff]
  %v3879 = vld [vmem:[%s3 + $0x110] sm:$0xff]
  %v3880 = vld [vmem:[%s3 + $0x118] sm:$0xff]
  %v3881 = vld [vmem:[%s3 + $0x120] sm:$0xff]
  %v3882 = vld [vmem:[%s3 + $0x128] sm:$0xff]
  %v3883 = vld [vmem:[%s3 + $0x130] sm:$0xff]
  %v3884 = vld [vmem:[%s3 + $0x138] sm:$0xff]
  %v3885 = vld [vmem:[%s3 + $0x140] sm:$0xff]
  %v3886 = vld [vmem:[%s3 + $0x148] sm:$0xff]
  %v3887 = vld [vmem:[%s3 + $0x150] sm:$0xff]
  %v3888 = vld [vmem:[%s3 + $0x158] sm:$0xff]
  %v3889 = vld [vmem:[%s3 + $0x160] sm:$0xff]
  %v3890 = vld [vmem:[%s3 + $0x168] sm:$0xff]
  %v3891 = vld [vmem:[%s3 + $0x170] sm:$0xff]
  %v3892 = vld [vmem:[%s3 + $0x178] sm:$0xff]
  %v3893 = vld [vmem:[%s3 + $0x180] sm:$0xff]
  %v3894 = vld [vmem:[%s3 + $0x188] sm:$0xff]
  %v3895 = vld [vmem:[%s3 + $0x190] sm:$0xff]
  %v3896 = vld [vmem:[%s3 + $0x198] sm:$0xff]
  %v3897 = vld [vmem:[%s3 + $0x1a0] sm:$0xff]
  %v3898 = vld [vmem:[%s3 + $0x1a8] sm:$0xff]
  %v3899 = vld [vmem:[%s3 + $0x1b0] sm:$0xff]
  %v3900 = vld [vmem:[%s3 + $0x1b8] sm:$0xff]
  %v3901 = vld [vmem:[%s3 + $0x1c0] sm:$0xff]
  %v3902 = vld [vmem:[%s3 + $0x1c8] sm:$0xff]
  %v3903 = vld [vmem:[%s3 + $0x1d0] sm:$0xff]
  %v3904 = vld [vmem:[%s3 + $0x1d8] sm:$0xff]
  %v3905 = vld [vmem:[%s3 + $0x1e0] sm:$0xff]
  %v3906 = vld [vmem:[%s3 + $0x1e8] sm:$0xff]
  %v3907 = vld [vmem:[%s3 + $0x1f0] sm:$0xff]
  %v3908 = vld [vmem:[%s3 + $0x1f8] sm:$0xff]
  %v3909 = vld [vmem:[%s3 + $0x200] sm:$0xff]
  %v3910 = vld [vmem:[%s3 + $0x208] sm:$0xff]
  %v3911 = vld [vmem:[%s3 + $0x210] sm:$0xff]
  %v3912 = vld [vmem:[%s3 + $0x218] sm:$0xff]
  %v3913 = vld [vmem:[%s3 + $0x220] sm:$0xff]
  %v3914 = vld [vmem:[%s3 + $0x228] sm:$0xff]
  %v3915 = vld [vmem:[%s3 + $0x230] sm:$0xff]
  %v3916 = vld [vmem:[%s3 + $0x238] sm:$0xff]
  %v3917 = vld [vmem:[%s3 + $0x240] sm:$0xff]
  %v3918 = vld [vmem:[%s3 + $0x248] sm:$0xff]
  %v3919 = vld [vmem:[%s3 + $0x250] sm:$0xff]
  %v3920 = vld [vmem:[%s3 + $0x258] sm:$0xff]
  %v3921 = vld [vmem:[%s3 + $0x260] sm:$0xff]
  %v3922 = vld [vmem:[%s3 + $0x268] sm:$0xff]
  %v3923 = vld [vmem:[%s3 + $0x270] sm:$0xff]
  %v3924 = vld [vmem:[%s3 + $0x278] sm:$0xff]
  %v3925 = vld [vmem:[%s3 + $0x280] sm:$0xff]
  %v3926 = vld [vmem:[%s3 + $0x288] sm:$0xff]
  %v3927 = vld [vmem:[%s3 + $0x290] sm:$0xff]
  %v3928 = vld [vmem:[%s3 + $0x298] sm:$0xff]
  %v3929 = vld [vmem:[%s3 + $0x2a0] sm:$0xff]
  %v3930 = vld [vmem:[%s3 + $0x2a8] sm:$0xff]
  %v3931 = vld [vmem:[%s3 + $0x2b0] sm:$0xff]
  %v3932 = vld [vmem:[%s3 + $0x2b8] sm:$0xff]
  %v3933 = vld [vmem:[%s3 + $0x2c0] sm:$0xff]
  %v3934 = vld [vmem:[%s3 + $0x2c8] sm:$0xff]
  %v3935 = vld [vmem:[%s3 + $0x2d0] sm:$0xff]
  %v3936 = vld [vmem:[%s3 + $0x2d8] sm:$0xff]
  %v3937 = vld [vmem:[%s3 + $0x2e0] sm:$0xff]
  %v3938 = vld [vmem:[%s3 + $0x2e8] sm:$0xff]
  %v3939 = vld [vmem:[%s3 + $0x2f0] sm:$0xff]
  %v3940 = vld [vmem:[%s3 + $0x2f8] sm:$0xff]
  %v3941 = vld [vmem:[%s3 + $0x300] sm:$0xff]
  %v3942 = vld [vmem:[%s3 + $0x308] sm:$0xff]
  %v3943 = vld [vmem:[%s3 + $0x310] sm:$0xff]
  %v3944 = vld [vmem:[%s3 + $0x318] sm:$0xff]
  %v3945 = vld [vmem:[%s3 + $0x320] sm:$0xff]
  %v3946 = vld [vmem:[%s3 + $0x328] sm:$0xff]
  %v3947 = vld [vmem:[%s3 + $0x330] sm:$0xff]
  %v3948 = vld [vmem:[%s3 + $0x338] sm:$0xff]
  %v3949 = vld [vmem:[%s3 + $0x340] sm:$0xff]
  %v3950 = vld [vmem:[%s3 + $0x348] sm:$0xff]
  %v3951 = vld [vmem:[%s3 + $0x350] sm:$0xff]
  %v3952 = vld [vmem:[%s3 + $0x358] sm:$0xff]
  %v3953 = vld [vmem:[%s3 + $0x360] sm:$0xff]
  %v3954 = vld [vmem:[%s3 + $0x368] sm:$0xff]
  %v3955 = vld [vmem:[%s3 + $0x370] sm:$0xff]
  %v3956 = vld [vmem:[%s3 + $0x378] sm:$0xff]
  %v3957 = vld [vmem:[%s3 + $0x380] sm:$0xff]
  %v3958 = vld [vmem:[%s3 + $0x388] sm:$0xff]
  %v3959 = vld [vmem:[%s3 + $0x390] sm:$0xff]
  %v3960 = vld [vmem:[%s3 + $0x398] sm:$0xff]
  %v3961 = vld [vmem:[%s3 + $0x3a0] sm:$0xff]
  %v3962 = vld [vmem:[%s3 + $0x3a8] sm:$0xff]
  %v3963 = vld [vmem:[%s3 + $0x3b0] sm:$0xff]
  %v3964 = vld [vmem:[%s3 + $0x3b8] sm:$0xff]
  %v3965 = vld [vmem:[%s3 + $0x3c0] sm:$0xff]
  %v3966 = vld [vmem:[%s3 + $0x3c8] sm:$0xff]
  %v3967 = vld [vmem:[%s3 + $0x3d0] sm:$0xff]
  %v3968 = vld [vmem:[%s3 + $0x3d8] sm:$0xff]
  %v3969 = vld [vmem:[%s3 + $0x3e0] sm:$0xff]
  %v3970 = vld [vmem:[%s3 + $0x3e8] sm:$0xff]
  %v3971 = vld [vmem:[%s3 + $0x3f0] sm:$0xff]
  %v3972 = vld [vmem:[%s3 + $0x3f8] sm:$0xff]
  %v3973 = vld [vmem:[%s4] sm:$0x3]
  %v3975 = vlaneseq
  %v3976 = vshrl.u32 %v3975, 7
  %v3977 = vsub.s32 0, %v3976
  %v3978 = vrot.slane %v3973, %v3977
  %v3979 = vlaneseq
  %v3980 = vshrl.u32 %v3979, 7
  %v3981 = vsub.s32 1, %v3980
  %v3982 = vrot.slane %v3973, %v3981
  %v4113 = vunpack.c.l.b16 %v3845
  %v4114 = vunpack.c.h.b16 %v3845
  %v4115 = vunpack.c.l.b16 %v3846
  %v4116 = vunpack.c.h.b16 %v3846
  %v4117 = vunpack.c.l.b16 %v3847
  %v4118 = vunpack.c.h.b16 %v3847
  %v4119 = vunpack.c.l.b16 %v3848
  %v4120 = vunpack.c.h.b16 %v3848
  %v4121 = vunpack.c.l.b16 %v3849
  %v4122 = vunpack.c.h.b16 %v3849
  %v4123 = vunpack.c.l.b16 %v3850
  %v4124 = vunpack.c.h.b16 %v3850
  %v4125 = vunpack.c.l.b16 %v3851
  %v4126 = vunpack.c.h.b16 %v3851
  %v4127 = vunpack.c.l.b16 %v3852
  %v4128 = vunpack.c.h.b16 %v3852
  %v4129 = vunpack.c.l.b16 %v3853
  %v4130 = vunpack.c.h.b16 %v3853
  %v4131 = vunpack.c.l.b16 %v3854
  %v4132 = vunpack.c.h.b16 %v3854
  %v4133 = vunpack.c.l.b16 %v3855
  %v4134 = vunpack.c.h.b16 %v3855
  %v4135 = vunpack.c.l.b16 %v3856
  %v4136 = vunpack.c.h.b16 %v3856
  %v4137 = vunpack.c.l.b16 %v3857
  %v4138 = vunpack.c.h.b16 %v3857
  %v4139 = vunpack.c.l.b16 %v3858
  %v4140 = vunpack.c.h.b16 %v3858
  %v4141 = vunpack.c.l.b16 %v3859
  %v4142 = vunpack.c.h.b16 %v3859
  %v4143 = vunpack.c.l.b16 %v3860
  %v4144 = vunpack.c.h.b16 %v3860
  %v4145 = vunpack.c.l.b16 %v3861
  %v4146 = vunpack.c.h.b16 %v3861
  %v4147 = vunpack.c.l.b16 %v3862
  %v4148 = vunpack.c.h.b16 %v3862
  %v4149 = vunpack.c.l.b16 %v3863
  %v4150 = vunpack.c.h.b16 %v3863
  %v4151 = vunpack.c.l.b16 %v3864
  %v4152 = vunpack.c.h.b16 %v3864
  %v4153 = vunpack.c.l.b16 %v3865
  %v4154 = vunpack.c.h.b16 %v3865
  %v4155 = vunpack.c.l.b16 %v3866
  %v4156 = vunpack.c.h.b16 %v3866
  %v4157 = vunpack.c.l.b16 %v3867
  %v4158 = vunpack.c.h.b16 %v3867
  %v4159 = vunpack.c.l.b16 %v3868
  %v4160 = vunpack.c.h.b16 %v3868
  %v4161 = vunpack.c.l.b16 %v3869
  %v4162 = vunpack.c.h.b16 %v3869
  %v4163 = vunpack.c.l.b16 %v3870
  %v4164 = vunpack.c.h.b16 %v3870
  %v4165 = vunpack.c.l.b16 %v3871
  %v4166 = vunpack.c.h.b16 %v3871
  %v4167 = vunpack.c.l.b16 %v3872
  %v4168 = vunpack.c.h.b16 %v3872
  %v4169 = vunpack.c.l.b16 %v3873
  %v4170 = vunpack.c.h.b16 %v3873
  %v4171 = vunpack.c.l.b16 %v3874
  %v4172 = vunpack.c.h.b16 %v3874
  %v4173 = vunpack.c.l.b16 %v3875
  %v4174 = vunpack.c.h.b16 %v3875
  %v4175 = vunpack.c.l.b16 %v3876
  %v4176 = vunpack.c.h.b16 %v3876
  %v4177 = vunpack.c.l.b16 %v3877
  %v4178 = vunpack.c.h.b16 %v3877
  %v4179 = vunpack.c.l.b16 %v3878
  %v4180 = vunpack.c.h.b16 %v3878
  %v4181 = vunpack.c.l.b16 %v3879
  %v4182 = vunpack.c.h.b16 %v3879
  %v4183 = vunpack.c.l.b16 %v3880
  %v4184 = vunpack.c.h.b16 %v3880
  %v4185 = vunpack.c.l.b16 %v3881
  %v4186 = vunpack.c.h.b16 %v3881
  %v4187 = vunpack.c.l.b16 %v3882
  %v4188 = vunpack.c.h.b16 %v3882
  %v4189 = vunpack.c.l.b16 %v3883
  %v4190 = vunpack.c.h.b16 %v3883
  %v4191 = vunpack.c.l.b16 %v3884
  %v4192 = vunpack.c.h.b16 %v3884
  %v4193 = vunpack.c.l.b16 %v3885
  %v4194 = vunpack.c.h.b16 %v3885
  %v4195 = vunpack.c.l.b16 %v3886
  %v4196 = vunpack.c.h.b16 %v3886
  %v4197 = vunpack.c.l.b16 %v3887
  %v4198 = vunpack.c.h.b16 %v3887
  %v4199 = vunpack.c.l.b16 %v3888
  %v4200 = vunpack.c.h.b16 %v3888
  %v4201 = vunpack.c.l.b16 %v3889
  %v4202 = vunpack.c.h.b16 %v3889
  %v4203 = vunpack.c.l.b16 %v3890
  %v4204 = vunpack.c.h.b16 %v3890
  %v4205 = vunpack.c.l.b16 %v3891
  %v4206 = vunpack.c.h.b16 %v3891
  %v4207 = vunpack.c.l.b16 %v3892
  %v4208 = vunpack.c.h.b16 %v3892
  %v4209 = vunpack.c.l.b16 %v3893
  %v4210 = vunpack.c.h.b16 %v3893
  %v4211 = vunpack.c.l.b16 %v3894
  %v4212 = vunpack.c.h.b16 %v3894
  %v4213 = vunpack.c.l.b16 %v3895
  %v4214 = vunpack.c.h.b16 %v3895
  %v4215 = vunpack.c.l.b16 %v3896
  %v4216 = vunpack.c.h.b16 %v3896
  %v4217 = vunpack.c.l.b16 %v3897
  %v4218 = vunpack.c.h.b16 %v3897
  %v4219 = vunpack.c.l.b16 %v3898
  %v4220 = vunpack.c.h.b16 %v3898
  %v4221 = vunpack.c.l.b16 %v3899
  %v4222 = vunpack.c.h.b16 %v3899
  %v4223 = vunpack.c.l.b16 %v3900
  %v4224 = vunpack.c.h.b16 %v3900
  %v4225 = vunpack.c.l.b16 %v3901
  %v4226 = vunpack.c.h.b16 %v3901
  %v4227 = vunpack.c.l.b16 %v3902
  %v4228 = vunpack.c.h.b16 %v3902
  %v4229 = vunpack.c.l.b16 %v3903
  %v4230 = vunpack.c.h.b16 %v3903
  %v4231 = vunpack.c.l.b16 %v3904
  %v4232 = vunpack.c.h.b16 %v3904
  %v4233 = vunpack.c.l.b16 %v3905
  %v4234 = vunpack.c.h.b16 %v3905
  %v4235 = vunpack.c.l.b16 %v3906
  %v4236 = vunpack.c.h.b16 %v3906
  %v4237 = vunpack.c.l.b16 %v3907
  %v4238 = vunpack.c.h.b16 %v3907
  %v4239 = vunpack.c.l.b16 %v3908
  %v4240 = vunpack.c.h.b16 %v3908
  %v4241 = vunpack.c.l.b16 %v3909
  %v4242 = vunpack.c.h.b16 %v3909
  %v4243 = vunpack.c.l.b16 %v3910
  %v4244 = vunpack.c.h.b16 %v3910
  %v4245 = vunpack.c.l.b16 %v3911
  %v4246 = vunpack.c.h.b16 %v3911
  %v4247 = vunpack.c.l.b16 %v3912
  %v4248 = vunpack.c.h.b16 %v3912
  %v4249 = vunpack.c.l.b16 %v3913
  %v4250 = vunpack.c.h.b16 %v3913
  %v4251 = vunpack.c.l.b16 %v3914
  %v4252 = vunpack.c.h.b16 %v3914
  %v4253 = vunpack.c.l.b16 %v3915
  %v4254 = vunpack.c.h.b16 %v3915
  %v4255 = vunpack.c.l.b16 %v3916
  %v4256 = vunpack.c.h.b16 %v3916
  %v4257 = vunpack.c.l.b16 %v3917
  %v4258 = vunpack.c.h.b16 %v3917
  %v4259 = vunpack.c.l.b16 %v3918
  %v4260 = vunpack.c.h.b16 %v3918
  %v4261 = vunpack.c.l.b16 %v3919
  %v4262 = vunpack.c.h.b16 %v3919
  %v4263 = vunpack.c.l.b16 %v3920
  %v4264 = vunpack.c.h.b16 %v3920
  %v4265 = vunpack.c.l.b16 %v3921
  %v4266 = vunpack.c.h.b16 %v3921
  %v4267 = vunpack.c.l.b16 %v3922
  %v4268 = vunpack.c.h.b16 %v3922
  %v4269 = vunpack.c.l.b16 %v3923
  %v4270 = vunpack.c.h.b16 %v3923
  %v4271 = vunpack.c.l.b16 %v3924
  %v4272 = vunpack.c.h.b16 %v3924
  %v4273 = vunpack.c.l.b16 %v3925
  %v4274 = vunpack.c.h.b16 %v3925
  %v4275 = vunpack.c.l.b16 %v3926
  %v4276 = vunpack.c.h.b16 %v3926
  %v4277 = vunpack.c.l.b16 %v3927
  %v4278 = vunpack.c.h.b16 %v3927
  %v4279 = vunpack.c.l.b16 %v3928
  %v4280 = vunpack.c.h.b16 %v3928
  %v4281 = vunpack.c.l.b16 %v3929
  %v4282 = vunpack.c.h.b16 %v3929
  %v4283 = vunpack.c.l.b16 %v3930
  %v4284 = vunpack.c.h.b16 %v3930
  %v4285 = vunpack.c.l.b16 %v3931
  %v4286 = vunpack.c.h.b16 %v3931
  %v4287 = vunpack.c.l.b16 %v3932
  %v4288 = vunpack.c.h.b16 %v3932
  %v4289 = vunpack.c.l.b16 %v3933
  %v4290 = vunpack.c.h.b16 %v3933
  %v4291 = vunpack.c.l.b16 %v3934
  %v4292 = vunpack.c.h.b16 %v3934
  %v4293 = vunpack.c.l.b16 %v3935
  %v4294 = vunpack.c.h.b16 %v3935
  %v4295 = vunpack.c.l.b16 %v3936
  %v4296 = vunpack.c.h.b16 %v3936
  %v4297 = vunpack.c.l.b16 %v3937
  %v4298 = vunpack.c.h.b16 %v3937
  %v4299 = vunpack.c.l.b16 %v3938
  %v4300 = vunpack.c.h.b16 %v3938
  %v4301 = vunpack.c.l.b16 %v3939
  %v4302 = vunpack.c.h.b16 %v3939
  %v4303 = vunpack.c.l.b16 %v3940
  %v4304 = vunpack.c.h.b16 %v3940
  %v4305 = vunpack.c.l.b16 %v3941
  %v4306 = vunpack.c.h.b16 %v3941
  %v4307 = vunpack.c.l.b16 %v3942
  %v4308 = vunpack.c.h.b16 %v3942
  %v4309 = vunpack.c.l.b16 %v3943
  %v4310 = vunpack.c.h.b16 %v3943
  %v4311 = vunpack.c.l.b16 %v3944
  %v4312 = vunpack.c.h.b16 %v3944
  %v4313 = vunpack.c.l.b16 %v3945
  %v4314 = vunpack.c.h.b16 %v3945
  %v4315 = vunpack.c.l.b16 %v3946
  %v4316 = vunpack.c.h.b16 %v3946
  %v4317 = vunpack.c.l.b16 %v3947
  %v4318 = vunpack.c.h.b16 %v3947
  %v4319 = vunpack.c.l.b16 %v3948
  %v4320 = vunpack.c.h.b16 %v3948
  %v4321 = vunpack.c.l.b16 %v3949
  %v4322 = vunpack.c.h.b16 %v3949
  %v4323 = vunpack.c.l.b16 %v3950
  %v4324 = vunpack.c.h.b16 %v3950
  %v4325 = vunpack.c.l.b16 %v3951
  %v4326 = vunpack.c.h.b16 %v3951
  %v4327 = vunpack.c.l.b16 %v3952
  %v4328 = vunpack.c.h.b16 %v3952
  %v4329 = vunpack.c.l.b16 %v3953
  %v4330 = vunpack.c.h.b16 %v3953
  %v4331 = vunpack.c.l.b16 %v3954
  %v4332 = vunpack.c.h.b16 %v3954
  %v4333 = vunpack.c.l.b16 %v3955
  %v4334 = vunpack.c.h.b16 %v3955
  %v4335 = vunpack.c.l.b16 %v3956
  %v4336 = vunpack.c.h.b16 %v3956
  %v4337 = vunpack.c.l.b16 %v3957
  %v4338 = vunpack.c.h.b16 %v3957
  %v4339 = vunpack.c.l.b16 %v3958
  %v4340 = vunpack.c.h.b16 %v3958
  %v4341 = vunpack.c.l.b16 %v3959
  %v4342 = vunpack.c.h.b16 %v3959
  %v4343 = vunpack.c.l.b16 %v3960
  %v4344 = vunpack.c.h.b16 %v3960
  %v4345 = vunpack.c.l.b16 %v3961
  %v4346 = vunpack.c.h.b16 %v3961
  %v4347 = vunpack.c.l.b16 %v3962
  %v4348 = vunpack.c.h.b16 %v3962
  %v4349 = vunpack.c.l.b16 %v3963
  %v4350 = vunpack.c.h.b16 %v3963
  %v4351 = vunpack.c.l.b16 %v3964
  %v4352 = vunpack.c.h.b16 %v3964
  %v4353 = vunpack.c.l.b16 %v3965
  %v4354 = vunpack.c.h.b16 %v3965
  %v4355 = vunpack.c.l.b16 %v3966
  %v4356 = vunpack.c.h.b16 %v3966
  %v4357 = vunpack.c.l.b16 %v3967
  %v4358 = vunpack.c.h.b16 %v3967
  %v4359 = vunpack.c.l.b16 %v3968
  %v4360 = vunpack.c.h.b16 %v3968
  %v4361 = vunpack.c.l.b16 %v3969
  %v4362 = vunpack.c.h.b16 %v3969
  %v4363 = vunpack.c.l.b16 %v3970
  %v4364 = vunpack.c.h.b16 %v3970
  %v4365 = vunpack.c.l.b16 %v3971
  %v4366 = vunpack.c.h.b16 %v3971
  %v4367 = vunpack.c.l.b16 %v3972
  %v4368 = vunpack.c.h.b16 %v3972
  %v4369 = vpack.c.b16 %v4115, %v4113
  %v4370 = vpack.c.b16 %v4116, %v4114
  %v4371 = vpack.c.b16 %v4119, %v4117
  %v4372 = vpack.c.b16 %v4120, %v4118
  %v4373 = vpack.c.b16 %v4123, %v4121
  %v4374 = vpack.c.b16 %v4124, %v4122
  %v4375 = vpack.c.b16 %v4127, %v4125
  %v4376 = vpack.c.b16 %v4128, %v4126
  %v4377 = vpack.c.b16 %v4131, %v4129
  %v4378 = vpack.c.b16 %v4132, %v4130
  %v4379 = vpack.c.b16 %v4135, %v4133
  %v4380 = vpack.c.b16 %v4136, %v4134
  %v4381 = vpack.c.b16 %v4139, %v4137
  %v4382 = vpack.c.b16 %v4140, %v4138
  %v4383 = vpack.c.b16 %v4143, %v4141
  %v4384 = vpack.c.b16 %v4144, %v4142
  %v4385 = vpack.c.b16 %v4147, %v4145
  %v4386 = vpack.c.b16 %v4148, %v4146
  %v4387 = vpack.c.b16 %v4151, %v4149
  %v4388 = vpack.c.b16 %v4152, %v4150
  %v4389 = vpack.c.b16 %v4155, %v4153
  %v4390 = vpack.c.b16 %v4156, %v4154
  %v4391 = vpack.c.b16 %v4159, %v4157
  %v4392 = vpack.c.b16 %v4160, %v4158
  %v4393 = vpack.c.b16 %v4163, %v4161
  %v4394 = vpack.c.b16 %v4164, %v4162
  %v4395 = vpack.c.b16 %v4167, %v4165
  %v4396 = vpack.c.b16 %v4168, %v4166
  %v4397 = vpack.c.b16 %v4171, %v4169
  %v4398 = vpack.c.b16 %v4172, %v4170
  %v4399 = vpack.c.b16 %v4175, %v4173
  %v4400 = vpack.c.b16 %v4176, %v4174
  %v4401 = vpack.c.b16 %v4179, %v4177
  %v4402 = vpack.c.b16 %v4180, %v4178
  %v4403 = vpack.c.b16 %v4183, %v4181
  %v4404 = vpack.c.b16 %v4184, %v4182
  %v4405 = vpack.c.b16 %v4187, %v4185
  %v4406 = vpack.c.b16 %v4188, %v4186
  %v4407 = vpack.c.b16 %v4191, %v4189
  %v4408 = vpack.c.b16 %v4192, %v4190
  %v4409 = vpack.c.b16 %v4195, %v4193
  %v4410 = vpack.c.b16 %v4196, %v4194
  %v4411 = vpack.c.b16 %v4199, %v4197
  %v4412 = vpack.c.b16 %v4200, %v4198
  %v4413 = vpack.c.b16 %v4203, %v4201
  %v4414 = vpack.c.b16 %v4204, %v4202
  %v4415 = vpack.c.b16 %v4207, %v4205
  %v4416 = vpack.c.b16 %v4208, %v4206
  %v4417 = vpack.c.b16 %v4211, %v4209
  %v4418 = vpack.c.b16 %v4212, %v4210
  %v4419 = vpack.c.b16 %v4215, %v4213
  %v4420 = vpack.c.b16 %v4216, %v4214
  %v4421 = vpack.c.b16 %v4219, %v4217
  %v4422 = vpack.c.b16 %v4220, %v4218
  %v4423 = vpack.c.b16 %v4223, %v4221
  %v4424 = vpack.c.b16 %v4224, %v4222
  %v4425 = vpack.c.b16 %v4227, %v4225
  %v4426 = vpack.c.b16 %v4228, %v4226
  %v4427 = vpack.c.b16 %v4231, %v4229
  %v4428 = vpack.c.b16 %v4232, %v4230
  %v4429 = vpack.c.b16 %v4235, %v4233
  %v4430 = vpack.c.b16 %v4236, %v4234
  %v4431 = vpack.c.b16 %v4239, %v4237
  %v4432 = vpack.c.b16 %v4240, %v4238
  %v4433 = vpack.c.b16 %v4243, %v4241
  %v4434 = vpack.c.b16 %v4244, %v4242
  %v4435 = vpack.c.b16 %v4247, %v4245
  %v4436 = vpack.c.b16 %v4248, %v4246
  %v4437 = vpack.c.b16 %v4251, %v4249
  %v4438 = vpack.c.b16 %v4252, %v4250
  %v4439 = vpack.c.b16 %v4255, %v4253
  %v4440 = vpack.c.b16 %v4256, %v4254
  %v4441 = vpack.c.b16 %v4259, %v4257
  %v4442 = vpack.c.b16 %v4260, %v4258
  %v4443 = vpack.c.b16 %v4263, %v4261
  %v4444 = vpack.c.b16 %v4264, %v4262
  %v4445 = vpack.c.b16 %v4267, %v4265
  %v4446 = vpack.c.b16 %v4268, %v4266
  %v4447 = vpack.c.b16 %v4271, %v4269
  %v4448 = vpack.c.b16 %v4272, %v4270
  %v4449 = vpack.c.b16 %v4275, %v4273
  %v4450 = vpack.c.b16 %v4276, %v4274
  %v4451 = vpack.c.b16 %v4279, %v4277
  %v4452 = vpack.c.b16 %v4280, %v4278
  %v4453 = vpack.c.b16 %v4283, %v4281
  %v4454 = vpack.c.b16 %v4284, %v4282
  %v4455 = vpack.c.b16 %v4287, %v4285
  %v4456 = vpack.c.b16 %v4288, %v4286
  %v4457 = vpack.c.b16 %v4291, %v4289
  %v4458 = vpack.c.b16 %v4292, %v4290
  %v4459 = vpack.c.b16 %v4295, %v4293
  %v4460 = vpack.c.b16 %v4296, %v4294
  %v4461 = vpack.c.b16 %v4299, %v4297
  %v4462 = vpack.c.b16 %v4300, %v4298
  %v4463 = vpack.c.b16 %v4303, %v4301
  %v4464 = vpack.c.b16 %v4304, %v4302
  %v4465 = vpack.c.b16 %v4307, %v4305
  %v4466 = vpack.c.b16 %v4308, %v4306
  %v4467 = vpack.c.b16 %v4311, %v4309
  %v4468 = vpack.c.b16 %v4312, %v4310
  %v4469 = vpack.c.b16 %v4315, %v4313
  %v4470 = vpack.c.b16 %v4316, %v4314
  %v4471 = vpack.c.b16 %v4319, %v4317
  %v4472 = vpack.c.b16 %v4320, %v4318
  %v4473 = vpack.c.b16 %v4323, %v4321
  %v4474 = vpack.c.b16 %v4324, %v4322
  %v4475 = vpack.c.b16 %v4327, %v4325
  %v4476 = vpack.c.b16 %v4328, %v4326
  %v4477 = vpack.c.b16 %v4331, %v4329
  %v4478 = vpack.c.b16 %v4332, %v4330
  %v4479 = vpack.c.b16 %v4335, %v4333
  %v4480 = vpack.c.b16 %v4336, %v4334
  %v4481 = vpack.c.b16 %v4339, %v4337
  %v4482 = vpack.c.b16 %v4340, %v4338
  %v4483 = vpack.c.b16 %v4343, %v4341
  %v4484 = vpack.c.b16 %v4344, %v4342
  %v4485 = vpack.c.b16 %v4347, %v4345
  %v4486 = vpack.c.b16 %v4348, %v4346
  %v4487 = vpack.c.b16 %v4351, %v4349
  %v4488 = vpack.c.b16 %v4352, %v4350
  %v4489 = vpack.c.b16 %v4355, %v4353
  %v4490 = vpack.c.b16 %v4356, %v4354
  %v4491 = vpack.c.b16 %v4359, %v4357
  %v4492 = vpack.c.b16 %v4360, %v4358
  %v4493 = vpack.c.b16 %v4363, %v4361
  %v4494 = vpack.c.b16 %v4364, %v4362
  %v4495 = vpack.c.b16 %v4367, %v4365
  %v4496 = vpack.c.b16 %v4368, %v4366
  %4625 = vmatprep.subr.bf16.mxu0 %v4370
  %4626 = vmatpush1.bf16.msra.mxu0 %v4369
  %4627 = vmatprep.subr.bf16.mxu0 %v4372
  %4628 = vmatpush1.bf16.msra.mxu0 %v4371
  %4629 = vmatprep.subr.bf16.mxu0 %v4374
  %4630 = vmatpush1.bf16.msra.mxu0 %v4373
  %4631 = vmatprep.subr.bf16.mxu0 %v4376
  %4632 = vmatpush1.bf16.msra.mxu0 %v4375
  %4633 = vmatprep.subr.bf16.mxu0 %v4378
  %4634 = vmatpush1.bf16.msra.mxu0 %v4377
  %4635 = vmatprep.subr.bf16.mxu0 %v4380
  %4636 = vmatpush1.bf16.msra.mxu0 %v4379
  %4637 = vmatprep.subr.bf16.mxu0 %v4382
  %4638 = vmatpush1.bf16.msra.mxu0 %v4381
  %4639 = vmatprep.subr.bf16.mxu0 %v4384
  %4640 = vmatpush1.bf16.msra.mxu0 %v4383
  %4641 = vmatprep.subr.bf16.mxu0 %v4386
  %4642 = vmatpush1.bf16.msra.mxu0 %v4385
  %4643 = vmatprep.subr.bf16.mxu0 %v4388
  %4644 = vmatpush1.bf16.msra.mxu0 %v4387
  %4645 = vmatprep.subr.bf16.mxu0 %v4390
  %4646 = vmatpush1.bf16.msra.mxu0 %v4389
  %4647 = vmatprep.subr.bf16.mxu0 %v4392
  %4648 = vmatpush1.bf16.msra.mxu0 %v4391
  %4649 = vmatprep.subr.bf16.mxu0 %v4394
  %4650 = vmatpush1.bf16.msra.mxu0 %v4393
  %4651 = vmatprep.subr.bf16.mxu0 %v4396
  %4652 = vmatpush1.bf16.msra.mxu0 %v4395
  %4653 = vmatprep.subr.bf16.mxu0 %v4398
  %4654 = vmatpush1.bf16.msra.mxu0 %v4397
  %4655 = vmatprep.subr.bf16.mxu0 %v4400
  %4656 = vmatpush1.bf16.msra.mxu0 %v4399
  %4657 = vmatprep.mubr.bf16.mxu0 %v3838
  %4658 = vmatmul.mubr.bf16.gmra.mrb[0].mxu0 %v3837
  %v4659 = vpop.f32.mrb[0].mxu0
  %v4660 = vadd.f32 %v3978, %v4659
  %v4661 = vpop.f32.mrb[0].mxu0
  %v4662 = vadd.f32 %v3982, %v4661
  %v4663 = vpop.f32.mrb[0].mxu0
  %v4664 = vpop.f32.mrb[0].mxu0
  %4665 = vdwg.mxu0
  %4666 = vmatprep.subr.bf16.mxu0 %v4402
  %4667 = vmatpush1.bf16.msra.mxu0 %v4401
  %4668 = vmatprep.subr.bf16.mxu0 %v4404
  %4669 = vmatpush1.bf16.msra.mxu0 %v4403
  %4670 = vmatprep.subr.bf16.mxu0 %v4406
  %4671 = vmatpush1.bf16.msra.mxu0 %v4405
  %4672 = vmatprep.subr.bf16.mxu0 %v4408
  %4673 = vmatpush1.bf16.msra.mxu0 %v4407
  %4674 = vmatprep.subr.bf16.mxu0 %v4410
  %4675 = vmatpush1.bf16.msra.mxu0 %v4409
  %4676 = vmatprep.subr.bf16.mxu0 %v4412
  %4677 = vmatpush1.bf16.msra.mxu0 %v4411
  %4678 = vmatprep.subr.bf16.mxu0 %v4414
  %4679 = vmatpush1.bf16.msra.mxu0 %v4413
  %4680 = vmatprep.subr.bf16.mxu0 %v4416
  %4681 = vmatpush1.bf16.msra.mxu0 %v4415
  %4682 = vmatprep.subr.bf16.mxu0 %v4418
  %4683 = vmatpush1.bf16.msra.mxu0 %v4417
  %4684 = vmatprep.subr.bf16.mxu0 %v4420
  %4685 = vmatpush1.bf16.msra.mxu0 %v4419
  %4686 = vmatprep.subr.bf16.mxu0 %v4422
  %4687 = vmatpush1.bf16.msra.mxu0 %v4421
  %4688 = vmatprep.subr.bf16.mxu0 %v4424
  %4689 = vmatpush1.bf16.msra.mxu0 %v4423
  %4690 = vmatprep.subr.bf16.mxu0 %v4426
  %4691 = vmatpush1.bf16.msra.mxu0 %v4425
  %4692 = vmatprep.subr.bf16.mxu0 %v4428
  %4693 = vmatpush1.bf16.msra.mxu0 %v4427
  %4694 = vmatprep.subr.bf16.mxu0 %v4430
  %4695 = vmatpush1.bf16.msra.mxu0 %v4429
  %4696 = vmatprep.subr.bf16.mxu0 %v4432
  %4697 = vmatpush1.bf16.msra.mxu0 %v4431
  %4698 = vmatprep.mubr.bf16.mxu0 %v3840
  %4699 = vmatmul.mubr.bf16.gmra.mrb[0].mxu0 %v3839
  %v4700 = vpop.f32.mrb[0].mxu0
  %v4701 = vadd.f32 %v4660, %v4700
  %v4702 = vpop.f32.mrb[0].mxu0
  %v4703 = vadd.f32 %v4662, %v4702
  %v4704 = vpop.f32.mrb[0].mxu0
  %v4705 = vpop.f32.mrb[0].mxu0
  %4706 = vdwg.mxu0
  %4707 = vmatprep.subr.bf16.mxu0 %v4434
  %4708 = vmatpush1.bf16.msra.mxu0 %v4433
  %4709 = vmatprep.subr.bf16.mxu0 %v4436
  %4710 = vmatpush1.bf16.msra.mxu0 %v4435
  %4711 = vmatprep.subr.bf16.mxu0 %v4438
  %4712 = vmatpush1.bf16.msra.mxu0 %v4437
  %4713 = vmatprep.subr.bf16.mxu0 %v4440
  %4714 = vmatpush1.bf16.msra.mxu0 %v4439
  %4715 = vmatprep.subr.bf16.mxu0 %v4442
  %4716 = vmatpush1.bf16.msra.mxu0 %v4441
  %4717 = vmatprep.subr.bf16.mxu0 %v4444
  %4718 = vmatpush1.bf16.msra.mxu0 %v4443
  %4719 = vmatprep.subr.bf16.mxu0 %v4446
  %4720 = vmatpush1.bf16.msra.mxu0 %v4445
  %4721 = vmatprep.subr.bf16.mxu0 %v4448
  %4722 = vmatpush1.bf16.msra.mxu0 %v4447
  %4723 = vmatprep.subr.bf16.mxu0 %v4450
  %4724 = vmatpush1.bf16.msra.mxu0 %v4449
  %4725 = vmatprep.subr.bf16.mxu0 %v4452
  %4726 = vmatpush1.bf16.msra.mxu0 %v4451
  %4727 = vmatprep.subr.bf16.mxu0 %v4454
  %4728 = vmatpush1.bf16.msra.mxu0 %v4453
  %4729 = vmatprep.subr.bf16.mxu0 %v4456
  %4730 = vmatpush1.bf16.msra.mxu0 %v4455
  %4731 = vmatprep.subr.bf16.mxu0 %v4458
  %4732 = vmatpush1.bf16.msra.mxu0 %v4457
  %4733 = vmatprep.subr.bf16.mxu0 %v4460
  %4734 = vmatpush1.bf16.msra.mxu0 %v4459
  %4735 = vmatprep.subr.bf16.mxu0 %v4462
  %4736 = vmatpush1.bf16.msra.mxu0 %v4461
  %4737 = vmatprep.subr.bf16.mxu0 %v4464
  %4738 = vmatpush1.bf16.msra.mxu0 %v4463
  %4739 = vmatprep.mubr.bf16.mxu0 %v3842
  %4740 = vmatmul.mubr.bf16.gmra.mrb[0].mxu0 %v3841
  %v4741 = vpop.f32.mrb[0].mxu0
  %v4742 = vadd.f32 %v4701, %v4741
  %v4743 = vpop.f32.mrb[0].mxu0
  %v4744 = vadd.f32 %v4703, %v4743
  %v4745 = vpop.f32.mrb[0].mxu0
  %v4746 = vpop.f32.mrb[0].mxu0
  %4747 = vdwg.mxu0
  %4748 = vmatprep.subr.bf16.mxu0 %v4466
  %4749 = vmatpush1.bf16.msra.mxu0 %v4465
  %4750 = vmatprep.subr.bf16.mxu0 %v4468
  %4751 = vmatpush1.bf16.msra.mxu0 %v4467
  %4752 = vmatprep.subr.bf16.mxu0 %v4470
  %4753 = vmatpush1.bf16.msra.mxu0 %v4469
  %4754 = vmatprep.subr.bf16.mxu0 %v4472
  %4755 = vmatpush1.bf16.msra.mxu0 %v4471
  %4756 = vmatprep.subr.bf16.mxu0 %v4474
  %4757 = vmatpush1.bf16.msra.mxu0 %v4473
  %4758 = vmatprep.subr.bf16.mxu0 %v4476
  %4759 = vmatpush1.bf16.msra.mxu0 %v4475
  %4760 = vmatprep.subr.bf16.mxu0 %v4478
  %4761 = vmatpush1.bf16.msra.mxu0 %v4477
  %4762 = vmatprep.subr.bf16.mxu0 %v4480
  %4763 = vmatpush1.bf16.msra.mxu0 %v4479
  %4764 = vmatprep.subr.bf16.mxu0 %v4482
  %4765 = vmatpush1.bf16.msra.mxu0 %v4481
  %4766 = vmatprep.subr.bf16.mxu0 %v4484
  %4767 = vmatpush1.bf16.msra.mxu0 %v4483
  %4768 = vmatprep.subr.bf16.mxu0 %v4486
  %4769 = vmatpush1.bf16.msra.mxu0 %v4485
  %4770 = vmatprep.subr.bf16.mxu0 %v4488
  %4771 = vmatpush1.bf16.msra.mxu0 %v4487
  %4772 = vmatprep.subr.bf16.mxu0 %v4490
  %4773 = vmatpush1.bf16.msra.mxu0 %v4489
  %4774 = vmatprep.subr.bf16.mxu0 %v4492
  %4775 = vmatpush1.bf16.msra.mxu0 %v4491
  %4776 = vmatprep.subr.bf16.mxu0 %v4494
  %4777 = vmatpush1.bf16.msra.mxu0 %v4493
  %4778 = vmatprep.subr.bf16.mxu0 %v4496
  %4779 = vmatpush1.bf16.msra.mxu0 %v4495
  %4780 = vmatprep.mubr.bf16.mxu0 %v3844
  %4781 = vmatmul.mubr.bf16.gmra.mrb[0].mxu0 %v3843
  %v4782 = vpop.f32.mrb[0].mxu0
  %v4783 = vadd.f32 %v4742, %v4782
  %v4784 = vpop.f32.mrb[0].mxu0
  %v4785 = vadd.f32 %v4744, %v4784
  %v4786 = vpop.f32.mrb[0].mxu0
  %v4787 = vpop.f32.mrb[0].mxu0
  %4788 = vdwg.mxu0
  %v4789 = vmax.f32 %v4783, 0.0
  %v4790 = vmax.f32 %v4785, 0.0
  %v4791 = vpack.c.bf16 %v4789, %v4789
  %v4792 = vpack.c.bf16 %v4790, %v4790
  %v4793 = vld [vmem:[%s5] sm:$0xf]
  %v4794 = vld [vmem:[%s5 + $0x4] sm:$0xf]
  %v4795 = vld [vmem:[%s5 + $0x8] sm:$0xf]
  %v4796 = vld [vmem:[%s5 + $0xc] sm:$0xf]
  %v4797 = vld [vmem:[%s5 + $0x10] sm:$0xf]
  %v4798 = vld [vmem:[%s5 + $0x14] sm:$0xf]
  %v4799 = vld [vmem:[%s5 + $0x18] sm:$0xf]
  %v4800 = vld [vmem:[%s5 + $0x1c] sm:$0xf]
  %v4801 = vld [vmem:[%s5 + $0x20] sm:$0xf]
  %v4802 = vld [vmem:[%s5 + $0x24] sm:$0xf]
  %v4803 = vld [vmem:[%s5 + $0x28] sm:$0xf]
  %v4804 = vld [vmem:[%s5 + $0x2c] sm:$0xf]
  %v4805 = vld [vmem:[%s5 + $0x30] sm:$0xf]
  %v4806 = vld [vmem:[%s5 + $0x34] sm:$0xf]
  %v4807 = vld [vmem:[%s5 + $0x38] sm:$0xf]
  %v4808 = vld [vmem:[%s5 + $0x3c] sm:$0xf]
  %v4809 = vld [vmem:[%s5 + $0x40] sm:$0xf]
  %v4810 = vld [vmem:[%s5 + $0x44] sm:$0xf]
  %v4811 = vld [vmem:[%s5 + $0x48] sm:$0xf]
  %v4812 = vld [vmem:[%s5 + $0x4c] sm:$0xf]
  %v4813 = vld [vmem:[%s5 + $0x50] sm:$0xf]
  %v4814 = vld [vmem:[%s5 + $0x54] sm:$0xf]
  %v4815 = vld [vmem:[%s5 + $0x58] sm:$0xf]
  %v4816 = vld [vmem:[%s5 + $0x5c] sm:$0xf]
  %v4817 = vld [vmem:[%s5 + $0x60] sm:$0xf]
  %v4818 = vld [vmem:[%s5 + $0x64] sm:$0xf]
  %v4819 = vld [vmem:[%s5 + $0x68] sm:$0xf]
  %v4820 = vld [vmem:[%s5 + $0x6c] sm:$0xf]
  %v4821 = vld [vmem:[%s5 + $0x70] sm:$0xf]
  %v4822 = vld [vmem:[%s5 + $0x74] sm:$0xf]
  %v4823 = vld [vmem:[%s5 + $0x78] sm:$0xf]
  %v4824 = vld [vmem:[%s5 + $0x7c] sm:$0xf]
  %v4825 = vld [vmem:[%s6] sm:$0x1]
  %v4827 = vlaneseq
  %v4828 = vshrl.u32 %v4827, 7
  %v4829 = vsub.s32 0, %v4828
  %v4830 = vrot.slane %v4825, %v4829
  %v4864 = vunpack.c.l.b16 %v4793
  %v4865 = vunpack.c.l.b16 %v4794
  %v4866 = vunpack.c.l.b16 %v4795
  %v4867 = vunpack.c.l.b16 %v4796
  %v4868 = vunpack.c.l.b16 %v4797
  %v4869 = vunpack.c.l.b16 %v4798
  %v4870 = vunpack.c.l.b16 %v4799
  %v4871 = vunpack.c.l.b16 %v4800
  %v4872 = vunpack.c.l.b16 %v4801
  %v4873 = vunpack.c.l.b16 %v4802
  %v4874 = vunpack.c.l.b16 %v4803
  %v4875 = vunpack.c.l.b16 %v4804
  %v4876 = vunpack.c.l.b16 %v4805
  %v4877 = vunpack.c.l.b16 %v4806
  %v4878 = vunpack.c.l.b16 %v4807
  %v4879 = vunpack.c.l.b16 %v4808
  %v4880 = vunpack.c.l.b16 %v4809
  %v4881 = vunpack.c.l.b16 %v4810
  %v4882 = vunpack.c.l.b16 %v4811
  %v4883 = vunpack.c.l.b16 %v4812
  %v4884 = vunpack.c.l.b16 %v4813
  %v4885 = vunpack.c.l.b16 %v4814
  %v4886 = vunpack.c.l.b16 %v4815
  %v4887 = vunpack.c.l.b16 %v4816
  %v4888 = vunpack.c.l.b16 %v4817
  %v4889 = vunpack.c.l.b16 %v4818
  %v4890 = vunpack.c.l.b16 %v4819
  %v4891 = vunpack.c.l.b16 %v4820
  %v4892 = vunpack.c.l.b16 %v4821
  %v4893 = vunpack.c.l.b16 %v4822
  %v4894 = vunpack.c.l.b16 %v4823
  %v4895 = vunpack.c.l.b16 %v4824
  %v4896 = vpack.c.b16 %v4865, %v4864
  %v4897 = vpack.c.b16 %v4867, %v4866
  %v4898 = vpack.c.b16 %v4869, %v4868
  %v4899 = vpack.c.b16 %v4871, %v4870
  %v4900 = vpack.c.b16 %v4873, %v4872
  %v4901 = vpack.c.b16 %v4875, %v4874
  %v4902 = vpack.c.b16 %v4877, %v4876
  %v4903 = vpack.c.b16 %v4879, %v4878
  %v4904 = vpack.c.b16 %v4881, %v4880
  %v4905 = vpack.c.b16 %v4883, %v4882
  %v4906 = vpack.c.b16 %v4885, %v4884
  %v4907 = vpack.c.b16 %v4887, %v4886
  %v4908 = vpack.c.b16 %v4889, %v4888
  %v4909 = vpack.c.b16 %v4891, %v4890
  %v4910 = vpack.c.b16 %v4893, %v4892
  %v4911 = vpack.c.b16 %v4895, %v4894
  %4928 = vmatprep.subr.bf16.mxu0 0
  %4929 = vmatpush1.bf16.msra.mxu0 %v4896
  %4930 = vmatprep.subr.bf16.mxu0 0
  %4931 = vmatpush1.bf16.msra.mxu0 %v4897
  %4932 = vmatprep.subr.bf16.mxu0 0
  %4933 = vmatpush1.bf16.msra.mxu0 %v4898
  %4934 = vmatprep.subr.bf16.mxu0 0
  %4935 = vmatpush1.bf16.msra.mxu0 %v4899
  %4936 = vmatprep.subr.bf16.mxu0 0
  %4937 = vmatpush1.bf16.msra.mxu0 %v4900
  %4938 = vmatprep.subr.bf16.mxu0 0
  %4939 = vmatpush1.bf16.msra.mxu0 %v4901
  %4940 = vmatprep.subr.bf16.mxu0 0
  %4941 = vmatpush1.bf16.msra.mxu0 %v4902
  %4942 = vmatprep.subr.bf16.mxu0 0
  %4943 = vmatpush1.bf16.msra.mxu0 %v4903
  %4944 = vmatprep.subr.bf16.mxu0 0
  %4945 = vmatpush1.bf16.msra.mxu0 %v4904
  %4946 = vmatprep.subr.bf16.mxu0 0
  %4947 = vmatpush1.bf16.msra.mxu0 %v4905
  %4948 = vmatprep.subr.bf16.mxu0 0
  %4949 = vmatpush1.bf16.msra.mxu0 %v4906
  %4950 = vmatprep.subr.bf16.mxu0 0
  %4951 = vmatpush1.bf16.msra.mxu0 %v4907
  %4952 = vmatprep.subr.bf16.mxu0 0
  %4953 = vmatpush1.bf16.msra.mxu0 %v4908
  %4954 = vmatprep.subr.bf16.mxu0 0
  %4955 = vmatpush1.bf16.msra.mxu0 %v4909
  %4956 = vmatprep.subr.bf16.mxu0 0
  %4957 = vmatpush1.bf16.msra.mxu0 %v4910
  %4958 = vmatprep.subr.bf16.mxu0 0
  %4959 = vmatpush1.bf16.msra.mxu0 %v4911
  %4960 = vmatprep.mubr.bf16.mxu0 %v4792
  %4961 = vmatmul.mubr.bf16.gmra.mrb[0].mxu0 %v4791
  %v4962 = vpop.f32.mrb[0].mxu0
  %v4963 = vadd.f32 %v4830, %v4962
  %v4964 = vpop.f32.mrb[0].mxu0
  %v4965 = vpop.f32.mrb[0].mxu0
  %v4966 = vpop.f32.mrb[0].mxu0
  %4967 = vdwg.mxu0
  %4968 = vst [vmem:[%s7] sm:$0xff] %v4963
  // Predicated region
  $region30: #{forward.5} parent=0 // pred_check
    _
  $region31: #{forward.5} parent=0 // pred_check_branch
    %4970 = sbr.rel (0) target = $region33
  $region32: #{forward.5} parent=0 // pred_region
    _
  $region33: #{forward.5} parent=0 // pred_fallthru
    _
  // Predicated region
  $region34: #{forward.5} parent=0 // pred_check
    _
  $region35: #{forward.5} parent=0 // pred_check_branch
    %4972 = sbr.rel (0) target = $region37
  $region36: #{forward.5} parent=0 // pred_region
    _
  $region37: #{forward.5} parent=0 // pred_fallthru
    _

</llo_original>
